<compile_context>
chip_gen: v5e
topology: v5e:2x2
jax: 0.10.0
libtpu: 0.0.40
codegen_flags: <defaults>
</compile_context>

<pallas_src>
import functools

import jax
import jax.numpy as jnp
from jax import lax
from jax.experimental import pallas as pl
from jax.experimental.pallas import tpu as pltpu


_VMEM_LIMIT = 32 * 1024 * 1024


# ----------------------------------------------------------------------------
# Helpers (host-side, static shapes)
# ----------------------------------------------------------------------------
def _interp_matrix(in_size, out_size):
    """Row-stochastic (out_size, in_size) bilinear matrix, align_corners=True."""
    if in_size == 1:
        return jnp.ones((out_size, 1), jnp.float32)
    src = jnp.arange(out_size, dtype=jnp.float32) * (in_size - 1) / (out_size - 1)
    i0 = jnp.clip(jnp.floor(src).astype(jnp.int32), 0, in_size - 2)
    frac = src - i0.astype(jnp.float32)
    rows = jnp.arange(out_size)
    m = jnp.zeros((out_size, in_size), jnp.float32)
    m = m.at[rows, i0].add(1.0 - frac)
    m = m.at[rows, i0 + 1].add(frac)
    return m


def _pick_cout_tile(c):
    """Divisor of c for the output-channel block (multiple of 8 or full)."""
    if c <= 128:
        return c
    ok = [d for d in range(8, 129, 8) if c % d == 0]
    return max(ok) if ok else c


def _pick_row_tile(ho, wo, max_lanes=512):
    """Divisor of ho so (tho, wo) output tiles satisfy the (8,128) layout rule."""
    divs = [d for d in range(1, ho + 1) if ho % d == 0]
    ok = [d for d in divs
          if (d % 8 == 0 or d == ho) and ((d * wo) % 128 == 0 or d == ho)]
    small = [d for d in ok if d * wo <= max_lanes]
    if small:
        return max(small)
    return min(ok) if ok else ho


# ----------------------------------------------------------------------------
# Kernels
# ----------------------------------------------------------------------------
def _k_deep(x_ref, w_ref, b_ref, u_ref, o_ref, y_ref):
    """1x1 conv (BN-folded weights) + bias + ReLU, fused 4x bilinear upsample.

    x_ref: (1, Cin, Hi*Wi)   w_ref: (co_t, Cin)   b_ref: (co_t, 1)
    u_ref: (Hi*Wi, tho*Wo)   o_ref: (1, co_t, tho, Wo)   y_ref: (co_t, Hi*Wi)
    """
    @pl.when(pl.program_id(2) == 0)
    def _():
        y = jnp.dot(w_ref[...], x_ref[0], preferred_element_type=jnp.float32)
        y_ref[...] = jnp.maximum(y + b_ref[...], 0.0)

    t = jnp.dot(y_ref[...], u_ref[...], preferred_element_type=jnp.float32)
    co_t, tho, wo = o_ref.shape[1], o_ref.shape[2], o_ref.shape[3]
    o_ref[0] = t.reshape(co_t, tho, wo)


def _k_mid(x_ref, w_ref, b_ref, u_ref, alias_ref, o_ref, y_ref, *, tap_offs, p_len):
    """3x3 conv (flat-padded taps) + bias + ReLU, fused 2x bilinear upsample.

    x_ref: (1, Cin, Hp*Wp)  w_ref: (9, co_t, Cin)  b_ref: (co_t, 1)
    u_ref: (P, tho*Wo)      o_ref: (1, co_t, tho, Wo)  y_ref: (co_t, P)
    """
    del alias_ref  # aliased running output buffer; written via o_ref only

    @pl.when(pl.program_id(2) == 0)
    def _():
        acc = jnp.zeros(y_ref.shape, jnp.float32)
        for t, off in enumerate(tap_offs):
            acc = acc + jnp.dot(w_ref[t], x_ref[0, :, off:off + p_len],
                                preferred_element_type=jnp.float32)
        y_ref[...] = jnp.maximum(acc + b_ref[...], 0.0)

    t2 = jnp.dot(y_ref[...], u_ref[...], preferred_element_type=jnp.float32)
    co_t, tho, wo = o_ref.shape[1], o_ref.shape[2], o_ref.shape[3]
    o_ref[0] = t2.reshape(co_t, tho, wo)


def _k_shallow(x_ref, w_ref, b_ref, alias_ref, o_ref, *, tap_offs, p_len, hs, wp, ws):
    """3x3 conv (flat-padded taps) + bias + ReLU, no upsample.

    x_ref: (1, Cin, Hp*Wp)  w_ref: (9, co_t, Cin)  b_ref: (co_t, 1)
    o_ref: (1, co_t, Hs, Ws)
    """
    del alias_ref
    co_t = o_ref.shape[1]
    acc = jnp.zeros((co_t, p_len), jnp.float32)
    for t, off in enumerate(tap_offs):
        acc = acc + jnp.dot(w_ref[t], x_ref[0, :, off:off + p_len],
                            preferred_element_type=jnp.float32)
    y = jnp.maximum(acc + b_ref[...], 0.0)          # (co_t, Hs*Wp)
    o_ref[0] = y.reshape(co_t, hs, wp)[:, :, :ws]   # drop the 2 pad columns


# ----------------------------------------------------------------------------
# Branch wrappers (each writes its channel slice of the shared NCHW output)
# ----------------------------------------------------------------------------
def _branch_deep(deep, w, b, ho, wo, ctot):
    n, cin, hi, wi = deep.shape
    cout = w.shape[0]
    x = deep.reshape(n, cin, hi * wi)                                   # free view
    u = jnp.kron(_interp_matrix(hi, ho), _interp_matrix(wi, wo)).T      # (Hi*Wi, Ho*Wo)
    co_t = _pick_cout_tile(cout)
    tho = _pick_row_tile(ho, wo)
    grid = (n, cout // co_t, ho // tho)
    return pl.pallas_call(
        _k_deep,
        out_shape=jax.ShapeDtypeStruct((n, ctot, ho, wo), jnp.float32),
        grid=grid,
        in_specs=[
            pl.BlockSpec((1, cin, hi * wi), lambda b_, c, s: (b_, 0, 0)),
            pl.BlockSpec((co_t, cin), lambda b_, c, s: (c, 0)),
            pl.BlockSpec((co_t, 1), lambda b_, c, s: (c, 0)),
            pl.BlockSpec((hi * wi, tho * wo), lambda b_, c, s: (0, s)),
        ],
        out_specs=pl.BlockSpec((1, co_t, tho, wo), lambda b_, c, s: (b_, c, s, 0)),
        scratch_shapes=[pltpu.VMEM((co_t, hi * wi), jnp.float32)],
        compiler_params=pltpu.CompilerParams(
            dimension_semantics=("parallel", "parallel", "arbitrary"),
            vmem_limit_bytes=_VMEM_LIMIT),
    )(x, w, b.reshape(cout, 1), u)


def _branch_mid(mid, w9, b, ho, wo, ctot, c_off, out_buf):
    n, cin, hm, wm = mid.shape
    cout = w9.shape[1]
    wp = wm + 2
    xp = jnp.pad(mid, ((0, 0), (0, 0), (1, 2), (1, 1)))
    xp = xp.reshape(n, cin, (hm + 3) * wp)                              # flat padded
    p_len = hm * wp
    tap_offs = tuple(kh * wp + kw for kh in range(3) for kw in range(3))

    # Bilinear (Ho*Wo, Hm*Wm) kron matrix, embedded into padded-flat row order
    # (rows for pad columns are zero, so conv garbage there never contributes).
    k2 = jnp.kron(_interp_matrix(hm, ho), _interp_matrix(wm, wo))       # (Ho*Wo, Hm*Wm)
    u = jnp.zeros((hm, wp, ho * wo), jnp.float32)
    u = u.at[:, :wm, :].set(k2.T.reshape(hm, wm, ho * wo))
    u = u.reshape(p_len, ho * wo)

    co_t = _pick_cout_tile(cout)
    tho = _pick_row_tile(ho, wo)
    assert c_off % co_t == 0
    c_blk0 = c_off // co_t
    grid = (n, cout // co_t, ho // tho)
    kern = functools.partial(_k_mid, tap_offs=tap_offs, p_len=p_len)
    return pl.pallas_call(
        kern,
        out_shape=jax.ShapeDtypeStruct((n, ctot, ho, wo), jnp.float32),
        grid=grid,
        in_specs=[
            pl.BlockSpec((1, cin, (hm + 3) * wp), lambda b_, c, s: (b_, 0, 0)),
            pl.BlockSpec((9, co_t, cin), lambda b_, c, s: (0, c, 0)),
            pl.BlockSpec((co_t, 1), lambda b_, c, s: (c, 0)),
            pl.BlockSpec((p_len, tho * wo), lambda b_, c, s: (0, s)),
            pl.BlockSpec(memory_space=pl.ANY),      # running output (aliased)
        ],
        out_specs=pl.BlockSpec((1, co_t, tho, wo),
                               lambda b_, c, s: (b_, c + c_blk0, s, 0)),
        scratch_shapes=[pltpu.VMEM((co_t, p_len), jnp.float32)],
        input_output_aliases={4: 0},
        compiler_params=pltpu.CompilerParams(
            dimension_semantics=("parallel", "parallel", "arbitrary"),
            vmem_limit_bytes=_VMEM_LIMIT),
    )(xp, w9, b.reshape(cout, 1), u, out_buf)


def _branch_shallow(shallow, w9, b, ctot, c_off, out_buf):
    n, cin, hs, ws = shallow.shape
    cout = w9.shape[1]
    wp = ws + 2
    xp = jnp.pad(shallow, ((0, 0), (0, 0), (1, 2), (1, 1)))
    xp = xp.reshape(n, cin, (hs + 3) * wp)
    p_len = hs * wp
    tap_offs = tuple(kh * wp + kw for kh in range(3) for kw in range(3))

    co_t = _pick_cout_tile(cout)
    assert c_off % co_t == 0
    c_blk0 = c_off // co_t
    grid = (n, cout // co_t)
    kern = functools.partial(_k_shallow, tap_offs=tap_offs, p_len=p_len,
                             hs=hs, wp=wp, ws=ws)
    return pl.pallas_call(
        kern,
        out_shape=jax.ShapeDtypeStruct((n, ctot, hs, ws), jnp.float32),
        grid=grid,
        in_specs=[
            pl.BlockSpec((1, cin, (hs + 3) * wp), lambda b_, c: (b_, 0, 0)),
            pl.BlockSpec((9, co_t, cin), lambda b_, c: (0, c, 0)),
            pl.BlockSpec((co_t, 1), lambda b_, c: (c, 0)),
            pl.BlockSpec(memory_space=pl.ANY),      # running output (aliased)
        ],
        out_specs=pl.BlockSpec((1, co_t, hs, ws), lambda b_, c: (b_, c + c_blk0, 0, 0)),
        input_output_aliases={3: 0},
        compiler_params=pltpu.CompilerParams(
            dimension_semantics=("parallel", "parallel"),
            vmem_limit_bytes=_VMEM_LIMIT),
    )(xp, w9, b.reshape(cout, 1), out_buf)


# ----------------------------------------------------------------------------
# FFMv3 parameters + forward (NCHW in, NCHW out — matches torch exactly)
# ----------------------------------------------------------------------------
def init_ffm_params(key, in_channels, out_channels):
    def bn_fold(k, c):
        k1, k2, k3, k4 = jax.random.split(k, 4)
        gamma = 1.0 + 0.1 * jax.random.normal(k1, (c,), jnp.float32)
        beta = 0.1 * jax.random.normal(k2, (c,), jnp.float32)
        mean = 0.1 * jax.random.normal(k3, (c,), jnp.float32)
        var = jnp.abs(jax.random.normal(k4, (c,), jnp.float32)) + 0.5
        scale = gamma * lax.rsqrt(var + 1e-5)
        bias = beta - mean * scale
        return scale, bias

    keys = jax.random.split(key, 6)
    p = {}
    # torch layouts: 1x1 conv (Cout, Cin); 3x3 conv (Cout, Cin, 3, 3)
    p["w1"] = 0.05 * jax.random.normal(
        keys[0], (out_channels[0], in_channels[0]), jnp.float32)
    p["s1"], p["b1"] = bn_fold(keys[1], out_channels[0])
    p["w2"] = 0.05 * jax.random.normal(
        keys[2], (out_channels[1], in_channels[1], 3, 3), jnp.float32)
    p["s2"], p["b2"] = bn_fold(keys[3], out_channels[1])
    p["w3"] = 0.05 * jax.random.normal(
        keys[4], (out_channels[2], in_channels[2], 3, 3), jnp.float32)
    p["s3"], p["b3"] = bn_fold(keys[5], out_channels[2])
    return p


def ffm_v3_forward(params, deep, mid, shallow):
    """deep/mid/shallow are NCHW; returns NCHW channel-concat of the 3 branches."""
    ho, wo = shallow.shape[2], shallow.shape[3]
    c1, c2, c3 = params["w1"].shape[0], params["w2"].shape[0], params["w3"].shape[0]
    ctot = c1 + c2 + c3

    # Fold BN scale into the conv weights; rearrange 3x3 weights to (9, Cout, Cin).
    w1 = params["w1"] * params["s1"][:, None]
    w2 = params["w2"] * params["s2"][:, None, None, None]
    w2 = jnp.transpose(w2, (2, 3, 0, 1)).reshape(9, c2, -1)
    w3 = params["w3"] * params["s3"][:, None, None, None]
    w3 = jnp.transpose(w3, (2, 3, 0, 1)).reshape(9, c3, -1)

    out = _branch_deep(deep, w1, params["b1"], ho, wo, ctot)
    out = _branch_mid(mid, w2, params["b2"], ho, wo, ctot, c1, out)
    out = _branch_shallow(shallow, w3, params["b3"], ctot, c1 + c2, out)
    return out


# ----------------------------------------------------------------------------
# Pure-JAX reference (for validation)
# ----------------------------------------------------------------------------
def ffm_v3_reference(params, deep, mid, shallow):
    def conv_bn_relu(x, w, s, b, pad):
        w4 = w if w.ndim == 4 else w[:, :, None, None]
        y = lax.conv_general_dilated(
            x, w4, window_strides=(1, 1), padding=pad,
            dimension_numbers=("NCHW", "OIHW", "NCHW"))
        return jnp.maximum(y * s[None, :, None, None] + b[None, :, None, None], 0.0)

    def upsample(x, f):
        _, _, hi, wi = x.shape
        ah = _interp_matrix(hi, hi * f)
        aw = _interp_matrix(wi, wi * f)
        return jnp.einsum("oh,pw,nchw->ncop", ah, aw, x)

    y1 = upsample(conv_bn_relu(deep, params["w1"], params["s1"], params["b1"], "VALID"), 4)
    y2 = upsample(conv_bn_relu(mid, params["w2"], params["s2"], params["b2"], "SAME"), 2)
    y3 = conv_bn_relu(shallow, params["w3"], params["s3"], params["b3"], "SAME")
    return jnp.concatenate([y1, y2, y3], axis=1)


if __name__ == "__main__":
    # Small shapes consistent with the module: three pyramid levels, spatial
    # ratios 1x / 2x / 4x, channel ratios 4:2:1, each block halving channels.
    in_channels = [64, 32, 16]
    out_channels = [32, 16, 8]
    N, H, W = 2, 8, 8  # deep spatial; mid = 2x, shallow = 4x -> output 32x32

    key = jax.random.PRNGKey(0)
    kd, km, ks, kp = jax.random.split(key, 4)
    deep = jax.random.normal(kd, (N, in_channels[0], H, W), jnp.float32)
    mid = jax.random.normal(km, (N, in_channels[1], 2 * H, 2 * W), jnp.float32)
    shallow = jax.random.normal(ks, (N, in_channels[2], 4 * H, 4 * W), jnp.float32)
    params = init_ffm_params(kp, in_channels, out_channels)

    out = jax.jit(ffm_v3_forward)(params, deep, mid, shallow)
    out = jax.block_until_ready(out)

    ref = ffm_v3_reference(params, deep, mid, shallow)
    assert out.shape == (N, sum(out_channels), 4 * H, 4 * W), out.shape
    err = float(jnp.max(jnp.abs(out - ref)))
    assert jnp.allclose(out, ref, atol=5e-3, rtol=1e-3), err
    print("KERNEL_OK")
</pallas_src>

<mosaic_0001>
module attributes {stable_mosaic.version = 11 : i64} {
  func.func @_k_deep(%arg0: i32, %arg1: i32, %arg2: i32, %arg3: memref<1x64x64xf32, #tpu.memory_space<vmem>>, %arg4: memref<32x64xf32, #tpu.memory_space<vmem>>, %arg5: memref<32x1xf32, #tpu.memory_space<vmem>>, %arg6: memref<64x512xf32, #tpu.memory_space<vmem>>, %arg7: memref<1x32x16x32xf32, #tpu.memory_space<vmem>>, %arg8: memref<32x64xf32, #tpu.memory_space<vmem>>) attributes {dimension_semantics = [#tpu.dimension_semantics<parallel>, #tpu.dimension_semantics<parallel>, #tpu.dimension_semantics<arbitrary>], iteration_bounds = array<i64: 2, 1, 2>, scalar_prefetch = 0 : i64, scratch_operands = 1 : i64, tpu.core_type = #tpu.core_type<tc>, window_params = [{transform_indices = @transform_0, window_bounds = array<i64: 1, 64, 64>}, {transform_indices = @transform_1, window_bounds = array<i64: 32, 64>}, {transform_indices = @transform_2, window_bounds = array<i64: 32, 1>}, {transform_indices = @transform_3, window_bounds = array<i64: 64, 512>}, {transform_indices = @transform_4, window_bounds = array<i64: 1, 32, 16, 32>}]} {
    %c0_i32 = arith.constant 0 : i32
    %0 = arith.cmpi eq, %arg2, %c0_i32 : i32
    %1 = arith.extui %0 : i1 to i32
    %c0_i32_0 = arith.constant 0 : i32
    %2 = arith.cmpi ne, %1, %c0_i32_0 : i32
    scf.if %2 {
      %c0_8 = arith.constant 0 : index
      %c0_9 = arith.constant 0 : index
      %10 = vector.load %arg4[%c0_8, %c0_9] : memref<32x64xf32, #tpu.memory_space<vmem>>, vector<32x64xf32>
      %c0_10 = arith.constant 0 : index
      %c0_11 = arith.constant 0 : index
      %c0_12 = arith.constant 0 : index
      %11 = vector.load %arg3[%c0_10, %c0_11, %c0_12] : memref<1x64x64xf32, #tpu.memory_space<vmem>>, vector<1x64x64xf32>
      %12 = vector.shape_cast %11 : vector<1x64x64xf32> to vector<64x64xf32>
      %cst_13 = arith.constant dense<0.000000e+00> : vector<32x64xf32>
      %13 = tpu.matmul %10, %12, %cst_13 {dimension_numbers = #tpu.dot_dimension_numbers<[1], [0], [0], [1], [0, 0, 1, 1], [], []>} : vector<32x64xf32>, vector<64x64xf32>, vector<32x64xf32> -> vector<32x64xf32>
      %c0_14 = arith.constant 0 : index
      %c0_15 = arith.constant 0 : index
      %14 = vector.load %arg5[%c0_14, %c0_15] : memref<32x1xf32, #tpu.memory_space<vmem>>, vector<32x1xf32>
      %15 = vector.broadcast %14 : vector<32x1xf32> to vector<32x64xf32>
      %16 = arith.addf %13, %15 : vector<32x64xf32>
      %cst_16 = arith.constant 0.000000e+00 : f32
      %17 = vector.broadcast %cst_16 : f32 to vector<32x64xf32>
      %18 = arith.maximumf %16, %17 : vector<32x64xf32>
      %c0_17 = arith.constant 0 : index
      %c0_18 = arith.constant 0 : index
      %19 = vector.load %arg8[%c0_17, %c0_18] : memref<32x64xf32, #tpu.memory_space<vmem>>, vector<32x64xf32>
      tpu.vector_store %arg8[%c0_17, %c0_18], %18 {strides = array<i32>} : memref<32x64xf32, #tpu.memory_space<vmem>>, vector<32x64xf32>,
    } else {
    }
    %c0 = arith.constant 0 : index
    %c0_1 = arith.constant 0 : index
    %3 = vector.load %arg8[%c0, %c0_1] : memref<32x64xf32, #tpu.memory_space<vmem>>, vector<32x64xf32>
    %c0_2 = arith.constant 0 : index
    %c0_3 = arith.constant 0 : index
    %4 = vector.load %arg6[%c0_2, %c0_3] : memref<64x512xf32, #tpu.memory_space<vmem>>, vector<64x512xf32>
    %cst = arith.constant dense<0.000000e+00> : vector<32x512xf32>
    %5 = tpu.matmul %3, %4, %cst {dimension_numbers = #tpu.dot_dimension_numbers<[1], [0], [0], [1], [0, 0, 1, 1], [], []>} : vector<32x64xf32>, vector<64x512xf32>, vector<32x512xf32> -> vector<32x512xf32>
    %6 = vector.shape_cast %5 : vector<32x512xf32> to vector<32x16x32xf32>
    %c0_4 = arith.constant 0 : index
    %c0_5 = arith.constant 0 : index
    %c0_6 = arith.constant 0 : index
    %c0_7 = arith.constant 0 : index
    %7 = vector.load %arg7[%c0_4, %c0_5, %c0_6, %c0_7] : memref<1x32x16x32xf32, #tpu.memory_space<vmem>>, vector<1x32x16x32xf32>
    %8 = vector.shape_cast %7 : vector<1x32x16x32xf32> to vector<32x16x32xf32>
    %9 = vector.shape_cast %6 : vector<32x16x32xf32> to vector<1x32x16x32xf32>
    tpu.vector_store %arg7[%c0_4, %c0_5, %c0_6, %c0_7], %9 {strides = array<i32>} : memref<1x32x16x32xf32, #tpu.memory_space<vmem>>, vector<1x32x16x32xf32>,
    return
  }
  func.func @transform_0(%arg0: i32, %arg1: i32, %arg2: i32) -> (i32, i32, i32) {
    %c0_i32 = arith.constant 0 : i32
    %c0_i32_0 = arith.constant 0 : i32
    %c0_i32_1 = arith.constant 0 : i32
    return %arg0, %c0_i32, %c0_i32_0 : i32, i32, i32
  }
  func.func @transform_1(%arg0: i32, %arg1: i32, %arg2: i32) -> (i32, i32) {
    %c0_i32 = arith.constant 0 : i32
    %c0_i32_0 = arith.constant 0 : i32
    return %arg1, %c0_i32 : i32, i32
  }
  func.func @transform_2(%arg0: i32, %arg1: i32, %arg2: i32) -> (i32, i32) {
    %c0_i32 = arith.constant 0 : i32
    %c0_i32_0 = arith.constant 0 : i32
    return %arg1, %c0_i32 : i32, i32
  }
  func.func @transform_3(%arg0: i32, %arg1: i32, %arg2: i32) -> (i32, i32) {
    %c0_i32 = arith.constant 0 : i32
    %c0_i32_0 = arith.constant 0 : i32
    return %c0_i32, %arg2 : i32, i32
  }
  func.func @transform_4(%arg0: i32, %arg1: i32, %arg2: i32) -> (i32, i32, i32, i32) {
    %c0_i32 = arith.constant 0 : i32
    %c0_i32_0 = arith.constant 0 : i32
    return %arg0, %arg1, %arg2, %c0_i32 : i32, i32, i32, i32
  }
}

module attributes {stable_mosaic.version = 11 : i64} {
  func.func @_k_mid(%arg0: i32, %arg1: i32, %arg2: i32, %arg3: memref<1x32x342xf32, #tpu.memory_space<vmem>>, %arg4: memref<9x16x32xf32, #tpu.memory_space<vmem>>, %arg5: memref<16x1xf32, #tpu.memory_space<vmem>>, %arg6: memref<288x512xf32, #tpu.memory_space<vmem>>, %arg7: memref<2x56x32x32xf32, #tpu.memory_space<any>>, %arg8: memref<1x16x16x32xf32, #tpu.memory_space<vmem>>, %arg9: memref<16x288xf32, #tpu.memory_space<vmem>>) attributes {dimension_semantics = [#tpu.dimension_semantics<parallel>, #tpu.dimension_semantics<parallel>, #tpu.dimension_semantics<arbitrary>], iteration_bounds = array<i64: 2, 1, 2>, scalar_prefetch = 0 : i64, scratch_operands = 1 : i64, tpu.core_type = #tpu.core_type<tc>, window_params = [{transform_indices = @transform_0, window_bounds = array<i64: 1, 32, 342>}, {transform_indices = @transform_1, window_bounds = array<i64: 9, 16, 32>}, {transform_indices = @transform_2, window_bounds = array<i64: 16, 1>}, {transform_indices = @transform_3, window_bounds = array<i64: 288, 512>}, {}, {transform_indices = @transform_5, window_bounds = array<i64: 1, 16, 16, 32>}]} {
    %c0_i32 = arith.constant 0 : i32
    %0 = arith.cmpi eq, %arg2, %c0_i32 : i32
    %1 = arith.extui %0 : i1 to i32
    %c0_i32_0 = arith.constant 0 : i32
    %2 = arith.cmpi ne, %1, %c0_i32_0 : i32
    scf.if %2 {
      %cst_8 = arith.constant 0.000000e+00 : f32
      %10 = vector.broadcast %cst_8 : f32 to vector<16x288xf32>
      %c0_9 = arith.constant 0 : index
      %c0_10 = arith.constant 0 : index
      %c0_11 = arith.constant 0 : index
      %11 = vector.load %arg4[%c0_9, %c0_10, %c0_11] : memref<9x16x32xf32, #tpu.memory_space<vmem>>, vector<1x16x32xf32>
      %12 = vector.shape_cast %11 : vector<1x16x32xf32> to vector<16x32xf32>
      %c0_12 = arith.constant 0 : index
      %c0_13 = arith.constant 0 : index
      %c0_14 = arith.constant 0 : index
      %13 = vector.load %arg3[%c0_12, %c0_13, %c0_14] : memref<1x32x342xf32, #tpu.memory_space<vmem>>, vector<1x32x288xf32>
      %14 = vector.shape_cast %13 : vector<1x32x288xf32> to vector<32x288xf32>
      %cst_15 = arith.constant dense<0.000000e+00> : vector<16x288xf32>
      %15 = tpu.matmul %12, %14, %cst_15 {dimension_numbers = #tpu.dot_dimension_numbers<[1], [0], [0], [1], [0, 0, 1, 1], [], []>} : vector<16x32xf32>, vector<32x288xf32>, vector<16x288xf32> -> vector<16x288xf32>
      %16 = arith.addf %10, %15 : vector<16x288xf32>
      %c1 = arith.constant 1 : index
      %c0_16 = arith.constant 0 : index
      %c0_17 = arith.constant 0 : index
      %17 = vector.load %arg4[%c1, %c0_16, %c0_17] : memref<9x16x32xf32, #tpu.memory_space<vmem>>, vector<1x16x32xf32>
      %18 = vector.shape_cast %17 : vector<1x16x32xf32> to vector<16x32xf32>
      %c0_18 = arith.constant 0 : index
      %c0_19 = arith.constant 0 : index
      %c1_20 = arith.constant 1 : index
      %19 = vector.load %arg3[%c0_18, %c0_19, %c1_20] : memref<1x32x342xf32, #tpu.memory_space<vmem>>, vector<1x32x288xf32>
      %20 = vector.shape_cast %19 : vector<1x32x288xf32> to vector<32x288xf32>
      %cst_21 = arith.constant dense<0.000000e+00> : vector<16x288xf32>
      %21 = tpu.matmul %18, %20, %cst_21 {dimension_numbers = #tpu.dot_dimension_numbers<[1], [0], [0], [1], [0, 0, 1, 1], [], []>} : vector<16x32xf32>, vector<32x288xf32>, vector<16x288xf32> -> vector<16x288xf32>
      %22 = arith.addf %16, %21 : vector<16x288xf32>
      %c2 = arith.constant 2 : index
      %c0_22 = arith.constant 0 : index
      %c0_23 = arith.constant 0 : index
      %23 = vector.load %arg4[%c2, %c0_22, %c0_23] : memref<9x16x32xf32, #tpu.memory_space<vmem>>, vector<1x16x32xf32>
      %24 = vector.shape_cast %23 : vector<1x16x32xf32> to vector<16x32xf32>
      %c0_24 = arith.constant 0 : index
      %c0_25 = arith.constant 0 : index
      %c2_26 = arith.constant 2 : index
      %25 = vector.load %arg3[%c0_24, %c0_25, %c2_26] : memref<1x32x342xf32, #tpu.memory_space<vmem>>, vector<1x32x288xf32>
      %26 = vector.shape_cast %25 : vector<1x32x288xf32> to vector<32x288xf32>
      %cst_27 = arith.constant dense<0.000000e+00> : vector<16x288xf32>
      %27 = tpu.matmul %24, %26, %cst_27 {dimension_numbers = #tpu.dot_dimension_numbers<[1], [0], [0], [1], [0, 0, 1, 1], [], []>} : vector<16x32xf32>, vector<32x288xf32>, vector<16x288xf32> -> vector<16x288xf32>
      %28 = arith.addf %22, %27 : vector<16x288xf32>
      %c3 = arith.constant 3 : index
      %c0_28 = arith.constant 0 : index
      %c0_29 = arith.constant 0 : index
      %29 = vector.load %arg4[%c3, %c0_28, %c0_29] : memref<9x16x32xf32, #tpu.memory_space<vmem>>, vector<1x16x32xf32>
      %30 = vector.shape_cast %29 : vector<1x16x32xf32> to vector<16x32xf32>
      %c0_30 = arith.constant 0 : index
      %c0_31 = arith.constant 0 : index
      %c18 = arith.constant 18 : index
      %31 = vector.load %arg3[%c0_30, %c0_31, %c18] : memref<1x32x342xf32, #tpu.memory_space<vmem>>, vector<1x32x288xf32>
      %32 = vector.shape_cast %31 : vector<1x32x288xf32> to vector<32x288xf32>
      %cst_32 = arith.constant dense<0.000000e+00> : vector<16x288xf32>
      %33 = tpu.matmul %30, %32, %cst_32 {dimension_numbers = #tpu.dot_dimension_numbers<[1], [0], [0], [1], [0, 0, 1, 1], [], []>} : vector<16x32xf32>, vector<32x288xf32>, vector<16x288xf32> -> vector<16x288xf32>
      %34 = arith.addf %28, %33 : vector<16x288xf32>
      %c4 = arith.constant 4 : index
      %c0_33 = arith.constant 0 : index
      %c0_34 = arith.constant 0 : index
      %35 = vector.load %arg4[%c4, %c0_33, %c0_34] : memref<9x16x32xf32, #tpu.memory_space<vmem>>, vector<1x16x32xf32>
      %36 = vector.shape_cast %35 : vector<1x16x32xf32> to vector<16x32xf32>
      %c0_35 = arith.constant 0 : index
      %c0_36 = arith.constant 0 : index
      %c19 = arith.constant 19 : index
      %37 = vector.load %arg3[%c0_35, %c0_36, %c19] : memref<1x32x342xf32, #tpu.memory_space<vmem>>, vector<1x32x288xf32>
      %38 = vector.shape_cast %37 : vector<1x32x288xf32> to vector<32x288xf32>
      %cst_37 = arith.constant dense<0.000000e+00> : vector<16x288xf32>
      %39 = tpu.matmul %36, %38, %cst_37 {dimension_numbers = #tpu.dot_dimension_numbers<[1], [0], [0], [1], [0, 0, 1, 1], [], []>} : vector<16x32xf32>, vector<32x288xf32>, vector<16x288xf32> -> vector<16x288xf32>
      %40 = arith.addf %34, %39 : vector<16x288xf32>
      %c5 = arith.constant 5 : index
      %c0_38 = arith.constant 0 : index
      %c0_39 = arith.constant 0 : index
      %41 = vector.load %arg4[%c5, %c0_38, %c0_39] : memref<9x16x32xf32, #tpu.memory_space<vmem>>, vector<1x16x32xf32>
      %42 = vector.shape_cast %41 : vector<1x16x32xf32> to vector<16x32xf32>
      %c0_40 = arith.constant 0 : index
      %c0_41 = arith.constant 0 : index
      %c20 = arith.constant 20 : index
      %43 = vector.load %arg3[%c0_40, %c0_41, %c20] : memref<1x32x342xf32, #tpu.memory_space<vmem>>, vector<1x32x288xf32>
      %44 = vector.shape_cast %43 : vector<1x32x288xf32> to vector<32x288xf32>
      %cst_42 = arith.constant dense<0.000000e+00> : vector<16x288xf32>
      %45 = tpu.matmul %42, %44, %cst_42 {dimension_numbers = #tpu.dot_dimension_numbers<[1], [0], [0], [1], [0, 0, 1, 1], [], []>} : vector<16x32xf32>, vector<32x288xf32>, vector<16x288xf32> -> vector<16x288xf32>
      %46 = arith.addf %40, %45 : vector<16x288xf32>
      %c6 = arith.constant 6 : index
      %c0_43 = arith.constant 0 : index
      %c0_44 = arith.constant 0 : index
      %47 = vector.load %arg4[%c6, %c0_43, %c0_44] : memref<9x16x32xf32, #tpu.memory_space<vmem>>, vector<1x16x32xf32>
      %48 = vector.shape_cast %47 : vector<1x16x32xf32> to vector<16x32xf32>
      %c0_45 = arith.constant 0 : index
      %c0_46 = arith.constant 0 : index
      %c36 = arith.constant 36 : index
      %49 = vector.load %arg3[%c0_45, %c0_46, %c36] : memref<1x32x342xf32, #tpu.memory_space<vmem>>, vector<1x32x288xf32>
      %50 = vector.shape_cast %49 : vector<1x32x288xf32> to vector<32x288xf32>
      %cst_47 = arith.constant dense<0.000000e+00> : vector<16x288xf32>
      %51 = tpu.matmul %48, %50, %cst_47 {dimension_numbers = #tpu.dot_dimension_numbers<[1], [0], [0], [1], [0, 0, 1, 1], [], []>} : vector<16x32xf32>, vector<32x288xf32>, vector<16x288xf32> -> vector<16x288xf32>
      %52 = arith.addf %46, %51 : vector<16x288xf32>
      %c7 = arith.constant 7 : index
      %c0_48 = arith.constant 0 : index
      %c0_49 = arith.constant 0 : index
      %53 = vector.load %arg4[%c7, %c0_48, %c0_49] : memref<9x16x32xf32, #tpu.memory_space<vmem>>, vector<1x16x32xf32>
      %54 = vector.shape_cast %53 : vector<1x16x32xf32> to vector<16x32xf32>
      %c0_50 = arith.constant 0 : index
      %c0_51 = arith.constant 0 : index
      %c37 = arith.constant 37 : index
      %55 = vector.load %arg3[%c0_50, %c0_51, %c37] : memref<1x32x342xf32, #tpu.memory_space<vmem>>, vector<1x32x288xf32>
      %56 = vector.shape_cast %55 : vector<1x32x288xf32> to vector<32x288xf32>
      %cst_52 = arith.constant dense<0.000000e+00> : vector<16x288xf32>
      %57 = tpu.matmul %54, %56, %cst_52 {dimension_numbers = #tpu.dot_dimension_numbers<[1], [0], [0], [1], [0, 0, 1, 1], [], []>} : vector<16x32xf32>, vector<32x288xf32>, vector<16x288xf32> -> vector<16x288xf32>
      %58 = arith.addf %52, %57 : vector<16x288xf32>
      %c8 = arith.constant 8 : index
      %c0_53 = arith.constant 0 : index
      %c0_54 = arith.constant 0 : index
      %59 = vector.load %arg4[%c8, %c0_53, %c0_54] : memref<9x16x32xf32, #tpu.memory_space<vmem>>, vector<1x16x32xf32>
      %60 = vector.shape_cast %59 : vector<1x16x32xf32> to vector<16x32xf32>
      %c0_55 = arith.constant 0 : index
      %c0_56 = arith.constant 0 : index
      %c38 = arith.constant 38 : index
      %61 = vector.load %arg3[%c0_55, %c0_56, %c38] : memref<1x32x342xf32, #tpu.memory_space<vmem>>, vector<1x32x288xf32>
      %62 = vector.shape_cast %61 : vector<1x32x288xf32> to vector<32x288xf32>
      %cst_57 = arith.constant dense<0.000000e+00> : vector<16x288xf32>
      %63 = tpu.matmul %60, %62, %cst_57 {dimension_numbers = #tpu.dot_dimension_numbers<[1], [0], [0], [1], [0, 0, 1, 1], [], []>} : vector<16x32xf32>, vector<32x288xf32>, vector<16x288xf32> -> vector<16x288xf32>
      %64 = arith.addf %58, %63 : vector<16x288xf32>
      %c0_58 = arith.constant 0 : index
      %c0_59 = arith.constant 0 : index
      %65 = vector.load %arg5[%c0_58, %c0_59] : memref<16x1xf32, #tpu.memory_space<vmem>>, vector<16x1xf32>
      %66 = vector.broadcast %65 : vector<16x1xf32> to vector<16x288xf32>
      %67 = arith.addf %64, %66 : vector<16x288xf32>
      %cst_60 = arith.constant 0.000000e+00 : f32
      %68 = vector.broadcast %cst_60 : f32 to vector<16x288xf32>
      %69 = arith.maximumf %67, %68 : vector<16x288xf32>
      %c0_61 = arith.constant 0 : index
      %c0_62 = arith.constant 0 : index
      %70 = vector.load %arg9[%c0_61, %c0_62] : memref<16x288xf32, #tpu.memory_space<vmem>>, vector<16x288xf32>
      tpu.vector_store %arg9[%c0_61, %c0_62], %69 {strides = array<i32>} : memref<16x288xf32, #tpu.memory_space<vmem>>, vector<16x288xf32>,
    } else {
    }
    %c0 = arith.constant 0 : index
    %c0_1 = arith.constant 0 : index
    %3 = vector.load %arg9[%c0, %c0_1] : memref<16x288xf32, #tpu.memory_space<vmem>>, vector<16x288xf32>
    %c0_2 = arith.constant 0 : index
    %c0_3 = arith.constant 0 : index
    %4 = vector.load %arg6[%c0_2, %c0_3] : memref<288x512xf32, #tpu.memory_space<vmem>>, vector<288x512xf32>
    %cst = arith.constant dense<0.000000e+00> : vector<16x512xf32>
    %5 = tpu.matmul %3, %4, %cst {dimension_numbers = #tpu.dot_dimension_numbers<[1], [0], [0], [1], [0, 0, 1, 1], [], []>} : vector<16x288xf32>, vector<288x512xf32>, vector<16x512xf32> -> vector<16x512xf32>
    %6 = vector.shape_cast %5 : vector<16x512xf32> to vector<16x16x32xf32>
    %c0_4 = arith.constant 0 : index
    %c0_5 = arith.constant 0 : index
    %c0_6 = arith.constant 0 : index
    %c0_7 = arith.constant 0 : index
    %7 = vector.load %arg8[%c0_4, %c0_5, %c0_6, %c0_7] : memref<1x16x16x32xf32, #tpu.memory_space<vmem>>, vector<1x16x16x32xf32>
    %8 = vector.shape_cast %7 : vector<1x16x16x32xf32> to vector<16x16x32xf32>
    %9 = vector.shape_cast %6 : vector<16x16x32xf32> to vector<1x16x16x32xf32>
    tpu.vector_store %arg8[%c0_4, %c0_5, %c0_6, %c0_7], %9 {strides = array<i32>} : memref<1x16x16x32xf32, #tpu.memory_space<vmem>>, vector<1x16x16x32xf32>,
    return
  }
  func.func @transform_0(%arg0: i32, %arg1: i32, %arg2: i32) -> (i32, i32, i32) {
    %c0_i32 = arith.constant 0 : i32
    %c0_i32_0 = arith.constant 0 : i32
    %c0_i32_1 = arith.constant 0 : i32
    return %arg0, %c0_i32, %c0_i32_0 : i32, i32, i32
  }
  func.func @transform_1(%arg0: i32, %arg1: i32, %arg2: i32) -> (i32, i32, i32) {
    %c0_i32 = arith.constant 0 : i32
    %c0_i32_0 = arith.constant 0 : i32
    %c0_i32_1 = arith.constant 0 : i32
    return %c0_i32, %arg1, %c0_i32_0 : i32, i32, i32
  }
  func.func @transform_2(%arg0: i32, %arg1: i32, %arg2: i32) -> (i32, i32) {
    %c0_i32 = arith.constant 0 : i32
    %c0_i32_0 = arith.constant 0 : i32
    return %arg1, %c0_i32 : i32, i32
  }
  func.func @transform_3(%arg0: i32, %arg1: i32, %arg2: i32) -> (i32, i32) {
    %c0_i32 = arith.constant 0 : i32
    %c0_i32_0 = arith.constant 0 : i32
    return %c0_i32, %arg2 : i32, i32
  }
  func.func @transform_5(%arg0: i32, %arg1: i32, %arg2: i32) -> (i32, i32, i32, i32) {
    %c2_i32 = arith.constant 2 : i32
    %0 = arith.addi %arg1, %c2_i32 : i32
    %c0_i32 = arith.constant 0 : i32
    %c0_i32_0 = arith.constant 0 : i32
    return %arg0, %0, %arg2, %c0_i32 : i32, i32, i32, i32
  }
}

module attributes {stable_mosaic.version = 11 : i64} {
  func.func @_k_shallow(%arg0: i32, %arg1: i32, %arg2: memref<1x16x1190xf32, #tpu.memory_space<vmem>>, %arg3: memref<9x8x16xf32, #tpu.memory_space<vmem>>, %arg4: memref<8x1xf32, #tpu.memory_space<vmem>>, %arg5: memref<2x56x32x32xf32, #tpu.memory_space<any>>, %arg6: memref<1x8x32x32xf32, #tpu.memory_space<vmem>>) attributes {dimension_semantics = [#tpu.dimension_semantics<parallel>, #tpu.dimension_semantics<parallel>], iteration_bounds = array<i64: 2, 1>, scalar_prefetch = 0 : i64, scratch_operands = 0 : i64, tpu.core_type = #tpu.core_type<tc>, window_params = [{transform_indices = @transform_0, window_bounds = array<i64: 1, 16, 1190>}, {transform_indices = @transform_1, window_bounds = array<i64: 9, 8, 16>}, {transform_indices = @transform_2, window_bounds = array<i64: 8, 1>}, {}, {transform_indices = @transform_4, window_bounds = array<i64: 1, 8, 32, 32>}]} {
    %cst = arith.constant 0.000000e+00 : f32
    %0 = vector.broadcast %cst : f32 to vector<8x1088xf32>
    %c0 = arith.constant 0 : index
    %c0_0 = arith.constant 0 : index
    %c0_1 = arith.constant 0 : index
    %1 = vector.load %arg3[%c0, %c0_0, %c0_1] : memref<9x8x16xf32, #tpu.memory_space<vmem>>, vector<1x8x16xf32>
    %2 = vector.shape_cast %1 : vector<1x8x16xf32> to vector<8x16xf32>
    %c0_2 = arith.constant 0 : index
    %c0_3 = arith.constant 0 : index
    %c0_4 = arith.constant 0 : index
    %3 = vector.load %arg2[%c0_2, %c0_3, %c0_4] : memref<1x16x1190xf32, #tpu.memory_space<vmem>>, vector<1x16x1088xf32>
    %4 = vector.shape_cast %3 : vector<1x16x1088xf32> to vector<16x1088xf32>
    %cst_5 = arith.constant dense<0.000000e+00> : vector<8x1088xf32>
    %5 = tpu.matmul %2, %4, %cst_5 {dimension_numbers = #tpu.dot_dimension_numbers<[1], [0], [0], [1], [0, 0, 1, 1], [], []>} : vector<8x16xf32>, vector<16x1088xf32>, vector<8x1088xf32> -> vector<8x1088xf32>
    %6 = arith.addf %0, %5 : vector<8x1088xf32>
    %c1 = arith.constant 1 : index
    %c0_6 = arith.constant 0 : index
    %c0_7 = arith.constant 0 : index
    %7 = vector.load %arg3[%c1, %c0_6, %c0_7] : memref<9x8x16xf32, #tpu.memory_space<vmem>>, vector<1x8x16xf32>
    %8 = vector.shape_cast %7 : vector<1x8x16xf32> to vector<8x16xf32>
    %c0_8 = arith.constant 0 : index
    %c0_9 = arith.constant 0 : index
    %c1_10 = arith.constant 1 : index
    %9 = vector.load %arg2[%c0_8, %c0_9, %c1_10] : memref<1x16x1190xf32, #tpu.memory_space<vmem>>, vector<1x16x1088xf32>
    %10 = vector.shape_cast %9 : vector<1x16x1088xf32> to vector<16x1088xf32>
    %cst_11 = arith.constant dense<0.000000e+00> : vector<8x1088xf32>
    %11 = tpu.matmul %8, %10, %cst_11 {dimension_numbers = #tpu.dot_dimension_numbers<[1], [0], [0], [1], [0, 0, 1, 1], [], []>} : vector<8x16xf32>, vector<16x1088xf32>, vector<8x1088xf32> -> vector<8x1088xf32>
    %12 = arith.addf %6, %11 : vector<8x1088xf32>
    %c2 = arith.constant 2 : index
    %c0_12 = arith.constant 0 : index
    %c0_13 = arith.constant 0 : index
    %13 = vector.load %arg3[%c2, %c0_12, %c0_13] : memref<9x8x16xf32, #tpu.memory_space<vmem>>, vector<1x8x16xf32>
    %14 = vector.shape_cast %13 : vector<1x8x16xf32> to vector<8x16xf32>
    %c0_14 = arith.constant 0 : index
    %c0_15 = arith.constant 0 : index
    %c2_16 = arith.constant 2 : index
    %15 = vector.load %arg2[%c0_14, %c0_15, %c2_16] : memref<1x16x1190xf32, #tpu.memory_space<vmem>>, vector<1x16x1088xf32>
    %16 = vector.shape_cast %15 : vector<1x16x1088xf32> to vector<16x1088xf32>
    %cst_17 = arith.constant dense<0.000000e+00> : vector<8x1088xf32>
    %17 = tpu.matmul %14, %16, %cst_17 {dimension_numbers = #tpu.dot_dimension_numbers<[1], [0], [0], [1], [0, 0, 1, 1], [], []>} : vector<8x16xf32>, vector<16x1088xf32>, vector<8x1088xf32> -> vector<8x1088xf32>
    %18 = arith.addf %12, %17 : vector<8x1088xf32>
    %c3 = arith.constant 3 : index
    %c0_18 = arith.constant 0 : index
    %c0_19 = arith.constant 0 : index
    %19 = vector.load %arg3[%c3, %c0_18, %c0_19] : memref<9x8x16xf32, #tpu.memory_space<vmem>>, vector<1x8x16xf32>
    %20 = vector.shape_cast %19 : vector<1x8x16xf32> to vector<8x16xf32>
    %c0_20 = arith.constant 0 : index
    %c0_21 = arith.constant 0 : index
    %c34 = arith.constant 34 : index
    %21 = vector.load %arg2[%c0_20, %c0_21, %c34] : memref<1x16x1190xf32, #tpu.memory_space<vmem>>, vector<1x16x1088xf32>
    %22 = vector.shape_cast %21 : vector<1x16x1088xf32> to vector<16x1088xf32>
    %cst_22 = arith.constant dense<0.000000e+00> : vector<8x1088xf32>
    %23 = tpu.matmul %20, %22, %cst_22 {dimension_numbers = #tpu.dot_dimension_numbers<[1], [0], [0], [1], [0, 0, 1, 1], [], []>} : vector<8x16xf32>, vector<16x1088xf32>, vector<8x1088xf32> -> vector<8x1088xf32>
    %24 = arith.addf %18, %23 : vector<8x1088xf32>
    %c4 = arith.constant 4 : index
    %c0_23 = arith.constant 0 : index
    %c0_24 = arith.constant 0 : index
    %25 = vector.load %arg3[%c4, %c0_23, %c0_24] : memref<9x8x16xf32, #tpu.memory_space<vmem>>, vector<1x8x16xf32>
    %26 = vector.shape_cast %25 : vector<1x8x16xf32> to vector<8x16xf32>
    %c0_25 = arith.constant 0 : index
    %c0_26 = arith.constant 0 : index
    %c35 = arith.constant 35 : index
    %27 = vector.load %arg2[%c0_25, %c0_26, %c35] : memref<1x16x1190xf32, #tpu.memory_space<vmem>>, vector<1x16x1088xf32>
    %28 = vector.shape_cast %27 : vector<1x16x1088xf32> to vector<16x1088xf32>
    %cst_27 = arith.constant dense<0.000000e+00> : vector<8x1088xf32>
    %29 = tpu.matmul %26, %28, %cst_27 {dimension_numbers = #tpu.dot_dimension_numbers<[1], [0], [0], [1], [0, 0, 1, 1], [], []>} : vector<8x16xf32>, vector<16x1088xf32>, vector<8x1088xf32> -> vector<8x1088xf32>
    %30 = arith.addf %24, %29 : vector<8x1088xf32>
    %c5 = arith.constant 5 : index
    %c0_28 = arith.constant 0 : index
    %c0_29 = arith.constant 0 : index
    %31 = vector.load %arg3[%c5, %c0_28, %c0_29] : memref<9x8x16xf32, #tpu.memory_space<vmem>>, vector<1x8x16xf32>
    %32 = vector.shape_cast %31 : vector<1x8x16xf32> to vector<8x16xf32>
    %c0_30 = arith.constant 0 : index
    %c0_31 = arith.constant 0 : index
    %c36 = arith.constant 36 : index
    %33 = vector.load %arg2[%c0_30, %c0_31, %c36] : memref<1x16x1190xf32, #tpu.memory_space<vmem>>, vector<1x16x1088xf32>
    %34 = vector.shape_cast %33 : vector<1x16x1088xf32> to vector<16x1088xf32>
    %cst_32 = arith.constant dense<0.000000e+00> : vector<8x1088xf32>
    %35 = tpu.matmul %32, %34, %cst_32 {dimension_numbers = #tpu.dot_dimension_numbers<[1], [0], [0], [1], [0, 0, 1, 1], [], []>} : vector<8x16xf32>, vector<16x1088xf32>, vector<8x1088xf32> -> vector<8x1088xf32>
    %36 = arith.addf %30, %35 : vector<8x1088xf32>
    %c6 = arith.constant 6 : index
    %c0_33 = arith.constant 0 : index
    %c0_34 = arith.constant 0 : index
    %37 = vector.load %arg3[%c6, %c0_33, %c0_34] : memref<9x8x16xf32, #tpu.memory_space<vmem>>, vector<1x8x16xf32>
    %38 = vector.shape_cast %37 : vector<1x8x16xf32> to vector<8x16xf32>
    %c0_35 = arith.constant 0 : index
    %c0_36 = arith.constant 0 : index
    %c68 = arith.constant 68 : index
    %39 = vector.load %arg2[%c0_35, %c0_36, %c68] : memref<1x16x1190xf32, #tpu.memory_space<vmem>>, vector<1x16x1088xf32>
    %40 = vector.shape_cast %39 : vector<1x16x1088xf32> to vector<16x1088xf32>
    %cst_37 = arith.constant dense<0.000000e+00> : vector<8x1088xf32>
    %41 = tpu.matmul %38, %40, %cst_37 {dimension_numbers = #tpu.dot_dimension_numbers<[1], [0], [0], [1], [0, 0, 1, 1], [], []>} : vector<8x16xf32>, vector<16x1088xf32>, vector<8x1088xf32> -> vector<8x1088xf32>
    %42 = arith.addf %36, %41 : vector<8x1088xf32>
    %c7 = arith.constant 7 : index
    %c0_38 = arith.constant 0 : index
    %c0_39 = arith.constant 0 : index
    %43 = vector.load %arg3[%c7, %c0_38, %c0_39] : memref<9x8x16xf32, #tpu.memory_space<vmem>>, vector<1x8x16xf32>
    %44 = vector.shape_cast %43 : vector<1x8x16xf32> to vector<8x16xf32>
    %c0_40 = arith.constant 0 : index
    %c0_41 = arith.constant 0 : index
    %c69 = arith.constant 69 : index
    %45 = vector.load %arg2[%c0_40, %c0_41, %c69] : memref<1x16x1190xf32, #tpu.memory_space<vmem>>, vector<1x16x1088xf32>
    %46 = vector.shape_cast %45 : vector<1x16x1088xf32> to vector<16x1088xf32>
    %cst_42 = arith.constant dense<0.000000e+00> : vector<8x1088xf32>
    %47 = tpu.matmul %44, %46, %cst_42 {dimension_numbers = #tpu.dot_dimension_numbers<[1], [0], [0], [1], [0, 0, 1, 1], [], []>} : vector<8x16xf32>, vector<16x1088xf32>, vector<8x1088xf32> -> vector<8x1088xf32>
    %48 = arith.addf %42, %47 : vector<8x1088xf32>
    %c8 = arith.constant 8 : index
    %c0_43 = arith.constant 0 : index
    %c0_44 = arith.constant 0 : index
    %49 = vector.load %arg3[%c8, %c0_43, %c0_44] : memref<9x8x16xf32, #tpu.memory_space<vmem>>, vector<1x8x16xf32>
    %50 = vector.shape_cast %49 : vector<1x8x16xf32> to vector<8x16xf32>
    %c0_45 = arith.constant 0 : index
    %c0_46 = arith.constant 0 : index
    %c70 = arith.constant 70 : index
    %51 = vector.load %arg2[%c0_45, %c0_46, %c70] : memref<1x16x1190xf32, #tpu.memory_space<vmem>>, vector<1x16x1088xf32>
    %52 = vector.shape_cast %51 : vector<1x16x1088xf32> to vector<16x1088xf32>
    %cst_47 = arith.constant dense<0.000000e+00> : vector<8x1088xf32>
    %53 = tpu.matmul %50, %52, %cst_47 {dimension_numbers = #tpu.dot_dimension_numbers<[1], [0], [0], [1], [0, 0, 1, 1], [], []>} : vector<8x16xf32>, vector<16x1088xf32>, vector<8x1088xf32> -> vector<8x1088xf32>
    %54 = arith.addf %48, %53 : vector<8x1088xf32>
    %c0_48 = arith.constant 0 : index
    %c0_49 = arith.constant 0 : index
    %55 = vector.load %arg4[%c0_48, %c0_49] : memref<8x1xf32, #tpu.memory_space<vmem>>, vector<8x1xf32>
    %56 = vector.broadcast %55 : vector<8x1xf32> to vector<8x1088xf32>
    %57 = arith.addf %54, %56 : vector<8x1088xf32>
    %cst_50 = arith.constant 0.000000e+00 : f32
    %58 = vector.broadcast %cst_50 : f32 to vector<8x1088xf32>
    %59 = arith.maximumf %57, %58 : vector<8x1088xf32>
    %60 = vector.shape_cast %59 : vector<8x1088xf32> to vector<8x32x34xf32>
    %61 = vector.extract_strided_slice %60 {offsets = [0, 0, 0], sizes = [8, 32, 32], strides = [1, 1, 1]} : vector<8x32x34xf32> to vector<8x32x32xf32>
    %c0_51 = arith.constant 0 : index
    %c0_52 = arith.constant 0 : index
    %c0_53 = arith.constant 0 : index
    %c0_54 = arith.constant 0 : index
    %62 = vector.load %arg6[%c0_51, %c0_52, %c0_53, %c0_54] : memref<1x8x32x32xf32, #tpu.memory_space<vmem>>, vector<1x8x32x32xf32>
    %63 = vector.shape_cast %62 : vector<1x8x32x32xf32> to vector<8x32x32xf32>
    %64 = vector.shape_cast %61 : vector<8x32x32xf32> to vector<1x8x32x32xf32>
    tpu.vector_store %arg6[%c0_51, %c0_52, %c0_53, %c0_54], %64 {strides = array<i32>} : memref<1x8x32x32xf32, #tpu.memory_space<vmem>>, vector<1x8x32x32xf32>,
    return
  }
  func.func @transform_0(%arg0: i32, %arg1: i32) -> (i32, i32, i32) {
    %c0_i32 = arith.constant 0 : i32
    %c0_i32_0 = arith.constant 0 : i32
    %c0_i32_1 = arith.constant 0 : i32
    return %arg0, %c0_i32, %c0_i32_0 : i32, i32, i32
  }
  func.func @transform_1(%arg0: i32, %arg1: i32) -> (i32, i32, i32) {
    %c0_i32 = arith.constant 0 : i32
    %c0_i32_0 = arith.constant 0 : i32
    %c0_i32_1 = arith.constant 0 : i32
    return %c0_i32, %arg1, %c0_i32_0 : i32, i32, i32
  }
  func.func @transform_2(%arg0: i32, %arg1: i32) -> (i32, i32) {
    %c0_i32 = arith.constant 0 : i32
    %c0_i32_0 = arith.constant 0 : i32
    return %arg1, %c0_i32 : i32, i32
  }
  func.func @transform_4(%arg0: i32, %arg1: i32) -> (i32, i32, i32, i32) {
    %c6_i32 = arith.constant 6 : i32
    %0 = arith.addi %arg1, %c6_i32 : i32
    %c0_i32 = arith.constant 0 : i32
    %c0_i32_0 = arith.constant 0 : i32
    %c0_i32_1 = arith.constant 0 : i32
    return %arg0, %0, %c0_i32, %c0_i32_0 : i32, i32, i32, i32
  }
}

</mosaic_0001>

<llo_original>
// kernel: ffm_v3_forward.3
$region0: #{ffm_v3_forward.3}
  #allocation0 [shape = 'u32[]', space=smem, size = 0x4, offset = 0x4, fixed_abs, tag = 'smem constant byte address 0x4 - core index']
  #allocation1 [shape = 'u32[72,128]{1,0:T(1,128)}', space=vmem, size = 0x9000, scoped, tag = 'internal scratch']
  #allocation2 [shape = 'f32[32,64]{1,0:T(8,128)}', space=vmem, size = 0x4000, scoped, tag = 'scratch operand']
  %s0 = inlined_call_operand.vmem [shape: f32[2,64,64], index: 0, kind: input, shape index: {}]
  %s1 = inlined_call_operand.vmem [shape: f32[32,64], index: 1, kind: input, shape index: {}]
  %s2 = inlined_call_operand.vmem [shape: f32[32,1], index: 2, kind: input, shape index: {}]
  %s3 = inlined_call_operand.vmem [shape: f32[64,1024], index: 3, kind: input, shape index: {}]
  %s4 = inlined_call_operand.vmem [shape: f32[2,56,32,32], index: 4, kind: output, shape index: {}]
  %s5 = sld [smem:[#allocation0]]
  $region124: #{ffm_v3_forward.3} parent=0
    _
  %s7 = ssub.s32 1, %s5
  %s8 = scalar_select 0, %s7, %s5
  $region1: #{ffm_v3_forward.3} parent=0
    #allocation3 [shape = 'u8[262144]{0}', space=vmem, size = 0x40000, scoped, tag = 'input window, operand 3']
    #allocation4 [shape = 'u8[524288]{0}', space=vmem, size = 0x80000, scoped, tag = 'output window, operand 0']
    loop: start=0, step=1, limit=6
    $region2: #{ffm_v3_forward.3} parent=1 // loop_pre_header
      _
    $region3: #{ffm_v3_forward.3} parent=1 // loop_header
      %s10 = sphi 0, %s14
      %p11 = scmp.ge.s32.totalorder %s10, 6
      %s17 = sphi 0, %s36
      %s18 = sphi 0, %s32
      %s19 = sphi 0, %s28
      %s20 = sphi 0, %s17
      %s21 = sphi 0, %s18
      %s22 = sphi 0, %s19
      %s23 = sphi 0, %s20
      %s24 = sphi 0, %s21
      %s25 = sphi 0, %s22
      %s39 = sphi 0, %s41
      %s42 = sphi 0, %s39
      %s43 = sphi 0, %s42
      %s59 = sphi 0, %s43
      %s65 = sphi 0, %s67
      %s68 = sphi 0, %s65
      %s69 = sphi 0, %s68
      %s85 = sphi 0, %s69
      %s91 = sphi 0, %s93
      %s94 = sphi 0, %s91
      %s95 = sphi 0, %s94
      %s111 = sphi 0, %s95
      %s117 = sphi 0, %s119
      %s120 = sphi 0, %s117
      %s121 = sphi 0, %s120
      %s137 = sphi 0, %s121
      %s147 = sphi 0, %s149
      %s150 = sphi 0, %s147
      %s151 = sphi 0, %s150
      %s167 = sphi 0, %s151
    $region4: #{ffm_v3_forward.3} parent=1 // loop_header_branch
      %13 = sbr.rel (%p11) target = $region8
    $region5: #{ffm_v3_forward.3} parent=1 // loop_body
      %s15 = ssub.s32 %s10, 1
      %s16 = ssub.s32 %s10, 2
      %s26 = sadd.s32 1, %s19
      %p27 = scmp.ge.s32.totalorder %s26, 2
      %s28 = scalar_select %p27, 0, %s26
      %s29 = sadd.s32 1, %s18
      %s30 = scalar_select %p27, %s29, %s18
      %p31 = scmp.ge.s32.totalorder %s30, 1
      %s32 = scalar_select %p31, 0, %s30
      %s33 = sadd.s32 1, %s17
      %s34 = scalar_select %p31, %s33, %s17
      %p35 = scmp.ge.s32.totalorder %s34, 2
      %s36 = scalar_select %p35, 0, %s34
      %s37 = ssub.s32 %s17, %s36
      %p38 = scmp.eq.s32.totalorder %s37, 0
      %s40 = sadd.s32 %s39, 1
      %s41 = scalar_select %p38, %s39, %s40
      %p44 = pneg %p38
      %p45 = scmp.eq.s32.totalorder %s10, 3
      %p46 = por %p44, %p45
      %p47 = scmp.ne.s32.totalorder %s39, %s42
      %p48 = scmp.eq.s32.totalorder %s10, 0
      %p49 = por %p47, %p48
      %p50 = scmp.ne.s32.totalorder %s39, %s42
      %p51 = scmp.eq.s32.totalorder %s15, 3
      %p52 = por %p50, %p51
      %p53 = scmp.ne.s32.totalorder %s42, %s43
      %p54 = scmp.eq.s32.totalorder %s15, 0
      %p55 = por %p53, %p54
      %p56 = scmp.ne.s32.totalorder %s42, %s43
      %p57 = scmp.eq.s32.totalorder %s16, 3
      %p58 = por %p56, %p57
      %p60 = scmp.ne.s32.totalorder %s43, %s59
      %p61 = scmp.eq.s32.totalorder %s16, 0
      %p62 = por %p60, %p61
      %s63 = ssub.s32 %s18, %s32
      %p64 = scmp.eq.s32.totalorder %s63, 0
      %s66 = sadd.s32 %s65, 1
      %s67 = scalar_select %p64, %s65, %s66
      %p70 = pneg %p64
      %p71 = scmp.eq.s32.totalorder %s10, 3
      %p72 = por %p70, %p71
      %p73 = scmp.ne.s32.totalorder %s65, %s68
      %p74 = scmp.eq.s32.totalorder %s10, 0
      %p75 = por %p73, %p74
      %p76 = scmp.ne.s32.totalorder %s65, %s68
      %p77 = scmp.eq.s32.totalorder %s15, 3
      %p78 = por %p76, %p77
      %p79 = scmp.ne.s32.totalorder %s68, %s69
      %p80 = scmp.eq.s32.totalorder %s15, 0
      %p81 = por %p79, %p80
      %p82 = scmp.ne.s32.totalorder %s68, %s69
      %p83 = scmp.eq.s32.totalorder %s16, 3
      %p84 = por %p82, %p83
      %p86 = scmp.ne.s32.totalorder %s69, %s85
      %p87 = scmp.eq.s32.totalorder %s16, 0
      %p88 = por %p86, %p87
      %s89 = ssub.s32 %s18, %s32
      %p90 = scmp.eq.s32.totalorder %s89, 0
      %s92 = sadd.s32 %s91, 1
      %s93 = scalar_select %p90, %s91, %s92
      %p96 = pneg %p90
      %p97 = scmp.eq.s32.totalorder %s10, 3
      %p98 = por %p96, %p97
      %p99 = scmp.ne.s32.totalorder %s91, %s94
      %p100 = scmp.eq.s32.totalorder %s10, 0
      %p101 = por %p99, %p100
      %p102 = scmp.ne.s32.totalorder %s91, %s94
      %p103 = scmp.eq.s32.totalorder %s15, 3
      %p104 = por %p102, %p103
      %p105 = scmp.ne.s32.totalorder %s94, %s95
      %p106 = scmp.eq.s32.totalorder %s15, 0
      %p107 = por %p105, %p106
      %p108 = scmp.ne.s32.totalorder %s94, %s95
      %p109 = scmp.eq.s32.totalorder %s16, 3
      %p110 = por %p108, %p109
      %p112 = scmp.ne.s32.totalorder %s95, %s111
      %p113 = scmp.eq.s32.totalorder %s16, 0
      %p114 = por %p112, %p113
      %s115 = ssub.s32 %s19, %s28
      %p116 = scmp.eq.s32.totalorder %s115, 0
      %s118 = sadd.s32 %s117, 1
      %s119 = scalar_select %p116, %s117, %s118
      %p122 = pneg %p116
      %p123 = scmp.eq.s32.totalorder %s10, 3
      %p124 = por %p122, %p123
      %p125 = scmp.ne.s32.totalorder %s117, %s120
      %p126 = scmp.eq.s32.totalorder %s10, 0
      %p127 = por %p125, %p126
      %p128 = scmp.ne.s32.totalorder %s117, %s120
      %p129 = scmp.eq.s32.totalorder %s15, 3
      %p130 = por %p128, %p129
      %p131 = scmp.ne.s32.totalorder %s120, %s121
      %p132 = scmp.eq.s32.totalorder %s15, 0
      %p133 = por %p131, %p132
      %p134 = scmp.ne.s32.totalorder %s120, %s121
      %p135 = scmp.eq.s32.totalorder %s16, 3
      %p136 = por %p134, %p135
      %p138 = scmp.ne.s32.totalorder %s121, %s137
      %p139 = scmp.eq.s32.totalorder %s16, 0
      %p140 = por %p138, %p139
      %s141 = ssub.s32 %s17, %s36
      %s142 = ssub.s32 %s18, %s32
      %s143 = sor.u32 %s141, %s142
      %s144 = ssub.s32 %s19, %s28
      %s145 = sor.u32 %s143, %s144
      %p146 = scmp.eq.s32.totalorder %s145, 0
      %s148 = sadd.s32 %s147, 1
      %s149 = scalar_select %p146, %s147, %s148
      %p152 = pneg %p146
      %p153 = scmp.eq.s32.totalorder %s10, 3
      %p154 = por %p152, %p153
      %p155 = scmp.ne.s32.totalorder %s147, %s150
      %p156 = scmp.eq.s32.totalorder %s10, 0
      %p157 = por %p155, %p156
      %p158 = scmp.ne.s32.totalorder %s147, %s150
      %p159 = scmp.eq.s32.totalorder %s15, 3
      %p160 = por %p158, %p159
      %p161 = scmp.ne.s32.totalorder %s150, %s151
      %p162 = scmp.eq.s32.totalorder %s15, 0
      %p163 = por %p161, %p162
      %p164 = scmp.ne.s32.totalorder %s150, %s151
      %p165 = scmp.eq.s32.totalorder %s16, 3
      %p166 = por %p164, %p165
      %p168 = scmp.ne.s32.totalorder %s151, %s167
      %p169 = scmp.eq.s32.totalorder %s16, 0
      %p170 = por %p168, %p169
      %p171 = scmp.le.s32.totalorder 1, %s10
      %p172 = scmp.lt.s32.totalorder %s10, 5
      %p173 = pnand %p171, %p172
      %p174 = pneg %p173
      // Predicated region
      $region9: #{ffm_v3_forward.3} parent=5 // pred_check
        _
      $region10: #{ffm_v3_forward.3} parent=5 // pred_check_branch
        %176 = sbr.rel (%p173) target = $region12
      $region11: #{ffm_v3_forward.3} parent=5 // pred_region
        %s177 = ssub.s32 %s10, 1
        // Predicated region
        $region13: #{ffm_v3_forward.3} parent=11 // pred_check
          %p178 = pneg %p81
        $region14: #{ffm_v3_forward.3} parent=11 // pred_check_branch
          %180 = sbr.rel (%p178) target = $region16
        $region15: #{ffm_v3_forward.3} parent=11 // pred_region
          %s181 = smul.u32 4, %s21
          %p182 = scmp.lt.s32.totalorder %s181, 3
          %s183 = scalar_select %p182, %s181, 3
          %s184 = smul.addr %s183, 8
          %s185 = scalar_lea.vmem %s1, %s184
          %s186 = smul.u32 4, %s21
        $region16: #{ffm_v3_forward.3} parent=11 // pred_fallthru
          _
        // Predicated region
        $region17: #{ffm_v3_forward.3} parent=11 // pred_check
          %p187 = pneg %p107
        $region18: #{ffm_v3_forward.3} parent=11 // pred_check_branch
          %189 = sbr.rel (%p187) target = $region20
        $region19: #{ffm_v3_forward.3} parent=11 // pred_region
          %s190 = smul.u32 4, %s21
          %p191 = scmp.lt.s32.totalorder %s190, 3
          %s192 = scalar_select %p191, %s190, 3
          %s193 = smul.addr %s192, 8
          %s194 = scalar_lea.vmem %s2, %s193
          %s195 = smul.u32 4, %s21
        $region20: #{ffm_v3_forward.3} parent=11 // pred_fallthru
          _
      $region12: #{ffm_v3_forward.3} parent=5 // pred_fallthru
        _
      %p196 = scmp.lt.s32.totalorder %s10, 4
      // Predicated region
      $region21: #{ffm_v3_forward.3} parent=5 // pred_check
        %p197 = pneg %p196
      $region22: #{ffm_v3_forward.3} parent=5 // pred_check_branch
        %199 = sbr.rel (%p197) target = $region24
      $region23: #{ffm_v3_forward.3} parent=5 // pred_region
        // Predicated region
        $region25: #{ffm_v3_forward.3} parent=23 // pred_check
          %p200 = pneg %p49
        $region26: #{ffm_v3_forward.3} parent=23 // pred_check_branch
          %202 = sbr.rel (%p200) target = $region28
        $region27: #{ffm_v3_forward.3} parent=23 // pred_region
          %p203 = scmp.lt.s32.totalorder %s17, 1
          %s204 = scalar_select %p203, %s17, 1
          %s205 = smul.addr %s204, 8
          %s206 = smul.addr %s205, 8
          %s207 = scalar_lea.vmem %s0, %s206
        $region28: #{ffm_v3_forward.3} parent=23 // pred_fallthru
          _
        // Predicated region
        $region29: #{ffm_v3_forward.3} parent=23 // pred_check
          %p208 = pneg %p127
        $region30: #{ffm_v3_forward.3} parent=23 // pred_check_branch
          %210 = sbr.rel (%p208) target = $region32
        $region31: #{ffm_v3_forward.3} parent=23 // pred_region
          %s211 = sand.u32 %s117, 1
          %s212 = sand.u32 %s117, 1
          %s213 = smul.addr %s212, 256
          %s214 = scalar_lea.vmem [#allocation3], %s213
          %s215 = smul.u32 4, %s19
          %s216 = smul.addr %s215, 8
          %s217 = scalar_lea.vmem %s3, %s216
          // Predicated region
          $region33: #{ffm_v3_forward.3} parent=31 // pred_check
            _
          $region34: #{ffm_v3_forward.3} parent=31 // pred_check_branch
            %219 = sbr.rel (0) target = $region36
          $region35: #{ffm_v3_forward.3} parent=31 // pred_region
            // Predicated region
            $region37: #{ffm_v3_forward.3} parent=35 // pred_check
              _
            $region38: #{ffm_v3_forward.3} parent=35 // pred_check_branch
              %221 = sbr.rel (0) target = $region40
            $region39: #{ffm_v3_forward.3} parent=35 // pred_region
              loop: start=0, step=1, limit=1
              $region41: #{ffm_v3_forward.3} parent=39 // loop_pre_header
                _
              $region42: #{ffm_v3_forward.3} parent=39 // loop_header
                %s223 = sphi 0, %s227
                %p224 = scmp.ge.s32.totalorder %s223, 1
                %s228 = sphi %s217, %s217
                %s229 = sphi %s214, %s214
              $region43: #{ffm_v3_forward.3} parent=39 // loop_header_branch
                %226 = sbr.rel (%p224) target = $region47
              $region44: #{ffm_v3_forward.3} parent=39 // loop_body
                %v230 = vld [vmem:[%s228] sm:$0xff]
                %231 = vst [vmem:[%s229] sm:$0xff] %v230
                %v232 = vld [vmem:[%s228 + $0x8] sm:$0xff]
                %233 = vst [vmem:[%s229 + $0x8] sm:$0xff] %v232
                %v234 = vld [vmem:[%s228 + $0x10] sm:$0xff]
                %235 = vst [vmem:[%s229 + $0x10] sm:$0xff] %v234
                %v236 = vld [vmem:[%s228 + $0x18] sm:$0xff]
                %237 = vst [vmem:[%s229 + $0x18] sm:$0xff] %v236
                %v238 = vld [vmem:[%s228 + $0x40] sm:$0xff]
                %239 = vst [vmem:[%s229 + $0x20] sm:$0xff] %v238
                %v240 = vld [vmem:[%s228 + $0x48] sm:$0xff]
                %241 = vst [vmem:[%s229 + $0x28] sm:$0xff] %v240
                %v242 = vld [vmem:[%s228 + $0x50] sm:$0xff]
                %243 = vst [vmem:[%s229 + $0x30] sm:$0xff] %v242
                %v244 = vld [vmem:[%s228 + $0x58] sm:$0xff]
                %245 = vst [vmem:[%s229 + $0x38] sm:$0xff] %v244
                %v246 = vld [vmem:[%s228 + $0x80] sm:$0xff]
                %247 = vst [vmem:[%s229 + $0x40] sm:$0xff] %v246
                %v248 = vld [vmem:[%s228 + $0x88] sm:$0xff]
                %249 = vst [vmem:[%s229 + $0x48] sm:$0xff] %v248
                %v250 = vld [vmem:[%s228 + $0x90] sm:$0xff]
                %251 = vst [vmem:[%s229 + $0x50] sm:$0xff] %v250
                %v252 = vld [vmem:[%s228 + $0x98] sm:$0xff]
                %253 = vst [vmem:[%s229 + $0x58] sm:$0xff] %v252
                %v254 = vld [vmem:[%s228 + $0xc0] sm:$0xff]
                %255 = vst [vmem:[%s229 + $0x60] sm:$0xff] %v254
                %v256 = vld [vmem:[%s228 + $0xc8] sm:$0xff]
                %257 = vst [vmem:[%s229 + $0x68] sm:$0xff] %v256
                %v258 = vld [vmem:[%s228 + $0xd0] sm:$0xff]
                %259 = vst [vmem:[%s229 + $0x70] sm:$0xff] %v258
                %v260 = vld [vmem:[%s228 + $0xd8] sm:$0xff]
                %261 = vst [vmem:[%s229 + $0x78] sm:$0xff] %v260
                %v262 = vld [vmem:[%s228 + $0x100] sm:$0xff]
                %263 = vst [vmem:[%s229 + $0x80] sm:$0xff] %v262
                %v264 = vld [vmem:[%s228 + $0x108] sm:$0xff]
                %265 = vst [vmem:[%s229 + $0x88] sm:$0xff] %v264
                %v266 = vld [vmem:[%s228 + $0x110] sm:$0xff]
                %267 = vst [vmem:[%s229 + $0x90] sm:$0xff] %v266
                %v268 = vld [vmem:[%s228 + $0x118] sm:$0xff]
                %269 = vst [vmem:[%s229 + $0x98] sm:$0xff] %v268
                %v270 = vld [vmem:[%s228 + $0x140] sm:$0xff]
                %271 = vst [vmem:[%s229 + $0xa0] sm:$0xff] %v270
                %v272 = vld [vmem:[%s228 + $0x148] sm:$0xff]
                %273 = vst [vmem:[%s229 + $0xa8] sm:$0xff] %v272
                %v274 = vld [vmem:[%s228 + $0x150] sm:$0xff]
                %275 = vst [vmem:[%s229 + $0xb0] sm:$0xff] %v274
                %v276 = vld [vmem:[%s228 + $0x158] sm:$0xff]
                %277 = vst [vmem:[%s229 + $0xb8] sm:$0xff] %v276
                %v278 = vld [vmem:[%s228 + $0x180] sm:$0xff]
                %279 = vst [vmem:[%s229 + $0xc0] sm:$0xff] %v278
                %v280 = vld [vmem:[%s228 + $0x188] sm:$0xff]
                %281 = vst [vmem:[%s229 + $0xc8] sm:$0xff] %v280
                %v282 = vld [vmem:[%s228 + $0x190] sm:$0xff]
                %283 = vst [vmem:[%s229 + $0xd0] sm:$0xff] %v282
                %v284 = vld [vmem:[%s228 + $0x198] sm:$0xff]
                %285 = vst [vmem:[%s229 + $0xd8] sm:$0xff] %v284
                %v286 = vld [vmem:[%s228 + $0x1c0] sm:$0xff]
                %287 = vst [vmem:[%s229 + $0xe0] sm:$0xff] %v286
                %v288 = vld [vmem:[%s228 + $0x1c8] sm:$0xff]
                %289 = vst [vmem:[%s229 + $0xe8] sm:$0xff] %v288
                %v290 = vld [vmem:[%s228 + $0x1d0] sm:$0xff]
                %291 = vst [vmem:[%s229 + $0xf0] sm:$0xff] %v290
                %v292 = vld [vmem:[%s228 + $0x1d8] sm:$0xff]
                %293 = vst [vmem:[%s229 + $0xf8] sm:$0xff] %v292
              $region45: #{ffm_v3_forward.3} parent=39 // loop_footer
                %s227 = sadd.s32 1, %s223
              $region46: #{ffm_v3_forward.3} parent=39 // loop_footer_branch
                %222 = sbr.rel target = $region42
              $region47: #{ffm_v3_forward.3} parent=39 // loop_exit
                _
            $region40: #{ffm_v3_forward.3} parent=35 // pred_fallthru
              _
            // Predicated region
            $region48: #{ffm_v3_forward.3} parent=35 // pred_check
              _
            $region49: #{ffm_v3_forward.3} parent=35 // pred_check_branch
              %295 = sbr.rel target = $region51
            $region50: #{ffm_v3_forward.3} parent=35 // pred_region
              _
            $region51: #{ffm_v3_forward.3} parent=35 // pred_fallthru
              _
          $region36: #{ffm_v3_forward.3} parent=31 // pred_fallthru
            _
          %296 = vnop
        $region32: #{ffm_v3_forward.3} parent=23 // pred_fallthru
          _
      $region24: #{ffm_v3_forward.3} parent=5 // pred_fallthru
        _
      %p297 = scmp.le.s32.totalorder 1, %s10
      %p298 = scmp.lt.s32.totalorder %s10, 5
      %p299 = pnand %p297, %p298
      %p300 = pneg %p299
      // Predicated region
      $region52: #{ffm_v3_forward.3} parent=5 // pred_check
        _
      $region53: #{ffm_v3_forward.3} parent=5 // pred_check_branch
        %302 = sbr.rel (%p299) target = $region55
      $region54: #{ffm_v3_forward.3} parent=5 // pred_region
        %s303 = ssub.s32 %s10, 1
        %s304 = sand.u32 %s120, 1
        %s305 = sand.u32 %s120, 1
        %s306 = smul.addr %s305, 256
        %s307 = scalar_lea.vmem [#allocation3], %s306
        // Predicated region
        $region56: #{ffm_v3_forward.3} parent=54 // pred_check
          %p308 = pneg %p133
        $region57: #{ffm_v3_forward.3} parent=54 // pred_check_branch
          %310 = sbr.rel (%p308) target = $region59
        $region58: #{ffm_v3_forward.3} parent=54 // pred_region
          _
        $region59: #{ffm_v3_forward.3} parent=54 // pred_fallthru
          _
        %p311 = scmp.lt.s32.totalorder %s20, 1
        %s312 = scalar_select %p311, %s20, 1
        %s313 = smul.addr %s312, 8
        %s314 = smul.addr %s313, 8
        %s315 = scalar_lea.vmem %s0, %s314
        %p316 = pneg %p55
        %p317 = pneg %p52
        %s318 = smul.u32 4, %s21
        %p319 = scmp.lt.s32.totalorder %s318, 3
        %s320 = scalar_select %p319, %s318, 3
        %s321 = smul.addr %s320, 8
        %s322 = scalar_lea.vmem %s1, %s321
        %p323 = pneg %p81
        %p324 = pneg %p78
        %s325 = smul.u32 4, %s21
        %p326 = scmp.lt.s32.totalorder %s325, 3
        %s327 = scalar_select %p326, %s325, 3
        %s328 = smul.addr %s327, 8
        %s329 = scalar_lea.vmem %s2, %s328
        %p330 = pneg %p107
        %p331 = pneg %p104
        %s332 = sand.u32 %s120, 1
        %s333 = sand.u32 %s120, 1
        %s334 = smul.addr %s333, 256
        %s335 = scalar_lea.vmem [#allocation3], %s334
        %p336 = pneg %p133
        %p337 = pneg %p130
        %p338 = pneg %p163
        %p339 = pneg %p160
        %s340 = sand.u32 %s150, 1
        %s341 = sand.u32 %s150, 1
        %s342 = smul.addr %s341, 512
        %s343 = scalar_lea.vmem [#allocation4], %s342
        %p344 = scmp.lt.s32.totalorder %s20, 1
        %s345 = scalar_select %p344, %s20, 1
        %s346 = smul.addr %s345, 8
        %s347 = smul.addr %s346, 8
        %s348 = scalar_lea.vmem %s0, %s347
        %s349 = smul.u32 4, %s21
        %p350 = scmp.lt.s32.totalorder %s349, 3
        %s351 = scalar_select %p350, %s349, 3
        %s352 = smul.addr %s351, 8
        %s353 = scalar_lea.vmem %s1, %s352
        %s354 = smul.u32 4, %s21
        %s355 = smul.u32 4, %s21
        %p356 = scmp.lt.s32.totalorder %s355, 3
        %s357 = scalar_select %p356, %s355, 3
        %s358 = smul.addr %s357, 8
        %s359 = scalar_lea.vmem %s2, %s358
        %s360 = smul.u32 4, %s21
        %s361 = smul.u32 4, %s22
        %s362 = smul.u32 32, %s21
        %s363 = smul.u32 2, %s22
        %s364 = ssub.s32 56, %s362
        %p365 = scmp.lt.s32.totalorder %s364, 32
        %s366 = scalar_select %p365, %s364, 32
        %s367 = smul.u32 8, %s366
        %s368 = smul.u32 %s367, 2
        %p369 = scmp.eq.s32.totalorder %s22, 0
        // Predicated region
        $region60: #{ffm_v3_forward.3} parent=54 // pred_check
          %p370 = pneg %p369
        $region61: #{ffm_v3_forward.3} parent=54 // pred_check_branch
          %372 = sbr.rel (%p370) target = $region63
        $region62: #{ffm_v3_forward.3} parent=54 // pred_region
          %v373 = vld [vmem:[%s353] sm:$0xff]
          %v374 = vld [vmem:[%s353 + $0x8] sm:$0xff]
          %v375 = vld [vmem:[%s353 + $0x10] sm:$0xff]
          %v376 = vld [vmem:[%s353 + $0x18] sm:$0xff]
          %v377 = vld [vmem:[%s348] sm:$0xff]
          %v378 = vld [vmem:[%s348 + $0x8] sm:$0xff]
          %v379 = vld [vmem:[%s348 + $0x10] sm:$0xff]
          %v380 = vld [vmem:[%s348 + $0x18] sm:$0xff]
          %v381 = vld [vmem:[%s348 + $0x20] sm:$0xff]
          %v382 = vld [vmem:[%s348 + $0x28] sm:$0xff]
          %v383 = vld [vmem:[%s348 + $0x30] sm:$0xff]
          %v384 = vld [vmem:[%s348 + $0x38] sm:$0xff]
          %v385 = vld [vmem:[%s359] sm:$0xff]
          %v386 = vld [vmem:[%s359 + $0x8] sm:$0xff]
          %v387 = vld [vmem:[%s359 + $0x10] sm:$0xff]
          %v388 = vld [vmem:[%s359 + $0x18] sm:$0xff]
          %390 = vset.pattern.permute.xlu0 0
          %391 = vperm.xlu0 %390, %v385
          %v392 = vpop.permute.xlu0 %391
          %395 = vset.pattern.permute.xlu0 0
          %396 = vperm.xlu0 %395, %v386
          %v397 = vpop.permute.xlu0 %396
          %400 = vset.pattern.permute.xlu0 0
          %401 = vperm.xlu0 %400, %v387
          %v402 = vpop.permute.xlu0 %401
          %405 = vset.pattern.permute.xlu0 0
          %406 = vperm.xlu0 %405, %v388
          %v407 = vpop.permute.xlu0 %406
          %vm409 = vcmask 523264
          %v411 = vsel %vm409, %v373, 0
          %v414 = vsel %vm409, %v374, 0
          %v417 = vsel %vm409, %v375, 0
          %v420 = vsel %vm409, %v376, 0
          %422 = vmatpush.msra.mxu0 0.0
          %423 = vmatpush.msra.mxu0 0.0
          %424 = vmatpush.msra.mxu0 0.0
          %425 = vmatpush.msra.mxu0 0.0
          %426 = vmatpush.msra.mxu0 0.0
          %427 = vmatpush.msra.mxu0 0.0
          %428 = vmatpush.msra.mxu0 0.0
          %429 = vmatpush.msra.mxu0 0.0
          %430 = vmatpush.msra.mxu0 %v384
          %431 = vmatpush.msra.mxu0 %v383
          %432 = vmatpush.msra.mxu0 %v382
          %433 = vmatpush.msra.mxu0 %v381
          %434 = vmatpush.msra.mxu0 %v380
          %435 = vmatpush.msra.mxu0 %v379
          %436 = vmatpush.msra.mxu0 %v378
          %437 = vmatpush.msra.mxu0 %v377
          %438 = vmatmul.f32.gmra.mxu0 %v411
          %v439 = vpop.f32.mrf.mxu0
          %v440 = vadd.f32 %v392, %v439
          %441 = vmatmul.f32.gmra.mxu0 %v414
          %v442 = vpop.f32.mrf.mxu0
          %v443 = vadd.f32 %v397, %v442
          %444 = vmatmul.f32.gmra.mxu0 %v417
          %v445 = vpop.f32.mrf.mxu0
          %v446 = vadd.f32 %v402, %v445
          %447 = vmatmul.f32.gmra.mxu0 %v420
          %v448 = vpop.f32.mrf.mxu0
          %v449 = vadd.f32 %v407, %v448
          %450 = vdwg.mxu0
          %v451 = vmax.f32 %v440, 0.0
          %v452 = vmax.f32 %v443, 0.0
          %v453 = vmax.f32 %v446, 0.0
          %v454 = vmax.f32 %v449, 0.0
          %455 = vst.msk [vmem:[#allocation2] sm:$0xff] %vm409, %v451
          %456 = vst.msk [vmem:[#allocation2 + $0x8] sm:$0xff] %vm409, %v452
          %457 = vst.msk [vmem:[#allocation2 + $0x10] sm:$0xff] %vm409, %v453
          %458 = vst.msk [vmem:[#allocation2 + $0x18] sm:$0xff] %vm409, %v454
        $region63: #{ffm_v3_forward.3} parent=54 // pred_fallthru
          _
        %v459 = vld [vmem:[#allocation2] sm:$0xff]
        %v460 = vld [vmem:[#allocation2 + $0x8] sm:$0xff]
        %v461 = vld [vmem:[#allocation2 + $0x10] sm:$0xff]
        %v462 = vld [vmem:[#allocation2 + $0x18] sm:$0xff]
        %v463 = vld [vmem:[%s307] sm:$0xff]
        %v464 = vld [vmem:[%s307 + $0x8] sm:$0xff]
        %v465 = vld [vmem:[%s307 + $0x10] sm:$0xff]
        %v466 = vld [vmem:[%s307 + $0x18] sm:$0xff]
        %v467 = vld [vmem:[%s307 + $0x20] sm:$0xff]
        %v468 = vld [vmem:[%s307 + $0x28] sm:$0xff]
        %v469 = vld [vmem:[%s307 + $0x30] sm:$0xff]
        %v470 = vld [vmem:[%s307 + $0x38] sm:$0xff]
        %v471 = vld [vmem:[%s307 + $0x40] sm:$0xff]
        %v472 = vld [vmem:[%s307 + $0x48] sm:$0xff]
        %v473 = vld [vmem:[%s307 + $0x50] sm:$0xff]
        %v474 = vld [vmem:[%s307 + $0x58] sm:$0xff]
        %v475 = vld [vmem:[%s307 + $0x60] sm:$0xff]
        %v476 = vld [vmem:[%s307 + $0x68] sm:$0xff]
        %v477 = vld [vmem:[%s307 + $0x70] sm:$0xff]
        %v478 = vld [vmem:[%s307 + $0x78] sm:$0xff]
        %v479 = vld [vmem:[%s307 + $0x80] sm:$0xff]
        %v480 = vld [vmem:[%s307 + $0x88] sm:$0xff]
        %v481 = vld [vmem:[%s307 + $0x90] sm:$0xff]
        %v482 = vld [vmem:[%s307 + $0x98] sm:$0xff]
        %v483 = vld [vmem:[%s307 + $0xa0] sm:$0xff]
        %v484 = vld [vmem:[%s307 + $0xa8] sm:$0xff]
        %v485 = vld [vmem:[%s307 + $0xb0] sm:$0xff]
        %v486 = vld [vmem:[%s307 + $0xb8] sm:$0xff]
        %v487 = vld [vmem:[%s307 + $0xc0] sm:$0xff]
        %v488 = vld [vmem:[%s307 + $0xc8] sm:$0xff]
        %v489 = vld [vmem:[%s307 + $0xd0] sm:$0xff]
        %v490 = vld [vmem:[%s307 + $0xd8] sm:$0xff]
        %v491 = vld [vmem:[%s307 + $0xe0] sm:$0xff]
        %v492 = vld [vmem:[%s307 + $0xe8] sm:$0xff]
        %v493 = vld [vmem:[%s307 + $0xf0] sm:$0xff]
        %v494 = vld [vmem:[%s307 + $0xf8] sm:$0xff]
        %vm495 = vcmask 523264
        %v497 = vsel %vm495, %v459, 0
        %v500 = vsel %vm495, %v460, 0
        %v503 = vsel %vm495, %v461, 0
        %v506 = vsel %vm495, %v462, 0
        %508 = vmatpush.msra.mxu0 0.0
        %509 = vmatpush.msra.mxu0 0.0
        %510 = vmatpush.msra.mxu0 0.0
        %511 = vmatpush.msra.mxu0 0.0
        %512 = vmatpush.msra.mxu0 0.0
        %513 = vmatpush.msra.mxu0 0.0
        %514 = vmatpush.msra.mxu0 0.0
        %515 = vmatpush.msra.mxu0 0.0
        %516 = vmatpush.msra.mxu0 %v491
        %517 = vmatpush.msra.mxu0 %v487
        %518 = vmatpush.msra.mxu0 %v483
        %519 = vmatpush.msra.mxu0 %v479
        %520 = vmatpush.msra.mxu0 %v475
        %521 = vmatpush.msra.mxu0 %v471
        %522 = vmatpush.msra.mxu0 %v467
        %523 = vmatpush.msra.mxu0 %v463
        %524 = vmatmul.f32.gmra.mxu0 %v497
        %v525 = vpop.f32.mrf.mxu0
        %v526 = vadd.f32 0.0, %v525
        %527 = vmatmul.f32.gmra.mxu0 %v500
        %v528 = vpop.f32.mrf.mxu0
        %v529 = vadd.f32 0.0, %v528
        %530 = vmatmul.f32.gmra.mxu0 %v503
        %v531 = vpop.f32.mrf.mxu0
        %v532 = vadd.f32 0.0, %v531
        %533 = vmatmul.f32.gmra.mxu0 %v506
        %v534 = vpop.f32.mrf.mxu0
        %v535 = vadd.f32 0.0, %v534
        %536 = vdwg.mxu0
        %537 = vmatpush.msra.mxu0 0.0
        %538 = vmatpush.msra.mxu0 0.0
        %539 = vmatpush.msra.mxu0 0.0
        %540 = vmatpush.msra.mxu0 0.0
        %541 = vmatpush.msra.mxu0 0.0
        %542 = vmatpush.msra.mxu0 0.0
        %543 = vmatpush.msra.mxu0 0.0
        %544 = vmatpush.msra.mxu0 0.0
        %545 = vmatpush.msra.mxu0 %v492
        %546 = vmatpush.msra.mxu0 %v488
        %547 = vmatpush.msra.mxu0 %v484
        %548 = vmatpush.msra.mxu0 %v480
        %549 = vmatpush.msra.mxu0 %v476
        %550 = vmatpush.msra.mxu0 %v472
        %551 = vmatpush.msra.mxu0 %v468
        %552 = vmatpush.msra.mxu0 %v464
        %553 = vmatmul.f32.gmra.mxu0 %v497
        %v554 = vpop.f32.mrf.mxu0
        %v555 = vadd.f32 0.0, %v554
        %556 = vmatmul.f32.gmra.mxu0 %v500
        %v557 = vpop.f32.mrf.mxu0
        %v558 = vadd.f32 0.0, %v557
        %559 = vmatmul.f32.gmra.mxu0 %v503
        %v560 = vpop.f32.mrf.mxu0
        %v561 = vadd.f32 0.0, %v560
        %562 = vmatmul.f32.gmra.mxu0 %v506
        %v563 = vpop.f32.mrf.mxu0
        %v564 = vadd.f32 0.0, %v563
        %565 = vdwg.mxu0
        %566 = vmatpush.msra.mxu0 0.0
        %567 = vmatpush.msra.mxu0 0.0
        %568 = vmatpush.msra.mxu0 0.0
        %569 = vmatpush.msra.mxu0 0.0
        %570 = vmatpush.msra.mxu0 0.0
        %571 = vmatpush.msra.mxu0 0.0
        %572 = vmatpush.msra.mxu0 0.0
        %573 = vmatpush.msra.mxu0 0.0
        %574 = vmatpush.msra.mxu0 %v493
        %575 = vmatpush.msra.mxu0 %v489
        %576 = vmatpush.msra.mxu0 %v485
        %577 = vmatpush.msra.mxu0 %v481
        %578 = vmatpush.msra.mxu0 %v477
        %579 = vmatpush.msra.mxu0 %v473
        %580 = vmatpush.msra.mxu0 %v469
        %581 = vmatpush.msra.mxu0 %v465
        %582 = vmatmul.f32.gmra.mxu0 %v497
        %v583 = vpop.f32.mrf.mxu0
        %v584 = vadd.f32 0.0, %v583
        %585 = vmatmul.f32.gmra.mxu0 %v500
        %v586 = vpop.f32.mrf.mxu0
        %v587 = vadd.f32 0.0, %v586
        %588 = vmatmul.f32.gmra.mxu0 %v503
        %v589 = vpop.f32.mrf.mxu0
        %v590 = vadd.f32 0.0, %v589
        %591 = vmatmul.f32.gmra.mxu0 %v506
        %v592 = vpop.f32.mrf.mxu0
        %v593 = vadd.f32 0.0, %v592
        %594 = vdwg.mxu0
        %595 = vmatpush.msra.mxu0 0.0
        %596 = vmatpush.msra.mxu0 0.0
        %597 = vmatpush.msra.mxu0 0.0
        %598 = vmatpush.msra.mxu0 0.0
        %599 = vmatpush.msra.mxu0 0.0
        %600 = vmatpush.msra.mxu0 0.0
        %601 = vmatpush.msra.mxu0 0.0
        %602 = vmatpush.msra.mxu0 0.0
        %603 = vmatpush.msra.mxu0 %v494
        %604 = vmatpush.msra.mxu0 %v490
        %605 = vmatpush.msra.mxu0 %v486
        %606 = vmatpush.msra.mxu0 %v482
        %607 = vmatpush.msra.mxu0 %v478
        %608 = vmatpush.msra.mxu0 %v474
        %609 = vmatpush.msra.mxu0 %v470
        %610 = vmatpush.msra.mxu0 %v466
        %611 = vmatmul.f32.gmra.mxu0 %v497
        %v612 = vpop.f32.mrf.mxu0
        %v613 = vadd.f32 0.0, %v612
        %614 = vmatmul.f32.gmra.mxu0 %v500
        %v615 = vpop.f32.mrf.mxu0
        %v616 = vadd.f32 0.0, %v615
        %617 = vmatmul.f32.gmra.mxu0 %v503
        %v618 = vpop.f32.mrf.mxu0
        %v619 = vadd.f32 0.0, %v618
        %620 = vmatmul.f32.gmra.mxu0 %v506
        %v621 = vpop.f32.mrf.mxu0
        %v622 = vadd.f32 0.0, %v621
        %623 = vdwg.mxu0
        %628 = vrot.lane.b32.xlu0 %v526, 96
        %v629 = vpop.permute.xlu0 %628
        %630 = vrot.lane.b32.xlu0 %v529, 96
        %v631 = vpop.permute.xlu0 %630
        %632 = vrot.lane.b32.xlu0 %v532, 96
        %v633 = vpop.permute.xlu0 %632
        %634 = vrot.lane.b32.xlu0 %v535, 96
        %v635 = vpop.permute.xlu0 %634
        %640 = vrot.lane.b32.xlu0 %v526, 64
        %v641 = vpop.permute.xlu0 %640
        %642 = vrot.lane.b32.xlu0 %v529, 64
        %v643 = vpop.permute.xlu0 %642
        %644 = vrot.lane.b32.xlu0 %v532, 64
        %v645 = vpop.permute.xlu0 %644
        %646 = vrot.lane.b32.xlu0 %v535, 64
        %v647 = vpop.permute.xlu0 %646
        %652 = vrot.lane.b32.xlu0 %v526, 32
        %v653 = vpop.permute.xlu0 %652
        %654 = vrot.lane.b32.xlu0 %v529, 32
        %v655 = vpop.permute.xlu0 %654
        %656 = vrot.lane.b32.xlu0 %v532, 32
        %v657 = vpop.permute.xlu0 %656
        %658 = vrot.lane.b32.xlu0 %v535, 32
        %v659 = vpop.permute.xlu0 %658
        %668 = vrot.lane.b32.xlu0 %v555, 96
        %v669 = vpop.permute.xlu0 %668
        %670 = vrot.lane.b32.xlu0 %v558, 96
        %v671 = vpop.permute.xlu0 %670
        %672 = vrot.lane.b32.xlu0 %v561, 96
        %v673 = vpop.permute.xlu0 %672
        %674 = vrot.lane.b32.xlu0 %v564, 96
        %v675 = vpop.permute.xlu0 %674
        %680 = vrot.lane.b32.xlu0 %v555, 64
        %v681 = vpop.permute.xlu0 %680
        %682 = vrot.lane.b32.xlu0 %v558, 64
        %v683 = vpop.permute.xlu0 %682
        %684 = vrot.lane.b32.xlu0 %v561, 64
        %v685 = vpop.permute.xlu0 %684
        %686 = vrot.lane.b32.xlu0 %v564, 64
        %v687 = vpop.permute.xlu0 %686
        %692 = vrot.lane.b32.xlu0 %v555, 32
        %v693 = vpop.permute.xlu0 %692
        %694 = vrot.lane.b32.xlu0 %v558, 32
        %v695 = vpop.permute.xlu0 %694
        %696 = vrot.lane.b32.xlu0 %v561, 32
        %v697 = vpop.permute.xlu0 %696
        %698 = vrot.lane.b32.xlu0 %v564, 32
        %v699 = vpop.permute.xlu0 %698
        %708 = vrot.lane.b32.xlu0 %v584, 96
        %v709 = vpop.permute.xlu0 %708
        %710 = vrot.lane.b32.xlu0 %v587, 96
        %v711 = vpop.permute.xlu0 %710
        %712 = vrot.lane.b32.xlu0 %v590, 96
        %v713 = vpop.permute.xlu0 %712
        %714 = vrot.lane.b32.xlu0 %v593, 96
        %v715 = vpop.permute.xlu0 %714
        %720 = vrot.lane.b32.xlu0 %v584, 64
        %v721 = vpop.permute.xlu0 %720
        %722 = vrot.lane.b32.xlu0 %v587, 64
        %v723 = vpop.permute.xlu0 %722
        %724 = vrot.lane.b32.xlu0 %v590, 64
        %v725 = vpop.permute.xlu0 %724
        %726 = vrot.lane.b32.xlu0 %v593, 64
        %v727 = vpop.permute.xlu0 %726
        %732 = vrot.lane.b32.xlu0 %v584, 32
        %v733 = vpop.permute.xlu0 %732
        %734 = vrot.lane.b32.xlu0 %v587, 32
        %v735 = vpop.permute.xlu0 %734
        %736 = vrot.lane.b32.xlu0 %v590, 32
        %v737 = vpop.permute.xlu0 %736
        %738 = vrot.lane.b32.xlu0 %v593, 32
        %v739 = vpop.permute.xlu0 %738
        %748 = vrot.lane.b32.xlu0 %v613, 96
        %v749 = vpop.permute.xlu0 %748
        %750 = vrot.lane.b32.xlu0 %v616, 96
        %v751 = vpop.permute.xlu0 %750
        %752 = vrot.lane.b32.xlu0 %v619, 96
        %v753 = vpop.permute.xlu0 %752
        %754 = vrot.lane.b32.xlu0 %v622, 96
        %v755 = vpop.permute.xlu0 %754
        %760 = vrot.lane.b32.xlu0 %v613, 64
        %v761 = vpop.permute.xlu0 %760
        %762 = vrot.lane.b32.xlu0 %v616, 64
        %v763 = vpop.permute.xlu0 %762
        %764 = vrot.lane.b32.xlu0 %v619, 64
        %v765 = vpop.permute.xlu0 %764
        %766 = vrot.lane.b32.xlu0 %v622, 64
        %v767 = vpop.permute.xlu0 %766
        %772 = vrot.lane.b32.xlu0 %v613, 32
        %v773 = vpop.permute.xlu0 %772
        %774 = vrot.lane.b32.xlu0 %v616, 32
        %v775 = vpop.permute.xlu0 %774
        %776 = vrot.lane.b32.xlu0 %v619, 32
        %v777 = vpop.permute.xlu0 %776
        %778 = vrot.lane.b32.xlu0 %v622, 32
        %v779 = vpop.permute.xlu0 %778
        %v784 = vrot.slane %v641, 4
        %vm785 = vcmask 1047556
        %v786 = vsel %vm785, %v784, %v526
        %v787 = vrot.slane %v526, 4
        %v788 = vsel %vm785, %v641, %v787
        %v790 = vunpack.c.l.s4 1983009808
        %v791 = vunpack.c.0.s8 %v790
        %v792 = vperm.slane %v786, %v791
        %v794 = vunpack.c.l.s4 1983009808
        %v795 = vunpack.c.0.s8 %v794
        %v796 = vperm.slane %v788, %v795
        %v797 = vrot.slane %v653, 4
        %v798 = vsel %vm785, %v797, %v629
        %v799 = vrot.slane %v629, 4
        %v800 = vsel %vm785, %v653, %v799
        %v802 = vunpack.c.l.s4 1983009808
        %v803 = vunpack.c.0.s8 %v802
        %v804 = vperm.slane %v798, %v803
        %v806 = vunpack.c.l.s4 1983009808
        %v807 = vunpack.c.0.s8 %v806
        %v808 = vperm.slane %v800, %v807
        %v809 = vrot.slane %v681, 4
        %v810 = vsel %vm785, %v809, %v555
        %v811 = vrot.slane %v555, 4
        %v812 = vsel %vm785, %v681, %v811
        %v814 = vunpack.c.l.s4 1983009808
        %v815 = vunpack.c.0.s8 %v814
        %v816 = vperm.slane %v810, %v815
        %v818 = vunpack.c.l.s4 1983009808
        %v819 = vunpack.c.0.s8 %v818
        %v820 = vperm.slane %v812, %v819
        %v821 = vrot.slane %v693, 4
        %v822 = vsel %vm785, %v821, %v669
        %v823 = vrot.slane %v669, 4
        %v824 = vsel %vm785, %v693, %v823
        %v826 = vunpack.c.l.s4 1983009808
        %v827 = vunpack.c.0.s8 %v826
        %v828 = vperm.slane %v822, %v827
        %v830 = vunpack.c.l.s4 1983009808
        %v831 = vunpack.c.0.s8 %v830
        %v832 = vperm.slane %v824, %v831
        %v833 = vrot.slane %v804, 4
        %v834 = vsel %vm785, %v833, %v792
        %v835 = vrot.slane %v792, 4
        %v836 = vsel %vm785, %v804, %v835
        %v838 = vunpack.c.l.s4 1934713408
        %v839 = vunpack.c.0.s8 %v838
        %v840 = vperm.slane %v834, %v839
        %v842 = vunpack.c.l.s4 1934713408
        %v843 = vunpack.c.0.s8 %v842
        %v844 = vperm.slane %v836, %v843
        %v845 = vrot.slane %v808, 4
        %v846 = vsel %vm785, %v845, %v796
        %v847 = vrot.slane %v796, 4
        %v848 = vsel %vm785, %v808, %v847
        %v850 = vunpack.c.l.s4 1934713408
        %v851 = vunpack.c.0.s8 %v850
        %v852 = vperm.slane %v846, %v851
        %v854 = vunpack.c.l.s4 1934713408
        %v855 = vunpack.c.0.s8 %v854
        %v856 = vperm.slane %v848, %v855
        %v857 = vrot.slane %v828, 4
        %v858 = vsel %vm785, %v857, %v816
        %v859 = vrot.slane %v816, 4
        %v860 = vsel %vm785, %v828, %v859
        %v862 = vunpack.c.l.s4 1934713408
        %v863 = vunpack.c.0.s8 %v862
        %v864 = vperm.slane %v858, %v863
        %v866 = vunpack.c.l.s4 1934713408
        %v867 = vunpack.c.0.s8 %v866
        %v868 = vperm.slane %v860, %v867
        %v869 = vrot.slane %v832, 4
        %v870 = vsel %vm785, %v869, %v820
        %v871 = vrot.slane %v820, 4
        %v872 = vsel %vm785, %v832, %v871
        %v874 = vunpack.c.l.s4 1934713408
        %v875 = vunpack.c.0.s8 %v874
        %v876 = vperm.slane %v870, %v875
        %v878 = vunpack.c.l.s4 1934713408
        %v879 = vunpack.c.0.s8 %v878
        %v880 = vperm.slane %v872, %v879
        %v881 = vrot.slane %v864, 4
        %v882 = vsel %vm785, %v881, %v840
        %v883 = vrot.slane %v840, 4
        %v884 = vsel %vm785, %v864, %v883
        %v885 = vrot.slane %v868, 4
        %v886 = vsel %vm785, %v885, %v844
        %v887 = vrot.slane %v844, 4
        %v888 = vsel %vm785, %v868, %v887
        %v889 = vrot.slane %v876, 4
        %v890 = vsel %vm785, %v889, %v852
        %v891 = vrot.slane %v852, 4
        %v892 = vsel %vm785, %v876, %v891
        %v893 = vrot.slane %v880, 4
        %v894 = vsel %vm785, %v893, %v856
        %v895 = vrot.slane %v856, 4
        %v896 = vsel %vm785, %v880, %v895
        %v897 = vrot.slane %v721, 4
        %v898 = vsel %vm785, %v897, %v584
        %v899 = vrot.slane %v584, 4
        %v900 = vsel %vm785, %v721, %v899
        %v902 = vunpack.c.l.s4 1983009808
        %v903 = vunpack.c.0.s8 %v902
        %v904 = vperm.slane %v898, %v903
        %v906 = vunpack.c.l.s4 1983009808
        %v907 = vunpack.c.0.s8 %v906
        %v908 = vperm.slane %v900, %v907
        %v909 = vrot.slane %v733, 4
        %v910 = vsel %vm785, %v909, %v709
        %v911 = vrot.slane %v709, 4
        %v912 = vsel %vm785, %v733, %v911
        %v914 = vunpack.c.l.s4 1983009808
        %v915 = vunpack.c.0.s8 %v914
        %v916 = vperm.slane %v910, %v915
        %v918 = vunpack.c.l.s4 1983009808
        %v919 = vunpack.c.0.s8 %v918
        %v920 = vperm.slane %v912, %v919
        %v921 = vrot.slane %v761, 4
        %v922 = vsel %vm785, %v921, %v613
        %v923 = vrot.slane %v613, 4
        %v924 = vsel %vm785, %v761, %v923
        %v926 = vunpack.c.l.s4 1983009808
        %v927 = vunpack.c.0.s8 %v926
        %v928 = vperm.slane %v922, %v927
        %v930 = vunpack.c.l.s4 1983009808
        %v931 = vunpack.c.0.s8 %v930
        %v932 = vperm.slane %v924, %v931
        %v933 = vrot.slane %v773, 4
        %v934 = vsel %vm785, %v933, %v749
        %v935 = vrot.slane %v749, 4
        %v936 = vsel %vm785, %v773, %v935
        %v938 = vunpack.c.l.s4 1983009808
        %v939 = vunpack.c.0.s8 %v938
        %v940 = vperm.slane %v934, %v939
        %v942 = vunpack.c.l.s4 1983009808
        %v943 = vunpack.c.0.s8 %v942
        %v944 = vperm.slane %v936, %v943
        %v945 = vrot.slane %v916, 4
        %v946 = vsel %vm785, %v945, %v904
        %v947 = vrot.slane %v904, 4
        %v948 = vsel %vm785, %v916, %v947
        %v950 = vunpack.c.l.s4 1934713408
        %v951 = vunpack.c.0.s8 %v950
        %v952 = vperm.slane %v946, %v951
        %v954 = vunpack.c.l.s4 1934713408
        %v955 = vunpack.c.0.s8 %v954
        %v956 = vperm.slane %v948, %v955
        %v957 = vrot.slane %v920, 4
        %v958 = vsel %vm785, %v957, %v908
        %v959 = vrot.slane %v908, 4
        %v960 = vsel %vm785, %v920, %v959
        %v962 = vunpack.c.l.s4 1934713408
        %v963 = vunpack.c.0.s8 %v962
        %v964 = vperm.slane %v958, %v963
        %v966 = vunpack.c.l.s4 1934713408
        %v967 = vunpack.c.0.s8 %v966
        %v968 = vperm.slane %v960, %v967
        %v969 = vrot.slane %v940, 4
        %v970 = vsel %vm785, %v969, %v928
        %v971 = vrot.slane %v928, 4
        %v972 = vsel %vm785, %v940, %v971
        %v974 = vunpack.c.l.s4 1934713408
        %v975 = vunpack.c.0.s8 %v974
        %v976 = vperm.slane %v970, %v975
        %v978 = vunpack.c.l.s4 1934713408
        %v979 = vunpack.c.0.s8 %v978
        %v980 = vperm.slane %v972, %v979
        %v981 = vrot.slane %v944, 4
        %v982 = vsel %vm785, %v981, %v932
        %v983 = vrot.slane %v932, 4
        %v984 = vsel %vm785, %v944, %v983
        %v986 = vunpack.c.l.s4 1934713408
        %v987 = vunpack.c.0.s8 %v986
        %v988 = vperm.slane %v982, %v987
        %v990 = vunpack.c.l.s4 1934713408
        %v991 = vunpack.c.0.s8 %v990
        %v992 = vperm.slane %v984, %v991
        %v993 = vrot.slane %v976, 4
        %v994 = vsel %vm785, %v993, %v952
        %v995 = vrot.slane %v952, 4
        %v996 = vsel %vm785, %v976, %v995
        %v997 = vrot.slane %v980, 4
        %v998 = vsel %vm785, %v997, %v956
        %v999 = vrot.slane %v956, 4
        %v1000 = vsel %vm785, %v980, %v999
        %v1001 = vrot.slane %v988, 4
        %v1002 = vsel %vm785, %v1001, %v964
        %v1003 = vrot.slane %v964, 4
        %v1004 = vsel %vm785, %v988, %v1003
        %v1005 = vrot.slane %v992, 4
        %v1006 = vsel %vm785, %v1005, %v968
        %v1007 = vrot.slane %v968, 4
        %v1008 = vsel %vm785, %v992, %v1007
        %v1009 = vrot.slane %v643, 4
        %v1010 = vsel %vm785, %v1009, %v529
        %v1011 = vrot.slane %v529, 4
        %v1012 = vsel %vm785, %v643, %v1011
        %v1014 = vunpack.c.l.s4 1983009808
        %v1015 = vunpack.c.0.s8 %v1014
        %v1016 = vperm.slane %v1010, %v1015
        %v1018 = vunpack.c.l.s4 1983009808
        %v1019 = vunpack.c.0.s8 %v1018
        %v1020 = vperm.slane %v1012, %v1019
        %v1021 = vrot.slane %v655, 4
        %v1022 = vsel %vm785, %v1021, %v631
        %v1023 = vrot.slane %v631, 4
        %v1024 = vsel %vm785, %v655, %v1023
        %v1026 = vunpack.c.l.s4 1983009808
        %v1027 = vunpack.c.0.s8 %v1026
        %v1028 = vperm.slane %v1022, %v1027
        %v1030 = vunpack.c.l.s4 1983009808
        %v1031 = vunpack.c.0.s8 %v1030
        %v1032 = vperm.slane %v1024, %v1031
        %v1033 = vrot.slane %v683, 4
        %v1034 = vsel %vm785, %v1033, %v558
        %v1035 = vrot.slane %v558, 4
        %v1036 = vsel %vm785, %v683, %v1035
        %v1038 = vunpack.c.l.s4 1983009808
        %v1039 = vunpack.c.0.s8 %v1038
        %v1040 = vperm.slane %v1034, %v1039
        %v1042 = vunpack.c.l.s4 1983009808
        %v1043 = vunpack.c.0.s8 %v1042
        %v1044 = vperm.slane %v1036, %v1043
        %v1045 = vrot.slane %v695, 4
        %v1046 = vsel %vm785, %v1045, %v671
        %v1047 = vrot.slane %v671, 4
        %v1048 = vsel %vm785, %v695, %v1047
        %v1050 = vunpack.c.l.s4 1983009808
        %v1051 = vunpack.c.0.s8 %v1050
        %v1052 = vperm.slane %v1046, %v1051
        %v1054 = vunpack.c.l.s4 1983009808
        %v1055 = vunpack.c.0.s8 %v1054
        %v1056 = vperm.slane %v1048, %v1055
        %v1057 = vrot.slane %v1028, 4
        %v1058 = vsel %vm785, %v1057, %v1016
        %v1059 = vrot.slane %v1016, 4
        %v1060 = vsel %vm785, %v1028, %v1059
        %v1062 = vunpack.c.l.s4 1934713408
        %v1063 = vunpack.c.0.s8 %v1062
        %v1064 = vperm.slane %v1058, %v1063
        %v1066 = vunpack.c.l.s4 1934713408
        %v1067 = vunpack.c.0.s8 %v1066
        %v1068 = vperm.slane %v1060, %v1067
        %v1069 = vrot.slane %v1032, 4
        %v1070 = vsel %vm785, %v1069, %v1020
        %v1071 = vrot.slane %v1020, 4
        %v1072 = vsel %vm785, %v1032, %v1071
        %v1074 = vunpack.c.l.s4 1934713408
        %v1075 = vunpack.c.0.s8 %v1074
        %v1076 = vperm.slane %v1070, %v1075
        %v1078 = vunpack.c.l.s4 1934713408
        %v1079 = vunpack.c.0.s8 %v1078
        %v1080 = vperm.slane %v1072, %v1079
        %v1081 = vrot.slane %v1052, 4
        %v1082 = vsel %vm785, %v1081, %v1040
        %v1083 = vrot.slane %v1040, 4
        %v1084 = vsel %vm785, %v1052, %v1083
        %v1086 = vunpack.c.l.s4 1934713408
        %v1087 = vunpack.c.0.s8 %v1086
        %v1088 = vperm.slane %v1082, %v1087
        %v1090 = vunpack.c.l.s4 1934713408
        %v1091 = vunpack.c.0.s8 %v1090
        %v1092 = vperm.slane %v1084, %v1091
        %v1093 = vrot.slane %v1056, 4
        %v1094 = vsel %vm785, %v1093, %v1044
        %v1095 = vrot.slane %v1044, 4
        %v1096 = vsel %vm785, %v1056, %v1095
        %v1098 = vunpack.c.l.s4 1934713408
        %v1099 = vunpack.c.0.s8 %v1098
        %v1100 = vperm.slane %v1094, %v1099
        %v1102 = vunpack.c.l.s4 1934713408
        %v1103 = vunpack.c.0.s8 %v1102
        %v1104 = vperm.slane %v1096, %v1103
        %v1105 = vrot.slane %v1088, 4
        %v1106 = vsel %vm785, %v1105, %v1064
        %v1107 = vrot.slane %v1064, 4
        %v1108 = vsel %vm785, %v1088, %v1107
        %v1109 = vrot.slane %v1092, 4
        %v1110 = vsel %vm785, %v1109, %v1068
        %v1111 = vrot.slane %v1068, 4
        %v1112 = vsel %vm785, %v1092, %v1111
        %v1113 = vrot.slane %v1100, 4
        %v1114 = vsel %vm785, %v1113, %v1076
        %v1115 = vrot.slane %v1076, 4
        %v1116 = vsel %vm785, %v1100, %v1115
        %v1117 = vrot.slane %v1104, 4
        %v1118 = vsel %vm785, %v1117, %v1080
        %v1119 = vrot.slane %v1080, 4
        %v1120 = vsel %vm785, %v1104, %v1119
        %v1121 = vrot.slane %v723, 4
        %v1122 = vsel %vm785, %v1121, %v587
        %v1123 = vrot.slane %v587, 4
        %v1124 = vsel %vm785, %v723, %v1123
        %v1126 = vunpack.c.l.s4 1983009808
        %v1127 = vunpack.c.0.s8 %v1126
        %v1128 = vperm.slane %v1122, %v1127
        %v1130 = vunpack.c.l.s4 1983009808
        %v1131 = vunpack.c.0.s8 %v1130
        %v1132 = vperm.slane %v1124, %v1131
        %v1133 = vrot.slane %v735, 4
        %v1134 = vsel %vm785, %v1133, %v711
        %v1135 = vrot.slane %v711, 4
        %v1136 = vsel %vm785, %v735, %v1135
        %v1138 = vunpack.c.l.s4 1983009808
        %v1139 = vunpack.c.0.s8 %v1138
        %v1140 = vperm.slane %v1134, %v1139
        %v1142 = vunpack.c.l.s4 1983009808
        %v1143 = vunpack.c.0.s8 %v1142
        %v1144 = vperm.slane %v1136, %v1143
        %v1145 = vrot.slane %v763, 4
        %v1146 = vsel %vm785, %v1145, %v616
        %v1147 = vrot.slane %v616, 4
        %v1148 = vsel %vm785, %v763, %v1147
        %v1150 = vunpack.c.l.s4 1983009808
        %v1151 = vunpack.c.0.s8 %v1150
        %v1152 = vperm.slane %v1146, %v1151
        %v1154 = vunpack.c.l.s4 1983009808
        %v1155 = vunpack.c.0.s8 %v1154
        %v1156 = vperm.slane %v1148, %v1155
        %v1157 = vrot.slane %v775, 4
        %v1158 = vsel %vm785, %v1157, %v751
        %v1159 = vrot.slane %v751, 4
        %v1160 = vsel %vm785, %v775, %v1159
        %v1162 = vunpack.c.l.s4 1983009808
        %v1163 = vunpack.c.0.s8 %v1162
        %v1164 = vperm.slane %v1158, %v1163
        %v1166 = vunpack.c.l.s4 1983009808
        %v1167 = vunpack.c.0.s8 %v1166
        %v1168 = vperm.slane %v1160, %v1167
        %v1169 = vrot.slane %v1140, 4
        %v1170 = vsel %vm785, %v1169, %v1128
        %v1171 = vrot.slane %v1128, 4
        %v1172 = vsel %vm785, %v1140, %v1171
        %v1174 = vunpack.c.l.s4 1934713408
        %v1175 = vunpack.c.0.s8 %v1174
        %v1176 = vperm.slane %v1170, %v1175
        %v1178 = vunpack.c.l.s4 1934713408
        %v1179 = vunpack.c.0.s8 %v1178
        %v1180 = vperm.slane %v1172, %v1179
        %v1181 = vrot.slane %v1144, 4
        %v1182 = vsel %vm785, %v1181, %v1132
        %v1183 = vrot.slane %v1132, 4
        %v1184 = vsel %vm785, %v1144, %v1183
        %v1186 = vunpack.c.l.s4 1934713408
        %v1187 = vunpack.c.0.s8 %v1186
        %v1188 = vperm.slane %v1182, %v1187
        %v1190 = vunpack.c.l.s4 1934713408
        %v1191 = vunpack.c.0.s8 %v1190
        %v1192 = vperm.slane %v1184, %v1191
        %v1193 = vrot.slane %v1164, 4
        %v1194 = vsel %vm785, %v1193, %v1152
        %v1195 = vrot.slane %v1152, 4
        %v1196 = vsel %vm785, %v1164, %v1195
        %v1198 = vunpack.c.l.s4 1934713408
        %v1199 = vunpack.c.0.s8 %v1198
        %v1200 = vperm.slane %v1194, %v1199
        %v1202 = vunpack.c.l.s4 1934713408
        %v1203 = vunpack.c.0.s8 %v1202
        %v1204 = vperm.slane %v1196, %v1203
        %v1205 = vrot.slane %v1168, 4
        %v1206 = vsel %vm785, %v1205, %v1156
        %v1207 = vrot.slane %v1156, 4
        %v1208 = vsel %vm785, %v1168, %v1207
        %v1210 = vunpack.c.l.s4 1934713408
        %v1211 = vunpack.c.0.s8 %v1210
        %v1212 = vperm.slane %v1206, %v1211
        %v1214 = vunpack.c.l.s4 1934713408
        %v1215 = vunpack.c.0.s8 %v1214
        %v1216 = vperm.slane %v1208, %v1215
        %v1217 = vrot.slane %v1200, 4
        %v1218 = vsel %vm785, %v1217, %v1176
        %v1219 = vrot.slane %v1176, 4
        %v1220 = vsel %vm785, %v1200, %v1219
        %v1221 = vrot.slane %v1204, 4
        %v1222 = vsel %vm785, %v1221, %v1180
        %v1223 = vrot.slane %v1180, 4
        %v1224 = vsel %vm785, %v1204, %v1223
        %v1225 = vrot.slane %v1212, 4
        %v1226 = vsel %vm785, %v1225, %v1188
        %v1227 = vrot.slane %v1188, 4
        %v1228 = vsel %vm785, %v1212, %v1227
        %v1229 = vrot.slane %v1216, 4
        %v1230 = vsel %vm785, %v1229, %v1192
        %v1231 = vrot.slane %v1192, 4
        %v1232 = vsel %vm785, %v1216, %v1231
        %v1233 = vrot.slane %v645, 4
        %v1234 = vsel %vm785, %v1233, %v532
        %v1235 = vrot.slane %v532, 4
        %v1236 = vsel %vm785, %v645, %v1235
        %v1238 = vunpack.c.l.s4 1983009808
        %v1239 = vunpack.c.0.s8 %v1238
        %v1240 = vperm.slane %v1234, %v1239
        %v1242 = vunpack.c.l.s4 1983009808
        %v1243 = vunpack.c.0.s8 %v1242
        %v1244 = vperm.slane %v1236, %v1243
        %v1245 = vrot.slane %v657, 4
        %v1246 = vsel %vm785, %v1245, %v633
        %v1247 = vrot.slane %v633, 4
        %v1248 = vsel %vm785, %v657, %v1247
        %v1250 = vunpack.c.l.s4 1983009808
        %v1251 = vunpack.c.0.s8 %v1250
        %v1252 = vperm.slane %v1246, %v1251
        %v1254 = vunpack.c.l.s4 1983009808
        %v1255 = vunpack.c.0.s8 %v1254
        %v1256 = vperm.slane %v1248, %v1255
        %v1257 = vrot.slane %v685, 4
        %v1258 = vsel %vm785, %v1257, %v561
        %v1259 = vrot.slane %v561, 4
        %v1260 = vsel %vm785, %v685, %v1259
        %v1262 = vunpack.c.l.s4 1983009808
        %v1263 = vunpack.c.0.s8 %v1262
        %v1264 = vperm.slane %v1258, %v1263
        %v1266 = vunpack.c.l.s4 1983009808
        %v1267 = vunpack.c.0.s8 %v1266
        %v1268 = vperm.slane %v1260, %v1267
        %v1269 = vrot.slane %v697, 4
        %v1270 = vsel %vm785, %v1269, %v673
        %v1271 = vrot.slane %v673, 4
        %v1272 = vsel %vm785, %v697, %v1271
        %v1274 = vunpack.c.l.s4 1983009808
        %v1275 = vunpack.c.0.s8 %v1274
        %v1276 = vperm.slane %v1270, %v1275
        %v1278 = vunpack.c.l.s4 1983009808
        %v1279 = vunpack.c.0.s8 %v1278
        %v1280 = vperm.slane %v1272, %v1279
        %v1281 = vrot.slane %v1252, 4
        %v1282 = vsel %vm785, %v1281, %v1240
        %v1283 = vrot.slane %v1240, 4
        %v1284 = vsel %vm785, %v1252, %v1283
        %v1286 = vunpack.c.l.s4 1934713408
        %v1287 = vunpack.c.0.s8 %v1286
        %v1288 = vperm.slane %v1282, %v1287
        %v1290 = vunpack.c.l.s4 1934713408
        %v1291 = vunpack.c.0.s8 %v1290
        %v1292 = vperm.slane %v1284, %v1291
        %v1293 = vrot.slane %v1256, 4
        %v1294 = vsel %vm785, %v1293, %v1244
        %v1295 = vrot.slane %v1244, 4
        %v1296 = vsel %vm785, %v1256, %v1295
        %v1298 = vunpack.c.l.s4 1934713408
        %v1299 = vunpack.c.0.s8 %v1298
        %v1300 = vperm.slane %v1294, %v1299
        %v1302 = vunpack.c.l.s4 1934713408
        %v1303 = vunpack.c.0.s8 %v1302
        %v1304 = vperm.slane %v1296, %v1303
        %v1305 = vrot.slane %v1276, 4
        %v1306 = vsel %vm785, %v1305, %v1264
        %v1307 = vrot.slane %v1264, 4
        %v1308 = vsel %vm785, %v1276, %v1307
        %v1310 = vunpack.c.l.s4 1934713408
        %v1311 = vunpack.c.0.s8 %v1310
        %v1312 = vperm.slane %v1306, %v1311
        %v1314 = vunpack.c.l.s4 1934713408
        %v1315 = vunpack.c.0.s8 %v1314
        %v1316 = vperm.slane %v1308, %v1315
        %v1317 = vrot.slane %v1280, 4
        %v1318 = vsel %vm785, %v1317, %v1268
        %v1319 = vrot.slane %v1268, 4
        %v1320 = vsel %vm785, %v1280, %v1319
        %v1322 = vunpack.c.l.s4 1934713408
        %v1323 = vunpack.c.0.s8 %v1322
        %v1324 = vperm.slane %v1318, %v1323
        %v1326 = vunpack.c.l.s4 1934713408
        %v1327 = vunpack.c.0.s8 %v1326
        %v1328 = vperm.slane %v1320, %v1327
        %v1329 = vrot.slane %v1312, 4
        %v1330 = vsel %vm785, %v1329, %v1288
        %v1331 = vrot.slane %v1288, 4
        %v1332 = vsel %vm785, %v1312, %v1331
        %v1333 = vrot.slane %v1316, 4
        %v1334 = vsel %vm785, %v1333, %v1292
        %v1335 = vrot.slane %v1292, 4
        %v1336 = vsel %vm785, %v1316, %v1335
        %v1337 = vrot.slane %v1324, 4
        %v1338 = vsel %vm785, %v1337, %v1300
        %v1339 = vrot.slane %v1300, 4
        %v1340 = vsel %vm785, %v1324, %v1339
        %v1341 = vrot.slane %v1328, 4
        %v1342 = vsel %vm785, %v1341, %v1304
        %v1343 = vrot.slane %v1304, 4
        %v1344 = vsel %vm785, %v1328, %v1343
        %v1345 = vrot.slane %v725, 4
        %v1346 = vsel %vm785, %v1345, %v590
        %v1347 = vrot.slane %v590, 4
        %v1348 = vsel %vm785, %v725, %v1347
        %v1350 = vunpack.c.l.s4 1983009808
        %v1351 = vunpack.c.0.s8 %v1350
        %v1352 = vperm.slane %v1346, %v1351
        %v1354 = vunpack.c.l.s4 1983009808
        %v1355 = vunpack.c.0.s8 %v1354
        %v1356 = vperm.slane %v1348, %v1355
        %v1357 = vrot.slane %v737, 4
        %v1358 = vsel %vm785, %v1357, %v713
        %v1359 = vrot.slane %v713, 4
        %v1360 = vsel %vm785, %v737, %v1359
        %v1362 = vunpack.c.l.s4 1983009808
        %v1363 = vunpack.c.0.s8 %v1362
        %v1364 = vperm.slane %v1358, %v1363
        %v1366 = vunpack.c.l.s4 1983009808
        %v1367 = vunpack.c.0.s8 %v1366
        %v1368 = vperm.slane %v1360, %v1367
        %v1369 = vrot.slane %v765, 4
        %v1370 = vsel %vm785, %v1369, %v619
        %v1371 = vrot.slane %v619, 4
        %v1372 = vsel %vm785, %v765, %v1371
        %v1374 = vunpack.c.l.s4 1983009808
        %v1375 = vunpack.c.0.s8 %v1374
        %v1376 = vperm.slane %v1370, %v1375
        %v1378 = vunpack.c.l.s4 1983009808
        %v1379 = vunpack.c.0.s8 %v1378
        %v1380 = vperm.slane %v1372, %v1379
        %v1381 = vrot.slane %v777, 4
        %v1382 = vsel %vm785, %v1381, %v753
        %v1383 = vrot.slane %v753, 4
        %v1384 = vsel %vm785, %v777, %v1383
        %v1386 = vunpack.c.l.s4 1983009808
        %v1387 = vunpack.c.0.s8 %v1386
        %v1388 = vperm.slane %v1382, %v1387
        %v1390 = vunpack.c.l.s4 1983009808
        %v1391 = vunpack.c.0.s8 %v1390
        %v1392 = vperm.slane %v1384, %v1391
        %v1393 = vrot.slane %v1364, 4
        %v1394 = vsel %vm785, %v1393, %v1352
        %v1395 = vrot.slane %v1352, 4
        %v1396 = vsel %vm785, %v1364, %v1395
        %v1398 = vunpack.c.l.s4 1934713408
        %v1399 = vunpack.c.0.s8 %v1398
        %v1400 = vperm.slane %v1394, %v1399
        %v1402 = vunpack.c.l.s4 1934713408
        %v1403 = vunpack.c.0.s8 %v1402
        %v1404 = vperm.slane %v1396, %v1403
        %v1405 = vrot.slane %v1368, 4
        %v1406 = vsel %vm785, %v1405, %v1356
        %v1407 = vrot.slane %v1356, 4
        %v1408 = vsel %vm785, %v1368, %v1407
        %v1410 = vunpack.c.l.s4 1934713408
        %v1411 = vunpack.c.0.s8 %v1410
        %v1412 = vperm.slane %v1406, %v1411
        %v1414 = vunpack.c.l.s4 1934713408
        %v1415 = vunpack.c.0.s8 %v1414
        %v1416 = vperm.slane %v1408, %v1415
        %v1417 = vrot.slane %v1388, 4
        %v1418 = vsel %vm785, %v1417, %v1376
        %v1419 = vrot.slane %v1376, 4
        %v1420 = vsel %vm785, %v1388, %v1419
        %v1422 = vunpack.c.l.s4 1934713408
        %v1423 = vunpack.c.0.s8 %v1422
        %v1424 = vperm.slane %v1418, %v1423
        %v1426 = vunpack.c.l.s4 1934713408
        %v1427 = vunpack.c.0.s8 %v1426
        %v1428 = vperm.slane %v1420, %v1427
        %v1429 = vrot.slane %v1392, 4
        %v1430 = vsel %vm785, %v1429, %v1380
        %v1431 = vrot.slane %v1380, 4
        %v1432 = vsel %vm785, %v1392, %v1431
        %v1434 = vunpack.c.l.s4 1934713408
        %v1435 = vunpack.c.0.s8 %v1434
        %v1436 = vperm.slane %v1430, %v1435
        %v1438 = vunpack.c.l.s4 1934713408
        %v1439 = vunpack.c.0.s8 %v1438
        %v1440 = vperm.slane %v1432, %v1439
        %v1441 = vrot.slane %v1424, 4
        %v1442 = vsel %vm785, %v1441, %v1400
        %v1443 = vrot.slane %v1400, 4
        %v1444 = vsel %vm785, %v1424, %v1443
        %v1445 = vrot.slane %v1428, 4
        %v1446 = vsel %vm785, %v1445, %v1404
        %v1447 = vrot.slane %v1404, 4
        %v1448 = vsel %vm785, %v1428, %v1447
        %v1449 = vrot.slane %v1436, 4
        %v1450 = vsel %vm785, %v1449, %v1412
        %v1451 = vrot.slane %v1412, 4
        %v1452 = vsel %vm785, %v1436, %v1451
        %v1453 = vrot.slane %v1440, 4
        %v1454 = vsel %vm785, %v1453, %v1416
        %v1455 = vrot.slane %v1416, 4
        %v1456 = vsel %vm785, %v1440, %v1455
        %v1457 = vrot.slane %v647, 4
        %v1458 = vsel %vm785, %v1457, %v535
        %v1459 = vrot.slane %v535, 4
        %v1460 = vsel %vm785, %v647, %v1459
        %v1462 = vunpack.c.l.s4 1983009808
        %v1463 = vunpack.c.0.s8 %v1462
        %v1464 = vperm.slane %v1458, %v1463
        %v1466 = vunpack.c.l.s4 1983009808
        %v1467 = vunpack.c.0.s8 %v1466
        %v1468 = vperm.slane %v1460, %v1467
        %v1469 = vrot.slane %v659, 4
        %v1470 = vsel %vm785, %v1469, %v635
        %v1471 = vrot.slane %v635, 4
        %v1472 = vsel %vm785, %v659, %v1471
        %v1474 = vunpack.c.l.s4 1983009808
        %v1475 = vunpack.c.0.s8 %v1474
        %v1476 = vperm.slane %v1470, %v1475
        %v1478 = vunpack.c.l.s4 1983009808
        %v1479 = vunpack.c.0.s8 %v1478
        %v1480 = vperm.slane %v1472, %v1479
        %v1481 = vrot.slane %v687, 4
        %v1482 = vsel %vm785, %v1481, %v564
        %v1483 = vrot.slane %v564, 4
        %v1484 = vsel %vm785, %v687, %v1483
        %v1486 = vunpack.c.l.s4 1983009808
        %v1487 = vunpack.c.0.s8 %v1486
        %v1488 = vperm.slane %v1482, %v1487
        %v1490 = vunpack.c.l.s4 1983009808
        %v1491 = vunpack.c.0.s8 %v1490
        %v1492 = vperm.slane %v1484, %v1491
        %v1493 = vrot.slane %v699, 4
        %v1494 = vsel %vm785, %v1493, %v675
        %v1495 = vrot.slane %v675, 4
        %v1496 = vsel %vm785, %v699, %v1495
        %v1498 = vunpack.c.l.s4 1983009808
        %v1499 = vunpack.c.0.s8 %v1498
        %v1500 = vperm.slane %v1494, %v1499
        %v1502 = vunpack.c.l.s4 1983009808
        %v1503 = vunpack.c.0.s8 %v1502
        %v1504 = vperm.slane %v1496, %v1503
        %v1505 = vrot.slane %v1476, 4
        %v1506 = vsel %vm785, %v1505, %v1464
        %v1507 = vrot.slane %v1464, 4
        %v1508 = vsel %vm785, %v1476, %v1507
        %v1510 = vunpack.c.l.s4 1934713408
        %v1511 = vunpack.c.0.s8 %v1510
        %v1512 = vperm.slane %v1506, %v1511
        %v1514 = vunpack.c.l.s4 1934713408
        %v1515 = vunpack.c.0.s8 %v1514
        %v1516 = vperm.slane %v1508, %v1515
        %v1517 = vrot.slane %v1480, 4
        %v1518 = vsel %vm785, %v1517, %v1468
        %v1519 = vrot.slane %v1468, 4
        %v1520 = vsel %vm785, %v1480, %v1519
        %v1522 = vunpack.c.l.s4 1934713408
        %v1523 = vunpack.c.0.s8 %v1522
        %v1524 = vperm.slane %v1518, %v1523
        %v1526 = vunpack.c.l.s4 1934713408
        %v1527 = vunpack.c.0.s8 %v1526
        %v1528 = vperm.slane %v1520, %v1527
        %v1529 = vrot.slane %v1500, 4
        %v1530 = vsel %vm785, %v1529, %v1488
        %v1531 = vrot.slane %v1488, 4
        %v1532 = vsel %vm785, %v1500, %v1531
        %v1534 = vunpack.c.l.s4 1934713408
        %v1535 = vunpack.c.0.s8 %v1534
        %v1536 = vperm.slane %v1530, %v1535
        %v1538 = vunpack.c.l.s4 1934713408
        %v1539 = vunpack.c.0.s8 %v1538
        %v1540 = vperm.slane %v1532, %v1539
        %v1541 = vrot.slane %v1504, 4
        %v1542 = vsel %vm785, %v1541, %v1492
        %v1543 = vrot.slane %v1492, 4
        %v1544 = vsel %vm785, %v1504, %v1543
        %v1546 = vunpack.c.l.s4 1934713408
        %v1547 = vunpack.c.0.s8 %v1546
        %v1548 = vperm.slane %v1542, %v1547
        %v1550 = vunpack.c.l.s4 1934713408
        %v1551 = vunpack.c.0.s8 %v1550
        %v1552 = vperm.slane %v1544, %v1551
        %v1553 = vrot.slane %v1536, 4
        %v1554 = vsel %vm785, %v1553, %v1512
        %v1555 = vrot.slane %v1512, 4
        %v1556 = vsel %vm785, %v1536, %v1555
        %v1557 = vrot.slane %v1540, 4
        %v1558 = vsel %vm785, %v1557, %v1516
        %v1559 = vrot.slane %v1516, 4
        %v1560 = vsel %vm785, %v1540, %v1559
        %v1561 = vrot.slane %v1548, 4
        %v1562 = vsel %vm785, %v1561, %v1524
        %v1563 = vrot.slane %v1524, 4
        %v1564 = vsel %vm785, %v1548, %v1563
        %v1565 = vrot.slane %v1552, 4
        %v1566 = vsel %vm785, %v1565, %v1528
        %v1567 = vrot.slane %v1528, 4
        %v1568 = vsel %vm785, %v1552, %v1567
        %v1569 = vrot.slane %v727, 4
        %v1570 = vsel %vm785, %v1569, %v593
        %v1571 = vrot.slane %v593, 4
        %v1572 = vsel %vm785, %v727, %v1571
        %v1574 = vunpack.c.l.s4 1983009808
        %v1575 = vunpack.c.0.s8 %v1574
        %v1576 = vperm.slane %v1570, %v1575
        %v1578 = vunpack.c.l.s4 1983009808
        %v1579 = vunpack.c.0.s8 %v1578
        %v1580 = vperm.slane %v1572, %v1579
        %v1581 = vrot.slane %v739, 4
        %v1582 = vsel %vm785, %v1581, %v715
        %v1583 = vrot.slane %v715, 4
        %v1584 = vsel %vm785, %v739, %v1583
        %v1586 = vunpack.c.l.s4 1983009808
        %v1587 = vunpack.c.0.s8 %v1586
        %v1588 = vperm.slane %v1582, %v1587
        %v1590 = vunpack.c.l.s4 1983009808
        %v1591 = vunpack.c.0.s8 %v1590
        %v1592 = vperm.slane %v1584, %v1591
        %v1593 = vrot.slane %v767, 4
        %v1594 = vsel %vm785, %v1593, %v622
        %v1595 = vrot.slane %v622, 4
        %v1596 = vsel %vm785, %v767, %v1595
        %v1598 = vunpack.c.l.s4 1983009808
        %v1599 = vunpack.c.0.s8 %v1598
        %v1600 = vperm.slane %v1594, %v1599
        %v1602 = vunpack.c.l.s4 1983009808
        %v1603 = vunpack.c.0.s8 %v1602
        %v1604 = vperm.slane %v1596, %v1603
        %v1605 = vrot.slane %v779, 4
        %v1606 = vsel %vm785, %v1605, %v755
        %v1607 = vrot.slane %v755, 4
        %v1608 = vsel %vm785, %v779, %v1607
        %v1610 = vunpack.c.l.s4 1983009808
        %v1611 = vunpack.c.0.s8 %v1610
        %v1612 = vperm.slane %v1606, %v1611
        %v1614 = vunpack.c.l.s4 1983009808
        %v1615 = vunpack.c.0.s8 %v1614
        %v1616 = vperm.slane %v1608, %v1615
        %v1617 = vrot.slane %v1588, 4
        %v1618 = vsel %vm785, %v1617, %v1576
        %v1619 = vrot.slane %v1576, 4
        %v1620 = vsel %vm785, %v1588, %v1619
        %v1622 = vunpack.c.l.s4 1934713408
        %v1623 = vunpack.c.0.s8 %v1622
        %v1624 = vperm.slane %v1618, %v1623
        %v1626 = vunpack.c.l.s4 1934713408
        %v1627 = vunpack.c.0.s8 %v1626
        %v1628 = vperm.slane %v1620, %v1627
        %v1629 = vrot.slane %v1592, 4
        %v1630 = vsel %vm785, %v1629, %v1580
        %v1631 = vrot.slane %v1580, 4
        %v1632 = vsel %vm785, %v1592, %v1631
        %v1634 = vunpack.c.l.s4 1934713408
        %v1635 = vunpack.c.0.s8 %v1634
        %v1636 = vperm.slane %v1630, %v1635
        %v1638 = vunpack.c.l.s4 1934713408
        %v1639 = vunpack.c.0.s8 %v1638
        %v1640 = vperm.slane %v1632, %v1639
        %v1641 = vrot.slane %v1612, 4
        %v1642 = vsel %vm785, %v1641, %v1600
        %v1643 = vrot.slane %v1600, 4
        %v1644 = vsel %vm785, %v1612, %v1643
        %v1646 = vunpack.c.l.s4 1934713408
        %v1647 = vunpack.c.0.s8 %v1646
        %v1648 = vperm.slane %v1642, %v1647
        %v1650 = vunpack.c.l.s4 1934713408
        %v1651 = vunpack.c.0.s8 %v1650
        %v1652 = vperm.slane %v1644, %v1651
        %v1653 = vrot.slane %v1616, 4
        %v1654 = vsel %vm785, %v1653, %v1604
        %v1655 = vrot.slane %v1604, 4
        %v1656 = vsel %vm785, %v1616, %v1655
        %v1658 = vunpack.c.l.s4 1934713408
        %v1659 = vunpack.c.0.s8 %v1658
        %v1660 = vperm.slane %v1654, %v1659
        %v1662 = vunpack.c.l.s4 1934713408
        %v1663 = vunpack.c.0.s8 %v1662
        %v1664 = vperm.slane %v1656, %v1663
        %v1665 = vrot.slane %v1648, 4
        %v1666 = vsel %vm785, %v1665, %v1624
        %v1667 = vrot.slane %v1624, 4
        %v1668 = vsel %vm785, %v1648, %v1667
        %v1669 = vrot.slane %v1652, 4
        %v1670 = vsel %vm785, %v1669, %v1628
        %v1671 = vrot.slane %v1628, 4
        %v1672 = vsel %vm785, %v1652, %v1671
        %v1673 = vrot.slane %v1660, 4
        %v1674 = vsel %vm785, %v1673, %v1636
        %v1675 = vrot.slane %v1636, 4
        %v1676 = vsel %vm785, %v1660, %v1675
        %v1677 = vrot.slane %v1664, 4
        %v1678 = vsel %vm785, %v1677, %v1640
        %v1679 = vrot.slane %v1640, 4
        %v1680 = vsel %vm785, %v1664, %v1679
        %vm1681 = vcmask 261120
        %1682 = vst.msk [vmem:[%s343] sm:$0xff] %vm1681, %v882
        %1683 = vst.msk [vmem:[%s343 + $0x8] sm:$0xff] %vm1681, %v994
        %1684 = vst.msk [vmem:[%s343 + $0x10] sm:$0xff] %vm1681, %v884
        %1685 = vst.msk [vmem:[%s343 + $0x18] sm:$0xff] %vm1681, %v996
        %1686 = vst.msk [vmem:[%s343 + $0x20] sm:$0xff] %vm1681, %v886
        %1687 = vst.msk [vmem:[%s343 + $0x28] sm:$0xff] %vm1681, %v998
        %1688 = vst.msk [vmem:[%s343 + $0x30] sm:$0xff] %vm1681, %v888
        %1689 = vst.msk [vmem:[%s343 + $0x38] sm:$0xff] %vm1681, %v1000
        %1690 = vst.msk [vmem:[%s343 + $0x40] sm:$0xff] %vm1681, %v890
        %1691 = vst.msk [vmem:[%s343 + $0x48] sm:$0xff] %vm1681, %v1002
        %1692 = vst.msk [vmem:[%s343 + $0x50] sm:$0xff] %vm1681, %v892
        %1693 = vst.msk [vmem:[%s343 + $0x58] sm:$0xff] %vm1681, %v1004
        %1694 = vst.msk [vmem:[%s343 + $0x60] sm:$0xff] %vm1681, %v894
        %1695 = vst.msk [vmem:[%s343 + $0x68] sm:$0xff] %vm1681, %v1006
        %1696 = vst.msk [vmem:[%s343 + $0x70] sm:$0xff] %vm1681, %v896
        %1697 = vst.msk [vmem:[%s343 + $0x78] sm:$0xff] %vm1681, %v1008
        %1698 = vst.msk [vmem:[%s343 + $0x80] sm:$0xff] %vm1681, %v1106
        %1699 = vst.msk [vmem:[%s343 + $0x88] sm:$0xff] %vm1681, %v1218
        %1700 = vst.msk [vmem:[%s343 + $0x90] sm:$0xff] %vm1681, %v1108
        %1701 = vst.msk [vmem:[%s343 + $0x98] sm:$0xff] %vm1681, %v1220
        %1702 = vst.msk [vmem:[%s343 + $0xa0] sm:$0xff] %vm1681, %v1110
        %1703 = vst.msk [vmem:[%s343 + $0xa8] sm:$0xff] %vm1681, %v1222
        %1704 = vst.msk [vmem:[%s343 + $0xb0] sm:$0xff] %vm1681, %v1112
        %1705 = vst.msk [vmem:[%s343 + $0xb8] sm:$0xff] %vm1681, %v1224
        %1706 = vst.msk [vmem:[%s343 + $0xc0] sm:$0xff] %vm1681, %v1114
        %1707 = vst.msk [vmem:[%s343 + $0xc8] sm:$0xff] %vm1681, %v1226
        %1708 = vst.msk [vmem:[%s343 + $0xd0] sm:$0xff] %vm1681, %v1116
        %1709 = vst.msk [vmem:[%s343 + $0xd8] sm:$0xff] %vm1681, %v1228
        %1710 = vst.msk [vmem:[%s343 + $0xe0] sm:$0xff] %vm1681, %v1118
        %1711 = vst.msk [vmem:[%s343 + $0xe8] sm:$0xff] %vm1681, %v1230
        %1712 = vst.msk [vmem:[%s343 + $0xf0] sm:$0xff] %vm1681, %v1120
        %1713 = vst.msk [vmem:[%s343 + $0xf8] sm:$0xff] %vm1681, %v1232
        %1714 = vst.msk [vmem:[%s343 + $0x100] sm:$0xff] %vm1681, %v1330
        %1715 = vst.msk [vmem:[%s343 + $0x108] sm:$0xff] %vm1681, %v1442
        %1716 = vst.msk [vmem:[%s343 + $0x110] sm:$0xff] %vm1681, %v1332
        %1717 = vst.msk [vmem:[%s343 + $0x118] sm:$0xff] %vm1681, %v1444
        %1718 = vst.msk [vmem:[%s343 + $0x120] sm:$0xff] %vm1681, %v1334
        %1719 = vst.msk [vmem:[%s343 + $0x128] sm:$0xff] %vm1681, %v1446
        %1720 = vst.msk [vmem:[%s343 + $0x130] sm:$0xff] %vm1681, %v1336
        %1721 = vst.msk [vmem:[%s343 + $0x138] sm:$0xff] %vm1681, %v1448
        %1722 = vst.msk [vmem:[%s343 + $0x140] sm:$0xff] %vm1681, %v1338
        %1723 = vst.msk [vmem:[%s343 + $0x148] sm:$0xff] %vm1681, %v1450
        %1724 = vst.msk [vmem:[%s343 + $0x150] sm:$0xff] %vm1681, %v1340
        %1725 = vst.msk [vmem:[%s343 + $0x158] sm:$0xff] %vm1681, %v1452
        %1726 = vst.msk [vmem:[%s343 + $0x160] sm:$0xff] %vm1681, %v1342
        %1727 = vst.msk [vmem:[%s343 + $0x168] sm:$0xff] %vm1681, %v1454
        %1728 = vst.msk [vmem:[%s343 + $0x170] sm:$0xff] %vm1681, %v1344
        %1729 = vst.msk [vmem:[%s343 + $0x178] sm:$0xff] %vm1681, %v1456
        %1730 = vst.msk [vmem:[%s343 + $0x180] sm:$0xff] %vm1681, %v1554
        %1731 = vst.msk [vmem:[%s343 + $0x188] sm:$0xff] %vm1681, %v1666
        %1732 = vst.msk [vmem:[%s343 + $0x190] sm:$0xff] %vm1681, %v1556
        %1733 = vst.msk [vmem:[%s343 + $0x198] sm:$0xff] %vm1681, %v1668
        %1734 = vst.msk [vmem:[%s343 + $0x1a0] sm:$0xff] %vm1681, %v1558
        %1735 = vst.msk [vmem:[%s343 + $0x1a8] sm:$0xff] %vm1681, %v1670
        %1736 = vst.msk [vmem:[%s343 + $0x1b0] sm:$0xff] %vm1681, %v1560
        %1737 = vst.msk [vmem:[%s343 + $0x1b8] sm:$0xff] %vm1681, %v1672
        %1738 = vst.msk [vmem:[%s343 + $0x1c0] sm:$0xff] %vm1681, %v1562
        %1739 = vst.msk [vmem:[%s343 + $0x1c8] sm:$0xff] %vm1681, %v1674
        %1740 = vst.msk [vmem:[%s343 + $0x1d0] sm:$0xff] %vm1681, %v1564
        %1741 = vst.msk [vmem:[%s343 + $0x1d8] sm:$0xff] %vm1681, %v1676
        %1742 = vst.msk [vmem:[%s343 + $0x1e0] sm:$0xff] %vm1681, %v1566
        %1743 = vst.msk [vmem:[%s343 + $0x1e8] sm:$0xff] %vm1681, %v1678
        %1744 = vst.msk [vmem:[%s343 + $0x1f0] sm:$0xff] %vm1681, %v1568
        %1745 = vst.msk [vmem:[%s343 + $0x1f8] sm:$0xff] %vm1681, %v1680
        %s1746 = sand.u32 %s150, 1
        %s1747 = sand.u32 %s150, 1
        %s1748 = smul.addr %s1747, 512
        %s1749 = scalar_lea.vmem [#allocation4], %s1748
        // Predicated region
        $region64: #{ffm_v3_forward.3} parent=54 // pred_check
          %p1750 = pneg %p160
        $region65: #{ffm_v3_forward.3} parent=54 // pred_check_branch
          %1752 = sbr.rel (%p1750) target = $region67
        $region66: #{ffm_v3_forward.3} parent=54 // pred_region
          %s1753 = smul.u32 32, %s21
          %s1754 = smul.u32 2, %s22
          %s1755 = ssub.s32 56, %s1753
          %p1756 = scmp.lt.s32.totalorder %s1755, 32
          %s1757 = scalar_select %p1756, %s1755, 32
          %s1758 = smul.u32 8, %s1757
          %s1759 = smul.u32 %s1758, 2
          %p1760 = scmp.ne.s32.totalorder 0, %s1759
          %s1761 = smul.addr %s1753, 4
          %s1762 = sadd.s32 %s1754, %s1761
          %s1763 = smul.addr %s20, 224
          %s1764 = sadd.s32 %s1762, %s1763
          %s1765 = smul.addr %s1764, 8
          %s1766 = scalar_lea.vmem %s4, %s1765
          // Predicated region
          $region68: #{ffm_v3_forward.3} parent=66 // pred_check
            %p1767 = pneg %p1760
          $region69: #{ffm_v3_forward.3} parent=66 // pred_check_branch
            %1769 = sbr.rel (%p1767) target = $region71
          $region70: #{ffm_v3_forward.3} parent=66 // pred_region
            // Predicated region
            $region72: #{ffm_v3_forward.3} parent=70 // pred_check
              _
            $region73: #{ffm_v3_forward.3} parent=70 // pred_check_branch
              %1771 = sbr.rel (0) target = $region75
            $region74: #{ffm_v3_forward.3} parent=70 // pred_region
              // Predicated region
              $region94: #{ffm_v3_forward.3} parent=74 // pred_check
                _
              $region95: #{ffm_v3_forward.3} parent=74 // pred_check_branch
                %1885 = sbr.rel (0) target = $region97
              $region96: #{ffm_v3_forward.3} parent=74 // pred_region
                %s1886 = sshrl.u32 %s1757, 4
                // While loop
                $region98: #{ffm_v3_forward.3} parent=96 // loop_pre_header
                  _
                $region99: #{ffm_v3_forward.3} parent=96 // loop_header
                  %s1888 = sphi 0, %s1890
                  %p1889 = scmp.ge.s32.totalorder %s1888, %s1886
                  %s1893 = sphi 0, %s1962
                  %s1894 = sphi %s1749, %s1965
                  %s1895 = sphi %s1766, %s1966
                $region100: #{ffm_v3_forward.3} parent=96 // loop_header_branch
                  %1892 = sbr.rel (%p1889) target = $region104
                $region101: #{ffm_v3_forward.3} parent=96 // loop_body
                  %v1896 = vld [vmem:[%s1894] sm:$0xff]
                  %1897 = vst [vmem:[%s1895] sm:$0xff] %v1896
                  %v1898 = vld [vmem:[%s1894 + $0x10] sm:$0xff]
                  %1899 = vst [vmem:[%s1895 + $0x20] sm:$0xff] %v1898
                  %v1900 = vld [vmem:[%s1894 + $0x20] sm:$0xff]
                  %1901 = vst [vmem:[%s1895 + $0x40] sm:$0xff] %v1900
                  %v1902 = vld [vmem:[%s1894 + $0x30] sm:$0xff]
                  %1903 = vst [vmem:[%s1895 + $0x60] sm:$0xff] %v1902
                  %v1904 = vld [vmem:[%s1894 + $0x40] sm:$0xff]
                  %1905 = vst [vmem:[%s1895 + $0x80] sm:$0xff] %v1904
                  %v1906 = vld [vmem:[%s1894 + $0x50] sm:$0xff]
                  %1907 = vst [vmem:[%s1895 + $0xa0] sm:$0xff] %v1906
                  %v1908 = vld [vmem:[%s1894 + $0x60] sm:$0xff]
                  %1909 = vst [vmem:[%s1895 + $0xc0] sm:$0xff] %v1908
                  %v1910 = vld [vmem:[%s1894 + $0x70] sm:$0xff]
                  %1911 = vst [vmem:[%s1895 + $0xe0] sm:$0xff] %v1910
                  %v1912 = vld [vmem:[%s1894 + $0x80] sm:$0xff]
                  %1913 = vst [vmem:[%s1895 + $0x100] sm:$0xff] %v1912
                  %v1914 = vld [vmem:[%s1894 + $0x90] sm:$0xff]
                  %1915 = vst [vmem:[%s1895 + $0x120] sm:$0xff] %v1914
                  %v1916 = vld [vmem:[%s1894 + $0xa0] sm:$0xff]
                  %1917 = vst [vmem:[%s1895 + $0x140] sm:$0xff] %v1916
                  %v1918 = vld [vmem:[%s1894 + $0xb0] sm:$0xff]
                  %1919 = vst [vmem:[%s1895 + $0x160] sm:$0xff] %v1918
                  %v1920 = vld [vmem:[%s1894 + $0xc0] sm:$0xff]
                  %1921 = vst [vmem:[%s1895 + $0x180] sm:$0xff] %v1920
                  %v1922 = vld [vmem:[%s1894 + $0xd0] sm:$0xff]
                  %1923 = vst [vmem:[%s1895 + $0x1a0] sm:$0xff] %v1922
                  %v1924 = vld [vmem:[%s1894 + $0xe0] sm:$0xff]
                  %1925 = vst [vmem:[%s1895 + $0x1c0] sm:$0xff] %v1924
                  %v1926 = vld [vmem:[%s1894 + $0xf0] sm:$0xff]
                  %1927 = vst [vmem:[%s1895 + $0x1e0] sm:$0xff] %v1926
                  %v1928 = vld [vmem:[%s1894 + $0x8] sm:$0xff]
                  %1929 = vst [vmem:[%s1895 + $0x8] sm:$0xff] %v1928
                  %v1930 = vld [vmem:[%s1894 + $0x18] sm:$0xff]
                  %1931 = vst [vmem:[%s1895 + $0x28] sm:$0xff] %v1930
                  %v1932 = vld [vmem:[%s1894 + $0x28] sm:$0xff]
                  %1933 = vst [vmem:[%s1895 + $0x48] sm:$0xff] %v1932
                  %v1934 = vld [vmem:[%s1894 + $0x38] sm:$0xff]
                  %1935 = vst [vmem:[%s1895 + $0x68] sm:$0xff] %v1934
                  %v1936 = vld [vmem:[%s1894 + $0x48] sm:$0xff]
                  %1937 = vst [vmem:[%s1895 + $0x88] sm:$0xff] %v1936
                  %v1938 = vld [vmem:[%s1894 + $0x58] sm:$0xff]
                  %1939 = vst [vmem:[%s1895 + $0xa8] sm:$0xff] %v1938
                  %v1940 = vld [vmem:[%s1894 + $0x68] sm:$0xff]
                  %1941 = vst [vmem:[%s1895 + $0xc8] sm:$0xff] %v1940
                  %v1942 = vld [vmem:[%s1894 + $0x78] sm:$0xff]
                  %1943 = vst [vmem:[%s1895 + $0xe8] sm:$0xff] %v1942
                  %v1944 = vld [vmem:[%s1894 + $0x88] sm:$0xff]
                  %1945 = vst [vmem:[%s1895 + $0x108] sm:$0xff] %v1944
                  %v1946 = vld [vmem:[%s1894 + $0x98] sm:$0xff]
                  %1947 = vst [vmem:[%s1895 + $0x128] sm:$0xff] %v1946
                  %v1948 = vld [vmem:[%s1894 + $0xa8] sm:$0xff]
                  %1949 = vst [vmem:[%s1895 + $0x148] sm:$0xff] %v1948
                  %v1950 = vld [vmem:[%s1894 + $0xb8] sm:$0xff]
                  %1951 = vst [vmem:[%s1895 + $0x168] sm:$0xff] %v1950
                  %v1952 = vld [vmem:[%s1894 + $0xc8] sm:$0xff]
                  %1953 = vst [vmem:[%s1895 + $0x188] sm:$0xff] %v1952
                  %v1954 = vld [vmem:[%s1894 + $0xd8] sm:$0xff]
                  %1955 = vst [vmem:[%s1895 + $0x1a8] sm:$0xff] %v1954
                  %v1956 = vld [vmem:[%s1894 + $0xe8] sm:$0xff]
                  %1957 = vst [vmem:[%s1895 + $0x1c8] sm:$0xff] %v1956
                  %v1958 = vld [vmem:[%s1894 + $0xf8] sm:$0xff]
                  %1959 = vst [vmem:[%s1895 + $0x1e8] sm:$0xff] %v1958
                  %s1960 = sadd.s32 1, %s1893
                  %p1961 = scmp.ge.s32.totalorder %s1960, %s1886
                  %s1962 = scalar_select %p1961, 0, %s1960
                  %s1963 = smul.u32 %s1962, 256
                  %s1964 = smul.u32 %s1962, 512
                  %s1965 = scalar_lea.vmem %s1749, %s1963 [#allocation4]
                  %s1966 = scalar_lea.vmem %s1766, %s1964
                $region102: #{ffm_v3_forward.3} parent=96 // loop_footer
                  %s1890 = sadd.s32 %s1888, 1
                $region103: #{ffm_v3_forward.3} parent=96 // loop_footer_branch
                  %1887 = sbr.rel target = $region99
                $region104: #{ffm_v3_forward.3} parent=96 // loop_exit
                  _
                %s1967 = sshrl.u32 %s1757, 4
                %s1968 = sand.u32 %s1757, 15
                %s1969 = smul.u32 %s1967, 16
                %s1970 = smul.u32 16, %s1969
                %s1971 = scalar_lea.vmem %s1749, %s1970 [#allocation4]
                %s1972 = smul.u32 32, %s1969
                %s1973 = scalar_lea.vmem %s1766, %s1972
                // While loop
                $region105: #{ffm_v3_forward.3} parent=96 // loop_pre_header
                  _
                $region106: #{ffm_v3_forward.3} parent=96 // loop_header
                  %s1975 = sphi 0, %s1977
                  %p1976 = scmp.ge.s32.totalorder %s1975, %s1968
                  %s1980 = sphi 0, %s1989
                  %s1981 = sphi %s1971, %s1992
                  %s1982 = sphi %s1973, %s1993
                $region107: #{ffm_v3_forward.3} parent=96 // loop_header_branch
                  %1979 = sbr.rel (%p1976) target = $region111
                $region108: #{ffm_v3_forward.3} parent=96 // loop_body
                  %v1983 = vld [vmem:[%s1981] sm:$0xff]
                  %1984 = vst [vmem:[%s1982] sm:$0xff] %v1983
                  %v1985 = vld [vmem:[%s1981 + $0x8] sm:$0xff]
                  %1986 = vst [vmem:[%s1982 + $0x8] sm:$0xff] %v1985
                  %s1987 = sadd.s32 1, %s1980
                  %p1988 = scmp.ge.s32.totalorder %s1987, %s1968
                  %s1989 = scalar_select %p1988, 0, %s1987
                  %s1990 = smul.u32 %s1989, 16
                  %s1991 = smul.u32 %s1989, 32
                  %s1992 = scalar_lea.vmem %s1971, %s1990 [#allocation4]
                  %s1993 = scalar_lea.vmem %s1973, %s1991
                $region109: #{ffm_v3_forward.3} parent=96 // loop_footer
                  %s1977 = sadd.s32 %s1975, 1
                $region110: #{ffm_v3_forward.3} parent=96 // loop_footer_branch
                  %1974 = sbr.rel target = $region106
                $region111: #{ffm_v3_forward.3} parent=96 // loop_exit
                  _
              $region97: #{ffm_v3_forward.3} parent=74 // pred_fallthru
                _
              // Predicated region
              $region112: #{ffm_v3_forward.3} parent=74 // pred_check
                _
              $region113: #{ffm_v3_forward.3} parent=74 // pred_check_branch
                %1995 = sbr.rel target = $region115
              $region114: #{ffm_v3_forward.3} parent=74 // pred_region
                _
              $region115: #{ffm_v3_forward.3} parent=74 // pred_fallthru
                _
            $region75: #{ffm_v3_forward.3} parent=70 // pred_fallthru
              _
            // Predicated region
            $region76: #{ffm_v3_forward.3} parent=70 // pred_check
              _
            $region77: #{ffm_v3_forward.3} parent=70 // pred_check_branch
              %1773 = sbr.rel target = $region79
            $region78: #{ffm_v3_forward.3} parent=70 // pred_region
              %s1775 = ssub.s32 256, 1
              %s1776 = sshrl.u32 %s1757, 4
              // While loop
              $region80: #{ffm_v3_forward.3} parent=78 // loop_pre_header
                _
              $region81: #{ffm_v3_forward.3} parent=78 // loop_header
                %s1778 = sphi 0, %s1780
                %p1779 = scmp.ge.s32.totalorder %s1778, %s1776
                %s1783 = sphi 0, %s1852
                %s1784 = sphi %s1749, %s1855
                %s1785 = sphi %s1766, %s1856
              $region82: #{ffm_v3_forward.3} parent=78 // loop_header_branch
                %1782 = sbr.rel (%p1779) target = $region86
              $region83: #{ffm_v3_forward.3} parent=78 // loop_body
                %v1786 = vld [vmem:[%s1784] sm:%s1775]
                %1787 = vst [vmem:[%s1785] sm:%s1775] %v1786
                %v1788 = vld [vmem:[%s1784 + $0x10] sm:%s1775]
                %1789 = vst [vmem:[%s1785 + $0x20] sm:%s1775] %v1788
                %v1790 = vld [vmem:[%s1784 + $0x20] sm:%s1775]
                %1791 = vst [vmem:[%s1785 + $0x40] sm:%s1775] %v1790
                %v1792 = vld [vmem:[%s1784 + $0x30] sm:%s1775]
                %1793 = vst [vmem:[%s1785 + $0x60] sm:%s1775] %v1792
                %v1794 = vld [vmem:[%s1784 + $0x40] sm:%s1775]
                %1795 = vst [vmem:[%s1785 + $0x80] sm:%s1775] %v1794
                %v1796 = vld [vmem:[%s1784 + $0x50] sm:%s1775]
                %1797 = vst [vmem:[%s1785 + $0xa0] sm:%s1775] %v1796
                %v1798 = vld [vmem:[%s1784 + $0x60] sm:%s1775]
                %1799 = vst [vmem:[%s1785 + $0xc0] sm:%s1775] %v1798
                %v1800 = vld [vmem:[%s1784 + $0x70] sm:%s1775]
                %1801 = vst [vmem:[%s1785 + $0xe0] sm:%s1775] %v1800
                %v1802 = vld [vmem:[%s1784 + $0x80] sm:%s1775]
                %1803 = vst [vmem:[%s1785 + $0x100] sm:%s1775] %v1802
                %v1804 = vld [vmem:[%s1784 + $0x90] sm:%s1775]
                %1805 = vst [vmem:[%s1785 + $0x120] sm:%s1775] %v1804
                %v1806 = vld [vmem:[%s1784 + $0xa0] sm:%s1775]
                %1807 = vst [vmem:[%s1785 + $0x140] sm:%s1775] %v1806
                %v1808 = vld [vmem:[%s1784 + $0xb0] sm:%s1775]
                %1809 = vst [vmem:[%s1785 + $0x160] sm:%s1775] %v1808
                %v1810 = vld [vmem:[%s1784 + $0xc0] sm:%s1775]
                %1811 = vst [vmem:[%s1785 + $0x180] sm:%s1775] %v1810
                %v1812 = vld [vmem:[%s1784 + $0xd0] sm:%s1775]
                %1813 = vst [vmem:[%s1785 + $0x1a0] sm:%s1775] %v1812
                %v1814 = vld [vmem:[%s1784 + $0xe0] sm:%s1775]
                %1815 = vst [vmem:[%s1785 + $0x1c0] sm:%s1775] %v1814
                %v1816 = vld [vmem:[%s1784 + $0xf0] sm:%s1775]
                %1817 = vst [vmem:[%s1785 + $0x1e0] sm:%s1775] %v1816
                %v1818 = vld [vmem:[%s1784 + $0x8] sm:%s1775]
                %1819 = vst [vmem:[%s1785 + $0x8] sm:%s1775] %v1818
                %v1820 = vld [vmem:[%s1784 + $0x18] sm:%s1775]
                %1821 = vst [vmem:[%s1785 + $0x28] sm:%s1775] %v1820
                %v1822 = vld [vmem:[%s1784 + $0x28] sm:%s1775]
                %1823 = vst [vmem:[%s1785 + $0x48] sm:%s1775] %v1822
                %v1824 = vld [vmem:[%s1784 + $0x38] sm:%s1775]
                %1825 = vst [vmem:[%s1785 + $0x68] sm:%s1775] %v1824
                %v1826 = vld [vmem:[%s1784 + $0x48] sm:%s1775]
                %1827 = vst [vmem:[%s1785 + $0x88] sm:%s1775] %v1826
                %v1828 = vld [vmem:[%s1784 + $0x58] sm:%s1775]
                %1829 = vst [vmem:[%s1785 + $0xa8] sm:%s1775] %v1828
                %v1830 = vld [vmem:[%s1784 + $0x68] sm:%s1775]
                %1831 = vst [vmem:[%s1785 + $0xc8] sm:%s1775] %v1830
                %v1832 = vld [vmem:[%s1784 + $0x78] sm:%s1775]
                %1833 = vst [vmem:[%s1785 + $0xe8] sm:%s1775] %v1832
                %v1834 = vld [vmem:[%s1784 + $0x88] sm:%s1775]
                %1835 = vst [vmem:[%s1785 + $0x108] sm:%s1775] %v1834
                %v1836 = vld [vmem:[%s1784 + $0x98] sm:%s1775]
                %1837 = vst [vmem:[%s1785 + $0x128] sm:%s1775] %v1836
                %v1838 = vld [vmem:[%s1784 + $0xa8] sm:%s1775]
                %1839 = vst [vmem:[%s1785 + $0x148] sm:%s1775] %v1838
                %v1840 = vld [vmem:[%s1784 + $0xb8] sm:%s1775]
                %1841 = vst [vmem:[%s1785 + $0x168] sm:%s1775] %v1840
                %v1842 = vld [vmem:[%s1784 + $0xc8] sm:%s1775]
                %1843 = vst [vmem:[%s1785 + $0x188] sm:%s1775] %v1842
                %v1844 = vld [vmem:[%s1784 + $0xd8] sm:%s1775]
                %1845 = vst [vmem:[%s1785 + $0x1a8] sm:%s1775] %v1844
                %v1846 = vld [vmem:[%s1784 + $0xe8] sm:%s1775]
                %1847 = vst [vmem:[%s1785 + $0x1c8] sm:%s1775] %v1846
                %v1848 = vld [vmem:[%s1784 + $0xf8] sm:%s1775]
                %1849 = vst [vmem:[%s1785 + $0x1e8] sm:%s1775] %v1848
                %s1850 = sadd.s32 1, %s1783
                %p1851 = scmp.ge.s32.totalorder %s1850, %s1776
                %s1852 = scalar_select %p1851, 0, %s1850
                %s1853 = smul.u32 %s1852, 256
                %s1854 = smul.u32 %s1852, 512
                %s1855 = scalar_lea.vmem %s1749, %s1853 [#allocation4]
                %s1856 = scalar_lea.vmem %s1766, %s1854
              $region84: #{ffm_v3_forward.3} parent=78 // loop_footer
                %s1780 = sadd.s32 %s1778, 1
              $region85: #{ffm_v3_forward.3} parent=78 // loop_footer_branch
                %1777 = sbr.rel target = $region81
              $region86: #{ffm_v3_forward.3} parent=78 // loop_exit
                _
              %s1857 = sshrl.u32 %s1757, 4
              %s1858 = sand.u32 %s1757, 15
              %s1859 = smul.u32 %s1857, 16
              %s1860 = smul.u32 16, %s1859
              %s1861 = scalar_lea.vmem %s1749, %s1860 [#allocation4]
              %s1862 = smul.u32 32, %s1859
              %s1863 = scalar_lea.vmem %s1766, %s1862
              // While loop
              $region87: #{ffm_v3_forward.3} parent=78 // loop_pre_header
                _
              $region88: #{ffm_v3_forward.3} parent=78 // loop_header
                %s1865 = sphi 0, %s1867
                %p1866 = scmp.ge.s32.totalorder %s1865, %s1858
                %s1870 = sphi 0, %s1879
                %s1871 = sphi %s1861, %s1882
                %s1872 = sphi %s1863, %s1883
              $region89: #{ffm_v3_forward.3} parent=78 // loop_header_branch
                %1869 = sbr.rel (%p1866) target = $region93
              $region90: #{ffm_v3_forward.3} parent=78 // loop_body
                %v1873 = vld [vmem:[%s1871] sm:%s1775]
                %1874 = vst [vmem:[%s1872] sm:%s1775] %v1873
                %v1875 = vld [vmem:[%s1871 + $0x8] sm:%s1775]
                %1876 = vst [vmem:[%s1872 + $0x8] sm:%s1775] %v1875
                %s1877 = sadd.s32 1, %s1870
                %p1878 = scmp.ge.s32.totalorder %s1877, %s1858
                %s1879 = scalar_select %p1878, 0, %s1877
                %s1880 = smul.u32 %s1879, 16
                %s1881 = smul.u32 %s1879, 32
                %s1882 = scalar_lea.vmem %s1861, %s1880 [#allocation4]
                %s1883 = scalar_lea.vmem %s1863, %s1881
              $region91: #{ffm_v3_forward.3} parent=78 // loop_footer
                %s1867 = sadd.s32 %s1865, 1
              $region92: #{ffm_v3_forward.3} parent=78 // loop_footer_branch
                %1864 = sbr.rel target = $region88
              $region93: #{ffm_v3_forward.3} parent=78 // loop_exit
                _
            $region79: #{ffm_v3_forward.3} parent=70 // pred_fallthru
              _
          $region71: #{ffm_v3_forward.3} parent=66 // pred_fallthru
            _
          %1996 = vnop
        $region67: #{ffm_v3_forward.3} parent=54 // pred_fallthru
          _
      $region55: #{ffm_v3_forward.3} parent=5 // pred_fallthru
        _
      %p1997 = scmp.le.s32.totalorder 2, %s10
      // Predicated region
      $region116: #{ffm_v3_forward.3} parent=5 // pred_check
        %p1998 = pneg %p1997
      $region117: #{ffm_v3_forward.3} parent=5 // pred_check_branch
        %2000 = sbr.rel (%p1998) target = $region119
      $region118: #{ffm_v3_forward.3} parent=5 // pred_region
        %s2001 = ssub.s32 %s10, 2
        // Predicated region
        $region120: #{ffm_v3_forward.3} parent=118 // pred_check
          %p2002 = pneg %p166
        $region121: #{ffm_v3_forward.3} parent=118 // pred_check_branch
          %2004 = sbr.rel (%p2002) target = $region123
        $region122: #{ffm_v3_forward.3} parent=118 // pred_region
          %s2005 = sand.u32 %s151, 1
          %s2006 = sand.u32 %s151, 1
          %s2007 = smul.addr %s2006, 512
          %s2008 = scalar_lea.vmem [#allocation4], %s2007
        $region123: #{ffm_v3_forward.3} parent=118 // pred_fallthru
          _
      $region119: #{ffm_v3_forward.3} parent=5 // pred_fallthru
        _
    $region6: #{ffm_v3_forward.3} parent=1 // loop_footer
      %s14 = sadd.s32 1, %s10
    $region7: #{ffm_v3_forward.3} parent=1 // loop_footer_branch
      %9 = sbr.rel target = $region3
    $region8: #{ffm_v3_forward.3} parent=1 // loop_exit
      _

// kernel: ffm_v3_forward.4
$region0: #{ffm_v3_forward.4}
  #allocation0 [shape = 'u32[]', space=smem, size = 0x4, offset = 0x4, fixed_abs, tag = 'smem constant byte address 0x4 - core index']
  #allocation1 [shape = 'u32[72,128]{1,0:T(1,128)}', space=vmem, size = 0x9000, scoped, tag = 'internal scratch']
  #allocation2 [shape = 'f32[16,288]{1,0:T(8,128)}', space=vmem, size = 0x6000, scoped, tag = 'scratch operand']
  %s0 = inlined_call_operand.vmem [shape: f32[2,32,342], index: 0, kind: input, shape index: {}]
  %s1 = inlined_call_operand.vmem [shape: f32[9,16,32], index: 1, kind: input, shape index: {}]
  %s2 = inlined_call_operand.vmem [shape: f32[16,1], index: 2, kind: input, shape index: {}]
  %s3 = inlined_call_operand.vmem [shape: f32[288,1024], index: 3, kind: input, shape index: {}]
  %s4 = inlined_call_operand.vmem [shape: f32[2,56,32,32], index: 4, kind: input, shape index: {}, may-alias: {4,5}]
  %s5 = inlined_call_operand.vmem [shape: f32[2,56,32,32], index: 5, kind: output, shape index: {}, may-alias: {4,5}]
  %s6 = sld [smem:[#allocation0]]
  $region124: #{ffm_v3_forward.4} parent=0
    _
  %s8 = ssub.s32 1, %s6
  %s9 = scalar_select 0, %s8, %s6
  $region1: #{ffm_v3_forward.4} parent=0
    #allocation3 [shape = 'u8[1179648]{0}', space=vmem, size = 0x120000, scoped, tag = 'input window, operand 3']
    #allocation4 [shape = 'u8[262144]{0}', space=vmem, size = 0x40000, scoped, tag = 'output window, operand 0']
    loop: start=0, step=1, limit=6
    $region2: #{ffm_v3_forward.4} parent=1 // loop_pre_header
      _
    $region3: #{ffm_v3_forward.4} parent=1 // loop_header
      %s11 = sphi 0, %s15
      %p12 = scmp.ge.s32.totalorder %s11, 6
      %s18 = sphi 0, %s37
      %s19 = sphi 0, %s33
      %s20 = sphi 0, %s29
      %s21 = sphi 0, %s18
      %s22 = sphi 0, %s19
      %s23 = sphi 0, %s20
      %s24 = sphi 0, %s21
      %s25 = sphi 0, %s22
      %s26 = sphi 0, %s23
      %s40 = sphi 0, %s42
      %s43 = sphi 0, %s40
      %s44 = sphi 0, %s43
      %s60 = sphi 0, %s44
      %s66 = sphi 0, %s68
      %s69 = sphi 0, %s66
      %s70 = sphi 0, %s69
      %s86 = sphi 0, %s70
      %s92 = sphi 0, %s94
      %s95 = sphi 0, %s92
      %s96 = sphi 0, %s95
      %s112 = sphi 0, %s96
      %s118 = sphi 0, %s120
      %s121 = sphi 0, %s118
      %s122 = sphi 0, %s121
      %s138 = sphi 0, %s122
      %s150 = sphi 0, %s152
      %s153 = sphi 0, %s150
      %s154 = sphi 0, %s153
      %s170 = sphi 0, %s154
    $region4: #{ffm_v3_forward.4} parent=1 // loop_header_branch
      %14 = sbr.rel (%p12) target = $region8
    $region5: #{ffm_v3_forward.4} parent=1 // loop_body
      %s16 = ssub.s32 %s11, 1
      %s17 = ssub.s32 %s11, 2
      %s27 = sadd.s32 1, %s20
      %p28 = scmp.ge.s32.totalorder %s27, 2
      %s29 = scalar_select %p28, 0, %s27
      %s30 = sadd.s32 1, %s19
      %s31 = scalar_select %p28, %s30, %s19
      %p32 = scmp.ge.s32.totalorder %s31, 1
      %s33 = scalar_select %p32, 0, %s31
      %s34 = sadd.s32 1, %s18
      %s35 = scalar_select %p32, %s34, %s18
      %p36 = scmp.ge.s32.totalorder %s35, 2
      %s37 = scalar_select %p36, 0, %s35
      %s38 = ssub.s32 %s18, %s37
      %p39 = scmp.eq.s32.totalorder %s38, 0
      %s41 = sadd.s32 %s40, 1
      %s42 = scalar_select %p39, %s40, %s41
      %p45 = pneg %p39
      %p46 = scmp.eq.s32.totalorder %s11, 3
      %p47 = por %p45, %p46
      %p48 = scmp.ne.s32.totalorder %s40, %s43
      %p49 = scmp.eq.s32.totalorder %s11, 0
      %p50 = por %p48, %p49
      %p51 = scmp.ne.s32.totalorder %s40, %s43
      %p52 = scmp.eq.s32.totalorder %s16, 3
      %p53 = por %p51, %p52
      %p54 = scmp.ne.s32.totalorder %s43, %s44
      %p55 = scmp.eq.s32.totalorder %s16, 0
      %p56 = por %p54, %p55
      %p57 = scmp.ne.s32.totalorder %s43, %s44
      %p58 = scmp.eq.s32.totalorder %s17, 3
      %p59 = por %p57, %p58
      %p61 = scmp.ne.s32.totalorder %s44, %s60
      %p62 = scmp.eq.s32.totalorder %s17, 0
      %p63 = por %p61, %p62
      %s64 = ssub.s32 %s19, %s33
      %p65 = scmp.eq.s32.totalorder %s64, 0
      %s67 = sadd.s32 %s66, 1
      %s68 = scalar_select %p65, %s66, %s67
      %p71 = pneg %p65
      %p72 = scmp.eq.s32.totalorder %s11, 3
      %p73 = por %p71, %p72
      %p74 = scmp.ne.s32.totalorder %s66, %s69
      %p75 = scmp.eq.s32.totalorder %s11, 0
      %p76 = por %p74, %p75
      %p77 = scmp.ne.s32.totalorder %s66, %s69
      %p78 = scmp.eq.s32.totalorder %s16, 3
      %p79 = por %p77, %p78
      %p80 = scmp.ne.s32.totalorder %s69, %s70
      %p81 = scmp.eq.s32.totalorder %s16, 0
      %p82 = por %p80, %p81
      %p83 = scmp.ne.s32.totalorder %s69, %s70
      %p84 = scmp.eq.s32.totalorder %s17, 3
      %p85 = por %p83, %p84
      %p87 = scmp.ne.s32.totalorder %s70, %s86
      %p88 = scmp.eq.s32.totalorder %s17, 0
      %p89 = por %p87, %p88
      %s90 = ssub.s32 %s19, %s33
      %p91 = scmp.eq.s32.totalorder %s90, 0
      %s93 = sadd.s32 %s92, 1
      %s94 = scalar_select %p91, %s92, %s93
      %p97 = pneg %p91
      %p98 = scmp.eq.s32.totalorder %s11, 3
      %p99 = por %p97, %p98
      %p100 = scmp.ne.s32.totalorder %s92, %s95
      %p101 = scmp.eq.s32.totalorder %s11, 0
      %p102 = por %p100, %p101
      %p103 = scmp.ne.s32.totalorder %s92, %s95
      %p104 = scmp.eq.s32.totalorder %s16, 3
      %p105 = por %p103, %p104
      %p106 = scmp.ne.s32.totalorder %s95, %s96
      %p107 = scmp.eq.s32.totalorder %s16, 0
      %p108 = por %p106, %p107
      %p109 = scmp.ne.s32.totalorder %s95, %s96
      %p110 = scmp.eq.s32.totalorder %s17, 3
      %p111 = por %p109, %p110
      %p113 = scmp.ne.s32.totalorder %s96, %s112
      %p114 = scmp.eq.s32.totalorder %s17, 0
      %p115 = por %p113, %p114
      %s116 = ssub.s32 %s20, %s29
      %p117 = scmp.eq.s32.totalorder %s116, 0
      %s119 = sadd.s32 %s118, 1
      %s120 = scalar_select %p117, %s118, %s119
      %p123 = pneg %p117
      %p124 = scmp.eq.s32.totalorder %s11, 3
      %p125 = por %p123, %p124
      %p126 = scmp.ne.s32.totalorder %s118, %s121
      %p127 = scmp.eq.s32.totalorder %s11, 0
      %p128 = por %p126, %p127
      %p129 = scmp.ne.s32.totalorder %s118, %s121
      %p130 = scmp.eq.s32.totalorder %s16, 3
      %p131 = por %p129, %p130
      %p132 = scmp.ne.s32.totalorder %s121, %s122
      %p133 = scmp.eq.s32.totalorder %s16, 0
      %p134 = por %p132, %p133
      %p135 = scmp.ne.s32.totalorder %s121, %s122
      %p136 = scmp.eq.s32.totalorder %s17, 3
      %p137 = por %p135, %p136
      %p139 = scmp.ne.s32.totalorder %s122, %s138
      %p140 = scmp.eq.s32.totalorder %s17, 0
      %p141 = por %p139, %p140
      %s142 = sadd.s32 %s19, 2
      %s143 = sadd.s32 %s33, 2
      %s144 = ssub.s32 %s18, %s37
      %s145 = ssub.s32 %s142, %s143
      %s146 = sor.u32 %s144, %s145
      %s147 = ssub.s32 %s20, %s29
      %s148 = sor.u32 %s146, %s147
      %p149 = scmp.eq.s32.totalorder %s148, 0
      %s151 = sadd.s32 %s150, 1
      %s152 = scalar_select %p149, %s150, %s151
      %p155 = pneg %p149
      %p156 = scmp.eq.s32.totalorder %s11, 3
      %p157 = por %p155, %p156
      %p158 = scmp.ne.s32.totalorder %s150, %s153
      %p159 = scmp.eq.s32.totalorder %s11, 0
      %p160 = por %p158, %p159
      %p161 = scmp.ne.s32.totalorder %s150, %s153
      %p162 = scmp.eq.s32.totalorder %s16, 3
      %p163 = por %p161, %p162
      %p164 = scmp.ne.s32.totalorder %s153, %s154
      %p165 = scmp.eq.s32.totalorder %s16, 0
      %p166 = por %p164, %p165
      %p167 = scmp.ne.s32.totalorder %s153, %s154
      %p168 = scmp.eq.s32.totalorder %s17, 3
      %p169 = por %p167, %p168
      %p171 = scmp.ne.s32.totalorder %s154, %s170
      %p172 = scmp.eq.s32.totalorder %s17, 0
      %p173 = por %p171, %p172
      %p174 = scmp.le.s32.totalorder 1, %s11
      %p175 = scmp.lt.s32.totalorder %s11, 5
      %p176 = pnand %p174, %p175
      %p177 = pneg %p176
      // Predicated region
      $region9: #{ffm_v3_forward.4} parent=5 // pred_check
        _
      $region10: #{ffm_v3_forward.4} parent=5 // pred_check_branch
        %179 = sbr.rel (%p176) target = $region12
      $region11: #{ffm_v3_forward.4} parent=5 // pred_region
        %s180 = ssub.s32 %s11, 1
        // Predicated region
        $region13: #{ffm_v3_forward.4} parent=11 // pred_check
          %p181 = pneg %p82
        $region14: #{ffm_v3_forward.4} parent=11 // pred_check_branch
          %183 = sbr.rel (%p181) target = $region16
        $region15: #{ffm_v3_forward.4} parent=11 // pred_region
          %s184 = smul.u32 2, %s22
          %p185 = scmp.lt.s32.totalorder %s184, 1
          %s186 = scalar_select %p185, %s184, 1
          %s187 = smul.addr %s186, 8
          %s188 = scalar_lea.vmem %s1, %s187
          %s189 = smul.u32 2, %s22
        $region16: #{ffm_v3_forward.4} parent=11 // pred_fallthru
          _
        // Predicated region
        $region17: #{ffm_v3_forward.4} parent=11 // pred_check
          %p190 = pneg %p108
        $region18: #{ffm_v3_forward.4} parent=11 // pred_check_branch
          %192 = sbr.rel (%p190) target = $region20
        $region19: #{ffm_v3_forward.4} parent=11 // pred_region
          %s193 = smul.u32 2, %s22
          %p194 = scmp.lt.s32.totalorder %s193, 1
          %s195 = scalar_select %p194, %s193, 1
          %s196 = smul.addr %s195, 8
          %s197 = scalar_lea.vmem %s2, %s196
          %s198 = smul.u32 2, %s22
        $region20: #{ffm_v3_forward.4} parent=11 // pred_fallthru
          _
      $region12: #{ffm_v3_forward.4} parent=5 // pred_fallthru
        _
      %p199 = scmp.lt.s32.totalorder %s11, 4
      // Predicated region
      $region21: #{ffm_v3_forward.4} parent=5 // pred_check
        %p200 = pneg %p199
      $region22: #{ffm_v3_forward.4} parent=5 // pred_check_branch
        %202 = sbr.rel (%p200) target = $region24
      $region23: #{ffm_v3_forward.4} parent=5 // pred_region
        // Predicated region
        $region25: #{ffm_v3_forward.4} parent=23 // pred_check
          %p203 = pneg %p50
        $region26: #{ffm_v3_forward.4} parent=23 // pred_check_branch
          %205 = sbr.rel (%p203) target = $region28
        $region27: #{ffm_v3_forward.4} parent=23 // pred_region
          %p206 = scmp.lt.s32.totalorder %s18, 1
          %s207 = scalar_select %p206, %s18, 1
          %s208 = smul.addr %s207, 12
          %s209 = smul.addr %s208, 8
          %s210 = scalar_lea.vmem %s0, %s209
        $region28: #{ffm_v3_forward.4} parent=23 // pred_fallthru
          _
        // Predicated region
        $region29: #{ffm_v3_forward.4} parent=23 // pred_check
          %p211 = pneg %p128
        $region30: #{ffm_v3_forward.4} parent=23 // pred_check_branch
          %213 = sbr.rel (%p211) target = $region32
        $region31: #{ffm_v3_forward.4} parent=23 // pred_region
          %s214 = sand.u32 %s118, 1
          %s215 = sand.u32 %s118, 1
          %s216 = smul.addr %s215, 1152
          %s217 = scalar_lea.vmem [#allocation3], %s216
          %s218 = smul.u32 4, %s20
          %s219 = smul.addr %s218, 8
          %s220 = scalar_lea.vmem %s3, %s219
          // Predicated region
          $region33: #{ffm_v3_forward.4} parent=31 // pred_check
            _
          $region34: #{ffm_v3_forward.4} parent=31 // pred_check_branch
            %222 = sbr.rel (0) target = $region36
          $region35: #{ffm_v3_forward.4} parent=31 // pred_region
            // Predicated region
            $region37: #{ffm_v3_forward.4} parent=35 // pred_check
              _
            $region38: #{ffm_v3_forward.4} parent=35 // pred_check_branch
              %224 = sbr.rel (0) target = $region40
            $region39: #{ffm_v3_forward.4} parent=35 // pred_region
              loop: start=0, step=1, limit=1
              $region41: #{ffm_v3_forward.4} parent=39 // loop_pre_header
                _
              $region42: #{ffm_v3_forward.4} parent=39 // loop_header
                %s226 = sphi 0, %s230
                %p227 = scmp.ge.s32.totalorder %s226, 1
                %s231 = sphi %s220, %s220
                %s232 = sphi %s217, %s217
              $region43: #{ffm_v3_forward.4} parent=39 // loop_header_branch
                %229 = sbr.rel (%p227) target = $region47
              $region44: #{ffm_v3_forward.4} parent=39 // loop_body
                %v233 = vld [vmem:[%s231] sm:$0xff]
                %234 = vst [vmem:[%s232] sm:$0xff] %v233
                %v235 = vld [vmem:[%s231 + $0x8] sm:$0xff]
                %236 = vst [vmem:[%s232 + $0x8] sm:$0xff] %v235
                %v237 = vld [vmem:[%s231 + $0x10] sm:$0xff]
                %238 = vst [vmem:[%s232 + $0x10] sm:$0xff] %v237
                %v239 = vld [vmem:[%s231 + $0x18] sm:$0xff]
                %240 = vst [vmem:[%s232 + $0x18] sm:$0xff] %v239
                %v241 = vld [vmem:[%s231 + $0x40] sm:$0xff]
                %242 = vst [vmem:[%s232 + $0x20] sm:$0xff] %v241
                %v243 = vld [vmem:[%s231 + $0x48] sm:$0xff]
                %244 = vst [vmem:[%s232 + $0x28] sm:$0xff] %v243
                %v245 = vld [vmem:[%s231 + $0x50] sm:$0xff]
                %246 = vst [vmem:[%s232 + $0x30] sm:$0xff] %v245
                %v247 = vld [vmem:[%s231 + $0x58] sm:$0xff]
                %248 = vst [vmem:[%s232 + $0x38] sm:$0xff] %v247
                %v249 = vld [vmem:[%s231 + $0x80] sm:$0xff]
                %250 = vst [vmem:[%s232 + $0x40] sm:$0xff] %v249
                %v251 = vld [vmem:[%s231 + $0x88] sm:$0xff]
                %252 = vst [vmem:[%s232 + $0x48] sm:$0xff] %v251
                %v253 = vld [vmem:[%s231 + $0x90] sm:$0xff]
                %254 = vst [vmem:[%s232 + $0x50] sm:$0xff] %v253
                %v255 = vld [vmem:[%s231 + $0x98] sm:$0xff]
                %256 = vst [vmem:[%s232 + $0x58] sm:$0xff] %v255
                %v257 = vld [vmem:[%s231 + $0xc0] sm:$0xff]
                %258 = vst [vmem:[%s232 + $0x60] sm:$0xff] %v257
                %v259 = vld [vmem:[%s231 + $0xc8] sm:$0xff]
                %260 = vst [vmem:[%s232 + $0x68] sm:$0xff] %v259
                %v261 = vld [vmem:[%s231 + $0xd0] sm:$0xff]
                %262 = vst [vmem:[%s232 + $0x70] sm:$0xff] %v261
                %v263 = vld [vmem:[%s231 + $0xd8] sm:$0xff]
                %264 = vst [vmem:[%s232 + $0x78] sm:$0xff] %v263
                %v265 = vld [vmem:[%s231 + $0x100] sm:$0xff]
                %266 = vst [vmem:[%s232 + $0x80] sm:$0xff] %v265
                %v267 = vld [vmem:[%s231 + $0x108] sm:$0xff]
                %268 = vst [vmem:[%s232 + $0x88] sm:$0xff] %v267
                %v269 = vld [vmem:[%s231 + $0x110] sm:$0xff]
                %270 = vst [vmem:[%s232 + $0x90] sm:$0xff] %v269
                %v271 = vld [vmem:[%s231 + $0x118] sm:$0xff]
                %272 = vst [vmem:[%s232 + $0x98] sm:$0xff] %v271
                %v273 = vld [vmem:[%s231 + $0x140] sm:$0xff]
                %274 = vst [vmem:[%s232 + $0xa0] sm:$0xff] %v273
                %v275 = vld [vmem:[%s231 + $0x148] sm:$0xff]
                %276 = vst [vmem:[%s232 + $0xa8] sm:$0xff] %v275
                %v277 = vld [vmem:[%s231 + $0x150] sm:$0xff]
                %278 = vst [vmem:[%s232 + $0xb0] sm:$0xff] %v277
                %v279 = vld [vmem:[%s231 + $0x158] sm:$0xff]
                %280 = vst [vmem:[%s232 + $0xb8] sm:$0xff] %v279
                %v281 = vld [vmem:[%s231 + $0x180] sm:$0xff]
                %282 = vst [vmem:[%s232 + $0xc0] sm:$0xff] %v281
                %v283 = vld [vmem:[%s231 + $0x188] sm:$0xff]
                %284 = vst [vmem:[%s232 + $0xc8] sm:$0xff] %v283
                %v285 = vld [vmem:[%s231 + $0x190] sm:$0xff]
                %286 = vst [vmem:[%s232 + $0xd0] sm:$0xff] %v285
                %v287 = vld [vmem:[%s231 + $0x198] sm:$0xff]
                %288 = vst [vmem:[%s232 + $0xd8] sm:$0xff] %v287
                %v289 = vld [vmem:[%s231 + $0x1c0] sm:$0xff]
                %290 = vst [vmem:[%s232 + $0xe0] sm:$0xff] %v289
                %v291 = vld [vmem:[%s231 + $0x1c8] sm:$0xff]
                %292 = vst [vmem:[%s232 + $0xe8] sm:$0xff] %v291
                %v293 = vld [vmem:[%s231 + $0x1d0] sm:$0xff]
                %294 = vst [vmem:[%s232 + $0xf0] sm:$0xff] %v293
                %v295 = vld [vmem:[%s231 + $0x1d8] sm:$0xff]
                %296 = vst [vmem:[%s232 + $0xf8] sm:$0xff] %v295
                %v297 = vld [vmem:[%s231 + $0x200] sm:$0xff]
                %298 = vst [vmem:[%s232 + $0x100] sm:$0xff] %v297
                %v299 = vld [vmem:[%s231 + $0x208] sm:$0xff]
                %300 = vst [vmem:[%s232 + $0x108] sm:$0xff] %v299
                %v301 = vld [vmem:[%s231 + $0x210] sm:$0xff]
                %302 = vst [vmem:[%s232 + $0x110] sm:$0xff] %v301
                %v303 = vld [vmem:[%s231 + $0x218] sm:$0xff]
                %304 = vst [vmem:[%s232 + $0x118] sm:$0xff] %v303
                %v305 = vld [vmem:[%s231 + $0x240] sm:$0xff]
                %306 = vst [vmem:[%s232 + $0x120] sm:$0xff] %v305
                %v307 = vld [vmem:[%s231 + $0x248] sm:$0xff]
                %308 = vst [vmem:[%s232 + $0x128] sm:$0xff] %v307
                %v309 = vld [vmem:[%s231 + $0x250] sm:$0xff]
                %310 = vst [vmem:[%s232 + $0x130] sm:$0xff] %v309
                %v311 = vld [vmem:[%s231 + $0x258] sm:$0xff]
                %312 = vst [vmem:[%s232 + $0x138] sm:$0xff] %v311
                %v313 = vld [vmem:[%s231 + $0x280] sm:$0xff]
                %314 = vst [vmem:[%s232 + $0x140] sm:$0xff] %v313
                %v315 = vld [vmem:[%s231 + $0x288] sm:$0xff]
                %316 = vst [vmem:[%s232 + $0x148] sm:$0xff] %v315
                %v317 = vld [vmem:[%s231 + $0x290] sm:$0xff]
                %318 = vst [vmem:[%s232 + $0x150] sm:$0xff] %v317
                %v319 = vld [vmem:[%s231 + $0x298] sm:$0xff]
                %320 = vst [vmem:[%s232 + $0x158] sm:$0xff] %v319
                %v321 = vld [vmem:[%s231 + $0x2c0] sm:$0xff]
                %322 = vst [vmem:[%s232 + $0x160] sm:$0xff] %v321
                %v323 = vld [vmem:[%s231 + $0x2c8] sm:$0xff]
                %324 = vst [vmem:[%s232 + $0x168] sm:$0xff] %v323
                %v325 = vld [vmem:[%s231 + $0x2d0] sm:$0xff]
                %326 = vst [vmem:[%s232 + $0x170] sm:$0xff] %v325
                %v327 = vld [vmem:[%s231 + $0x2d8] sm:$0xff]
                %328 = vst [vmem:[%s232 + $0x178] sm:$0xff] %v327
                %v329 = vld [vmem:[%s231 + $0x300] sm:$0xff]
                %330 = vst [vmem:[%s232 + $0x180] sm:$0xff] %v329
                %v331 = vld [vmem:[%s231 + $0x308] sm:$0xff]
                %332 = vst [vmem:[%s232 + $0x188] sm:$0xff] %v331
                %v333 = vld [vmem:[%s231 + $0x310] sm:$0xff]
                %334 = vst [vmem:[%s232 + $0x190] sm:$0xff] %v333
                %v335 = vld [vmem:[%s231 + $0x318] sm:$0xff]
                %336 = vst [vmem:[%s232 + $0x198] sm:$0xff] %v335
                %v337 = vld [vmem:[%s231 + $0x340] sm:$0xff]
                %338 = vst [vmem:[%s232 + $0x1a0] sm:$0xff] %v337
                %v339 = vld [vmem:[%s231 + $0x348] sm:$0xff]
                %340 = vst [vmem:[%s232 + $0x1a8] sm:$0xff] %v339
                %v341 = vld [vmem:[%s231 + $0x350] sm:$0xff]
                %342 = vst [vmem:[%s232 + $0x1b0] sm:$0xff] %v341
                %v343 = vld [vmem:[%s231 + $0x358] sm:$0xff]
                %344 = vst [vmem:[%s232 + $0x1b8] sm:$0xff] %v343
                %v345 = vld [vmem:[%s231 + $0x380] sm:$0xff]
                %346 = vst [vmem:[%s232 + $0x1c0] sm:$0xff] %v345
                %v347 = vld [vmem:[%s231 + $0x388] sm:$0xff]
                %348 = vst [vmem:[%s232 + $0x1c8] sm:$0xff] %v347
                %v349 = vld [vmem:[%s231 + $0x390] sm:$0xff]
                %350 = vst [vmem:[%s232 + $0x1d0] sm:$0xff] %v349
                %v351 = vld [vmem:[%s231 + $0x398] sm:$0xff]
                %352 = vst [vmem:[%s232 + $0x1d8] sm:$0xff] %v351
                %v353 = vld [vmem:[%s231 + $0x3c0] sm:$0xff]
                %354 = vst [vmem:[%s232 + $0x1e0] sm:$0xff] %v353
                %v355 = vld [vmem:[%s231 + $0x3c8] sm:$0xff]
                %356 = vst [vmem:[%s232 + $0x1e8] sm:$0xff] %v355
                %v357 = vld [vmem:[%s231 + $0x3d0] sm:$0xff]
                %358 = vst [vmem:[%s232 + $0x1f0] sm:$0xff] %v357
                %v359 = vld [vmem:[%s231 + $0x3d8] sm:$0xff]
                %360 = vst [vmem:[%s232 + $0x1f8] sm:$0xff] %v359
                %v361 = vld [vmem:[%s231 + $0x400] sm:$0xff]
                %362 = vst [vmem:[%s232 + $0x200] sm:$0xff] %v361
                %v363 = vld [vmem:[%s231 + $0x408] sm:$0xff]
                %364 = vst [vmem:[%s232 + $0x208] sm:$0xff] %v363
                %v365 = vld [vmem:[%s231 + $0x410] sm:$0xff]
                %366 = vst [vmem:[%s232 + $0x210] sm:$0xff] %v365
                %v367 = vld [vmem:[%s231 + $0x418] sm:$0xff]
                %368 = vst [vmem:[%s232 + $0x218] sm:$0xff] %v367
                %v369 = vld [vmem:[%s231 + $0x440] sm:$0xff]
                %370 = vst [vmem:[%s232 + $0x220] sm:$0xff] %v369
                %v371 = vld [vmem:[%s231 + $0x448] sm:$0xff]
                %372 = vst [vmem:[%s232 + $0x228] sm:$0xff] %v371
                %v373 = vld [vmem:[%s231 + $0x450] sm:$0xff]
                %374 = vst [vmem:[%s232 + $0x230] sm:$0xff] %v373
                %v375 = vld [vmem:[%s231 + $0x458] sm:$0xff]
                %376 = vst [vmem:[%s232 + $0x238] sm:$0xff] %v375
                %v377 = vld [vmem:[%s231 + $0x480] sm:$0xff]
                %378 = vst [vmem:[%s232 + $0x240] sm:$0xff] %v377
                %v379 = vld [vmem:[%s231 + $0x488] sm:$0xff]
                %380 = vst [vmem:[%s232 + $0x248] sm:$0xff] %v379
                %v381 = vld [vmem:[%s231 + $0x490] sm:$0xff]
                %382 = vst [vmem:[%s232 + $0x250] sm:$0xff] %v381
                %v383 = vld [vmem:[%s231 + $0x498] sm:$0xff]
                %384 = vst [vmem:[%s232 + $0x258] sm:$0xff] %v383
                %v385 = vld [vmem:[%s231 + $0x4c0] sm:$0xff]
                %386 = vst [vmem:[%s232 + $0x260] sm:$0xff] %v385
                %v387 = vld [vmem:[%s231 + $0x4c8] sm:$0xff]
                %388 = vst [vmem:[%s232 + $0x268] sm:$0xff] %v387
                %v389 = vld [vmem:[%s231 + $0x4d0] sm:$0xff]
                %390 = vst [vmem:[%s232 + $0x270] sm:$0xff] %v389
                %v391 = vld [vmem:[%s231 + $0x4d8] sm:$0xff]
                %392 = vst [vmem:[%s232 + $0x278] sm:$0xff] %v391
                %v393 = vld [vmem:[%s231 + $0x500] sm:$0xff]
                %394 = vst [vmem:[%s232 + $0x280] sm:$0xff] %v393
                %v395 = vld [vmem:[%s231 + $0x508] sm:$0xff]
                %396 = vst [vmem:[%s232 + $0x288] sm:$0xff] %v395
                %v397 = vld [vmem:[%s231 + $0x510] sm:$0xff]
                %398 = vst [vmem:[%s232 + $0x290] sm:$0xff] %v397
                %v399 = vld [vmem:[%s231 + $0x518] sm:$0xff]
                %400 = vst [vmem:[%s232 + $0x298] sm:$0xff] %v399
                %v401 = vld [vmem:[%s231 + $0x540] sm:$0xff]
                %402 = vst [vmem:[%s232 + $0x2a0] sm:$0xff] %v401
                %v403 = vld [vmem:[%s231 + $0x548] sm:$0xff]
                %404 = vst [vmem:[%s232 + $0x2a8] sm:$0xff] %v403
                %v405 = vld [vmem:[%s231 + $0x550] sm:$0xff]
                %406 = vst [vmem:[%s232 + $0x2b0] sm:$0xff] %v405
                %v407 = vld [vmem:[%s231 + $0x558] sm:$0xff]
                %408 = vst [vmem:[%s232 + $0x2b8] sm:$0xff] %v407
                %v409 = vld [vmem:[%s231 + $0x580] sm:$0xff]
                %410 = vst [vmem:[%s232 + $0x2c0] sm:$0xff] %v409
                %v411 = vld [vmem:[%s231 + $0x588] sm:$0xff]
                %412 = vst [vmem:[%s232 + $0x2c8] sm:$0xff] %v411
                %v413 = vld [vmem:[%s231 + $0x590] sm:$0xff]
                %414 = vst [vmem:[%s232 + $0x2d0] sm:$0xff] %v413
                %v415 = vld [vmem:[%s231 + $0x598] sm:$0xff]
                %416 = vst [vmem:[%s232 + $0x2d8] sm:$0xff] %v415
                %v417 = vld [vmem:[%s231 + $0x5c0] sm:$0xff]
                %418 = vst [vmem:[%s232 + $0x2e0] sm:$0xff] %v417
                %v419 = vld [vmem:[%s231 + $0x5c8] sm:$0xff]
                %420 = vst [vmem:[%s232 + $0x2e8] sm:$0xff] %v419
                %v421 = vld [vmem:[%s231 + $0x5d0] sm:$0xff]
                %422 = vst [vmem:[%s232 + $0x2f0] sm:$0xff] %v421
                %v423 = vld [vmem:[%s231 + $0x5d8] sm:$0xff]
                %424 = vst [vmem:[%s232 + $0x2f8] sm:$0xff] %v423
                %v425 = vld [vmem:[%s231 + $0x600] sm:$0xff]
                %426 = vst [vmem:[%s232 + $0x300] sm:$0xff] %v425
                %v427 = vld [vmem:[%s231 + $0x608] sm:$0xff]
                %428 = vst [vmem:[%s232 + $0x308] sm:$0xff] %v427
                %v429 = vld [vmem:[%s231 + $0x610] sm:$0xff]
                %430 = vst [vmem:[%s232 + $0x310] sm:$0xff] %v429
                %v431 = vld [vmem:[%s231 + $0x618] sm:$0xff]
                %432 = vst [vmem:[%s232 + $0x318] sm:$0xff] %v431
                %v433 = vld [vmem:[%s231 + $0x640] sm:$0xff]
                %434 = vst [vmem:[%s232 + $0x320] sm:$0xff] %v433
                %v435 = vld [vmem:[%s231 + $0x648] sm:$0xff]
                %436 = vst [vmem:[%s232 + $0x328] sm:$0xff] %v435
                %v437 = vld [vmem:[%s231 + $0x650] sm:$0xff]
                %438 = vst [vmem:[%s232 + $0x330] sm:$0xff] %v437
                %v439 = vld [vmem:[%s231 + $0x658] sm:$0xff]
                %440 = vst [vmem:[%s232 + $0x338] sm:$0xff] %v439
                %v441 = vld [vmem:[%s231 + $0x680] sm:$0xff]
                %442 = vst [vmem:[%s232 + $0x340] sm:$0xff] %v441
                %v443 = vld [vmem:[%s231 + $0x688] sm:$0xff]
                %444 = vst [vmem:[%s232 + $0x348] sm:$0xff] %v443
                %v445 = vld [vmem:[%s231 + $0x690] sm:$0xff]
                %446 = vst [vmem:[%s232 + $0x350] sm:$0xff] %v445
                %v447 = vld [vmem:[%s231 + $0x698] sm:$0xff]
                %448 = vst [vmem:[%s232 + $0x358] sm:$0xff] %v447
                %v449 = vld [vmem:[%s231 + $0x6c0] sm:$0xff]
                %450 = vst [vmem:[%s232 + $0x360] sm:$0xff] %v449
                %v451 = vld [vmem:[%s231 + $0x6c8] sm:$0xff]
                %452 = vst [vmem:[%s232 + $0x368] sm:$0xff] %v451
                %v453 = vld [vmem:[%s231 + $0x6d0] sm:$0xff]
                %454 = vst [vmem:[%s232 + $0x370] sm:$0xff] %v453
                %v455 = vld [vmem:[%s231 + $0x6d8] sm:$0xff]
                %456 = vst [vmem:[%s232 + $0x378] sm:$0xff] %v455
                %v457 = vld [vmem:[%s231 + $0x700] sm:$0xff]
                %458 = vst [vmem:[%s232 + $0x380] sm:$0xff] %v457
                %v459 = vld [vmem:[%s231 + $0x708] sm:$0xff]
                %460 = vst [vmem:[%s232 + $0x388] sm:$0xff] %v459
                %v461 = vld [vmem:[%s231 + $0x710] sm:$0xff]
                %462 = vst [vmem:[%s232 + $0x390] sm:$0xff] %v461
                %v463 = vld [vmem:[%s231 + $0x718] sm:$0xff]
                %464 = vst [vmem:[%s232 + $0x398] sm:$0xff] %v463
                %v465 = vld [vmem:[%s231 + $0x740] sm:$0xff]
                %466 = vst [vmem:[%s232 + $0x3a0] sm:$0xff] %v465
                %v467 = vld [vmem:[%s231 + $0x748] sm:$0xff]
                %468 = vst [vmem:[%s232 + $0x3a8] sm:$0xff] %v467
                %v469 = vld [vmem:[%s231 + $0x750] sm:$0xff]
                %470 = vst [vmem:[%s232 + $0x3b0] sm:$0xff] %v469
                %v471 = vld [vmem:[%s231 + $0x758] sm:$0xff]
                %472 = vst [vmem:[%s232 + $0x3b8] sm:$0xff] %v471
                %v473 = vld [vmem:[%s231 + $0x780] sm:$0xff]
                %474 = vst [vmem:[%s232 + $0x3c0] sm:$0xff] %v473
                %v475 = vld [vmem:[%s231 + $0x788] sm:$0xff]
                %476 = vst [vmem:[%s232 + $0x3c8] sm:$0xff] %v475
                %v477 = vld [vmem:[%s231 + $0x790] sm:$0xff]
                %478 = vst [vmem:[%s232 + $0x3d0] sm:$0xff] %v477
                %v479 = vld [vmem:[%s231 + $0x798] sm:$0xff]
                %480 = vst [vmem:[%s232 + $0x3d8] sm:$0xff] %v479
                %v481 = vld [vmem:[%s231 + $0x7c0] sm:$0xff]
                %482 = vst [vmem:[%s232 + $0x3e0] sm:$0xff] %v481
                %v483 = vld [vmem:[%s231 + $0x7c8] sm:$0xff]
                %484 = vst [vmem:[%s232 + $0x3e8] sm:$0xff] %v483
                %v485 = vld [vmem:[%s231 + $0x7d0] sm:$0xff]
                %486 = vst [vmem:[%s232 + $0x3f0] sm:$0xff] %v485
                %v487 = vld [vmem:[%s231 + $0x7d8] sm:$0xff]
                %488 = vst [vmem:[%s232 + $0x3f8] sm:$0xff] %v487
                %v489 = vld [vmem:[%s231 + $0x800] sm:$0xff]
                %490 = vst [vmem:[%s232 + $0x400] sm:$0xff] %v489
                %v491 = vld [vmem:[%s231 + $0x808] sm:$0xff]
                %492 = vst [vmem:[%s232 + $0x408] sm:$0xff] %v491
                %v493 = vld [vmem:[%s231 + $0x810] sm:$0xff]
                %494 = vst [vmem:[%s232 + $0x410] sm:$0xff] %v493
                %v495 = vld [vmem:[%s231 + $0x818] sm:$0xff]
                %496 = vst [vmem:[%s232 + $0x418] sm:$0xff] %v495
                %v497 = vld [vmem:[%s231 + $0x840] sm:$0xff]
                %498 = vst [vmem:[%s232 + $0x420] sm:$0xff] %v497
                %v499 = vld [vmem:[%s231 + $0x848] sm:$0xff]
                %500 = vst [vmem:[%s232 + $0x428] sm:$0xff] %v499
                %v501 = vld [vmem:[%s231 + $0x850] sm:$0xff]
                %502 = vst [vmem:[%s232 + $0x430] sm:$0xff] %v501
                %v503 = vld [vmem:[%s231 + $0x858] sm:$0xff]
                %504 = vst [vmem:[%s232 + $0x438] sm:$0xff] %v503
                %v505 = vld [vmem:[%s231 + $0x880] sm:$0xff]
                %506 = vst [vmem:[%s232 + $0x440] sm:$0xff] %v505
                %v507 = vld [vmem:[%s231 + $0x888] sm:$0xff]
                %508 = vst [vmem:[%s232 + $0x448] sm:$0xff] %v507
                %v509 = vld [vmem:[%s231 + $0x890] sm:$0xff]
                %510 = vst [vmem:[%s232 + $0x450] sm:$0xff] %v509
                %v511 = vld [vmem:[%s231 + $0x898] sm:$0xff]
                %512 = vst [vmem:[%s232 + $0x458] sm:$0xff] %v511
                %v513 = vld [vmem:[%s231 + $0x8c0] sm:$0xff]
                %514 = vst [vmem:[%s232 + $0x460] sm:$0xff] %v513
                %v515 = vld [vmem:[%s231 + $0x8c8] sm:$0xff]
                %516 = vst [vmem:[%s232 + $0x468] sm:$0xff] %v515
                %v517 = vld [vmem:[%s231 + $0x8d0] sm:$0xff]
                %518 = vst [vmem:[%s232 + $0x470] sm:$0xff] %v517
                %v519 = vld [vmem:[%s231 + $0x8d8] sm:$0xff]
                %520 = vst [vmem:[%s232 + $0x478] sm:$0xff] %v519
              $region45: #{ffm_v3_forward.4} parent=39 // loop_footer
                %s230 = sadd.s32 1, %s226
              $region46: #{ffm_v3_forward.4} parent=39 // loop_footer_branch
                %225 = sbr.rel target = $region42
              $region47: #{ffm_v3_forward.4} parent=39 // loop_exit
                _
            $region40: #{ffm_v3_forward.4} parent=35 // pred_fallthru
              _
            // Predicated region
            $region48: #{ffm_v3_forward.4} parent=35 // pred_check
              _
            $region49: #{ffm_v3_forward.4} parent=35 // pred_check_branch
              %522 = sbr.rel target = $region51
            $region50: #{ffm_v3_forward.4} parent=35 // pred_region
              _
            $region51: #{ffm_v3_forward.4} parent=35 // pred_fallthru
              _
          $region36: #{ffm_v3_forward.4} parent=31 // pred_fallthru
            _
          %523 = vnop
        $region32: #{ffm_v3_forward.4} parent=23 // pred_fallthru
          _
      $region24: #{ffm_v3_forward.4} parent=5 // pred_fallthru
        _
      %p524 = scmp.le.s32.totalorder 1, %s11
      %p525 = scmp.lt.s32.totalorder %s11, 5
      %p526 = pnand %p524, %p525
      %p527 = pneg %p526
      // Predicated region
      $region52: #{ffm_v3_forward.4} parent=5 // pred_check
        _
      $region53: #{ffm_v3_forward.4} parent=5 // pred_check_branch
        %529 = sbr.rel (%p526) target = $region55
      $region54: #{ffm_v3_forward.4} parent=5 // pred_region
        %s530 = ssub.s32 %s11, 1
        %s531 = sand.u32 %s121, 1
        %s532 = sand.u32 %s121, 1
        %s533 = smul.addr %s532, 1152
        %s534 = scalar_lea.vmem [#allocation3], %s533
        // Predicated region
        $region56: #{ffm_v3_forward.4} parent=54 // pred_check
          %p535 = pneg %p134
        $region57: #{ffm_v3_forward.4} parent=54 // pred_check_branch
          %537 = sbr.rel (%p535) target = $region59
        $region58: #{ffm_v3_forward.4} parent=54 // pred_region
          _
        $region59: #{ffm_v3_forward.4} parent=54 // pred_fallthru
          _
        %p538 = scmp.lt.s32.totalorder %s21, 1
        %s539 = scalar_select %p538, %s21, 1
        %s540 = smul.addr %s539, 12
        %s541 = smul.addr %s540, 8
        %s542 = scalar_lea.vmem %s0, %s541
        %p543 = pneg %p56
        %p544 = pneg %p53
        %s545 = smul.u32 2, %s22
        %p546 = scmp.lt.s32.totalorder %s545, 1
        %s547 = scalar_select %p546, %s545, 1
        %s548 = smul.addr %s547, 8
        %s549 = scalar_lea.vmem %s1, %s548
        %p550 = pneg %p82
        %p551 = pneg %p79
        %s552 = smul.u32 2, %s22
        %p553 = scmp.lt.s32.totalorder %s552, 1
        %s554 = scalar_select %p553, %s552, 1
        %s555 = smul.addr %s554, 8
        %s556 = scalar_lea.vmem %s2, %s555
        %p557 = pneg %p108
        %p558 = pneg %p105
        %s559 = sand.u32 %s121, 1
        %s560 = sand.u32 %s121, 1
        %s561 = smul.addr %s560, 1152
        %s562 = scalar_lea.vmem [#allocation3], %s561
        %p563 = pneg %p134
        %p564 = pneg %p131
        %p565 = pneg %p166
        %p566 = pneg %p163
        %s567 = sand.u32 %s153, 1
        %s568 = sand.u32 %s153, 1
        %s569 = smul.addr %s568, 256
        %s570 = scalar_lea.vmem [#allocation4], %s569
        %p571 = scmp.lt.s32.totalorder %s21, 1
        %s572 = scalar_select %p571, %s21, 1
        %s573 = smul.addr %s572, 12
        %s574 = smul.addr %s573, 8
        %s575 = scalar_lea.vmem %s0, %s574
        %s576 = smul.u32 2, %s22
        %p577 = scmp.lt.s32.totalorder %s576, 1
        %s578 = scalar_select %p577, %s576, 1
        %s579 = smul.addr %s578, 8
        %s580 = scalar_lea.vmem %s1, %s579
        %s581 = smul.u32 2, %s22
        %s582 = smul.u32 2, %s22
        %p583 = scmp.lt.s32.totalorder %s582, 1
        %s584 = scalar_select %p583, %s582, 1
        %s585 = smul.addr %s584, 8
        %s586 = scalar_lea.vmem %s2, %s585
        %s587 = smul.u32 2, %s22
        %s588 = smul.u32 4, %s23
        %s589 = sadd.s32 %s22, 2
        %s590 = smul.u32 16, %s589
        %s591 = smul.u32 2, %s23
        %s592 = ssub.s32 56, %s590
        %p593 = scmp.lt.s32.totalorder %s592, 16
        %s594 = scalar_select %p593, %s592, 16
        %s595 = smul.u32 8, %s594
        %s596 = smul.u32 %s595, 2
        %p597 = scmp.eq.s32.totalorder %s23, 0
        // Predicated region
        $region60: #{ffm_v3_forward.4} parent=54 // pred_check
          %p598 = pneg %p597
        $region61: #{ffm_v3_forward.4} parent=54 // pred_check_branch
          %600 = sbr.rel (%p598) target = $region63
        $region62: #{ffm_v3_forward.4} parent=54 // pred_region
          %v601 = vld [vmem:[%s580] sm:$0xff]
          %v602 = vld [vmem:[%s580 + $0x8] sm:$0xff]
          %v603 = vld [vmem:[%s575] sm:$0xff]
          %v604 = vld [vmem:[%s575 + $0x8] sm:$0xff]
          %v605 = vld [vmem:[%s575 + $0x10] sm:$0xff]
          %v606 = vld [vmem:[%s575 + $0x18] sm:$0xff]
          %v607 = vld [vmem:[%s575 + $0x20] sm:$0xff]
          %v608 = vld [vmem:[%s575 + $0x28] sm:$0xff]
          %v609 = vld [vmem:[%s575 + $0x30] sm:$0xff]
          %v610 = vld [vmem:[%s575 + $0x38] sm:$0xff]
          %v611 = vld [vmem:[%s575 + $0x40] sm:$0xff]
          %v612 = vld [vmem:[%s575 + $0x48] sm:$0xff]
          %v613 = vld [vmem:[%s575 + $0x50] sm:$0xff]
          %v614 = vld [vmem:[%s575 + $0x58] sm:$0xff]
          %s615 = scalar_lea.vmem %s580, 16
          %v616 = vld [vmem:[%s615] sm:$0xff]
          %v617 = vld [vmem:[%s615 + $0x8] sm:$0xff]
          %630 = vrot.lane.b32.xlu0 %v603, 127
          %v631 = vpop.permute.xlu0 %630
          %632 = vrot.lane.b32.xlu0 %v604, 127
          %v633 = vpop.permute.xlu0 %632
          %634 = vrot.lane.b32.xlu0 %v605, 127
          %v635 = vpop.permute.xlu0 %634
          %636 = vrot.lane.b32.xlu0 %v606, 127
          %v637 = vpop.permute.xlu0 %636
          %638 = vrot.lane.b32.xlu0 %v607, 127
          %v639 = vpop.permute.xlu0 %638
          %640 = vrot.lane.b32.xlu0 %v608, 127
          %v641 = vpop.permute.xlu0 %640
          %642 = vrot.lane.b32.xlu0 %v609, 127
          %v643 = vpop.permute.xlu0 %642
          %644 = vrot.lane.b32.xlu0 %v610, 127
          %v645 = vpop.permute.xlu0 %644
          %646 = vrot.lane.b32.xlu0 %v611, 127
          %v647 = vpop.permute.xlu0 %646
          %648 = vrot.lane.b32.xlu0 %v612, 127
          %v649 = vpop.permute.xlu0 %648
          %650 = vrot.lane.b32.xlu0 %v613, 127
          %v651 = vpop.permute.xlu0 %650
          %652 = vrot.lane.b32.xlu0 %v614, 127
          %v653 = vpop.permute.xlu0 %652
          %vm654 = vcmask 1039360
          %v655 = vsel %vm654, %v631, %v633
          %v656 = vsel %vm654, %v633, %v635
          %v657 = vsel %vm654, %v637, %v639
          %v658 = vsel %vm654, %v639, %v641
          %v659 = vsel %vm654, %v643, %v645
          %v660 = vsel %vm654, %v645, %v647
          %v661 = vsel %vm654, %v649, %v651
          %v662 = vsel %vm654, %v651, %v653
          %vm675 = vcmask 261120
          %v677 = vsel %vm675, %v616, 0
          %v680 = vsel %vm675, %v617, 0
          %682 = vmatpush.msra.mxu0 0.0
          %683 = vmatpush.msra.mxu0 0.0
          %684 = vmatpush.msra.mxu0 0.0
          %685 = vmatpush.msra.mxu0 0.0
          %686 = vmatpush.msra.mxu0 0.0
          %687 = vmatpush.msra.mxu0 0.0
          %688 = vmatpush.msra.mxu0 0.0
          %689 = vmatpush.msra.mxu0 0.0
          %690 = vmatpush.msra.mxu0 0.0
          %691 = vmatpush.msra.mxu0 0.0
          %692 = vmatpush.msra.mxu0 0.0
          %693 = vmatpush.msra.mxu0 0.0
          %694 = vmatpush.msra.mxu0 %v661
          %695 = vmatpush.msra.mxu0 %v659
          %696 = vmatpush.msra.mxu0 %v657
          %697 = vmatpush.msra.mxu0 %v655
          %698 = vmatmul.f32.gmra.mxu0 %v677
          %v699 = vpop.f32.mrf.mxu0
          %v700 = vadd.f32 0.0, %v699
          %701 = vmatmul.f32.gmra.mxu0 %v680
          %v702 = vpop.f32.mrf.mxu0
          %v703 = vadd.f32 0.0, %v702
          %704 = vdwg.mxu0
          %705 = vmatpush.msra.mxu0 0.0
          %706 = vmatpush.msra.mxu0 0.0
          %707 = vmatpush.msra.mxu0 0.0
          %708 = vmatpush.msra.mxu0 0.0
          %709 = vmatpush.msra.mxu0 0.0
          %710 = vmatpush.msra.mxu0 0.0
          %711 = vmatpush.msra.mxu0 0.0
          %712 = vmatpush.msra.mxu0 0.0
          %713 = vmatpush.msra.mxu0 0.0
          %714 = vmatpush.msra.mxu0 0.0
          %715 = vmatpush.msra.mxu0 0.0
          %716 = vmatpush.msra.mxu0 0.0
          %717 = vmatpush.msra.mxu0 %v662
          %718 = vmatpush.msra.mxu0 %v660
          %719 = vmatpush.msra.mxu0 %v658
          %720 = vmatpush.msra.mxu0 %v656
          %721 = vmatmul.f32.gmra.mxu0 %v677
          %v722 = vpop.f32.mrf.mxu0
          %v723 = vadd.f32 0.0, %v722
          %724 = vmatmul.f32.gmra.mxu0 %v680
          %v725 = vpop.f32.mrf.mxu0
          %v726 = vadd.f32 0.0, %v725
          %727 = vdwg.mxu0
          %728 = vmatpush.msra.mxu0 0.0
          %729 = vmatpush.msra.mxu0 0.0
          %730 = vmatpush.msra.mxu0 0.0
          %731 = vmatpush.msra.mxu0 0.0
          %732 = vmatpush.msra.mxu0 0.0
          %733 = vmatpush.msra.mxu0 0.0
          %734 = vmatpush.msra.mxu0 0.0
          %735 = vmatpush.msra.mxu0 0.0
          %736 = vmatpush.msra.mxu0 0.0
          %737 = vmatpush.msra.mxu0 0.0
          %738 = vmatpush.msra.mxu0 0.0
          %739 = vmatpush.msra.mxu0 0.0
          %740 = vmatpush.msra.mxu0 %v653
          %741 = vmatpush.msra.mxu0 %v647
          %742 = vmatpush.msra.mxu0 %v641
          %743 = vmatpush.msra.mxu0 %v635
          %744 = vmatmul.f32.gmra.mxu0 %v677
          %v745 = vpop.f32.mrf.mxu0
          %v746 = vadd.f32 0.0, %v745
          %747 = vmatmul.f32.gmra.mxu0 %v680
          %v748 = vpop.f32.mrf.mxu0
          %v749 = vadd.f32 0.0, %v748
          %750 = vdwg.mxu0
          %v752 = vsel %vm675, %v601, 0
          %v755 = vsel %vm675, %v602, 0
          %757 = vmatpush.msra.mxu0 0.0
          %758 = vmatpush.msra.mxu0 0.0
          %759 = vmatpush.msra.mxu0 0.0
          %760 = vmatpush.msra.mxu0 0.0
          %761 = vmatpush.msra.mxu0 0.0
          %762 = vmatpush.msra.mxu0 0.0
          %763 = vmatpush.msra.mxu0 0.0
          %764 = vmatpush.msra.mxu0 0.0
          %765 = vmatpush.msra.mxu0 0.0
          %766 = vmatpush.msra.mxu0 0.0
          %767 = vmatpush.msra.mxu0 0.0
          %768 = vmatpush.msra.mxu0 0.0
          %769 = vmatpush.msra.mxu0 %v612
          %770 = vmatpush.msra.mxu0 %v609
          %771 = vmatpush.msra.mxu0 %v606
          %772 = vmatpush.msra.mxu0 %v603
          %773 = vmatmul.f32.gmra.mxu0 %v752
          %v774 = vpop.f32.mrf.mxu0
          %v775 = vadd.f32 %v700, %v774
          %776 = vmatmul.f32.gmra.mxu0 %v755
          %v777 = vpop.f32.mrf.mxu0
          %v778 = vadd.f32 %v703, %v777
          %779 = vdwg.mxu0
          %780 = vmatpush.msra.mxu0 0.0
          %781 = vmatpush.msra.mxu0 0.0
          %782 = vmatpush.msra.mxu0 0.0
          %783 = vmatpush.msra.mxu0 0.0
          %784 = vmatpush.msra.mxu0 0.0
          %785 = vmatpush.msra.mxu0 0.0
          %786 = vmatpush.msra.mxu0 0.0
          %787 = vmatpush.msra.mxu0 0.0
          %788 = vmatpush.msra.mxu0 0.0
          %789 = vmatpush.msra.mxu0 0.0
          %790 = vmatpush.msra.mxu0 0.0
          %791 = vmatpush.msra.mxu0 0.0
          %792 = vmatpush.msra.mxu0 %v613
          %793 = vmatpush.msra.mxu0 %v610
          %794 = vmatpush.msra.mxu0 %v607
          %795 = vmatpush.msra.mxu0 %v604
          %796 = vmatmul.f32.gmra.mxu0 %v752
          %v797 = vpop.f32.mrf.mxu0
          %v798 = vadd.f32 %v723, %v797
          %799 = vmatmul.f32.gmra.mxu0 %v755
          %v800 = vpop.f32.mrf.mxu0
          %v801 = vadd.f32 %v726, %v800
          %802 = vdwg.mxu0
          %803 = vmatpush.msra.mxu0 0.0
          %804 = vmatpush.msra.mxu0 0.0
          %805 = vmatpush.msra.mxu0 0.0
          %806 = vmatpush.msra.mxu0 0.0
          %807 = vmatpush.msra.mxu0 0.0
          %808 = vmatpush.msra.mxu0 0.0
          %809 = vmatpush.msra.mxu0 0.0
          %810 = vmatpush.msra.mxu0 0.0
          %811 = vmatpush.msra.mxu0 0.0
          %812 = vmatpush.msra.mxu0 0.0
          %813 = vmatpush.msra.mxu0 0.0
          %814 = vmatpush.msra.mxu0 0.0
          %815 = vmatpush.msra.mxu0 %v614
          %816 = vmatpush.msra.mxu0 %v611
          %817 = vmatpush.msra.mxu0 %v608
          %818 = vmatpush.msra.mxu0 %v605
          %819 = vmatmul.f32.gmra.mxu0 %v752
          %v820 = vpop.f32.mrf.mxu0
          %v821 = vadd.f32 %v746, %v820
          %822 = vmatmul.f32.gmra.mxu0 %v755
          %v823 = vpop.f32.mrf.mxu0
          %v824 = vadd.f32 %v749, %v823
          %825 = vdwg.mxu0
          %s826 = scalar_lea.vmem %s580, 32
          %v827 = vld [vmem:[%s826] sm:$0xff]
          %v828 = vld [vmem:[%s826 + $0x8] sm:$0xff]
          %829 = vrot.lane.b32.xlu0 %v603, 126
          %v830 = vpop.permute.xlu0 %829
          %831 = vrot.lane.b32.xlu0 %v604, 126
          %v832 = vpop.permute.xlu0 %831
          %833 = vrot.lane.b32.xlu0 %v605, 126
          %v834 = vpop.permute.xlu0 %833
          %835 = vrot.lane.b32.xlu0 %v606, 126
          %v836 = vpop.permute.xlu0 %835
          %837 = vrot.lane.b32.xlu0 %v607, 126
          %v838 = vpop.permute.xlu0 %837
          %839 = vrot.lane.b32.xlu0 %v608, 126
          %v840 = vpop.permute.xlu0 %839
          %841 = vrot.lane.b32.xlu0 %v609, 126
          %v842 = vpop.permute.xlu0 %841
          %843 = vrot.lane.b32.xlu0 %v610, 126
          %v844 = vpop.permute.xlu0 %843
          %845 = vrot.lane.b32.xlu0 %v611, 126
          %v846 = vpop.permute.xlu0 %845
          %847 = vrot.lane.b32.xlu0 %v612, 126
          %v848 = vpop.permute.xlu0 %847
          %849 = vrot.lane.b32.xlu0 %v613, 126
          %v850 = vpop.permute.xlu0 %849
          %851 = vrot.lane.b32.xlu0 %v614, 126
          %v852 = vpop.permute.xlu0 %851
          %vm853 = vcmask 1031168
          %v854 = vsel %vm853, %v830, %v832
          %v855 = vsel %vm853, %v832, %v834
          %v856 = vsel %vm853, %v836, %v838
          %v857 = vsel %vm853, %v838, %v840
          %v858 = vsel %vm853, %v842, %v844
          %v859 = vsel %vm853, %v844, %v846
          %v860 = vsel %vm853, %v848, %v850
          %v861 = vsel %vm853, %v850, %v852
          %v875 = vsel %vm675, %v827, 0
          %v878 = vsel %vm675, %v828, 0
          %880 = vmatpush.msra.mxu0 0.0
          %881 = vmatpush.msra.mxu0 0.0
          %882 = vmatpush.msra.mxu0 0.0
          %883 = vmatpush.msra.mxu0 0.0
          %884 = vmatpush.msra.mxu0 0.0
          %885 = vmatpush.msra.mxu0 0.0
          %886 = vmatpush.msra.mxu0 0.0
          %887 = vmatpush.msra.mxu0 0.0
          %888 = vmatpush.msra.mxu0 0.0
          %889 = vmatpush.msra.mxu0 0.0
          %890 = vmatpush.msra.mxu0 0.0
          %891 = vmatpush.msra.mxu0 0.0
          %892 = vmatpush.msra.mxu0 %v860
          %893 = vmatpush.msra.mxu0 %v858
          %894 = vmatpush.msra.mxu0 %v856
          %895 = vmatpush.msra.mxu0 %v854
          %896 = vmatmul.f32.gmra.mxu0 %v875
          %v897 = vpop.f32.mrf.mxu0
          %v898 = vadd.f32 0.0, %v897
          %899 = vmatmul.f32.gmra.mxu0 %v878
          %v900 = vpop.f32.mrf.mxu0
          %v901 = vadd.f32 0.0, %v900
          %902 = vdwg.mxu0
          %903 = vmatpush.msra.mxu0 0.0
          %904 = vmatpush.msra.mxu0 0.0
          %905 = vmatpush.msra.mxu0 0.0
          %906 = vmatpush.msra.mxu0 0.0
          %907 = vmatpush.msra.mxu0 0.0
          %908 = vmatpush.msra.mxu0 0.0
          %909 = vmatpush.msra.mxu0 0.0
          %910 = vmatpush.msra.mxu0 0.0
          %911 = vmatpush.msra.mxu0 0.0
          %912 = vmatpush.msra.mxu0 0.0
          %913 = vmatpush.msra.mxu0 0.0
          %914 = vmatpush.msra.mxu0 0.0
          %915 = vmatpush.msra.mxu0 %v861
          %916 = vmatpush.msra.mxu0 %v859
          %917 = vmatpush.msra.mxu0 %v857
          %918 = vmatpush.msra.mxu0 %v855
          %919 = vmatmul.f32.gmra.mxu0 %v875
          %v920 = vpop.f32.mrf.mxu0
          %v921 = vadd.f32 0.0, %v920
          %922 = vmatmul.f32.gmra.mxu0 %v878
          %v923 = vpop.f32.mrf.mxu0
          %v924 = vadd.f32 0.0, %v923
          %925 = vdwg.mxu0
          %926 = vmatpush.msra.mxu0 0.0
          %927 = vmatpush.msra.mxu0 0.0
          %928 = vmatpush.msra.mxu0 0.0
          %929 = vmatpush.msra.mxu0 0.0
          %930 = vmatpush.msra.mxu0 0.0
          %931 = vmatpush.msra.mxu0 0.0
          %932 = vmatpush.msra.mxu0 0.0
          %933 = vmatpush.msra.mxu0 0.0
          %934 = vmatpush.msra.mxu0 0.0
          %935 = vmatpush.msra.mxu0 0.0
          %936 = vmatpush.msra.mxu0 0.0
          %937 = vmatpush.msra.mxu0 0.0
          %938 = vmatpush.msra.mxu0 %v852
          %939 = vmatpush.msra.mxu0 %v846
          %940 = vmatpush.msra.mxu0 %v840
          %941 = vmatpush.msra.mxu0 %v834
          %942 = vmatmul.f32.gmra.mxu0 %v875
          %v943 = vpop.f32.mrf.mxu0
          %v944 = vadd.f32 0.0, %v943
          %945 = vmatmul.f32.gmra.mxu0 %v878
          %v946 = vpop.f32.mrf.mxu0
          %v947 = vadd.f32 0.0, %v946
          %948 = vdwg.mxu0
          %v949 = vadd.f32 %v775, %v898
          %v950 = vadd.f32 %v798, %v921
          %v951 = vadd.f32 %v821, %v944
          %v952 = vadd.f32 %v778, %v901
          %v953 = vadd.f32 %v801, %v924
          %v954 = vadd.f32 %v824, %v947
          %s955 = scalar_lea.vmem %s580, 48
          %v956 = vld [vmem:[%s955] sm:$0xff]
          %v957 = vld [vmem:[%s955 + $0x8] sm:$0xff]
          %958 = vrot.lane.b32.xlu0 %v603, 110
          %v959 = vpop.permute.xlu0 %958
          %960 = vrot.lane.b32.xlu0 %v604, 110
          %v961 = vpop.permute.xlu0 %960
          %962 = vrot.lane.b32.xlu0 %v605, 110
          %v963 = vpop.permute.xlu0 %962
          %964 = vrot.lane.b32.xlu0 %v606, 110
          %v965 = vpop.permute.xlu0 %964
          %966 = vrot.lane.b32.xlu0 %v607, 110
          %v967 = vpop.permute.xlu0 %966
          %968 = vrot.lane.b32.xlu0 %v608, 110
          %v969 = vpop.permute.xlu0 %968
          %970 = vrot.lane.b32.xlu0 %v609, 110
          %v971 = vpop.permute.xlu0 %970
          %972 = vrot.lane.b32.xlu0 %v610, 110
          %v973 = vpop.permute.xlu0 %972
          %974 = vrot.lane.b32.xlu0 %v611, 110
          %v975 = vpop.permute.xlu0 %974
          %976 = vrot.lane.b32.xlu0 %v612, 110
          %v977 = vpop.permute.xlu0 %976
          %978 = vrot.lane.b32.xlu0 %v613, 110
          %v979 = vpop.permute.xlu0 %978
          %980 = vrot.lane.b32.xlu0 %v614, 110
          %v981 = vpop.permute.xlu0 %980
          %vm982 = vcmask 900096
          %v983 = vsel %vm982, %v959, %v961
          %v984 = vsel %vm982, %v961, %v963
          %v985 = vsel %vm982, %v965, %v967
          %v986 = vsel %vm982, %v967, %v969
          %v987 = vsel %vm982, %v971, %v973
          %v988 = vsel %vm982, %v973, %v975
          %v989 = vsel %vm982, %v977, %v979
          %v990 = vsel %vm982, %v979, %v981
          %v1004 = vsel %vm675, %v956, 0
          %v1007 = vsel %vm675, %v957, 0
          %1009 = vmatpush.msra.mxu0 0.0
          %1010 = vmatpush.msra.mxu0 0.0
          %1011 = vmatpush.msra.mxu0 0.0
          %1012 = vmatpush.msra.mxu0 0.0
          %1013 = vmatpush.msra.mxu0 0.0
          %1014 = vmatpush.msra.mxu0 0.0
          %1015 = vmatpush.msra.mxu0 0.0
          %1016 = vmatpush.msra.mxu0 0.0
          %1017 = vmatpush.msra.mxu0 0.0
          %1018 = vmatpush.msra.mxu0 0.0
          %1019 = vmatpush.msra.mxu0 0.0
          %1020 = vmatpush.msra.mxu0 0.0
          %1021 = vmatpush.msra.mxu0 %v989
          %1022 = vmatpush.msra.mxu0 %v987
          %1023 = vmatpush.msra.mxu0 %v985
          %1024 = vmatpush.msra.mxu0 %v983
          %1025 = vmatmul.f32.gmra.mxu0 %v1004
          %v1026 = vpop.f32.mrf.mxu0
          %v1027 = vadd.f32 0.0, %v1026
          %1028 = vmatmul.f32.gmra.mxu0 %v1007
          %v1029 = vpop.f32.mrf.mxu0
          %v1030 = vadd.f32 0.0, %v1029
          %1031 = vdwg.mxu0
          %1032 = vmatpush.msra.mxu0 0.0
          %1033 = vmatpush.msra.mxu0 0.0
          %1034 = vmatpush.msra.mxu0 0.0
          %1035 = vmatpush.msra.mxu0 0.0
          %1036 = vmatpush.msra.mxu0 0.0
          %1037 = vmatpush.msra.mxu0 0.0
          %1038 = vmatpush.msra.mxu0 0.0
          %1039 = vmatpush.msra.mxu0 0.0
          %1040 = vmatpush.msra.mxu0 0.0
          %1041 = vmatpush.msra.mxu0 0.0
          %1042 = vmatpush.msra.mxu0 0.0
          %1043 = vmatpush.msra.mxu0 0.0
          %1044 = vmatpush.msra.mxu0 %v990
          %1045 = vmatpush.msra.mxu0 %v988
          %1046 = vmatpush.msra.mxu0 %v986
          %1047 = vmatpush.msra.mxu0 %v984
          %1048 = vmatmul.f32.gmra.mxu0 %v1004
          %v1049 = vpop.f32.mrf.mxu0
          %v1050 = vadd.f32 0.0, %v1049
          %1051 = vmatmul.f32.gmra.mxu0 %v1007
          %v1052 = vpop.f32.mrf.mxu0
          %v1053 = vadd.f32 0.0, %v1052
          %1054 = vdwg.mxu0
          %1055 = vmatpush.msra.mxu0 0.0
          %1056 = vmatpush.msra.mxu0 0.0
          %1057 = vmatpush.msra.mxu0 0.0
          %1058 = vmatpush.msra.mxu0 0.0
          %1059 = vmatpush.msra.mxu0 0.0
          %1060 = vmatpush.msra.mxu0 0.0
          %1061 = vmatpush.msra.mxu0 0.0
          %1062 = vmatpush.msra.mxu0 0.0
          %1063 = vmatpush.msra.mxu0 0.0
          %1064 = vmatpush.msra.mxu0 0.0
          %1065 = vmatpush.msra.mxu0 0.0
          %1066 = vmatpush.msra.mxu0 0.0
          %1067 = vmatpush.msra.mxu0 %v981
          %1068 = vmatpush.msra.mxu0 %v975
          %1069 = vmatpush.msra.mxu0 %v969
          %1070 = vmatpush.msra.mxu0 %v963
          %1071 = vmatmul.f32.gmra.mxu0 %v1004
          %v1072 = vpop.f32.mrf.mxu0
          %v1073 = vadd.f32 0.0, %v1072
          %1074 = vmatmul.f32.gmra.mxu0 %v1007
          %v1075 = vpop.f32.mrf.mxu0
          %v1076 = vadd.f32 0.0, %v1075
          %1077 = vdwg.mxu0
          %v1078 = vadd.f32 %v949, %v1027
          %v1079 = vadd.f32 %v950, %v1050
          %v1080 = vadd.f32 %v951, %v1073
          %v1081 = vadd.f32 %v952, %v1030
          %v1082 = vadd.f32 %v953, %v1053
          %v1083 = vadd.f32 %v954, %v1076
          %s1084 = scalar_lea.vmem %s580, 64
          %v1085 = vld [vmem:[%s1084] sm:$0xff]
          %v1086 = vld [vmem:[%s1084 + $0x8] sm:$0xff]
          %1087 = vrot.lane.b32.xlu0 %v603, 109
          %v1088 = vpop.permute.xlu0 %1087
          %1089 = vrot.lane.b32.xlu0 %v604, 109
          %v1090 = vpop.permute.xlu0 %1089
          %1091 = vrot.lane.b32.xlu0 %v605, 109
          %v1092 = vpop.permute.xlu0 %1091
          %1093 = vrot.lane.b32.xlu0 %v606, 109
          %v1094 = vpop.permute.xlu0 %1093
          %1095 = vrot.lane.b32.xlu0 %v607, 109
          %v1096 = vpop.permute.xlu0 %1095
          %1097 = vrot.lane.b32.xlu0 %v608, 109
          %v1098 = vpop.permute.xlu0 %1097
          %1099 = vrot.lane.b32.xlu0 %v609, 109
          %v1100 = vpop.permute.xlu0 %1099
          %1101 = vrot.lane.b32.xlu0 %v610, 109
          %v1102 = vpop.permute.xlu0 %1101
          %1103 = vrot.lane.b32.xlu0 %v611, 109
          %v1104 = vpop.permute.xlu0 %1103
          %1105 = vrot.lane.b32.xlu0 %v612, 109
          %v1106 = vpop.permute.xlu0 %1105
          %1107 = vrot.lane.b32.xlu0 %v613, 109
          %v1108 = vpop.permute.xlu0 %1107
          %1109 = vrot.lane.b32.xlu0 %v614, 109
          %v1110 = vpop.permute.xlu0 %1109
          %vm1111 = vcmask 891904
          %v1112 = vsel %vm1111, %v1088, %v1090
          %v1113 = vsel %vm1111, %v1090, %v1092
          %v1114 = vsel %vm1111, %v1094, %v1096
          %v1115 = vsel %vm1111, %v1096, %v1098
          %v1116 = vsel %vm1111, %v1100, %v1102
          %v1117 = vsel %vm1111, %v1102, %v1104
          %v1118 = vsel %vm1111, %v1106, %v1108
          %v1119 = vsel %vm1111, %v1108, %v1110
          %v1133 = vsel %vm675, %v1085, 0
          %v1136 = vsel %vm675, %v1086, 0
          %1138 = vmatpush.msra.mxu0 0.0
          %1139 = vmatpush.msra.mxu0 0.0
          %1140 = vmatpush.msra.mxu0 0.0
          %1141 = vmatpush.msra.mxu0 0.0
          %1142 = vmatpush.msra.mxu0 0.0
          %1143 = vmatpush.msra.mxu0 0.0
          %1144 = vmatpush.msra.mxu0 0.0
          %1145 = vmatpush.msra.mxu0 0.0
          %1146 = vmatpush.msra.mxu0 0.0
          %1147 = vmatpush.msra.mxu0 0.0
          %1148 = vmatpush.msra.mxu0 0.0
          %1149 = vmatpush.msra.mxu0 0.0
          %1150 = vmatpush.msra.mxu0 %v1118
          %1151 = vmatpush.msra.mxu0 %v1116
          %1152 = vmatpush.msra.mxu0 %v1114
          %1153 = vmatpush.msra.mxu0 %v1112
          %1154 = vmatmul.f32.gmra.mxu0 %v1133
          %v1155 = vpop.f32.mrf.mxu0
          %v1156 = vadd.f32 0.0, %v1155
          %1157 = vmatmul.f32.gmra.mxu0 %v1136
          %v1158 = vpop.f32.mrf.mxu0
          %v1159 = vadd.f32 0.0, %v1158
          %1160 = vdwg.mxu0
          %1161 = vmatpush.msra.mxu0 0.0
          %1162 = vmatpush.msra.mxu0 0.0
          %1163 = vmatpush.msra.mxu0 0.0
          %1164 = vmatpush.msra.mxu0 0.0
          %1165 = vmatpush.msra.mxu0 0.0
          %1166 = vmatpush.msra.mxu0 0.0
          %1167 = vmatpush.msra.mxu0 0.0
          %1168 = vmatpush.msra.mxu0 0.0
          %1169 = vmatpush.msra.mxu0 0.0
          %1170 = vmatpush.msra.mxu0 0.0
          %1171 = vmatpush.msra.mxu0 0.0
          %1172 = vmatpush.msra.mxu0 0.0
          %1173 = vmatpush.msra.mxu0 %v1119
          %1174 = vmatpush.msra.mxu0 %v1117
          %1175 = vmatpush.msra.mxu0 %v1115
          %1176 = vmatpush.msra.mxu0 %v1113
          %1177 = vmatmul.f32.gmra.mxu0 %v1133
          %v1178 = vpop.f32.mrf.mxu0
          %v1179 = vadd.f32 0.0, %v1178
          %1180 = vmatmul.f32.gmra.mxu0 %v1136
          %v1181 = vpop.f32.mrf.mxu0
          %v1182 = vadd.f32 0.0, %v1181
          %1183 = vdwg.mxu0
          %1184 = vmatpush.msra.mxu0 0.0
          %1185 = vmatpush.msra.mxu0 0.0
          %1186 = vmatpush.msra.mxu0 0.0
          %1187 = vmatpush.msra.mxu0 0.0
          %1188 = vmatpush.msra.mxu0 0.0
          %1189 = vmatpush.msra.mxu0 0.0
          %1190 = vmatpush.msra.mxu0 0.0
          %1191 = vmatpush.msra.mxu0 0.0
          %1192 = vmatpush.msra.mxu0 0.0
          %1193 = vmatpush.msra.mxu0 0.0
          %1194 = vmatpush.msra.mxu0 0.0
          %1195 = vmatpush.msra.mxu0 0.0
          %1196 = vmatpush.msra.mxu0 %v1110
          %1197 = vmatpush.msra.mxu0 %v1104
          %1198 = vmatpush.msra.mxu0 %v1098
          %1199 = vmatpush.msra.mxu0 %v1092
          %1200 = vmatmul.f32.gmra.mxu0 %v1133
          %v1201 = vpop.f32.mrf.mxu0
          %v1202 = vadd.f32 0.0, %v1201
          %1203 = vmatmul.f32.gmra.mxu0 %v1136
          %v1204 = vpop.f32.mrf.mxu0
          %v1205 = vadd.f32 0.0, %v1204
          %1206 = vdwg.mxu0
          %v1207 = vadd.f32 %v1078, %v1156
          %v1208 = vadd.f32 %v1079, %v1179
          %v1209 = vadd.f32 %v1080, %v1202
          %v1210 = vadd.f32 %v1081, %v1159
          %v1211 = vadd.f32 %v1082, %v1182
          %v1212 = vadd.f32 %v1083, %v1205
          %s1213 = scalar_lea.vmem %s580, 80
          %v1214 = vld [vmem:[%s1213] sm:$0xff]
          %v1215 = vld [vmem:[%s1213 + $0x8] sm:$0xff]
          %1216 = vrot.lane.b32.xlu0 %v603, 108
          %v1217 = vpop.permute.xlu0 %1216
          %1218 = vrot.lane.b32.xlu0 %v604, 108
          %v1219 = vpop.permute.xlu0 %1218
          %1220 = vrot.lane.b32.xlu0 %v605, 108
          %v1221 = vpop.permute.xlu0 %1220
          %1222 = vrot.lane.b32.xlu0 %v606, 108
          %v1223 = vpop.permute.xlu0 %1222
          %1224 = vrot.lane.b32.xlu0 %v607, 108
          %v1225 = vpop.permute.xlu0 %1224
          %1226 = vrot.lane.b32.xlu0 %v608, 108
          %v1227 = vpop.permute.xlu0 %1226
          %1228 = vrot.lane.b32.xlu0 %v609, 108
          %v1229 = vpop.permute.xlu0 %1228
          %1230 = vrot.lane.b32.xlu0 %v610, 108
          %v1231 = vpop.permute.xlu0 %1230
          %1232 = vrot.lane.b32.xlu0 %v611, 108
          %v1233 = vpop.permute.xlu0 %1232
          %1234 = vrot.lane.b32.xlu0 %v612, 108
          %v1235 = vpop.permute.xlu0 %1234
          %1236 = vrot.lane.b32.xlu0 %v613, 108
          %v1237 = vpop.permute.xlu0 %1236
          %1238 = vrot.lane.b32.xlu0 %v614, 108
          %v1239 = vpop.permute.xlu0 %1238
          %vm1240 = vcmask 883712
          %v1241 = vsel %vm1240, %v1217, %v1219
          %v1242 = vsel %vm1240, %v1219, %v1221
          %v1243 = vsel %vm1240, %v1223, %v1225
          %v1244 = vsel %vm1240, %v1225, %v1227
          %v1245 = vsel %vm1240, %v1229, %v1231
          %v1246 = vsel %vm1240, %v1231, %v1233
          %v1247 = vsel %vm1240, %v1235, %v1237
          %v1248 = vsel %vm1240, %v1237, %v1239
          %v1262 = vsel %vm675, %v1214, 0
          %v1265 = vsel %vm675, %v1215, 0
          %1267 = vmatpush.msra.mxu0 0.0
          %1268 = vmatpush.msra.mxu0 0.0
          %1269 = vmatpush.msra.mxu0 0.0
          %1270 = vmatpush.msra.mxu0 0.0
          %1271 = vmatpush.msra.mxu0 0.0
          %1272 = vmatpush.msra.mxu0 0.0
          %1273 = vmatpush.msra.mxu0 0.0
          %1274 = vmatpush.msra.mxu0 0.0
          %1275 = vmatpush.msra.mxu0 0.0
          %1276 = vmatpush.msra.mxu0 0.0
          %1277 = vmatpush.msra.mxu0 0.0
          %1278 = vmatpush.msra.mxu0 0.0
          %1279 = vmatpush.msra.mxu0 %v1247
          %1280 = vmatpush.msra.mxu0 %v1245
          %1281 = vmatpush.msra.mxu0 %v1243
          %1282 = vmatpush.msra.mxu0 %v1241
          %1283 = vmatmul.f32.gmra.mxu0 %v1262
          %v1284 = vpop.f32.mrf.mxu0
          %v1285 = vadd.f32 0.0, %v1284
          %1286 = vmatmul.f32.gmra.mxu0 %v1265
          %v1287 = vpop.f32.mrf.mxu0
          %v1288 = vadd.f32 0.0, %v1287
          %1289 = vdwg.mxu0
          %1290 = vmatpush.msra.mxu0 0.0
          %1291 = vmatpush.msra.mxu0 0.0
          %1292 = vmatpush.msra.mxu0 0.0
          %1293 = vmatpush.msra.mxu0 0.0
          %1294 = vmatpush.msra.mxu0 0.0
          %1295 = vmatpush.msra.mxu0 0.0
          %1296 = vmatpush.msra.mxu0 0.0
          %1297 = vmatpush.msra.mxu0 0.0
          %1298 = vmatpush.msra.mxu0 0.0
          %1299 = vmatpush.msra.mxu0 0.0
          %1300 = vmatpush.msra.mxu0 0.0
          %1301 = vmatpush.msra.mxu0 0.0
          %1302 = vmatpush.msra.mxu0 %v1248
          %1303 = vmatpush.msra.mxu0 %v1246
          %1304 = vmatpush.msra.mxu0 %v1244
          %1305 = vmatpush.msra.mxu0 %v1242
          %1306 = vmatmul.f32.gmra.mxu0 %v1262
          %v1307 = vpop.f32.mrf.mxu0
          %v1308 = vadd.f32 0.0, %v1307
          %1309 = vmatmul.f32.gmra.mxu0 %v1265
          %v1310 = vpop.f32.mrf.mxu0
          %v1311 = vadd.f32 0.0, %v1310
          %1312 = vdwg.mxu0
          %1313 = vmatpush.msra.mxu0 0.0
          %1314 = vmatpush.msra.mxu0 0.0
          %1315 = vmatpush.msra.mxu0 0.0
          %1316 = vmatpush.msra.mxu0 0.0
          %1317 = vmatpush.msra.mxu0 0.0
          %1318 = vmatpush.msra.mxu0 0.0
          %1319 = vmatpush.msra.mxu0 0.0
          %1320 = vmatpush.msra.mxu0 0.0
          %1321 = vmatpush.msra.mxu0 0.0
          %1322 = vmatpush.msra.mxu0 0.0
          %1323 = vmatpush.msra.mxu0 0.0
          %1324 = vmatpush.msra.mxu0 0.0
          %1325 = vmatpush.msra.mxu0 %v1239
          %1326 = vmatpush.msra.mxu0 %v1233
          %1327 = vmatpush.msra.mxu0 %v1227
          %1328 = vmatpush.msra.mxu0 %v1221
          %1329 = vmatmul.f32.gmra.mxu0 %v1262
          %v1330 = vpop.f32.mrf.mxu0
          %v1331 = vadd.f32 0.0, %v1330
          %1332 = vmatmul.f32.gmra.mxu0 %v1265
          %v1333 = vpop.f32.mrf.mxu0
          %v1334 = vadd.f32 0.0, %v1333
          %1335 = vdwg.mxu0
          %v1336 = vadd.f32 %v1207, %v1285
          %v1337 = vadd.f32 %v1208, %v1308
          %v1338 = vadd.f32 %v1209, %v1331
          %v1339 = vadd.f32 %v1210, %v1288
          %v1340 = vadd.f32 %v1211, %v1311
          %v1341 = vadd.f32 %v1212, %v1334
          %s1342 = scalar_lea.vmem %s580, 96
          %v1343 = vld [vmem:[%s1342] sm:$0xff]
          %v1344 = vld [vmem:[%s1342 + $0x8] sm:$0xff]
          %1345 = vrot.lane.b32.xlu0 %v603, 92
          %v1346 = vpop.permute.xlu0 %1345
          %1347 = vrot.lane.b32.xlu0 %v604, 92
          %v1348 = vpop.permute.xlu0 %1347
          %1349 = vrot.lane.b32.xlu0 %v605, 92
          %v1350 = vpop.permute.xlu0 %1349
          %1351 = vrot.lane.b32.xlu0 %v606, 92
          %v1352 = vpop.permute.xlu0 %1351
          %1353 = vrot.lane.b32.xlu0 %v607, 92
          %v1354 = vpop.permute.xlu0 %1353
          %1355 = vrot.lane.b32.xlu0 %v608, 92
          %v1356 = vpop.permute.xlu0 %1355
          %1357 = vrot.lane.b32.xlu0 %v609, 92
          %v1358 = vpop.permute.xlu0 %1357
          %1359 = vrot.lane.b32.xlu0 %v610, 92
          %v1360 = vpop.permute.xlu0 %1359
          %1361 = vrot.lane.b32.xlu0 %v611, 92
          %v1362 = vpop.permute.xlu0 %1361
          %1363 = vrot.lane.b32.xlu0 %v612, 92
          %v1364 = vpop.permute.xlu0 %1363
          %1365 = vrot.lane.b32.xlu0 %v613, 92
          %v1366 = vpop.permute.xlu0 %1365
          %1367 = vrot.lane.b32.xlu0 %v614, 92
          %v1368 = vpop.permute.xlu0 %1367
          %vm1369 = vcmask 752640
          %v1370 = vsel %vm1369, %v1346, %v1348
          %v1371 = vsel %vm1369, %v1348, %v1350
          %v1372 = vsel %vm1369, %v1352, %v1354
          %v1373 = vsel %vm1369, %v1354, %v1356
          %v1374 = vsel %vm1369, %v1358, %v1360
          %v1375 = vsel %vm1369, %v1360, %v1362
          %v1376 = vsel %vm1369, %v1364, %v1366
          %v1377 = vsel %vm1369, %v1366, %v1368
          %v1391 = vsel %vm675, %v1343, 0
          %v1394 = vsel %vm675, %v1344, 0
          %1396 = vmatpush.msra.mxu0 0.0
          %1397 = vmatpush.msra.mxu0 0.0
          %1398 = vmatpush.msra.mxu0 0.0
          %1399 = vmatpush.msra.mxu0 0.0
          %1400 = vmatpush.msra.mxu0 0.0
          %1401 = vmatpush.msra.mxu0 0.0
          %1402 = vmatpush.msra.mxu0 0.0
          %1403 = vmatpush.msra.mxu0 0.0
          %1404 = vmatpush.msra.mxu0 0.0
          %1405 = vmatpush.msra.mxu0 0.0
          %1406 = vmatpush.msra.mxu0 0.0
          %1407 = vmatpush.msra.mxu0 0.0
          %1408 = vmatpush.msra.mxu0 %v1376
          %1409 = vmatpush.msra.mxu0 %v1374
          %1410 = vmatpush.msra.mxu0 %v1372
          %1411 = vmatpush.msra.mxu0 %v1370
          %1412 = vmatmul.f32.gmra.mxu0 %v1391
          %v1413 = vpop.f32.mrf.mxu0
          %v1414 = vadd.f32 0.0, %v1413
          %1415 = vmatmul.f32.gmra.mxu0 %v1394
          %v1416 = vpop.f32.mrf.mxu0
          %v1417 = vadd.f32 0.0, %v1416
          %1418 = vdwg.mxu0
          %1419 = vmatpush.msra.mxu0 0.0
          %1420 = vmatpush.msra.mxu0 0.0
          %1421 = vmatpush.msra.mxu0 0.0
          %1422 = vmatpush.msra.mxu0 0.0
          %1423 = vmatpush.msra.mxu0 0.0
          %1424 = vmatpush.msra.mxu0 0.0
          %1425 = vmatpush.msra.mxu0 0.0
          %1426 = vmatpush.msra.mxu0 0.0
          %1427 = vmatpush.msra.mxu0 0.0
          %1428 = vmatpush.msra.mxu0 0.0
          %1429 = vmatpush.msra.mxu0 0.0
          %1430 = vmatpush.msra.mxu0 0.0
          %1431 = vmatpush.msra.mxu0 %v1377
          %1432 = vmatpush.msra.mxu0 %v1375
          %1433 = vmatpush.msra.mxu0 %v1373
          %1434 = vmatpush.msra.mxu0 %v1371
          %1435 = vmatmul.f32.gmra.mxu0 %v1391
          %v1436 = vpop.f32.mrf.mxu0
          %v1437 = vadd.f32 0.0, %v1436
          %1438 = vmatmul.f32.gmra.mxu0 %v1394
          %v1439 = vpop.f32.mrf.mxu0
          %v1440 = vadd.f32 0.0, %v1439
          %1441 = vdwg.mxu0
          %1442 = vmatpush.msra.mxu0 0.0
          %1443 = vmatpush.msra.mxu0 0.0
          %1444 = vmatpush.msra.mxu0 0.0
          %1445 = vmatpush.msra.mxu0 0.0
          %1446 = vmatpush.msra.mxu0 0.0
          %1447 = vmatpush.msra.mxu0 0.0
          %1448 = vmatpush.msra.mxu0 0.0
          %1449 = vmatpush.msra.mxu0 0.0
          %1450 = vmatpush.msra.mxu0 0.0
          %1451 = vmatpush.msra.mxu0 0.0
          %1452 = vmatpush.msra.mxu0 0.0
          %1453 = vmatpush.msra.mxu0 0.0
          %1454 = vmatpush.msra.mxu0 %v1368
          %1455 = vmatpush.msra.mxu0 %v1362
          %1456 = vmatpush.msra.mxu0 %v1356
          %1457 = vmatpush.msra.mxu0 %v1350
          %1458 = vmatmul.f32.gmra.mxu0 %v1391
          %v1459 = vpop.f32.mrf.mxu0
          %v1460 = vadd.f32 0.0, %v1459
          %1461 = vmatmul.f32.gmra.mxu0 %v1394
          %v1462 = vpop.f32.mrf.mxu0
          %v1463 = vadd.f32 0.0, %v1462
          %1464 = vdwg.mxu0
          %v1465 = vadd.f32 %v1336, %v1414
          %v1466 = vadd.f32 %v1337, %v1437
          %v1467 = vadd.f32 %v1338, %v1460
          %v1468 = vadd.f32 %v1339, %v1417
          %v1469 = vadd.f32 %v1340, %v1440
          %v1470 = vadd.f32 %v1341, %v1463
          %s1471 = scalar_lea.vmem %s580, 112
          %v1472 = vld [vmem:[%s1471] sm:$0xff]
          %v1473 = vld [vmem:[%s1471 + $0x8] sm:$0xff]
          %1474 = vrot.lane.b32.xlu0 %v603, 91
          %v1475 = vpop.permute.xlu0 %1474
          %1476 = vrot.lane.b32.xlu0 %v604, 91
          %v1477 = vpop.permute.xlu0 %1476
          %1478 = vrot.lane.b32.xlu0 %v605, 91
          %v1479 = vpop.permute.xlu0 %1478
          %1480 = vrot.lane.b32.xlu0 %v606, 91
          %v1481 = vpop.permute.xlu0 %1480
          %1482 = vrot.lane.b32.xlu0 %v607, 91
          %v1483 = vpop.permute.xlu0 %1482
          %1484 = vrot.lane.b32.xlu0 %v608, 91
          %v1485 = vpop.permute.xlu0 %1484
          %1486 = vrot.lane.b32.xlu0 %v609, 91
          %v1487 = vpop.permute.xlu0 %1486
          %1488 = vrot.lane.b32.xlu0 %v610, 91
          %v1489 = vpop.permute.xlu0 %1488
          %1490 = vrot.lane.b32.xlu0 %v611, 91
          %v1491 = vpop.permute.xlu0 %1490
          %1492 = vrot.lane.b32.xlu0 %v612, 91
          %v1493 = vpop.permute.xlu0 %1492
          %1494 = vrot.lane.b32.xlu0 %v613, 91
          %v1495 = vpop.permute.xlu0 %1494
          %1496 = vrot.lane.b32.xlu0 %v614, 91
          %v1497 = vpop.permute.xlu0 %1496
          %vm1498 = vcmask 744448
          %v1499 = vsel %vm1498, %v1475, %v1477
          %v1500 = vsel %vm1498, %v1477, %v1479
          %v1501 = vsel %vm1498, %v1481, %v1483
          %v1502 = vsel %vm1498, %v1483, %v1485
          %v1503 = vsel %vm1498, %v1487, %v1489
          %v1504 = vsel %vm1498, %v1489, %v1491
          %v1505 = vsel %vm1498, %v1493, %v1495
          %v1506 = vsel %vm1498, %v1495, %v1497
          %v1520 = vsel %vm675, %v1472, 0
          %v1523 = vsel %vm675, %v1473, 0
          %1525 = vmatpush.msra.mxu0 0.0
          %1526 = vmatpush.msra.mxu0 0.0
          %1527 = vmatpush.msra.mxu0 0.0
          %1528 = vmatpush.msra.mxu0 0.0
          %1529 = vmatpush.msra.mxu0 0.0
          %1530 = vmatpush.msra.mxu0 0.0
          %1531 = vmatpush.msra.mxu0 0.0
          %1532 = vmatpush.msra.mxu0 0.0
          %1533 = vmatpush.msra.mxu0 0.0
          %1534 = vmatpush.msra.mxu0 0.0
          %1535 = vmatpush.msra.mxu0 0.0
          %1536 = vmatpush.msra.mxu0 0.0
          %1537 = vmatpush.msra.mxu0 %v1505
          %1538 = vmatpush.msra.mxu0 %v1503
          %1539 = vmatpush.msra.mxu0 %v1501
          %1540 = vmatpush.msra.mxu0 %v1499
          %1541 = vmatmul.f32.gmra.mxu0 %v1520
          %v1542 = vpop.f32.mrf.mxu0
          %v1543 = vadd.f32 0.0, %v1542
          %1544 = vmatmul.f32.gmra.mxu0 %v1523
          %v1545 = vpop.f32.mrf.mxu0
          %v1546 = vadd.f32 0.0, %v1545
          %1547 = vdwg.mxu0
          %1548 = vmatpush.msra.mxu0 0.0
          %1549 = vmatpush.msra.mxu0 0.0
          %1550 = vmatpush.msra.mxu0 0.0
          %1551 = vmatpush.msra.mxu0 0.0
          %1552 = vmatpush.msra.mxu0 0.0
          %1553 = vmatpush.msra.mxu0 0.0
          %1554 = vmatpush.msra.mxu0 0.0
          %1555 = vmatpush.msra.mxu0 0.0
          %1556 = vmatpush.msra.mxu0 0.0
          %1557 = vmatpush.msra.mxu0 0.0
          %1558 = vmatpush.msra.mxu0 0.0
          %1559 = vmatpush.msra.mxu0 0.0
          %1560 = vmatpush.msra.mxu0 %v1506
          %1561 = vmatpush.msra.mxu0 %v1504
          %1562 = vmatpush.msra.mxu0 %v1502
          %1563 = vmatpush.msra.mxu0 %v1500
          %1564 = vmatmul.f32.gmra.mxu0 %v1520
          %v1565 = vpop.f32.mrf.mxu0
          %v1566 = vadd.f32 0.0, %v1565
          %1567 = vmatmul.f32.gmra.mxu0 %v1523
          %v1568 = vpop.f32.mrf.mxu0
          %v1569 = vadd.f32 0.0, %v1568
          %1570 = vdwg.mxu0
          %1571 = vmatpush.msra.mxu0 0.0
          %1572 = vmatpush.msra.mxu0 0.0
          %1573 = vmatpush.msra.mxu0 0.0
          %1574 = vmatpush.msra.mxu0 0.0
          %1575 = vmatpush.msra.mxu0 0.0
          %1576 = vmatpush.msra.mxu0 0.0
          %1577 = vmatpush.msra.mxu0 0.0
          %1578 = vmatpush.msra.mxu0 0.0
          %1579 = vmatpush.msra.mxu0 0.0
          %1580 = vmatpush.msra.mxu0 0.0
          %1581 = vmatpush.msra.mxu0 0.0
          %1582 = vmatpush.msra.mxu0 0.0
          %1583 = vmatpush.msra.mxu0 %v1497
          %1584 = vmatpush.msra.mxu0 %v1491
          %1585 = vmatpush.msra.mxu0 %v1485
          %1586 = vmatpush.msra.mxu0 %v1479
          %1587 = vmatmul.f32.gmra.mxu0 %v1520
          %v1588 = vpop.f32.mrf.mxu0
          %v1589 = vadd.f32 0.0, %v1588
          %1590 = vmatmul.f32.gmra.mxu0 %v1523
          %v1591 = vpop.f32.mrf.mxu0
          %v1592 = vadd.f32 0.0, %v1591
          %1593 = vdwg.mxu0
          %v1594 = vadd.f32 %v1465, %v1543
          %v1595 = vadd.f32 %v1466, %v1566
          %v1596 = vadd.f32 %v1467, %v1589
          %v1597 = vadd.f32 %v1468, %v1546
          %v1598 = vadd.f32 %v1469, %v1569
          %v1599 = vadd.f32 %v1470, %v1592
          %s1600 = scalar_lea.vmem %s580, 128
          %v1601 = vld [vmem:[%s1600] sm:$0xff]
          %v1602 = vld [vmem:[%s1600 + $0x8] sm:$0xff]
          %1603 = vrot.lane.b32.xlu0 %v603, 90
          %v1604 = vpop.permute.xlu0 %1603
          %1605 = vrot.lane.b32.xlu0 %v604, 90
          %v1606 = vpop.permute.xlu0 %1605
          %1607 = vrot.lane.b32.xlu0 %v605, 90
          %v1608 = vpop.permute.xlu0 %1607
          %1609 = vrot.lane.b32.xlu0 %v606, 90
          %v1610 = vpop.permute.xlu0 %1609
          %1611 = vrot.lane.b32.xlu0 %v607, 90
          %v1612 = vpop.permute.xlu0 %1611
          %1613 = vrot.lane.b32.xlu0 %v608, 90
          %v1614 = vpop.permute.xlu0 %1613
          %1615 = vrot.lane.b32.xlu0 %v609, 90
          %v1616 = vpop.permute.xlu0 %1615
          %1617 = vrot.lane.b32.xlu0 %v610, 90
          %v1618 = vpop.permute.xlu0 %1617
          %1619 = vrot.lane.b32.xlu0 %v611, 90
          %v1620 = vpop.permute.xlu0 %1619
          %1621 = vrot.lane.b32.xlu0 %v612, 90
          %v1622 = vpop.permute.xlu0 %1621
          %1623 = vrot.lane.b32.xlu0 %v613, 90
          %v1624 = vpop.permute.xlu0 %1623
          %1625 = vrot.lane.b32.xlu0 %v614, 90
          %v1626 = vpop.permute.xlu0 %1625
          %vm1627 = vcmask 736256
          %v1628 = vsel %vm1627, %v1604, %v1606
          %v1629 = vsel %vm1627, %v1606, %v1608
          %v1630 = vsel %vm1627, %v1610, %v1612
          %v1631 = vsel %vm1627, %v1612, %v1614
          %v1632 = vsel %vm1627, %v1616, %v1618
          %v1633 = vsel %vm1627, %v1618, %v1620
          %v1634 = vsel %vm1627, %v1622, %v1624
          %v1635 = vsel %vm1627, %v1624, %v1626
          %v1649 = vsel %vm675, %v1601, 0
          %v1652 = vsel %vm675, %v1602, 0
          %1654 = vmatpush.msra.mxu0 0.0
          %1655 = vmatpush.msra.mxu0 0.0
          %1656 = vmatpush.msra.mxu0 0.0
          %1657 = vmatpush.msra.mxu0 0.0
          %1658 = vmatpush.msra.mxu0 0.0
          %1659 = vmatpush.msra.mxu0 0.0
          %1660 = vmatpush.msra.mxu0 0.0
          %1661 = vmatpush.msra.mxu0 0.0
          %1662 = vmatpush.msra.mxu0 0.0
          %1663 = vmatpush.msra.mxu0 0.0
          %1664 = vmatpush.msra.mxu0 0.0
          %1665 = vmatpush.msra.mxu0 0.0
          %1666 = vmatpush.msra.mxu0 %v1634
          %1667 = vmatpush.msra.mxu0 %v1632
          %1668 = vmatpush.msra.mxu0 %v1630
          %1669 = vmatpush.msra.mxu0 %v1628
          %1670 = vmatmul.f32.gmra.mxu0 %v1649
          %v1671 = vpop.f32.mrf.mxu0
          %v1672 = vadd.f32 0.0, %v1671
          %1673 = vmatmul.f32.gmra.mxu0 %v1652
          %v1674 = vpop.f32.mrf.mxu0
          %v1675 = vadd.f32 0.0, %v1674
          %1676 = vdwg.mxu0
          %1677 = vmatpush.msra.mxu0 0.0
          %1678 = vmatpush.msra.mxu0 0.0
          %1679 = vmatpush.msra.mxu0 0.0
          %1680 = vmatpush.msra.mxu0 0.0
          %1681 = vmatpush.msra.mxu0 0.0
          %1682 = vmatpush.msra.mxu0 0.0
          %1683 = vmatpush.msra.mxu0 0.0
          %1684 = vmatpush.msra.mxu0 0.0
          %1685 = vmatpush.msra.mxu0 0.0
          %1686 = vmatpush.msra.mxu0 0.0
          %1687 = vmatpush.msra.mxu0 0.0
          %1688 = vmatpush.msra.mxu0 0.0
          %1689 = vmatpush.msra.mxu0 %v1635
          %1690 = vmatpush.msra.mxu0 %v1633
          %1691 = vmatpush.msra.mxu0 %v1631
          %1692 = vmatpush.msra.mxu0 %v1629
          %1693 = vmatmul.f32.gmra.mxu0 %v1649
          %v1694 = vpop.f32.mrf.mxu0
          %v1695 = vadd.f32 0.0, %v1694
          %1696 = vmatmul.f32.gmra.mxu0 %v1652
          %v1697 = vpop.f32.mrf.mxu0
          %v1698 = vadd.f32 0.0, %v1697
          %1699 = vdwg.mxu0
          %1700 = vmatpush.msra.mxu0 0.0
          %1701 = vmatpush.msra.mxu0 0.0
          %1702 = vmatpush.msra.mxu0 0.0
          %1703 = vmatpush.msra.mxu0 0.0
          %1704 = vmatpush.msra.mxu0 0.0
          %1705 = vmatpush.msra.mxu0 0.0
          %1706 = vmatpush.msra.mxu0 0.0
          %1707 = vmatpush.msra.mxu0 0.0
          %1708 = vmatpush.msra.mxu0 0.0
          %1709 = vmatpush.msra.mxu0 0.0
          %1710 = vmatpush.msra.mxu0 0.0
          %1711 = vmatpush.msra.mxu0 0.0
          %1712 = vmatpush.msra.mxu0 %v1626
          %1713 = vmatpush.msra.mxu0 %v1620
          %1714 = vmatpush.msra.mxu0 %v1614
          %1715 = vmatpush.msra.mxu0 %v1608
          %1716 = vmatmul.f32.gmra.mxu0 %v1649
          %v1717 = vpop.f32.mrf.mxu0
          %v1718 = vadd.f32 0.0, %v1717
          %1719 = vmatmul.f32.gmra.mxu0 %v1652
          %v1720 = vpop.f32.mrf.mxu0
          %v1721 = vadd.f32 0.0, %v1720
          %1722 = vdwg.mxu0
          %v1723 = vadd.f32 %v1594, %v1672
          %v1724 = vadd.f32 %v1595, %v1695
          %v1725 = vadd.f32 %v1596, %v1718
          %v1726 = vadd.f32 %v1597, %v1675
          %v1727 = vadd.f32 %v1598, %v1698
          %v1728 = vadd.f32 %v1599, %v1721
          %v1729 = vld [vmem:[%s586] sm:$0xff]
          %v1730 = vld [vmem:[%s586 + $0x8] sm:$0xff]
          %1732 = vset.pattern.permute.xlu0 0
          %1733 = vperm.xlu0 %1732, %v1729
          %v1734 = vpop.permute.xlu0 %1733
          %1737 = vset.pattern.permute.xlu0 0
          %1738 = vperm.xlu0 %1737, %v1730
          %v1739 = vpop.permute.xlu0 %1738
          %v1741 = vadd.f32 %v1723, %v1734
          %v1742 = vadd.f32 %v1724, %v1734
          %v1743 = vadd.f32 %v1725, %v1734
          %v1744 = vadd.f32 %v1726, %v1739
          %v1745 = vadd.f32 %v1727, %v1739
          %v1746 = vadd.f32 %v1728, %v1739
          %v1747 = vmax.f32 %v1741, 0.0
          %v1748 = vmax.f32 %v1742, 0.0
          %v1749 = vmax.f32 %v1743, 0.0
          %v1750 = vmax.f32 %v1744, 0.0
          %v1751 = vmax.f32 %v1745, 0.0
          %v1752 = vmax.f32 %v1746, 0.0
          %1753 = vst [vmem:[#allocation2] sm:$0xff] %v1747
          %1754 = vst [vmem:[#allocation2 + $0x8] sm:$0xff] %v1748
          %1755 = vst.msk [vmem:[#allocation2 + $0x10] sm:$0xff] %vm675, %v1749
          %1756 = vst [vmem:[#allocation2 + $0x18] sm:$0xff] %v1750
          %1757 = vst [vmem:[#allocation2 + $0x20] sm:$0xff] %v1751
          %1758 = vst.msk [vmem:[#allocation2 + $0x28] sm:$0xff] %vm675, %v1752
        $region63: #{ffm_v3_forward.4} parent=54 // pred_fallthru
          _
        %v1759 = vld [vmem:[#allocation2] sm:$0xff]
        %v1760 = vld [vmem:[#allocation2 + $0x8] sm:$0xff]
        %v1761 = vld [vmem:[#allocation2 + $0x10] sm:$0xff]
        %v1762 = vld [vmem:[#allocation2 + $0x18] sm:$0xff]
        %v1763 = vld [vmem:[#allocation2 + $0x20] sm:$0xff]
        %v1764 = vld [vmem:[#allocation2 + $0x28] sm:$0xff]
        %v1765 = vld [vmem:[%s534] sm:$0xff]
        %v1766 = vld [vmem:[%s534 + $0x8] sm:$0xff]
        %v1767 = vld [vmem:[%s534 + $0x10] sm:$0xff]
        %v1768 = vld [vmem:[%s534 + $0x18] sm:$0xff]
        %v1769 = vld [vmem:[%s534 + $0x20] sm:$0xff]
        %v1770 = vld [vmem:[%s534 + $0x28] sm:$0xff]
        %v1771 = vld [vmem:[%s534 + $0x30] sm:$0xff]
        %v1772 = vld [vmem:[%s534 + $0x38] sm:$0xff]
        %v1773 = vld [vmem:[%s534 + $0x40] sm:$0xff]
        %v1774 = vld [vmem:[%s534 + $0x48] sm:$0xff]
        %v1775 = vld [vmem:[%s534 + $0x50] sm:$0xff]
        %v1776 = vld [vmem:[%s534 + $0x58] sm:$0xff]
        %v1777 = vld [vmem:[%s534 + $0x60] sm:$0xff]
        %v1778 = vld [vmem:[%s534 + $0x68] sm:$0xff]
        %v1779 = vld [vmem:[%s534 + $0x70] sm:$0xff]
        %v1780 = vld [vmem:[%s534 + $0x78] sm:$0xff]
        %v1781 = vld [vmem:[%s534 + $0x80] sm:$0xff]
        %v1782 = vld [vmem:[%s534 + $0x88] sm:$0xff]
        %v1783 = vld [vmem:[%s534 + $0x90] sm:$0xff]
        %v1784 = vld [vmem:[%s534 + $0x98] sm:$0xff]
        %v1785 = vld [vmem:[%s534 + $0xa0] sm:$0xff]
        %v1786 = vld [vmem:[%s534 + $0xa8] sm:$0xff]
        %v1787 = vld [vmem:[%s534 + $0xb0] sm:$0xff]
        %v1788 = vld [vmem:[%s534 + $0xb8] sm:$0xff]
        %v1789 = vld [vmem:[%s534 + $0xc0] sm:$0xff]
        %v1790 = vld [vmem:[%s534 + $0xc8] sm:$0xff]
        %v1791 = vld [vmem:[%s534 + $0xd0] sm:$0xff]
        %v1792 = vld [vmem:[%s534 + $0xd8] sm:$0xff]
        %v1793 = vld [vmem:[%s534 + $0xe0] sm:$0xff]
        %v1794 = vld [vmem:[%s534 + $0xe8] sm:$0xff]
        %v1795 = vld [vmem:[%s534 + $0xf0] sm:$0xff]
        %v1796 = vld [vmem:[%s534 + $0xf8] sm:$0xff]
        %v1797 = vld [vmem:[%s534 + $0x100] sm:$0xff]
        %v1798 = vld [vmem:[%s534 + $0x108] sm:$0xff]
        %v1799 = vld [vmem:[%s534 + $0x110] sm:$0xff]
        %v1800 = vld [vmem:[%s534 + $0x118] sm:$0xff]
        %v1801 = vld [vmem:[%s534 + $0x120] sm:$0xff]
        %v1802 = vld [vmem:[%s534 + $0x128] sm:$0xff]
        %v1803 = vld [vmem:[%s534 + $0x130] sm:$0xff]
        %v1804 = vld [vmem:[%s534 + $0x138] sm:$0xff]
        %v1805 = vld [vmem:[%s534 + $0x140] sm:$0xff]
        %v1806 = vld [vmem:[%s534 + $0x148] sm:$0xff]
        %v1807 = vld [vmem:[%s534 + $0x150] sm:$0xff]
        %v1808 = vld [vmem:[%s534 + $0x158] sm:$0xff]
        %v1809 = vld [vmem:[%s534 + $0x160] sm:$0xff]
        %v1810 = vld [vmem:[%s534 + $0x168] sm:$0xff]
        %v1811 = vld [vmem:[%s534 + $0x170] sm:$0xff]
        %v1812 = vld [vmem:[%s534 + $0x178] sm:$0xff]
        %v1813 = vld [vmem:[%s534 + $0x180] sm:$0xff]
        %v1814 = vld [vmem:[%s534 + $0x188] sm:$0xff]
        %v1815 = vld [vmem:[%s534 + $0x190] sm:$0xff]
        %v1816 = vld [vmem:[%s534 + $0x198] sm:$0xff]
        %v1817 = vld [vmem:[%s534 + $0x1a0] sm:$0xff]
        %v1818 = vld [vmem:[%s534 + $0x1a8] sm:$0xff]
        %v1819 = vld [vmem:[%s534 + $0x1b0] sm:$0xff]
        %v1820 = vld [vmem:[%s534 + $0x1b8] sm:$0xff]
        %v1821 = vld [vmem:[%s534 + $0x1c0] sm:$0xff]
        %v1822 = vld [vmem:[%s534 + $0x1c8] sm:$0xff]
        %v1823 = vld [vmem:[%s534 + $0x1d0] sm:$0xff]
        %v1824 = vld [vmem:[%s534 + $0x1d8] sm:$0xff]
        %v1825 = vld [vmem:[%s534 + $0x1e0] sm:$0xff]
        %v1826 = vld [vmem:[%s534 + $0x1e8] sm:$0xff]
        %v1827 = vld [vmem:[%s534 + $0x1f0] sm:$0xff]
        %v1828 = vld [vmem:[%s534 + $0x1f8] sm:$0xff]
        %v1829 = vld [vmem:[%s534 + $0x200] sm:$0xff]
        %v1830 = vld [vmem:[%s534 + $0x208] sm:$0xff]
        %v1831 = vld [vmem:[%s534 + $0x210] sm:$0xff]
        %v1832 = vld [vmem:[%s534 + $0x218] sm:$0xff]
        %v1833 = vld [vmem:[%s534 + $0x220] sm:$0xff]
        %v1834 = vld [vmem:[%s534 + $0x228] sm:$0xff]
        %v1835 = vld [vmem:[%s534 + $0x230] sm:$0xff]
        %v1836 = vld [vmem:[%s534 + $0x238] sm:$0xff]
        %v1837 = vld [vmem:[%s534 + $0x240] sm:$0xff]
        %v1838 = vld [vmem:[%s534 + $0x248] sm:$0xff]
        %v1839 = vld [vmem:[%s534 + $0x250] sm:$0xff]
        %v1840 = vld [vmem:[%s534 + $0x258] sm:$0xff]
        %v1841 = vld [vmem:[%s534 + $0x260] sm:$0xff]
        %v1842 = vld [vmem:[%s534 + $0x268] sm:$0xff]
        %v1843 = vld [vmem:[%s534 + $0x270] sm:$0xff]
        %v1844 = vld [vmem:[%s534 + $0x278] sm:$0xff]
        %v1845 = vld [vmem:[%s534 + $0x280] sm:$0xff]
        %v1846 = vld [vmem:[%s534 + $0x288] sm:$0xff]
        %v1847 = vld [vmem:[%s534 + $0x290] sm:$0xff]
        %v1848 = vld [vmem:[%s534 + $0x298] sm:$0xff]
        %v1849 = vld [vmem:[%s534 + $0x2a0] sm:$0xff]
        %v1850 = vld [vmem:[%s534 + $0x2a8] sm:$0xff]
        %v1851 = vld [vmem:[%s534 + $0x2b0] sm:$0xff]
        %v1852 = vld [vmem:[%s534 + $0x2b8] sm:$0xff]
        %v1853 = vld [vmem:[%s534 + $0x2c0] sm:$0xff]
        %v1854 = vld [vmem:[%s534 + $0x2c8] sm:$0xff]
        %v1855 = vld [vmem:[%s534 + $0x2d0] sm:$0xff]
        %v1856 = vld [vmem:[%s534 + $0x2d8] sm:$0xff]
        %v1857 = vld [vmem:[%s534 + $0x2e0] sm:$0xff]
        %v1858 = vld [vmem:[%s534 + $0x2e8] sm:$0xff]
        %v1859 = vld [vmem:[%s534 + $0x2f0] sm:$0xff]
        %v1860 = vld [vmem:[%s534 + $0x2f8] sm:$0xff]
        %v1861 = vld [vmem:[%s534 + $0x300] sm:$0xff]
        %v1862 = vld [vmem:[%s534 + $0x308] sm:$0xff]
        %v1863 = vld [vmem:[%s534 + $0x310] sm:$0xff]
        %v1864 = vld [vmem:[%s534 + $0x318] sm:$0xff]
        %v1865 = vld [vmem:[%s534 + $0x320] sm:$0xff]
        %v1866 = vld [vmem:[%s534 + $0x328] sm:$0xff]
        %v1867 = vld [vmem:[%s534 + $0x330] sm:$0xff]
        %v1868 = vld [vmem:[%s534 + $0x338] sm:$0xff]
        %v1869 = vld [vmem:[%s534 + $0x340] sm:$0xff]
        %v1870 = vld [vmem:[%s534 + $0x348] sm:$0xff]
        %v1871 = vld [vmem:[%s534 + $0x350] sm:$0xff]
        %v1872 = vld [vmem:[%s534 + $0x358] sm:$0xff]
        %v1873 = vld [vmem:[%s534 + $0x360] sm:$0xff]
        %v1874 = vld [vmem:[%s534 + $0x368] sm:$0xff]
        %v1875 = vld [vmem:[%s534 + $0x370] sm:$0xff]
        %v1876 = vld [vmem:[%s534 + $0x378] sm:$0xff]
        %v1877 = vld [vmem:[%s534 + $0x380] sm:$0xff]
        %v1878 = vld [vmem:[%s534 + $0x388] sm:$0xff]
        %v1879 = vld [vmem:[%s534 + $0x390] sm:$0xff]
        %v1880 = vld [vmem:[%s534 + $0x398] sm:$0xff]
        %v1881 = vld [vmem:[%s534 + $0x3a0] sm:$0xff]
        %v1882 = vld [vmem:[%s534 + $0x3a8] sm:$0xff]
        %v1883 = vld [vmem:[%s534 + $0x3b0] sm:$0xff]
        %v1884 = vld [vmem:[%s534 + $0x3b8] sm:$0xff]
        %v1885 = vld [vmem:[%s534 + $0x3c0] sm:$0xff]
        %v1886 = vld [vmem:[%s534 + $0x3c8] sm:$0xff]
        %v1887 = vld [vmem:[%s534 + $0x3d0] sm:$0xff]
        %v1888 = vld [vmem:[%s534 + $0x3d8] sm:$0xff]
        %v1889 = vld [vmem:[%s534 + $0x3e0] sm:$0xff]
        %v1890 = vld [vmem:[%s534 + $0x3e8] sm:$0xff]
        %v1891 = vld [vmem:[%s534 + $0x3f0] sm:$0xff]
        %v1892 = vld [vmem:[%s534 + $0x3f8] sm:$0xff]
        %v1893 = vld [vmem:[%s534 + $0x400] sm:$0xff]
        %v1894 = vld [vmem:[%s534 + $0x408] sm:$0xff]
        %v1895 = vld [vmem:[%s534 + $0x410] sm:$0xff]
        %v1896 = vld [vmem:[%s534 + $0x418] sm:$0xff]
        %v1897 = vld [vmem:[%s534 + $0x420] sm:$0xff]
        %v1898 = vld [vmem:[%s534 + $0x428] sm:$0xff]
        %v1899 = vld [vmem:[%s534 + $0x430] sm:$0xff]
        %v1900 = vld [vmem:[%s534 + $0x438] sm:$0xff]
        %v1901 = vld [vmem:[%s534 + $0x440] sm:$0xff]
        %v1902 = vld [vmem:[%s534 + $0x448] sm:$0xff]
        %v1903 = vld [vmem:[%s534 + $0x450] sm:$0xff]
        %v1904 = vld [vmem:[%s534 + $0x458] sm:$0xff]
        %v1905 = vld [vmem:[%s534 + $0x460] sm:$0xff]
        %v1906 = vld [vmem:[%s534 + $0x468] sm:$0xff]
        %v1907 = vld [vmem:[%s534 + $0x470] sm:$0xff]
        %v1908 = vld [vmem:[%s534 + $0x478] sm:$0xff]
        %vm1909 = vcmask 261120
        %v1911 = vsel %vm1909, %v1761, 0
        %v1914 = vsel %vm1909, %v1764, 0
        %1916 = vmatpush.msra.mxu0 %v1825
        %1917 = vmatpush.msra.mxu0 %v1821
        %1918 = vmatpush.msra.mxu0 %v1817
        %1919 = vmatpush.msra.mxu0 %v1813
        %1920 = vmatpush.msra.mxu0 %v1809
        %1921 = vmatpush.msra.mxu0 %v1805
        %1922 = vmatpush.msra.mxu0 %v1801
        %1923 = vmatpush.msra.mxu0 %v1797
        %1924 = vmatpush.msra.mxu0 %v1793
        %1925 = vmatpush.msra.mxu0 %v1789
        %1926 = vmatpush.msra.mxu0 %v1785
        %1927 = vmatpush.msra.mxu0 %v1781
        %1928 = vmatpush.msra.mxu0 %v1777
        %1929 = vmatpush.msra.mxu0 %v1773
        %1930 = vmatpush.msra.mxu0 %v1769
        %1931 = vmatpush.msra.mxu0 %v1765
        %1932 = vmatmul.f32.gmra.mxu0 %v1759
        %v1933 = vpop.f32.mrf.mxu0
        %v1934 = vadd.f32 0.0, %v1933
        %1935 = vmatmul.f32.gmra.mxu0 %v1762
        %v1936 = vpop.f32.mrf.mxu0
        %v1937 = vadd.f32 0.0, %v1936
        %1938 = vdwg.mxu0
        %1939 = vmatpush.msra.mxu0 %v1889
        %1940 = vmatpush.msra.mxu0 %v1885
        %1941 = vmatpush.msra.mxu0 %v1881
        %1942 = vmatpush.msra.mxu0 %v1877
        %1943 = vmatpush.msra.mxu0 %v1873
        %1944 = vmatpush.msra.mxu0 %v1869
        %1945 = vmatpush.msra.mxu0 %v1865
        %1946 = vmatpush.msra.mxu0 %v1861
        %1947 = vmatpush.msra.mxu0 %v1857
        %1948 = vmatpush.msra.mxu0 %v1853
        %1949 = vmatpush.msra.mxu0 %v1849
        %1950 = vmatpush.msra.mxu0 %v1845
        %1951 = vmatpush.msra.mxu0 %v1841
        %1952 = vmatpush.msra.mxu0 %v1837
        %1953 = vmatpush.msra.mxu0 %v1833
        %1954 = vmatpush.msra.mxu0 %v1829
        %1955 = vmatmul.f32.gmra.mxu0 %v1760
        %v1956 = vpop.f32.mrf.mxu0
        %v1957 = vadd.f32 %v1934, %v1956
        %1958 = vmatmul.f32.gmra.mxu0 %v1763
        %v1959 = vpop.f32.mrf.mxu0
        %v1960 = vadd.f32 %v1937, %v1959
        %1961 = vdwg.mxu0
        %1962 = vmatpush.msra.mxu0 0.0
        %1963 = vmatpush.msra.mxu0 0.0
        %1964 = vmatpush.msra.mxu0 0.0
        %1965 = vmatpush.msra.mxu0 0.0
        %1966 = vmatpush.msra.mxu0 0.0
        %1967 = vmatpush.msra.mxu0 0.0
        %1968 = vmatpush.msra.mxu0 0.0
        %1969 = vmatpush.msra.mxu0 0.0
        %1970 = vmatpush.msra.mxu0 0.0
        %1971 = vmatpush.msra.mxu0 0.0
        %1972 = vmatpush.msra.mxu0 0.0
        %1973 = vmatpush.msra.mxu0 0.0
        %1974 = vmatpush.msra.mxu0 %v1905
        %1975 = vmatpush.msra.mxu0 %v1901
        %1976 = vmatpush.msra.mxu0 %v1897
        %1977 = vmatpush.msra.mxu0 %v1893
        %1978 = vmatmul.f32.gmra.mxu0 %v1911
        %v1979 = vpop.f32.mrf.mxu0
        %v1980 = vadd.f32 %v1957, %v1979
        %1981 = vmatmul.f32.gmra.mxu0 %v1914
        %v1982 = vpop.f32.mrf.mxu0
        %v1983 = vadd.f32 %v1960, %v1982
        %1984 = vdwg.mxu0
        %1985 = vmatpush.msra.mxu0 %v1826
        %1986 = vmatpush.msra.mxu0 %v1822
        %1987 = vmatpush.msra.mxu0 %v1818
        %1988 = vmatpush.msra.mxu0 %v1814
        %1989 = vmatpush.msra.mxu0 %v1810
        %1990 = vmatpush.msra.mxu0 %v1806
        %1991 = vmatpush.msra.mxu0 %v1802
        %1992 = vmatpush.msra.mxu0 %v1798
        %1993 = vmatpush.msra.mxu0 %v1794
        %1994 = vmatpush.msra.mxu0 %v1790
        %1995 = vmatpush.msra.mxu0 %v1786
        %1996 = vmatpush.msra.mxu0 %v1782
        %1997 = vmatpush.msra.mxu0 %v1778
        %1998 = vmatpush.msra.mxu0 %v1774
        %1999 = vmatpush.msra.mxu0 %v1770
        %2000 = vmatpush.msra.mxu0 %v1766
        %2001 = vmatmul.f32.gmra.mxu0 %v1759
        %v2002 = vpop.f32.mrf.mxu0
        %v2003 = vadd.f32 0.0, %v2002
        %2004 = vmatmul.f32.gmra.mxu0 %v1762
        %v2005 = vpop.f32.mrf.mxu0
        %v2006 = vadd.f32 0.0, %v2005
        %2007 = vdwg.mxu0
        %2008 = vmatpush.msra.mxu0 %v1890
        %2009 = vmatpush.msra.mxu0 %v1886
        %2010 = vmatpush.msra.mxu0 %v1882
        %2011 = vmatpush.msra.mxu0 %v1878
        %2012 = vmatpush.msra.mxu0 %v1874
        %2013 = vmatpush.msra.mxu0 %v1870
        %2014 = vmatpush.msra.mxu0 %v1866
        %2015 = vmatpush.msra.mxu0 %v1862
        %2016 = vmatpush.msra.mxu0 %v1858
        %2017 = vmatpush.msra.mxu0 %v1854
        %2018 = vmatpush.msra.mxu0 %v1850
        %2019 = vmatpush.msra.mxu0 %v1846
        %2020 = vmatpush.msra.mxu0 %v1842
        %2021 = vmatpush.msra.mxu0 %v1838
        %2022 = vmatpush.msra.mxu0 %v1834
        %2023 = vmatpush.msra.mxu0 %v1830
        %2024 = vmatmul.f32.gmra.mxu0 %v1760
        %v2025 = vpop.f32.mrf.mxu0
        %v2026 = vadd.f32 %v2003, %v2025
        %2027 = vmatmul.f32.gmra.mxu0 %v1763
        %v2028 = vpop.f32.mrf.mxu0
        %v2029 = vadd.f32 %v2006, %v2028
        %2030 = vdwg.mxu0
        %2031 = vmatpush.msra.mxu0 0.0
        %2032 = vmatpush.msra.mxu0 0.0
        %2033 = vmatpush.msra.mxu0 0.0
        %2034 = vmatpush.msra.mxu0 0.0
        %2035 = vmatpush.msra.mxu0 0.0
        %2036 = vmatpush.msra.mxu0 0.0
        %2037 = vmatpush.msra.mxu0 0.0
        %2038 = vmatpush.msra.mxu0 0.0
        %2039 = vmatpush.msra.mxu0 0.0
        %2040 = vmatpush.msra.mxu0 0.0
        %2041 = vmatpush.msra.mxu0 0.0
        %2042 = vmatpush.msra.mxu0 0.0
        %2043 = vmatpush.msra.mxu0 %v1906
        %2044 = vmatpush.msra.mxu0 %v1902
        %2045 = vmatpush.msra.mxu0 %v1898
        %2046 = vmatpush.msra.mxu0 %v1894
        %2047 = vmatmul.f32.gmra.mxu0 %v1911
        %v2048 = vpop.f32.mrf.mxu0
        %v2049 = vadd.f32 %v2026, %v2048
        %2050 = vmatmul.f32.gmra.mxu0 %v1914
        %v2051 = vpop.f32.mrf.mxu0
        %v2052 = vadd.f32 %v2029, %v2051
        %2053 = vdwg.mxu0
        %2054 = vmatpush.msra.mxu0 %v1827
        %2055 = vmatpush.msra.mxu0 %v1823
        %2056 = vmatpush.msra.mxu0 %v1819
        %2057 = vmatpush.msra.mxu0 %v1815
        %2058 = vmatpush.msra.mxu0 %v1811
        %2059 = vmatpush.msra.mxu0 %v1807
        %2060 = vmatpush.msra.mxu0 %v1803
        %2061 = vmatpush.msra.mxu0 %v1799
        %2062 = vmatpush.msra.mxu0 %v1795
        %2063 = vmatpush.msra.mxu0 %v1791
        %2064 = vmatpush.msra.mxu0 %v1787
        %2065 = vmatpush.msra.mxu0 %v1783
        %2066 = vmatpush.msra.mxu0 %v1779
        %2067 = vmatpush.msra.mxu0 %v1775
        %2068 = vmatpush.msra.mxu0 %v1771
        %2069 = vmatpush.msra.mxu0 %v1767
        %2070 = vmatmul.f32.gmra.mxu0 %v1759
        %v2071 = vpop.f32.mrf.mxu0
        %v2072 = vadd.f32 0.0, %v2071
        %2073 = vmatmul.f32.gmra.mxu0 %v1762
        %v2074 = vpop.f32.mrf.mxu0
        %v2075 = vadd.f32 0.0, %v2074
        %2076 = vdwg.mxu0
        %2077 = vmatpush.msra.mxu0 %v1891
        %2078 = vmatpush.msra.mxu0 %v1887
        %2079 = vmatpush.msra.mxu0 %v1883
        %2080 = vmatpush.msra.mxu0 %v1879
        %2081 = vmatpush.msra.mxu0 %v1875
        %2082 = vmatpush.msra.mxu0 %v1871
        %2083 = vmatpush.msra.mxu0 %v1867
        %2084 = vmatpush.msra.mxu0 %v1863
        %2085 = vmatpush.msra.mxu0 %v1859
        %2086 = vmatpush.msra.mxu0 %v1855
        %2087 = vmatpush.msra.mxu0 %v1851
        %2088 = vmatpush.msra.mxu0 %v1847
        %2089 = vmatpush.msra.mxu0 %v1843
        %2090 = vmatpush.msra.mxu0 %v1839
        %2091 = vmatpush.msra.mxu0 %v1835
        %2092 = vmatpush.msra.mxu0 %v1831
        %2093 = vmatmul.f32.gmra.mxu0 %v1760
        %v2094 = vpop.f32.mrf.mxu0
        %v2095 = vadd.f32 %v2072, %v2094
        %2096 = vmatmul.f32.gmra.mxu0 %v1763
        %v2097 = vpop.f32.mrf.mxu0
        %v2098 = vadd.f32 %v2075, %v2097
        %2099 = vdwg.mxu0
        %2100 = vmatpush.msra.mxu0 0.0
        %2101 = vmatpush.msra.mxu0 0.0
        %2102 = vmatpush.msra.mxu0 0.0
        %2103 = vmatpush.msra.mxu0 0.0
        %2104 = vmatpush.msra.mxu0 0.0
        %2105 = vmatpush.msra.mxu0 0.0
        %2106 = vmatpush.msra.mxu0 0.0
        %2107 = vmatpush.msra.mxu0 0.0
        %2108 = vmatpush.msra.mxu0 0.0
        %2109 = vmatpush.msra.mxu0 0.0
        %2110 = vmatpush.msra.mxu0 0.0
        %2111 = vmatpush.msra.mxu0 0.0
        %2112 = vmatpush.msra.mxu0 %v1907
        %2113 = vmatpush.msra.mxu0 %v1903
        %2114 = vmatpush.msra.mxu0 %v1899
        %2115 = vmatpush.msra.mxu0 %v1895
        %2116 = vmatmul.f32.gmra.mxu0 %v1911
        %v2117 = vpop.f32.mrf.mxu0
        %v2118 = vadd.f32 %v2095, %v2117
        %2119 = vmatmul.f32.gmra.mxu0 %v1914
        %v2120 = vpop.f32.mrf.mxu0
        %v2121 = vadd.f32 %v2098, %v2120
        %2122 = vdwg.mxu0
        %2123 = vmatpush.msra.mxu0 %v1828
        %2124 = vmatpush.msra.mxu0 %v1824
        %2125 = vmatpush.msra.mxu0 %v1820
        %2126 = vmatpush.msra.mxu0 %v1816
        %2127 = vmatpush.msra.mxu0 %v1812
        %2128 = vmatpush.msra.mxu0 %v1808
        %2129 = vmatpush.msra.mxu0 %v1804
        %2130 = vmatpush.msra.mxu0 %v1800
        %2131 = vmatpush.msra.mxu0 %v1796
        %2132 = vmatpush.msra.mxu0 %v1792
        %2133 = vmatpush.msra.mxu0 %v1788
        %2134 = vmatpush.msra.mxu0 %v1784
        %2135 = vmatpush.msra.mxu0 %v1780
        %2136 = vmatpush.msra.mxu0 %v1776
        %2137 = vmatpush.msra.mxu0 %v1772
        %2138 = vmatpush.msra.mxu0 %v1768
        %2139 = vmatmul.f32.gmra.mxu0 %v1759
        %v2140 = vpop.f32.mrf.mxu0
        %v2141 = vadd.f32 0.0, %v2140
        %2142 = vmatmul.f32.gmra.mxu0 %v1762
        %v2143 = vpop.f32.mrf.mxu0
        %v2144 = vadd.f32 0.0, %v2143
        %2145 = vdwg.mxu0
        %2146 = vmatpush.msra.mxu0 %v1892
        %2147 = vmatpush.msra.mxu0 %v1888
        %2148 = vmatpush.msra.mxu0 %v1884
        %2149 = vmatpush.msra.mxu0 %v1880
        %2150 = vmatpush.msra.mxu0 %v1876
        %2151 = vmatpush.msra.mxu0 %v1872
        %2152 = vmatpush.msra.mxu0 %v1868
        %2153 = vmatpush.msra.mxu0 %v1864
        %2154 = vmatpush.msra.mxu0 %v1860
        %2155 = vmatpush.msra.mxu0 %v1856
        %2156 = vmatpush.msra.mxu0 %v1852
        %2157 = vmatpush.msra.mxu0 %v1848
        %2158 = vmatpush.msra.mxu0 %v1844
        %2159 = vmatpush.msra.mxu0 %v1840
        %2160 = vmatpush.msra.mxu0 %v1836
        %2161 = vmatpush.msra.mxu0 %v1832
        %2162 = vmatmul.f32.gmra.mxu0 %v1760
        %v2163 = vpop.f32.mrf.mxu0
        %v2164 = vadd.f32 %v2141, %v2163
        %2165 = vmatmul.f32.gmra.mxu0 %v1763
        %v2166 = vpop.f32.mrf.mxu0
        %v2167 = vadd.f32 %v2144, %v2166
        %2168 = vdwg.mxu0
        %2169 = vmatpush.msra.mxu0 0.0
        %2170 = vmatpush.msra.mxu0 0.0
        %2171 = vmatpush.msra.mxu0 0.0
        %2172 = vmatpush.msra.mxu0 0.0
        %2173 = vmatpush.msra.mxu0 0.0
        %2174 = vmatpush.msra.mxu0 0.0
        %2175 = vmatpush.msra.mxu0 0.0
        %2176 = vmatpush.msra.mxu0 0.0
        %2177 = vmatpush.msra.mxu0 0.0
        %2178 = vmatpush.msra.mxu0 0.0
        %2179 = vmatpush.msra.mxu0 0.0
        %2180 = vmatpush.msra.mxu0 0.0
        %2181 = vmatpush.msra.mxu0 %v1908
        %2182 = vmatpush.msra.mxu0 %v1904
        %2183 = vmatpush.msra.mxu0 %v1900
        %2184 = vmatpush.msra.mxu0 %v1896
        %2185 = vmatmul.f32.gmra.mxu0 %v1911
        %v2186 = vpop.f32.mrf.mxu0
        %v2187 = vadd.f32 %v2164, %v2186
        %2188 = vmatmul.f32.gmra.mxu0 %v1914
        %v2189 = vpop.f32.mrf.mxu0
        %v2190 = vadd.f32 %v2167, %v2189
        %2191 = vdwg.mxu0
        %2194 = vrot.lane.b32.xlu0 %v1980, 96
        %v2195 = vpop.permute.xlu0 %2194
        %2196 = vrot.lane.b32.xlu0 %v1983, 96
        %v2197 = vpop.permute.xlu0 %2196
        %2200 = vrot.lane.b32.xlu0 %v1980, 64
        %v2201 = vpop.permute.xlu0 %2200
        %2202 = vrot.lane.b32.xlu0 %v1983, 64
        %v2203 = vpop.permute.xlu0 %2202
        %2206 = vrot.lane.b32.xlu0 %v1980, 32
        %v2207 = vpop.permute.xlu0 %2206
        %2208 = vrot.lane.b32.xlu0 %v1983, 32
        %v2209 = vpop.permute.xlu0 %2208
        %2214 = vrot.lane.b32.xlu0 %v2049, 96
        %v2215 = vpop.permute.xlu0 %2214
        %2216 = vrot.lane.b32.xlu0 %v2052, 96
        %v2217 = vpop.permute.xlu0 %2216
        %2220 = vrot.lane.b32.xlu0 %v2049, 64
        %v2221 = vpop.permute.xlu0 %2220
        %2222 = vrot.lane.b32.xlu0 %v2052, 64
        %v2223 = vpop.permute.xlu0 %2222
        %2226 = vrot.lane.b32.xlu0 %v2049, 32
        %v2227 = vpop.permute.xlu0 %2226
        %2228 = vrot.lane.b32.xlu0 %v2052, 32
        %v2229 = vpop.permute.xlu0 %2228
        %2234 = vrot.lane.b32.xlu0 %v2118, 96
        %v2235 = vpop.permute.xlu0 %2234
        %2236 = vrot.lane.b32.xlu0 %v2121, 96
        %v2237 = vpop.permute.xlu0 %2236
        %2240 = vrot.lane.b32.xlu0 %v2118, 64
        %v2241 = vpop.permute.xlu0 %2240
        %2242 = vrot.lane.b32.xlu0 %v2121, 64
        %v2243 = vpop.permute.xlu0 %2242
        %2246 = vrot.lane.b32.xlu0 %v2118, 32
        %v2247 = vpop.permute.xlu0 %2246
        %2248 = vrot.lane.b32.xlu0 %v2121, 32
        %v2249 = vpop.permute.xlu0 %2248
        %2254 = vrot.lane.b32.xlu0 %v2187, 96
        %v2255 = vpop.permute.xlu0 %2254
        %2256 = vrot.lane.b32.xlu0 %v2190, 96
        %v2257 = vpop.permute.xlu0 %2256
        %2260 = vrot.lane.b32.xlu0 %v2187, 64
        %v2261 = vpop.permute.xlu0 %2260
        %2262 = vrot.lane.b32.xlu0 %v2190, 64
        %v2263 = vpop.permute.xlu0 %2262
        %2266 = vrot.lane.b32.xlu0 %v2187, 32
        %v2267 = vpop.permute.xlu0 %2266
        %2268 = vrot.lane.b32.xlu0 %v2190, 32
        %v2269 = vpop.permute.xlu0 %2268
        %v2272 = vrot.slane %v2201, 4
        %vm2273 = vcmask 1047556
        %v2274 = vsel %vm2273, %v2272, %v1980
        %v2275 = vrot.slane %v1980, 4
        %v2276 = vsel %vm2273, %v2201, %v2275
        %v2278 = vunpack.c.l.s4 1983009808
        %v2279 = vunpack.c.0.s8 %v2278
        %v2280 = vperm.slane %v2274, %v2279
        %v2282 = vunpack.c.l.s4 1983009808
        %v2283 = vunpack.c.0.s8 %v2282
        %v2284 = vperm.slane %v2276, %v2283
        %v2285 = vrot.slane %v2207, 4
        %v2286 = vsel %vm2273, %v2285, %v2195
        %v2287 = vrot.slane %v2195, 4
        %v2288 = vsel %vm2273, %v2207, %v2287
        %v2290 = vunpack.c.l.s4 1983009808
        %v2291 = vunpack.c.0.s8 %v2290
        %v2292 = vperm.slane %v2286, %v2291
        %v2294 = vunpack.c.l.s4 1983009808
        %v2295 = vunpack.c.0.s8 %v2294
        %v2296 = vperm.slane %v2288, %v2295
        %v2297 = vrot.slane %v2221, 4
        %v2298 = vsel %vm2273, %v2297, %v2049
        %v2299 = vrot.slane %v2049, 4
        %v2300 = vsel %vm2273, %v2221, %v2299
        %v2302 = vunpack.c.l.s4 1983009808
        %v2303 = vunpack.c.0.s8 %v2302
        %v2304 = vperm.slane %v2298, %v2303
        %v2306 = vunpack.c.l.s4 1983009808
        %v2307 = vunpack.c.0.s8 %v2306
        %v2308 = vperm.slane %v2300, %v2307
        %v2309 = vrot.slane %v2227, 4
        %v2310 = vsel %vm2273, %v2309, %v2215
        %v2311 = vrot.slane %v2215, 4
        %v2312 = vsel %vm2273, %v2227, %v2311
        %v2314 = vunpack.c.l.s4 1983009808
        %v2315 = vunpack.c.0.s8 %v2314
        %v2316 = vperm.slane %v2310, %v2315
        %v2318 = vunpack.c.l.s4 1983009808
        %v2319 = vunpack.c.0.s8 %v2318
        %v2320 = vperm.slane %v2312, %v2319
        %v2321 = vrot.slane %v2292, 4
        %v2322 = vsel %vm2273, %v2321, %v2280
        %v2323 = vrot.slane %v2280, 4
        %v2324 = vsel %vm2273, %v2292, %v2323
        %v2326 = vunpack.c.l.s4 1934713408
        %v2327 = vunpack.c.0.s8 %v2326
        %v2328 = vperm.slane %v2322, %v2327
        %v2330 = vunpack.c.l.s4 1934713408
        %v2331 = vunpack.c.0.s8 %v2330
        %v2332 = vperm.slane %v2324, %v2331
        %v2333 = vrot.slane %v2296, 4
        %v2334 = vsel %vm2273, %v2333, %v2284
        %v2335 = vrot.slane %v2284, 4
        %v2336 = vsel %vm2273, %v2296, %v2335
        %v2338 = vunpack.c.l.s4 1934713408
        %v2339 = vunpack.c.0.s8 %v2338
        %v2340 = vperm.slane %v2334, %v2339
        %v2342 = vunpack.c.l.s4 1934713408
        %v2343 = vunpack.c.0.s8 %v2342
        %v2344 = vperm.slane %v2336, %v2343
        %v2345 = vrot.slane %v2316, 4
        %v2346 = vsel %vm2273, %v2345, %v2304
        %v2347 = vrot.slane %v2304, 4
        %v2348 = vsel %vm2273, %v2316, %v2347
        %v2350 = vunpack.c.l.s4 1934713408
        %v2351 = vunpack.c.0.s8 %v2350
        %v2352 = vperm.slane %v2346, %v2351
        %v2354 = vunpack.c.l.s4 1934713408
        %v2355 = vunpack.c.0.s8 %v2354
        %v2356 = vperm.slane %v2348, %v2355
        %v2357 = vrot.slane %v2320, 4
        %v2358 = vsel %vm2273, %v2357, %v2308
        %v2359 = vrot.slane %v2308, 4
        %v2360 = vsel %vm2273, %v2320, %v2359
        %v2362 = vunpack.c.l.s4 1934713408
        %v2363 = vunpack.c.0.s8 %v2362
        %v2364 = vperm.slane %v2358, %v2363
        %v2366 = vunpack.c.l.s4 1934713408
        %v2367 = vunpack.c.0.s8 %v2366
        %v2368 = vperm.slane %v2360, %v2367
        %v2369 = vrot.slane %v2352, 4
        %v2370 = vsel %vm2273, %v2369, %v2328
        %v2371 = vrot.slane %v2328, 4
        %v2372 = vsel %vm2273, %v2352, %v2371
        %v2373 = vrot.slane %v2356, 4
        %v2374 = vsel %vm2273, %v2373, %v2332
        %v2375 = vrot.slane %v2332, 4
        %v2376 = vsel %vm2273, %v2356, %v2375
        %v2377 = vrot.slane %v2364, 4
        %v2378 = vsel %vm2273, %v2377, %v2340
        %v2379 = vrot.slane %v2340, 4
        %v2380 = vsel %vm2273, %v2364, %v2379
        %v2381 = vrot.slane %v2368, 4
        %v2382 = vsel %vm2273, %v2381, %v2344
        %v2383 = vrot.slane %v2344, 4
        %v2384 = vsel %vm2273, %v2368, %v2383
        %v2385 = vrot.slane %v2241, 4
        %v2386 = vsel %vm2273, %v2385, %v2118
        %v2387 = vrot.slane %v2118, 4
        %v2388 = vsel %vm2273, %v2241, %v2387
        %v2390 = vunpack.c.l.s4 1983009808
        %v2391 = vunpack.c.0.s8 %v2390
        %v2392 = vperm.slane %v2386, %v2391
        %v2394 = vunpack.c.l.s4 1983009808
        %v2395 = vunpack.c.0.s8 %v2394
        %v2396 = vperm.slane %v2388, %v2395
        %v2397 = vrot.slane %v2247, 4
        %v2398 = vsel %vm2273, %v2397, %v2235
        %v2399 = vrot.slane %v2235, 4
        %v2400 = vsel %vm2273, %v2247, %v2399
        %v2402 = vunpack.c.l.s4 1983009808
        %v2403 = vunpack.c.0.s8 %v2402
        %v2404 = vperm.slane %v2398, %v2403
        %v2406 = vunpack.c.l.s4 1983009808
        %v2407 = vunpack.c.0.s8 %v2406
        %v2408 = vperm.slane %v2400, %v2407
        %v2409 = vrot.slane %v2261, 4
        %v2410 = vsel %vm2273, %v2409, %v2187
        %v2411 = vrot.slane %v2187, 4
        %v2412 = vsel %vm2273, %v2261, %v2411
        %v2414 = vunpack.c.l.s4 1983009808
        %v2415 = vunpack.c.0.s8 %v2414
        %v2416 = vperm.slane %v2410, %v2415
        %v2418 = vunpack.c.l.s4 1983009808
        %v2419 = vunpack.c.0.s8 %v2418
        %v2420 = vperm.slane %v2412, %v2419
        %v2421 = vrot.slane %v2267, 4
        %v2422 = vsel %vm2273, %v2421, %v2255
        %v2423 = vrot.slane %v2255, 4
        %v2424 = vsel %vm2273, %v2267, %v2423
        %v2426 = vunpack.c.l.s4 1983009808
        %v2427 = vunpack.c.0.s8 %v2426
        %v2428 = vperm.slane %v2422, %v2427
        %v2430 = vunpack.c.l.s4 1983009808
        %v2431 = vunpack.c.0.s8 %v2430
        %v2432 = vperm.slane %v2424, %v2431
        %v2433 = vrot.slane %v2404, 4
        %v2434 = vsel %vm2273, %v2433, %v2392
        %v2435 = vrot.slane %v2392, 4
        %v2436 = vsel %vm2273, %v2404, %v2435
        %v2438 = vunpack.c.l.s4 1934713408
        %v2439 = vunpack.c.0.s8 %v2438
        %v2440 = vperm.slane %v2434, %v2439
        %v2442 = vunpack.c.l.s4 1934713408
        %v2443 = vunpack.c.0.s8 %v2442
        %v2444 = vperm.slane %v2436, %v2443
        %v2445 = vrot.slane %v2408, 4
        %v2446 = vsel %vm2273, %v2445, %v2396
        %v2447 = vrot.slane %v2396, 4
        %v2448 = vsel %vm2273, %v2408, %v2447
        %v2450 = vunpack.c.l.s4 1934713408
        %v2451 = vunpack.c.0.s8 %v2450
        %v2452 = vperm.slane %v2446, %v2451
        %v2454 = vunpack.c.l.s4 1934713408
        %v2455 = vunpack.c.0.s8 %v2454
        %v2456 = vperm.slane %v2448, %v2455
        %v2457 = vrot.slane %v2428, 4
        %v2458 = vsel %vm2273, %v2457, %v2416
        %v2459 = vrot.slane %v2416, 4
        %v2460 = vsel %vm2273, %v2428, %v2459
        %v2462 = vunpack.c.l.s4 1934713408
        %v2463 = vunpack.c.0.s8 %v2462
        %v2464 = vperm.slane %v2458, %v2463
        %v2466 = vunpack.c.l.s4 1934713408
        %v2467 = vunpack.c.0.s8 %v2466
        %v2468 = vperm.slane %v2460, %v2467
        %v2469 = vrot.slane %v2432, 4
        %v2470 = vsel %vm2273, %v2469, %v2420
        %v2471 = vrot.slane %v2420, 4
        %v2472 = vsel %vm2273, %v2432, %v2471
        %v2474 = vunpack.c.l.s4 1934713408
        %v2475 = vunpack.c.0.s8 %v2474
        %v2476 = vperm.slane %v2470, %v2475
        %v2478 = vunpack.c.l.s4 1934713408
        %v2479 = vunpack.c.0.s8 %v2478
        %v2480 = vperm.slane %v2472, %v2479
        %v2481 = vrot.slane %v2464, 4
        %v2482 = vsel %vm2273, %v2481, %v2440
        %v2483 = vrot.slane %v2440, 4
        %v2484 = vsel %vm2273, %v2464, %v2483
        %v2485 = vrot.slane %v2468, 4
        %v2486 = vsel %vm2273, %v2485, %v2444
        %v2487 = vrot.slane %v2444, 4
        %v2488 = vsel %vm2273, %v2468, %v2487
        %v2489 = vrot.slane %v2476, 4
        %v2490 = vsel %vm2273, %v2489, %v2452
        %v2491 = vrot.slane %v2452, 4
        %v2492 = vsel %vm2273, %v2476, %v2491
        %v2493 = vrot.slane %v2480, 4
        %v2494 = vsel %vm2273, %v2493, %v2456
        %v2495 = vrot.slane %v2456, 4
        %v2496 = vsel %vm2273, %v2480, %v2495
        %v2497 = vrot.slane %v2203, 4
        %v2498 = vsel %vm2273, %v2497, %v1983
        %v2499 = vrot.slane %v1983, 4
        %v2500 = vsel %vm2273, %v2203, %v2499
        %v2502 = vunpack.c.l.s4 1983009808
        %v2503 = vunpack.c.0.s8 %v2502
        %v2504 = vperm.slane %v2498, %v2503
        %v2506 = vunpack.c.l.s4 1983009808
        %v2507 = vunpack.c.0.s8 %v2506
        %v2508 = vperm.slane %v2500, %v2507
        %v2509 = vrot.slane %v2209, 4
        %v2510 = vsel %vm2273, %v2509, %v2197
        %v2511 = vrot.slane %v2197, 4
        %v2512 = vsel %vm2273, %v2209, %v2511
        %v2514 = vunpack.c.l.s4 1983009808
        %v2515 = vunpack.c.0.s8 %v2514
        %v2516 = vperm.slane %v2510, %v2515
        %v2518 = vunpack.c.l.s4 1983009808
        %v2519 = vunpack.c.0.s8 %v2518
        %v2520 = vperm.slane %v2512, %v2519
        %v2521 = vrot.slane %v2223, 4
        %v2522 = vsel %vm2273, %v2521, %v2052
        %v2523 = vrot.slane %v2052, 4
        %v2524 = vsel %vm2273, %v2223, %v2523
        %v2526 = vunpack.c.l.s4 1983009808
        %v2527 = vunpack.c.0.s8 %v2526
        %v2528 = vperm.slane %v2522, %v2527
        %v2530 = vunpack.c.l.s4 1983009808
        %v2531 = vunpack.c.0.s8 %v2530
        %v2532 = vperm.slane %v2524, %v2531
        %v2533 = vrot.slane %v2229, 4
        %v2534 = vsel %vm2273, %v2533, %v2217
        %v2535 = vrot.slane %v2217, 4
        %v2536 = vsel %vm2273, %v2229, %v2535
        %v2538 = vunpack.c.l.s4 1983009808
        %v2539 = vunpack.c.0.s8 %v2538
        %v2540 = vperm.slane %v2534, %v2539
        %v2542 = vunpack.c.l.s4 1983009808
        %v2543 = vunpack.c.0.s8 %v2542
        %v2544 = vperm.slane %v2536, %v2543
        %v2545 = vrot.slane %v2516, 4
        %v2546 = vsel %vm2273, %v2545, %v2504
        %v2547 = vrot.slane %v2504, 4
        %v2548 = vsel %vm2273, %v2516, %v2547
        %v2550 = vunpack.c.l.s4 1934713408
        %v2551 = vunpack.c.0.s8 %v2550
        %v2552 = vperm.slane %v2546, %v2551
        %v2554 = vunpack.c.l.s4 1934713408
        %v2555 = vunpack.c.0.s8 %v2554
        %v2556 = vperm.slane %v2548, %v2555
        %v2557 = vrot.slane %v2520, 4
        %v2558 = vsel %vm2273, %v2557, %v2508
        %v2559 = vrot.slane %v2508, 4
        %v2560 = vsel %vm2273, %v2520, %v2559
        %v2562 = vunpack.c.l.s4 1934713408
        %v2563 = vunpack.c.0.s8 %v2562
        %v2564 = vperm.slane %v2558, %v2563
        %v2566 = vunpack.c.l.s4 1934713408
        %v2567 = vunpack.c.0.s8 %v2566
        %v2568 = vperm.slane %v2560, %v2567
        %v2569 = vrot.slane %v2540, 4
        %v2570 = vsel %vm2273, %v2569, %v2528
        %v2571 = vrot.slane %v2528, 4
        %v2572 = vsel %vm2273, %v2540, %v2571
        %v2574 = vunpack.c.l.s4 1934713408
        %v2575 = vunpack.c.0.s8 %v2574
        %v2576 = vperm.slane %v2570, %v2575
        %v2578 = vunpack.c.l.s4 1934713408
        %v2579 = vunpack.c.0.s8 %v2578
        %v2580 = vperm.slane %v2572, %v2579
        %v2581 = vrot.slane %v2544, 4
        %v2582 = vsel %vm2273, %v2581, %v2532
        %v2583 = vrot.slane %v2532, 4
        %v2584 = vsel %vm2273, %v2544, %v2583
        %v2586 = vunpack.c.l.s4 1934713408
        %v2587 = vunpack.c.0.s8 %v2586
        %v2588 = vperm.slane %v2582, %v2587
        %v2590 = vunpack.c.l.s4 1934713408
        %v2591 = vunpack.c.0.s8 %v2590
        %v2592 = vperm.slane %v2584, %v2591
        %v2593 = vrot.slane %v2576, 4
        %v2594 = vsel %vm2273, %v2593, %v2552
        %v2595 = vrot.slane %v2552, 4
        %v2596 = vsel %vm2273, %v2576, %v2595
        %v2597 = vrot.slane %v2580, 4
        %v2598 = vsel %vm2273, %v2597, %v2556
        %v2599 = vrot.slane %v2556, 4
        %v2600 = vsel %vm2273, %v2580, %v2599
        %v2601 = vrot.slane %v2588, 4
        %v2602 = vsel %vm2273, %v2601, %v2564
        %v2603 = vrot.slane %v2564, 4
        %v2604 = vsel %vm2273, %v2588, %v2603
        %v2605 = vrot.slane %v2592, 4
        %v2606 = vsel %vm2273, %v2605, %v2568
        %v2607 = vrot.slane %v2568, 4
        %v2608 = vsel %vm2273, %v2592, %v2607
        %v2609 = vrot.slane %v2243, 4
        %v2610 = vsel %vm2273, %v2609, %v2121
        %v2611 = vrot.slane %v2121, 4
        %v2612 = vsel %vm2273, %v2243, %v2611
        %v2614 = vunpack.c.l.s4 1983009808
        %v2615 = vunpack.c.0.s8 %v2614
        %v2616 = vperm.slane %v2610, %v2615
        %v2618 = vunpack.c.l.s4 1983009808
        %v2619 = vunpack.c.0.s8 %v2618
        %v2620 = vperm.slane %v2612, %v2619
        %v2621 = vrot.slane %v2249, 4
        %v2622 = vsel %vm2273, %v2621, %v2237
        %v2623 = vrot.slane %v2237, 4
        %v2624 = vsel %vm2273, %v2249, %v2623
        %v2626 = vunpack.c.l.s4 1983009808
        %v2627 = vunpack.c.0.s8 %v2626
        %v2628 = vperm.slane %v2622, %v2627
        %v2630 = vunpack.c.l.s4 1983009808
        %v2631 = vunpack.c.0.s8 %v2630
        %v2632 = vperm.slane %v2624, %v2631
        %v2633 = vrot.slane %v2263, 4
        %v2634 = vsel %vm2273, %v2633, %v2190
        %v2635 = vrot.slane %v2190, 4
        %v2636 = vsel %vm2273, %v2263, %v2635
        %v2638 = vunpack.c.l.s4 1983009808
        %v2639 = vunpack.c.0.s8 %v2638
        %v2640 = vperm.slane %v2634, %v2639
        %v2642 = vunpack.c.l.s4 1983009808
        %v2643 = vunpack.c.0.s8 %v2642
        %v2644 = vperm.slane %v2636, %v2643
        %v2645 = vrot.slane %v2269, 4
        %v2646 = vsel %vm2273, %v2645, %v2257
        %v2647 = vrot.slane %v2257, 4
        %v2648 = vsel %vm2273, %v2269, %v2647
        %v2650 = vunpack.c.l.s4 1983009808
        %v2651 = vunpack.c.0.s8 %v2650
        %v2652 = vperm.slane %v2646, %v2651
        %v2654 = vunpack.c.l.s4 1983009808
        %v2655 = vunpack.c.0.s8 %v2654
        %v2656 = vperm.slane %v2648, %v2655
        %v2657 = vrot.slane %v2628, 4
        %v2658 = vsel %vm2273, %v2657, %v2616
        %v2659 = vrot.slane %v2616, 4
        %v2660 = vsel %vm2273, %v2628, %v2659
        %v2662 = vunpack.c.l.s4 1934713408
        %v2663 = vunpack.c.0.s8 %v2662
        %v2664 = vperm.slane %v2658, %v2663
        %v2666 = vunpack.c.l.s4 1934713408
        %v2667 = vunpack.c.0.s8 %v2666
        %v2668 = vperm.slane %v2660, %v2667
        %v2669 = vrot.slane %v2632, 4
        %v2670 = vsel %vm2273, %v2669, %v2620
        %v2671 = vrot.slane %v2620, 4
        %v2672 = vsel %vm2273, %v2632, %v2671
        %v2674 = vunpack.c.l.s4 1934713408
        %v2675 = vunpack.c.0.s8 %v2674
        %v2676 = vperm.slane %v2670, %v2675
        %v2678 = vunpack.c.l.s4 1934713408
        %v2679 = vunpack.c.0.s8 %v2678
        %v2680 = vperm.slane %v2672, %v2679
        %v2681 = vrot.slane %v2652, 4
        %v2682 = vsel %vm2273, %v2681, %v2640
        %v2683 = vrot.slane %v2640, 4
        %v2684 = vsel %vm2273, %v2652, %v2683
        %v2686 = vunpack.c.l.s4 1934713408
        %v2687 = vunpack.c.0.s8 %v2686
        %v2688 = vperm.slane %v2682, %v2687
        %v2690 = vunpack.c.l.s4 1934713408
        %v2691 = vunpack.c.0.s8 %v2690
        %v2692 = vperm.slane %v2684, %v2691
        %v2693 = vrot.slane %v2656, 4
        %v2694 = vsel %vm2273, %v2693, %v2644
        %v2695 = vrot.slane %v2644, 4
        %v2696 = vsel %vm2273, %v2656, %v2695
        %v2698 = vunpack.c.l.s4 1934713408
        %v2699 = vunpack.c.0.s8 %v2698
        %v2700 = vperm.slane %v2694, %v2699
        %v2702 = vunpack.c.l.s4 1934713408
        %v2703 = vunpack.c.0.s8 %v2702
        %v2704 = vperm.slane %v2696, %v2703
        %v2705 = vrot.slane %v2688, 4
        %v2706 = vsel %vm2273, %v2705, %v2664
        %v2707 = vrot.slane %v2664, 4
        %v2708 = vsel %vm2273, %v2688, %v2707
        %v2709 = vrot.slane %v2692, 4
        %v2710 = vsel %vm2273, %v2709, %v2668
        %v2711 = vrot.slane %v2668, 4
        %v2712 = vsel %vm2273, %v2692, %v2711
        %v2713 = vrot.slane %v2700, 4
        %v2714 = vsel %vm2273, %v2713, %v2676
        %v2715 = vrot.slane %v2676, 4
        %v2716 = vsel %vm2273, %v2700, %v2715
        %v2717 = vrot.slane %v2704, 4
        %v2718 = vsel %vm2273, %v2717, %v2680
        %v2719 = vrot.slane %v2680, 4
        %v2720 = vsel %vm2273, %v2704, %v2719
        %2721 = vst.msk [vmem:[%s570] sm:$0xff] %vm1909, %v2370
        %2722 = vst.msk [vmem:[%s570 + $0x8] sm:$0xff] %vm1909, %v2482
        %2723 = vst.msk [vmem:[%s570 + $0x10] sm:$0xff] %vm1909, %v2372
        %2724 = vst.msk [vmem:[%s570 + $0x18] sm:$0xff] %vm1909, %v2484
        %2725 = vst.msk [vmem:[%s570 + $0x20] sm:$0xff] %vm1909, %v2374
        %2726 = vst.msk [vmem:[%s570 + $0x28] sm:$0xff] %vm1909, %v2486
        %2727 = vst.msk [vmem:[%s570 + $0x30] sm:$0xff] %vm1909, %v2376
        %2728 = vst.msk [vmem:[%s570 + $0x38] sm:$0xff] %vm1909, %v2488
        %2729 = vst.msk [vmem:[%s570 + $0x40] sm:$0xff] %vm1909, %v2378
        %2730 = vst.msk [vmem:[%s570 + $0x48] sm:$0xff] %vm1909, %v2490
        %2731 = vst.msk [vmem:[%s570 + $0x50] sm:$0xff] %vm1909, %v2380
        %2732 = vst.msk [vmem:[%s570 + $0x58] sm:$0xff] %vm1909, %v2492
        %2733 = vst.msk [vmem:[%s570 + $0x60] sm:$0xff] %vm1909, %v2382
        %2734 = vst.msk [vmem:[%s570 + $0x68] sm:$0xff] %vm1909, %v2494
        %2735 = vst.msk [vmem:[%s570 + $0x70] sm:$0xff] %vm1909, %v2384
        %2736 = vst.msk [vmem:[%s570 + $0x78] sm:$0xff] %vm1909, %v2496
        %2737 = vst.msk [vmem:[%s570 + $0x80] sm:$0xff] %vm1909, %v2594
        %2738 = vst.msk [vmem:[%s570 + $0x88] sm:$0xff] %vm1909, %v2706
        %2739 = vst.msk [vmem:[%s570 + $0x90] sm:$0xff] %vm1909, %v2596
        %2740 = vst.msk [vmem:[%s570 + $0x98] sm:$0xff] %vm1909, %v2708
        %2741 = vst.msk [vmem:[%s570 + $0xa0] sm:$0xff] %vm1909, %v2598
        %2742 = vst.msk [vmem:[%s570 + $0xa8] sm:$0xff] %vm1909, %v2710
        %2743 = vst.msk [vmem:[%s570 + $0xb0] sm:$0xff] %vm1909, %v2600
        %2744 = vst.msk [vmem:[%s570 + $0xb8] sm:$0xff] %vm1909, %v2712
        %2745 = vst.msk [vmem:[%s570 + $0xc0] sm:$0xff] %vm1909, %v2602
        %2746 = vst.msk [vmem:[%s570 + $0xc8] sm:$0xff] %vm1909, %v2714
        %2747 = vst.msk [vmem:[%s570 + $0xd0] sm:$0xff] %vm1909, %v2604
        %2748 = vst.msk [vmem:[%s570 + $0xd8] sm:$0xff] %vm1909, %v2716
        %2749 = vst.msk [vmem:[%s570 + $0xe0] sm:$0xff] %vm1909, %v2606
        %2750 = vst.msk [vmem:[%s570 + $0xe8] sm:$0xff] %vm1909, %v2718
        %2751 = vst.msk [vmem:[%s570 + $0xf0] sm:$0xff] %vm1909, %v2608
        %2752 = vst.msk [vmem:[%s570 + $0xf8] sm:$0xff] %vm1909, %v2720
        %s2753 = sand.u32 %s153, 1
        %s2754 = sand.u32 %s153, 1
        %s2755 = smul.addr %s2754, 256
        %s2756 = scalar_lea.vmem [#allocation4], %s2755
        // Predicated region
        $region64: #{ffm_v3_forward.4} parent=54 // pred_check
          %p2757 = pneg %p163
        $region65: #{ffm_v3_forward.4} parent=54 // pred_check_branch
          %2759 = sbr.rel (%p2757) target = $region67
        $region66: #{ffm_v3_forward.4} parent=54 // pred_region
          %s2760 = sadd.s32 %s22, 2
          %s2761 = smul.u32 16, %s2760
          %s2762 = smul.u32 2, %s23
          %s2763 = ssub.s32 56, %s2761
          %p2764 = scmp.lt.s32.totalorder %s2763, 16
          %s2765 = scalar_select %p2764, %s2763, 16
          %s2766 = smul.u32 8, %s2765
          %s2767 = smul.u32 %s2766, 2
          %p2768 = scmp.ne.s32.totalorder 0, %s2767
          %s2769 = smul.addr %s2761, 4
          %s2770 = sadd.s32 %s2762, %s2769
          %s2771 = smul.addr %s21, 224
          %s2772 = sadd.s32 %s2770, %s2771
          %s2773 = smul.addr %s2772, 8
          %s2774 = scalar_lea.vmem %s5, %s2773
          // Predicated region
          $region68: #{ffm_v3_forward.4} parent=66 // pred_check
            %p2775 = pneg %p2768
          $region69: #{ffm_v3_forward.4} parent=66 // pred_check_branch
            %2777 = sbr.rel (%p2775) target = $region71
          $region70: #{ffm_v3_forward.4} parent=66 // pred_region
            // Predicated region
            $region72: #{ffm_v3_forward.4} parent=70 // pred_check
              _
            $region73: #{ffm_v3_forward.4} parent=70 // pred_check_branch
              %2779 = sbr.rel (0) target = $region75
            $region74: #{ffm_v3_forward.4} parent=70 // pred_region
              // Predicated region
              $region94: #{ffm_v3_forward.4} parent=74 // pred_check
                _
              $region95: #{ffm_v3_forward.4} parent=74 // pred_check_branch
                %2893 = sbr.rel (0) target = $region97
              $region96: #{ffm_v3_forward.4} parent=74 // pred_region
                %s2894 = sshrl.u32 %s2765, 4
                // While loop
                $region98: #{ffm_v3_forward.4} parent=96 // loop_pre_header
                  _
                $region99: #{ffm_v3_forward.4} parent=96 // loop_header
                  %s2896 = sphi 0, %s2898
                  %p2897 = scmp.ge.s32.totalorder %s2896, %s2894
                  %s2901 = sphi 0, %s2970
                  %s2902 = sphi %s2756, %s2973
                  %s2903 = sphi %s2774, %s2974
                $region100: #{ffm_v3_forward.4} parent=96 // loop_header_branch
                  %2900 = sbr.rel (%p2897) target = $region104
                $region101: #{ffm_v3_forward.4} parent=96 // loop_body
                  %v2904 = vld [vmem:[%s2902] sm:$0xff]
                  %2905 = vst [vmem:[%s2903] sm:$0xff] %v2904
                  %v2906 = vld [vmem:[%s2902 + $0x10] sm:$0xff]
                  %2907 = vst [vmem:[%s2903 + $0x20] sm:$0xff] %v2906
                  %v2908 = vld [vmem:[%s2902 + $0x20] sm:$0xff]
                  %2909 = vst [vmem:[%s2903 + $0x40] sm:$0xff] %v2908
                  %v2910 = vld [vmem:[%s2902 + $0x30] sm:$0xff]
                  %2911 = vst [vmem:[%s2903 + $0x60] sm:$0xff] %v2910
                  %v2912 = vld [vmem:[%s2902 + $0x40] sm:$0xff]
                  %2913 = vst [vmem:[%s2903 + $0x80] sm:$0xff] %v2912
                  %v2914 = vld [vmem:[%s2902 + $0x50] sm:$0xff]
                  %2915 = vst [vmem:[%s2903 + $0xa0] sm:$0xff] %v2914
                  %v2916 = vld [vmem:[%s2902 + $0x60] sm:$0xff]
                  %2917 = vst [vmem:[%s2903 + $0xc0] sm:$0xff] %v2916
                  %v2918 = vld [vmem:[%s2902 + $0x70] sm:$0xff]
                  %2919 = vst [vmem:[%s2903 + $0xe0] sm:$0xff] %v2918
                  %v2920 = vld [vmem:[%s2902 + $0x80] sm:$0xff]
                  %2921 = vst [vmem:[%s2903 + $0x100] sm:$0xff] %v2920
                  %v2922 = vld [vmem:[%s2902 + $0x90] sm:$0xff]
                  %2923 = vst [vmem:[%s2903 + $0x120] sm:$0xff] %v2922
                  %v2924 = vld [vmem:[%s2902 + $0xa0] sm:$0xff]
                  %2925 = vst [vmem:[%s2903 + $0x140] sm:$0xff] %v2924
                  %v2926 = vld [vmem:[%s2902 + $0xb0] sm:$0xff]
                  %2927 = vst [vmem:[%s2903 + $0x160] sm:$0xff] %v2926
                  %v2928 = vld [vmem:[%s2902 + $0xc0] sm:$0xff]
                  %2929 = vst [vmem:[%s2903 + $0x180] sm:$0xff] %v2928
                  %v2930 = vld [vmem:[%s2902 + $0xd0] sm:$0xff]
                  %2931 = vst [vmem:[%s2903 + $0x1a0] sm:$0xff] %v2930
                  %v2932 = vld [vmem:[%s2902 + $0xe0] sm:$0xff]
                  %2933 = vst [vmem:[%s2903 + $0x1c0] sm:$0xff] %v2932
                  %v2934 = vld [vmem:[%s2902 + $0xf0] sm:$0xff]
                  %2935 = vst [vmem:[%s2903 + $0x1e0] sm:$0xff] %v2934
                  %v2936 = vld [vmem:[%s2902 + $0x8] sm:$0xff]
                  %2937 = vst [vmem:[%s2903 + $0x8] sm:$0xff] %v2936
                  %v2938 = vld [vmem:[%s2902 + $0x18] sm:$0xff]
                  %2939 = vst [vmem:[%s2903 + $0x28] sm:$0xff] %v2938
                  %v2940 = vld [vmem:[%s2902 + $0x28] sm:$0xff]
                  %2941 = vst [vmem:[%s2903 + $0x48] sm:$0xff] %v2940
                  %v2942 = vld [vmem:[%s2902 + $0x38] sm:$0xff]
                  %2943 = vst [vmem:[%s2903 + $0x68] sm:$0xff] %v2942
                  %v2944 = vld [vmem:[%s2902 + $0x48] sm:$0xff]
                  %2945 = vst [vmem:[%s2903 + $0x88] sm:$0xff] %v2944
                  %v2946 = vld [vmem:[%s2902 + $0x58] sm:$0xff]
                  %2947 = vst [vmem:[%s2903 + $0xa8] sm:$0xff] %v2946
                  %v2948 = vld [vmem:[%s2902 + $0x68] sm:$0xff]
                  %2949 = vst [vmem:[%s2903 + $0xc8] sm:$0xff] %v2948
                  %v2950 = vld [vmem:[%s2902 + $0x78] sm:$0xff]
                  %2951 = vst [vmem:[%s2903 + $0xe8] sm:$0xff] %v2950
                  %v2952 = vld [vmem:[%s2902 + $0x88] sm:$0xff]
                  %2953 = vst [vmem:[%s2903 + $0x108] sm:$0xff] %v2952
                  %v2954 = vld [vmem:[%s2902 + $0x98] sm:$0xff]
                  %2955 = vst [vmem:[%s2903 + $0x128] sm:$0xff] %v2954
                  %v2956 = vld [vmem:[%s2902 + $0xa8] sm:$0xff]
                  %2957 = vst [vmem:[%s2903 + $0x148] sm:$0xff] %v2956
                  %v2958 = vld [vmem:[%s2902 + $0xb8] sm:$0xff]
                  %2959 = vst [vmem:[%s2903 + $0x168] sm:$0xff] %v2958
                  %v2960 = vld [vmem:[%s2902 + $0xc8] sm:$0xff]
                  %2961 = vst [vmem:[%s2903 + $0x188] sm:$0xff] %v2960
                  %v2962 = vld [vmem:[%s2902 + $0xd8] sm:$0xff]
                  %2963 = vst [vmem:[%s2903 + $0x1a8] sm:$0xff] %v2962
                  %v2964 = vld [vmem:[%s2902 + $0xe8] sm:$0xff]
                  %2965 = vst [vmem:[%s2903 + $0x1c8] sm:$0xff] %v2964
                  %v2966 = vld [vmem:[%s2902 + $0xf8] sm:$0xff]
                  %2967 = vst [vmem:[%s2903 + $0x1e8] sm:$0xff] %v2966
                  %s2968 = sadd.s32 1, %s2901
                  %p2969 = scmp.ge.s32.totalorder %s2968, %s2894
                  %s2970 = scalar_select %p2969, 0, %s2968
                  %s2971 = smul.u32 %s2970, 256
                  %s2972 = smul.u32 %s2970, 512
                  %s2973 = scalar_lea.vmem %s2756, %s2971 [#allocation4]
                  %s2974 = scalar_lea.vmem %s2774, %s2972
                $region102: #{ffm_v3_forward.4} parent=96 // loop_footer
                  %s2898 = sadd.s32 %s2896, 1
                $region103: #{ffm_v3_forward.4} parent=96 // loop_footer_branch
                  %2895 = sbr.rel target = $region99
                $region104: #{ffm_v3_forward.4} parent=96 // loop_exit
                  _
                %s2975 = sshrl.u32 %s2765, 4
                %s2976 = sand.u32 %s2765, 15
                %s2977 = smul.u32 %s2975, 16
                %s2978 = smul.u32 16, %s2977
                %s2979 = scalar_lea.vmem %s2756, %s2978 [#allocation4]
                %s2980 = smul.u32 32, %s2977
                %s2981 = scalar_lea.vmem %s2774, %s2980
                // While loop
                $region105: #{ffm_v3_forward.4} parent=96 // loop_pre_header
                  _
                $region106: #{ffm_v3_forward.4} parent=96 // loop_header
                  %s2983 = sphi 0, %s2985
                  %p2984 = scmp.ge.s32.totalorder %s2983, %s2976
                  %s2988 = sphi 0, %s2997
                  %s2989 = sphi %s2979, %s3000
                  %s2990 = sphi %s2981, %s3001
                $region107: #{ffm_v3_forward.4} parent=96 // loop_header_branch
                  %2987 = sbr.rel (%p2984) target = $region111
                $region108: #{ffm_v3_forward.4} parent=96 // loop_body
                  %v2991 = vld [vmem:[%s2989] sm:$0xff]
                  %2992 = vst [vmem:[%s2990] sm:$0xff] %v2991
                  %v2993 = vld [vmem:[%s2989 + $0x8] sm:$0xff]
                  %2994 = vst [vmem:[%s2990 + $0x8] sm:$0xff] %v2993
                  %s2995 = sadd.s32 1, %s2988
                  %p2996 = scmp.ge.s32.totalorder %s2995, %s2976
                  %s2997 = scalar_select %p2996, 0, %s2995
                  %s2998 = smul.u32 %s2997, 16
                  %s2999 = smul.u32 %s2997, 32
                  %s3000 = scalar_lea.vmem %s2979, %s2998 [#allocation4]
                  %s3001 = scalar_lea.vmem %s2981, %s2999
                $region109: #{ffm_v3_forward.4} parent=96 // loop_footer
                  %s2985 = sadd.s32 %s2983, 1
                $region110: #{ffm_v3_forward.4} parent=96 // loop_footer_branch
                  %2982 = sbr.rel target = $region106
                $region111: #{ffm_v3_forward.4} parent=96 // loop_exit
                  _
              $region97: #{ffm_v3_forward.4} parent=74 // pred_fallthru
                _
              // Predicated region
              $region112: #{ffm_v3_forward.4} parent=74 // pred_check
                _
              $region113: #{ffm_v3_forward.4} parent=74 // pred_check_branch
                %3003 = sbr.rel target = $region115
              $region114: #{ffm_v3_forward.4} parent=74 // pred_region
                _
              $region115: #{ffm_v3_forward.4} parent=74 // pred_fallthru
                _
            $region75: #{ffm_v3_forward.4} parent=70 // pred_fallthru
              _
            // Predicated region
            $region76: #{ffm_v3_forward.4} parent=70 // pred_check
              _
            $region77: #{ffm_v3_forward.4} parent=70 // pred_check_branch
              %2781 = sbr.rel target = $region79
            $region78: #{ffm_v3_forward.4} parent=70 // pred_region
              %s2783 = ssub.s32 256, 1
              %s2784 = sshrl.u32 %s2765, 4
              // While loop
              $region80: #{ffm_v3_forward.4} parent=78 // loop_pre_header
                _
              $region81: #{ffm_v3_forward.4} parent=78 // loop_header
                %s2786 = sphi 0, %s2788
                %p2787 = scmp.ge.s32.totalorder %s2786, %s2784
                %s2791 = sphi 0, %s2860
                %s2792 = sphi %s2756, %s2863
                %s2793 = sphi %s2774, %s2864
              $region82: #{ffm_v3_forward.4} parent=78 // loop_header_branch
                %2790 = sbr.rel (%p2787) target = $region86
              $region83: #{ffm_v3_forward.4} parent=78 // loop_body
                %v2794 = vld [vmem:[%s2792] sm:%s2783]
                %2795 = vst [vmem:[%s2793] sm:%s2783] %v2794
                %v2796 = vld [vmem:[%s2792 + $0x10] sm:%s2783]
                %2797 = vst [vmem:[%s2793 + $0x20] sm:%s2783] %v2796
                %v2798 = vld [vmem:[%s2792 + $0x20] sm:%s2783]
                %2799 = vst [vmem:[%s2793 + $0x40] sm:%s2783] %v2798
                %v2800 = vld [vmem:[%s2792 + $0x30] sm:%s2783]
                %2801 = vst [vmem:[%s2793 + $0x60] sm:%s2783] %v2800
                %v2802 = vld [vmem:[%s2792 + $0x40] sm:%s2783]
                %2803 = vst [vmem:[%s2793 + $0x80] sm:%s2783] %v2802
                %v2804 = vld [vmem:[%s2792 + $0x50] sm:%s2783]
                %2805 = vst [vmem:[%s2793 + $0xa0] sm:%s2783] %v2804
                %v2806 = vld [vmem:[%s2792 + $0x60] sm:%s2783]
                %2807 = vst [vmem:[%s2793 + $0xc0] sm:%s2783] %v2806
                %v2808 = vld [vmem:[%s2792 + $0x70] sm:%s2783]
                %2809 = vst [vmem:[%s2793 + $0xe0] sm:%s2783] %v2808
                %v2810 = vld [vmem:[%s2792 + $0x80] sm:%s2783]
                %2811 = vst [vmem:[%s2793 + $0x100] sm:%s2783] %v2810
                %v2812 = vld [vmem:[%s2792 + $0x90] sm:%s2783]
                %2813 = vst [vmem:[%s2793 + $0x120] sm:%s2783] %v2812
                %v2814 = vld [vmem:[%s2792 + $0xa0] sm:%s2783]
                %2815 = vst [vmem:[%s2793 + $0x140] sm:%s2783] %v2814
                %v2816 = vld [vmem:[%s2792 + $0xb0] sm:%s2783]
                %2817 = vst [vmem:[%s2793 + $0x160] sm:%s2783] %v2816
                %v2818 = vld [vmem:[%s2792 + $0xc0] sm:%s2783]
                %2819 = vst [vmem:[%s2793 + $0x180] sm:%s2783] %v2818
                %v2820 = vld [vmem:[%s2792 + $0xd0] sm:%s2783]
                %2821 = vst [vmem:[%s2793 + $0x1a0] sm:%s2783] %v2820
                %v2822 = vld [vmem:[%s2792 + $0xe0] sm:%s2783]
                %2823 = vst [vmem:[%s2793 + $0x1c0] sm:%s2783] %v2822
                %v2824 = vld [vmem:[%s2792 + $0xf0] sm:%s2783]
                %2825 = vst [vmem:[%s2793 + $0x1e0] sm:%s2783] %v2824
                %v2826 = vld [vmem:[%s2792 + $0x8] sm:%s2783]
                %2827 = vst [vmem:[%s2793 + $0x8] sm:%s2783] %v2826
                %v2828 = vld [vmem:[%s2792 + $0x18] sm:%s2783]
                %2829 = vst [vmem:[%s2793 + $0x28] sm:%s2783] %v2828
                %v2830 = vld [vmem:[%s2792 + $0x28] sm:%s2783]
                %2831 = vst [vmem:[%s2793 + $0x48] sm:%s2783] %v2830
                %v2832 = vld [vmem:[%s2792 + $0x38] sm:%s2783]
                %2833 = vst [vmem:[%s2793 + $0x68] sm:%s2783] %v2832
                %v2834 = vld [vmem:[%s2792 + $0x48] sm:%s2783]
                %2835 = vst [vmem:[%s2793 + $0x88] sm:%s2783] %v2834
                %v2836 = vld [vmem:[%s2792 + $0x58] sm:%s2783]
                %2837 = vst [vmem:[%s2793 + $0xa8] sm:%s2783] %v2836
                %v2838 = vld [vmem:[%s2792 + $0x68] sm:%s2783]
                %2839 = vst [vmem:[%s2793 + $0xc8] sm:%s2783] %v2838
                %v2840 = vld [vmem:[%s2792 + $0x78] sm:%s2783]
                %2841 = vst [vmem:[%s2793 + $0xe8] sm:%s2783] %v2840
                %v2842 = vld [vmem:[%s2792 + $0x88] sm:%s2783]
                %2843 = vst [vmem:[%s2793 + $0x108] sm:%s2783] %v2842
                %v2844 = vld [vmem:[%s2792 + $0x98] sm:%s2783]
                %2845 = vst [vmem:[%s2793 + $0x128] sm:%s2783] %v2844
                %v2846 = vld [vmem:[%s2792 + $0xa8] sm:%s2783]
                %2847 = vst [vmem:[%s2793 + $0x148] sm:%s2783] %v2846
                %v2848 = vld [vmem:[%s2792 + $0xb8] sm:%s2783]
                %2849 = vst [vmem:[%s2793 + $0x168] sm:%s2783] %v2848
                %v2850 = vld [vmem:[%s2792 + $0xc8] sm:%s2783]
                %2851 = vst [vmem:[%s2793 + $0x188] sm:%s2783] %v2850
                %v2852 = vld [vmem:[%s2792 + $0xd8] sm:%s2783]
                %2853 = vst [vmem:[%s2793 + $0x1a8] sm:%s2783] %v2852
                %v2854 = vld [vmem:[%s2792 + $0xe8] sm:%s2783]
                %2855 = vst [vmem:[%s2793 + $0x1c8] sm:%s2783] %v2854
                %v2856 = vld [vmem:[%s2792 + $0xf8] sm:%s2783]
                %2857 = vst [vmem:[%s2793 + $0x1e8] sm:%s2783] %v2856
                %s2858 = sadd.s32 1, %s2791
                %p2859 = scmp.ge.s32.totalorder %s2858, %s2784
                %s2860 = scalar_select %p2859, 0, %s2858
                %s2861 = smul.u32 %s2860, 256
                %s2862 = smul.u32 %s2860, 512
                %s2863 = scalar_lea.vmem %s2756, %s2861 [#allocation4]
                %s2864 = scalar_lea.vmem %s2774, %s2862
              $region84: #{ffm_v3_forward.4} parent=78 // loop_footer
                %s2788 = sadd.s32 %s2786, 1
              $region85: #{ffm_v3_forward.4} parent=78 // loop_footer_branch
                %2785 = sbr.rel target = $region81
              $region86: #{ffm_v3_forward.4} parent=78 // loop_exit
                _
              %s2865 = sshrl.u32 %s2765, 4
              %s2866 = sand.u32 %s2765, 15
              %s2867 = smul.u32 %s2865, 16
              %s2868 = smul.u32 16, %s2867
              %s2869 = scalar_lea.vmem %s2756, %s2868 [#allocation4]
              %s2870 = smul.u32 32, %s2867
              %s2871 = scalar_lea.vmem %s2774, %s2870
              // While loop
              $region87: #{ffm_v3_forward.4} parent=78 // loop_pre_header
                _
              $region88: #{ffm_v3_forward.4} parent=78 // loop_header
                %s2873 = sphi 0, %s2875
                %p2874 = scmp.ge.s32.totalorder %s2873, %s2866
                %s2878 = sphi 0, %s2887
                %s2879 = sphi %s2869, %s2890
                %s2880 = sphi %s2871, %s2891
              $region89: #{ffm_v3_forward.4} parent=78 // loop_header_branch
                %2877 = sbr.rel (%p2874) target = $region93
              $region90: #{ffm_v3_forward.4} parent=78 // loop_body
                %v2881 = vld [vmem:[%s2879] sm:%s2783]
                %2882 = vst [vmem:[%s2880] sm:%s2783] %v2881
                %v2883 = vld [vmem:[%s2879 + $0x8] sm:%s2783]
                %2884 = vst [vmem:[%s2880 + $0x8] sm:%s2783] %v2883
                %s2885 = sadd.s32 1, %s2878
                %p2886 = scmp.ge.s32.totalorder %s2885, %s2866
                %s2887 = scalar_select %p2886, 0, %s2885
                %s2888 = smul.u32 %s2887, 16
                %s2889 = smul.u32 %s2887, 32
                %s2890 = scalar_lea.vmem %s2869, %s2888 [#allocation4]
                %s2891 = scalar_lea.vmem %s2871, %s2889
              $region91: #{ffm_v3_forward.4} parent=78 // loop_footer
                %s2875 = sadd.s32 %s2873, 1
              $region92: #{ffm_v3_forward.4} parent=78 // loop_footer_branch
                %2872 = sbr.rel target = $region88
              $region93: #{ffm_v3_forward.4} parent=78 // loop_exit
                _
            $region79: #{ffm_v3_forward.4} parent=70 // pred_fallthru
              _
          $region71: #{ffm_v3_forward.4} parent=66 // pred_fallthru
            _
          %3004 = vnop
        $region67: #{ffm_v3_forward.4} parent=54 // pred_fallthru
          _
      $region55: #{ffm_v3_forward.4} parent=5 // pred_fallthru
        _
      %p3005 = scmp.le.s32.totalorder 2, %s11
      // Predicated region
      $region116: #{ffm_v3_forward.4} parent=5 // pred_check
        %p3006 = pneg %p3005
      $region117: #{ffm_v3_forward.4} parent=5 // pred_check_branch
        %3008 = sbr.rel (%p3006) target = $region119
      $region118: #{ffm_v3_forward.4} parent=5 // pred_region
        %s3009 = ssub.s32 %s11, 2
        // Predicated region
        $region120: #{ffm_v3_forward.4} parent=118 // pred_check
          %p3010 = pneg %p169
        $region121: #{ffm_v3_forward.4} parent=118 // pred_check_branch
          %3012 = sbr.rel (%p3010) target = $region123
        $region122: #{ffm_v3_forward.4} parent=118 // pred_region
          %s3013 = sand.u32 %s154, 1
          %s3014 = sand.u32 %s154, 1
          %s3015 = smul.addr %s3014, 256
          %s3016 = scalar_lea.vmem [#allocation4], %s3015
        $region123: #{ffm_v3_forward.4} parent=118 // pred_fallthru
          _
      $region119: #{ffm_v3_forward.4} parent=5 // pred_fallthru
        _
    $region6: #{ffm_v3_forward.4} parent=1 // loop_footer
      %s15 = sadd.s32 1, %s11
    $region7: #{ffm_v3_forward.4} parent=1 // loop_footer_branch
      %10 = sbr.rel target = $region3
    $region8: #{ffm_v3_forward.4} parent=1 // loop_exit
      _

// kernel: ffm_v3_forward.5
$region0: #{ffm_v3_forward.5}
  #allocation0 [shape = 'u32[]', space=smem, size = 0x4, offset = 0x4, fixed_abs, tag = 'smem constant byte address 0x4 - core index']
  #allocation1 [shape = 'u32[72,128]{1,0:T(1,128)}', space=vmem, size = 0x9000, scoped, tag = 'internal scratch']
  %s0 = inlined_call_operand.vmem [shape: f32[2,16,1190], index: 0, kind: input, shape index: {}]
  %s1 = inlined_call_operand.vmem [shape: f32[9,8,16], index: 1, kind: input, shape index: {}]
  %s2 = inlined_call_operand.vmem [shape: f32[8,1], index: 2, kind: input, shape index: {}]
  %s3 = inlined_call_operand.vmem [shape: f32[2,56,32,32], index: 3, kind: input, shape index: {}, may-alias: {3,4}]
  %s4 = inlined_call_operand.vmem [shape: f32[2,56,32,32], index: 4, kind: output, shape index: {}, may-alias: {3,4}]
  %s5 = sld [smem:[#allocation0]]
  $region45: #{ffm_v3_forward.5} parent=0
    _
  %s7 = ssub.s32 1, %s5
  %s8 = scalar_select 0, %s7, %s5
  loop: start=0, step=1, limit=4
  $region2: #{ffm_v3_forward.5} parent=0 // loop_pre_header
    _
  $region3: #{ffm_v3_forward.5} parent=0 // loop_header
    %s10 = sphi 0, %s14
    %p11 = scmp.ge.s32.totalorder %s10, 4
    %s17 = sphi 0, %s29
    %s18 = sphi 0, %s25
    %s19 = sphi 0, %s17
    %s20 = sphi 0, %s18
    %s21 = sphi 0, %s19
    %s22 = sphi 0, %s20
    %s32 = sphi 0, %s34
    %s35 = sphi 0, %s32
    %s36 = sphi 0, %s35
    %s52 = sphi 0, %s36
    %s58 = sphi 0, %s60
    %s61 = sphi 0, %s58
    %s62 = sphi 0, %s61
    %s78 = sphi 0, %s62
    %s84 = sphi 0, %s86
    %s87 = sphi 0, %s84
    %s88 = sphi 0, %s87
    %s104 = sphi 0, %s88
    %s114 = sphi 0, %s116
    %s117 = sphi 0, %s114
    %s118 = sphi 0, %s117
    %s134 = sphi 0, %s118
  $region4: #{ffm_v3_forward.5} parent=0 // loop_header_branch
    %13 = sbr.rel (%p11) target = $region8
  $region5: #{ffm_v3_forward.5} parent=0 // loop_body
    %s15 = ssub.s32 %s10, 1
    %s16 = ssub.s32 %s10, 2
    %s23 = sadd.s32 1, %s18
    %p24 = scmp.ge.s32.totalorder %s23, 1
    %s25 = scalar_select %p24, 0, %s23
    %s26 = sadd.s32 1, %s17
    %s27 = scalar_select %p24, %s26, %s17
    %p28 = scmp.ge.s32.totalorder %s27, 2
    %s29 = scalar_select %p28, 0, %s27
    %s30 = ssub.s32 %s17, %s29
    %p31 = scmp.eq.s32.totalorder %s30, 0
    %s33 = sadd.s32 %s32, 1
    %s34 = scalar_select %p31, %s32, %s33
    %p37 = pneg %p31
    %p38 = scmp.eq.s32.totalorder %s10, 1
    %p39 = por %p37, %p38
    %p40 = scmp.ne.s32.totalorder %s32, %s35
    %p41 = scmp.eq.s32.totalorder %s10, 0
    %p42 = por %p40, %p41
    %p43 = scmp.ne.s32.totalorder %s32, %s35
    %p44 = scmp.eq.s32.totalorder %s15, 1
    %p45 = por %p43, %p44
    %p46 = scmp.ne.s32.totalorder %s35, %s36
    %p47 = scmp.eq.s32.totalorder %s15, 0
    %p48 = por %p46, %p47
    %p49 = scmp.ne.s32.totalorder %s35, %s36
    %p50 = scmp.eq.s32.totalorder %s16, 1
    %p51 = por %p49, %p50
    %p53 = scmp.ne.s32.totalorder %s36, %s52
    %p54 = scmp.eq.s32.totalorder %s16, 0
    %p55 = por %p53, %p54
    %s56 = ssub.s32 %s18, %s25
    %p57 = scmp.eq.s32.totalorder %s56, 0
    %s59 = sadd.s32 %s58, 1
    %s60 = scalar_select %p57, %s58, %s59
    %p63 = pneg %p57
    %p64 = scmp.eq.s32.totalorder %s10, 1
    %p65 = por %p63, %p64
    %p66 = scmp.ne.s32.totalorder %s58, %s61
    %p67 = scmp.eq.s32.totalorder %s10, 0
    %p68 = por %p66, %p67
    %p69 = scmp.ne.s32.totalorder %s58, %s61
    %p70 = scmp.eq.s32.totalorder %s15, 1
    %p71 = por %p69, %p70
    %p72 = scmp.ne.s32.totalorder %s61, %s62
    %p73 = scmp.eq.s32.totalorder %s15, 0
    %p74 = por %p72, %p73
    %p75 = scmp.ne.s32.totalorder %s61, %s62
    %p76 = scmp.eq.s32.totalorder %s16, 1
    %p77 = por %p75, %p76
    %p79 = scmp.ne.s32.totalorder %s62, %s78
    %p80 = scmp.eq.s32.totalorder %s16, 0
    %p81 = por %p79, %p80
    %s82 = ssub.s32 %s18, %s25
    %p83 = scmp.eq.s32.totalorder %s82, 0
    %s85 = sadd.s32 %s84, 1
    %s86 = scalar_select %p83, %s84, %s85
    %p89 = pneg %p83
    %p90 = scmp.eq.s32.totalorder %s10, 1
    %p91 = por %p89, %p90
    %p92 = scmp.ne.s32.totalorder %s84, %s87
    %p93 = scmp.eq.s32.totalorder %s10, 0
    %p94 = por %p92, %p93
    %p95 = scmp.ne.s32.totalorder %s84, %s87
    %p96 = scmp.eq.s32.totalorder %s15, 1
    %p97 = por %p95, %p96
    %p98 = scmp.ne.s32.totalorder %s87, %s88
    %p99 = scmp.eq.s32.totalorder %s15, 0
    %p100 = por %p98, %p99
    %p101 = scmp.ne.s32.totalorder %s87, %s88
    %p102 = scmp.eq.s32.totalorder %s16, 1
    %p103 = por %p101, %p102
    %p105 = scmp.ne.s32.totalorder %s88, %s104
    %p106 = scmp.eq.s32.totalorder %s16, 0
    %p107 = por %p105, %p106
    %s108 = sadd.s32 %s18, 6
    %s109 = sadd.s32 %s25, 6
    %s110 = ssub.s32 %s17, %s29
    %s111 = ssub.s32 %s108, %s109
    %s112 = sor.u32 %s110, %s111
    %p113 = scmp.eq.s32.totalorder %s112, 0
    %s115 = sadd.s32 %s114, 1
    %s116 = scalar_select %p113, %s114, %s115
    %p119 = pneg %p113
    %p120 = scmp.eq.s32.totalorder %s10, 1
    %p121 = por %p119, %p120
    %p122 = scmp.ne.s32.totalorder %s114, %s117
    %p123 = scmp.eq.s32.totalorder %s10, 0
    %p124 = por %p122, %p123
    %p125 = scmp.ne.s32.totalorder %s114, %s117
    %p126 = scmp.eq.s32.totalorder %s15, 1
    %p127 = por %p125, %p126
    %p128 = scmp.ne.s32.totalorder %s117, %s118
    %p129 = scmp.eq.s32.totalorder %s15, 0
    %p130 = por %p128, %p129
    %p131 = scmp.ne.s32.totalorder %s117, %s118
    %p132 = scmp.eq.s32.totalorder %s16, 1
    %p133 = por %p131, %p132
    %p135 = scmp.ne.s32.totalorder %s118, %s134
    %p136 = scmp.eq.s32.totalorder %s16, 0
    %p137 = por %p135, %p136
    %p138 = scmp.le.s32.totalorder 1, %s10
    %p139 = scmp.lt.s32.totalorder %s10, 3
    %p140 = pnand %p138, %p139
    %p141 = pneg %p140
    // Predicated region
    $region9: #{ffm_v3_forward.5} parent=5 // pred_check
      _
    $region10: #{ffm_v3_forward.5} parent=5 // pred_check_branch
      %143 = sbr.rel (%p140) target = $region12
    $region11: #{ffm_v3_forward.5} parent=5 // pred_region
      %s144 = ssub.s32 %s10, 1
      // Predicated region
      $region13: #{ffm_v3_forward.5} parent=11 // pred_check
        %p145 = pneg %p74
      $region14: #{ffm_v3_forward.5} parent=11 // pred_check_branch
        %147 = sbr.rel (%p145) target = $region16
      $region15: #{ffm_v3_forward.5} parent=11 // pred_region
        %p148 = scmp.lt.s32.totalorder %s20, 0
        %s149 = scalar_select %p148, %s20, 0
        %s150 = smul.addr %s149, 8
        %s151 = scalar_lea.vmem %s1, %s150
      $region16: #{ffm_v3_forward.5} parent=11 // pred_fallthru
        _
      // Predicated region
      $region17: #{ffm_v3_forward.5} parent=11 // pred_check
        %p152 = pneg %p100
      $region18: #{ffm_v3_forward.5} parent=11 // pred_check_branch
        %154 = sbr.rel (%p152) target = $region20
      $region19: #{ffm_v3_forward.5} parent=11 // pred_region
        %p155 = scmp.lt.s32.totalorder %s20, 0
        %s156 = scalar_select %p155, %s20, 0
        %s157 = smul.addr %s156, 8
        %s158 = scalar_lea.vmem %s2, %s157
      $region20: #{ffm_v3_forward.5} parent=11 // pred_fallthru
        _
    $region12: #{ffm_v3_forward.5} parent=5 // pred_fallthru
      _
    %p159 = scmp.lt.s32.totalorder %s10, 2
    // Predicated region
    $region21: #{ffm_v3_forward.5} parent=5 // pred_check
      %p160 = pneg %p159
    $region22: #{ffm_v3_forward.5} parent=5 // pred_check_branch
      %162 = sbr.rel (%p160) target = $region24
    $region23: #{ffm_v3_forward.5} parent=5 // pred_region
      // Predicated region
      $region25: #{ffm_v3_forward.5} parent=23 // pred_check
        %p163 = pneg %p42
      $region26: #{ffm_v3_forward.5} parent=23 // pred_check_branch
        %165 = sbr.rel (%p163) target = $region28
      $region27: #{ffm_v3_forward.5} parent=23 // pred_region
        %p166 = scmp.lt.s32.totalorder %s17, 1
        %s167 = scalar_select %p166, %s17, 1
        %s168 = smul.addr %s167, 20
        %s169 = smul.addr %s168, 8
        %s170 = scalar_lea.vmem %s0, %s169
      $region28: #{ffm_v3_forward.5} parent=23 // pred_fallthru
        _
    $region24: #{ffm_v3_forward.5} parent=5 // pred_fallthru
      _
    %p171 = scmp.le.s32.totalorder 1, %s10
    %p172 = scmp.lt.s32.totalorder %s10, 3
    %p173 = pnand %p171, %p172
    %p174 = pneg %p173
    // Predicated region
    $region29: #{ffm_v3_forward.5} parent=5 // pred_check
      _
    $region30: #{ffm_v3_forward.5} parent=5 // pred_check_branch
      %176 = sbr.rel (%p173) target = $region32
    $region31: #{ffm_v3_forward.5} parent=5 // pred_region
      %s177 = ssub.s32 %s10, 1
      %p178 = scmp.lt.s32.totalorder %s19, 1
      %s179 = scalar_select %p178, %s19, 1
      %s180 = smul.addr %s179, 20
      %s181 = smul.addr %s180, 8
      %s182 = scalar_lea.vmem %s0, %s181
      %p183 = pneg %p48
      %p184 = pneg %p45
      %p185 = scmp.lt.s32.totalorder %s20, 0
      %s186 = scalar_select %p185, %s20, 0
      %s187 = smul.addr %s186, 8
      %s188 = scalar_lea.vmem %s1, %s187
      %p189 = pneg %p74
      %p190 = pneg %p71
      %p191 = scmp.lt.s32.totalorder %s20, 0
      %s192 = scalar_select %p191, %s20, 0
      %s193 = smul.addr %s192, 8
      %s194 = scalar_lea.vmem %s2, %s193
      %p195 = pneg %p100
      %p196 = pneg %p97
      %p197 = pneg %p130
      %p198 = pneg %p127
      %s199 = sadd.s32 %s20, 6
      %s200 = smul.u32 8, %s199
      %p201 = scmp.lt.s32.totalorder %s19, 1
      %s202 = scalar_select %p201, %s19, 1
      %p203 = scmp.lt.s32.totalorder %s200, 55
      %s204 = scalar_select %p203, %s200, 55
      %s205 = smul.addr %s204, 4
      %s206 = smul.addr %s202, 224
      %s207 = sadd.s32 %s205, %s206
      %s208 = smul.addr %s207, 8
      %s209 = scalar_lea.vmem %s4, %s208
      %p210 = scmp.lt.s32.totalorder %s19, 1
      %s211 = scalar_select %p210, %s19, 1
      %s212 = smul.addr %s211, 20
      %s213 = smul.addr %s212, 8
      %s214 = scalar_lea.vmem %s0, %s213
      %p215 = scmp.lt.s32.totalorder %s20, 0
      %s216 = scalar_select %p215, %s20, 0
      %s217 = smul.addr %s216, 8
      %s218 = scalar_lea.vmem %s1, %s217
      %p219 = scmp.lt.s32.totalorder %s20, 0
      %s220 = scalar_select %p219, %s20, 0
      %s221 = smul.addr %s220, 8
      %s222 = scalar_lea.vmem %s2, %s221
      %s223 = sadd.s32 %s20, 6
      %s224 = smul.u32 8, %s223
      %p225 = scmp.lt.s32.totalorder %s19, 1
      %s226 = scalar_select %p225, %s19, 1
      %p227 = scmp.lt.s32.totalorder %s224, 55
      %s228 = scalar_select %p227, %s224, 55
      %s229 = smul.addr %s228, 4
      %s230 = smul.addr %s226, 224
      %s231 = sadd.s32 %s229, %s230
      %s232 = smul.addr %s231, 8
      %s233 = scalar_lea.vmem %s4, %s232
      %s234 = sadd.s32 %s20, 6
      %s235 = smul.u32 8, %s234
      %v236 = vld [vmem:[%s218] sm:$0xff]
      %v237 = vld [vmem:[%s214] sm:$0xff]
      %v238 = vld [vmem:[%s214 + $0x8] sm:$0xff]
      %v239 = vld [vmem:[%s214 + $0x10] sm:$0xff]
      %v240 = vld [vmem:[%s214 + $0x18] sm:$0xff]
      %v241 = vld [vmem:[%s214 + $0x20] sm:$0xff]
      %v242 = vld [vmem:[%s214 + $0x28] sm:$0xff]
      %v243 = vld [vmem:[%s214 + $0x30] sm:$0xff]
      %v244 = vld [vmem:[%s214 + $0x38] sm:$0xff]
      %v245 = vld [vmem:[%s214 + $0x40] sm:$0xff]
      %v246 = vld [vmem:[%s214 + $0x50] sm:$0xff]
      %v247 = vld [vmem:[%s214 + $0x58] sm:$0xff]
      %v248 = vld [vmem:[%s214 + $0x60] sm:$0xff]
      %v249 = vld [vmem:[%s214 + $0x68] sm:$0xff]
      %v250 = vld [vmem:[%s214 + $0x70] sm:$0xff]
      %v251 = vld [vmem:[%s214 + $0x78] sm:$0xff]
      %v252 = vld [vmem:[%s214 + $0x80] sm:$0xff]
      %v253 = vld [vmem:[%s214 + $0x88] sm:$0xff]
      %v254 = vld [vmem:[%s214 + $0x90] sm:$0xff]
      %s255 = scalar_lea.vmem %s218, 8
      %v256 = vld [vmem:[%s255] sm:$0xff]
      %275 = vrot.lane.b32.xlu0 %v237, 127
      %v276 = vpop.permute.xlu0 %275
      %277 = vrot.lane.b32.xlu0 %v238, 127
      %v278 = vpop.permute.xlu0 %277
      %279 = vrot.lane.b32.xlu0 %v239, 127
      %v280 = vpop.permute.xlu0 %279
      %281 = vrot.lane.b32.xlu0 %v240, 127
      %v282 = vpop.permute.xlu0 %281
      %283 = vrot.lane.b32.xlu0 %v241, 127
      %v284 = vpop.permute.xlu0 %283
      %285 = vrot.lane.b32.xlu0 %v242, 127
      %v286 = vpop.permute.xlu0 %285
      %287 = vrot.lane.b32.xlu0 %v243, 127
      %v288 = vpop.permute.xlu0 %287
      %289 = vrot.lane.b32.xlu0 %v244, 127
      %v290 = vpop.permute.xlu0 %289
      %291 = vrot.lane.b32.xlu0 %v245, 127
      %v292 = vpop.permute.xlu0 %291
      %293 = vrot.lane.b32.xlu0 %v246, 127
      %v294 = vpop.permute.xlu0 %293
      %295 = vrot.lane.b32.xlu0 %v247, 127
      %v296 = vpop.permute.xlu0 %295
      %297 = vrot.lane.b32.xlu0 %v248, 127
      %v298 = vpop.permute.xlu0 %297
      %299 = vrot.lane.b32.xlu0 %v249, 127
      %v300 = vpop.permute.xlu0 %299
      %301 = vrot.lane.b32.xlu0 %v250, 127
      %v302 = vpop.permute.xlu0 %301
      %303 = vrot.lane.b32.xlu0 %v251, 127
      %v304 = vpop.permute.xlu0 %303
      %305 = vrot.lane.b32.xlu0 %v252, 127
      %v306 = vpop.permute.xlu0 %305
      %307 = vrot.lane.b32.xlu0 %v253, 127
      %v308 = vpop.permute.xlu0 %307
      %309 = vrot.lane.b32.xlu0 %v254, 127
      %v310 = vpop.permute.xlu0 %309
      %vm311 = vcmask 1039360
      %v312 = vsel %vm311, %v276, %v278
      %v313 = vsel %vm311, %v278, %v280
      %v314 = vsel %vm311, %v280, %v282
      %v315 = vsel %vm311, %v282, %v284
      %v316 = vsel %vm311, %v284, %v286
      %v317 = vsel %vm311, %v286, %v288
      %v318 = vsel %vm311, %v288, %v290
      %v319 = vsel %vm311, %v290, %v292
      %v320 = vsel %vm311, %v294, %v296
      %v321 = vsel %vm311, %v296, %v298
      %v322 = vsel %vm311, %v298, %v300
      %v323 = vsel %vm311, %v300, %v302
      %v324 = vsel %vm311, %v302, %v304
      %v325 = vsel %vm311, %v304, %v306
      %v326 = vsel %vm311, %v306, %v308
      %v327 = vsel %vm311, %v308, %v310
      %vm346 = vcmask 130048
      %v348 = vsel %vm346, %v256, 0
      %350 = vmatpush.msra.mxu0 0.0
      %351 = vmatpush.msra.mxu0 0.0
      %352 = vmatpush.msra.mxu0 0.0
      %353 = vmatpush.msra.mxu0 0.0
      %354 = vmatpush.msra.mxu0 0.0
      %355 = vmatpush.msra.mxu0 0.0
      %356 = vmatpush.msra.mxu0 0.0
      %357 = vmatpush.msra.mxu0 0.0
      %358 = vmatpush.msra.mxu0 0.0
      %359 = vmatpush.msra.mxu0 0.0
      %360 = vmatpush.msra.mxu0 0.0
      %361 = vmatpush.msra.mxu0 0.0
      %362 = vmatpush.msra.mxu0 0.0
      %363 = vmatpush.msra.mxu0 0.0
      %364 = vmatpush.msra.mxu0 %v320
      %365 = vmatpush.msra.mxu0 %v312
      %366 = vmatmul.f32.gmra.mxu0 %v348
      %v367 = vpop.f32.mrf.mxu0
      %v368 = vadd.f32 0.0, %v367
      %369 = vdwg.mxu0
      %370 = vmatpush.msra.mxu0 0.0
      %371 = vmatpush.msra.mxu0 0.0
      %372 = vmatpush.msra.mxu0 0.0
      %373 = vmatpush.msra.mxu0 0.0
      %374 = vmatpush.msra.mxu0 0.0
      %375 = vmatpush.msra.mxu0 0.0
      %376 = vmatpush.msra.mxu0 0.0
      %377 = vmatpush.msra.mxu0 0.0
      %378 = vmatpush.msra.mxu0 0.0
      %379 = vmatpush.msra.mxu0 0.0
      %380 = vmatpush.msra.mxu0 0.0
      %381 = vmatpush.msra.mxu0 0.0
      %382 = vmatpush.msra.mxu0 0.0
      %383 = vmatpush.msra.mxu0 0.0
      %384 = vmatpush.msra.mxu0 %v321
      %385 = vmatpush.msra.mxu0 %v313
      %386 = vmatmul.f32.gmra.mxu0 %v348
      %v387 = vpop.f32.mrf.mxu0
      %v388 = vadd.f32 0.0, %v387
      %389 = vdwg.mxu0
      %390 = vmatpush.msra.mxu0 0.0
      %391 = vmatpush.msra.mxu0 0.0
      %392 = vmatpush.msra.mxu0 0.0
      %393 = vmatpush.msra.mxu0 0.0
      %394 = vmatpush.msra.mxu0 0.0
      %395 = vmatpush.msra.mxu0 0.0
      %396 = vmatpush.msra.mxu0 0.0
      %397 = vmatpush.msra.mxu0 0.0
      %398 = vmatpush.msra.mxu0 0.0
      %399 = vmatpush.msra.mxu0 0.0
      %400 = vmatpush.msra.mxu0 0.0
      %401 = vmatpush.msra.mxu0 0.0
      %402 = vmatpush.msra.mxu0 0.0
      %403 = vmatpush.msra.mxu0 0.0
      %404 = vmatpush.msra.mxu0 %v322
      %405 = vmatpush.msra.mxu0 %v314
      %406 = vmatmul.f32.gmra.mxu0 %v348
      %v407 = vpop.f32.mrf.mxu0
      %v408 = vadd.f32 0.0, %v407
      %409 = vdwg.mxu0
      %410 = vmatpush.msra.mxu0 0.0
      %411 = vmatpush.msra.mxu0 0.0
      %412 = vmatpush.msra.mxu0 0.0
      %413 = vmatpush.msra.mxu0 0.0
      %414 = vmatpush.msra.mxu0 0.0
      %415 = vmatpush.msra.mxu0 0.0
      %416 = vmatpush.msra.mxu0 0.0
      %417 = vmatpush.msra.mxu0 0.0
      %418 = vmatpush.msra.mxu0 0.0
      %419 = vmatpush.msra.mxu0 0.0
      %420 = vmatpush.msra.mxu0 0.0
      %421 = vmatpush.msra.mxu0 0.0
      %422 = vmatpush.msra.mxu0 0.0
      %423 = vmatpush.msra.mxu0 0.0
      %424 = vmatpush.msra.mxu0 %v323
      %425 = vmatpush.msra.mxu0 %v315
      %426 = vmatmul.f32.gmra.mxu0 %v348
      %v427 = vpop.f32.mrf.mxu0
      %v428 = vadd.f32 0.0, %v427
      %429 = vdwg.mxu0
      %430 = vmatpush.msra.mxu0 0.0
      %431 = vmatpush.msra.mxu0 0.0
      %432 = vmatpush.msra.mxu0 0.0
      %433 = vmatpush.msra.mxu0 0.0
      %434 = vmatpush.msra.mxu0 0.0
      %435 = vmatpush.msra.mxu0 0.0
      %436 = vmatpush.msra.mxu0 0.0
      %437 = vmatpush.msra.mxu0 0.0
      %438 = vmatpush.msra.mxu0 0.0
      %439 = vmatpush.msra.mxu0 0.0
      %440 = vmatpush.msra.mxu0 0.0
      %441 = vmatpush.msra.mxu0 0.0
      %442 = vmatpush.msra.mxu0 0.0
      %443 = vmatpush.msra.mxu0 0.0
      %444 = vmatpush.msra.mxu0 %v324
      %445 = vmatpush.msra.mxu0 %v316
      %446 = vmatmul.f32.gmra.mxu0 %v348
      %v447 = vpop.f32.mrf.mxu0
      %v448 = vadd.f32 0.0, %v447
      %449 = vdwg.mxu0
      %450 = vmatpush.msra.mxu0 0.0
      %451 = vmatpush.msra.mxu0 0.0
      %452 = vmatpush.msra.mxu0 0.0
      %453 = vmatpush.msra.mxu0 0.0
      %454 = vmatpush.msra.mxu0 0.0
      %455 = vmatpush.msra.mxu0 0.0
      %456 = vmatpush.msra.mxu0 0.0
      %457 = vmatpush.msra.mxu0 0.0
      %458 = vmatpush.msra.mxu0 0.0
      %459 = vmatpush.msra.mxu0 0.0
      %460 = vmatpush.msra.mxu0 0.0
      %461 = vmatpush.msra.mxu0 0.0
      %462 = vmatpush.msra.mxu0 0.0
      %463 = vmatpush.msra.mxu0 0.0
      %464 = vmatpush.msra.mxu0 %v325
      %465 = vmatpush.msra.mxu0 %v317
      %466 = vmatmul.f32.gmra.mxu0 %v348
      %v467 = vpop.f32.mrf.mxu0
      %v468 = vadd.f32 0.0, %v467
      %469 = vdwg.mxu0
      %470 = vmatpush.msra.mxu0 0.0
      %471 = vmatpush.msra.mxu0 0.0
      %472 = vmatpush.msra.mxu0 0.0
      %473 = vmatpush.msra.mxu0 0.0
      %474 = vmatpush.msra.mxu0 0.0
      %475 = vmatpush.msra.mxu0 0.0
      %476 = vmatpush.msra.mxu0 0.0
      %477 = vmatpush.msra.mxu0 0.0
      %478 = vmatpush.msra.mxu0 0.0
      %479 = vmatpush.msra.mxu0 0.0
      %480 = vmatpush.msra.mxu0 0.0
      %481 = vmatpush.msra.mxu0 0.0
      %482 = vmatpush.msra.mxu0 0.0
      %483 = vmatpush.msra.mxu0 0.0
      %484 = vmatpush.msra.mxu0 %v326
      %485 = vmatpush.msra.mxu0 %v318
      %486 = vmatmul.f32.gmra.mxu0 %v348
      %v487 = vpop.f32.mrf.mxu0
      %v488 = vadd.f32 0.0, %v487
      %489 = vdwg.mxu0
      %490 = vmatpush.msra.mxu0 0.0
      %491 = vmatpush.msra.mxu0 0.0
      %492 = vmatpush.msra.mxu0 0.0
      %493 = vmatpush.msra.mxu0 0.0
      %494 = vmatpush.msra.mxu0 0.0
      %495 = vmatpush.msra.mxu0 0.0
      %496 = vmatpush.msra.mxu0 0.0
      %497 = vmatpush.msra.mxu0 0.0
      %498 = vmatpush.msra.mxu0 0.0
      %499 = vmatpush.msra.mxu0 0.0
      %500 = vmatpush.msra.mxu0 0.0
      %501 = vmatpush.msra.mxu0 0.0
      %502 = vmatpush.msra.mxu0 0.0
      %503 = vmatpush.msra.mxu0 0.0
      %504 = vmatpush.msra.mxu0 %v327
      %505 = vmatpush.msra.mxu0 %v319
      %506 = vmatmul.f32.gmra.mxu0 %v348
      %v507 = vpop.f32.mrf.mxu0
      %v508 = vadd.f32 0.0, %v507
      %509 = vdwg.mxu0
      %510 = vmatpush.msra.mxu0 0.0
      %511 = vmatpush.msra.mxu0 0.0
      %512 = vmatpush.msra.mxu0 0.0
      %513 = vmatpush.msra.mxu0 0.0
      %514 = vmatpush.msra.mxu0 0.0
      %515 = vmatpush.msra.mxu0 0.0
      %516 = vmatpush.msra.mxu0 0.0
      %517 = vmatpush.msra.mxu0 0.0
      %518 = vmatpush.msra.mxu0 0.0
      %519 = vmatpush.msra.mxu0 0.0
      %520 = vmatpush.msra.mxu0 0.0
      %521 = vmatpush.msra.mxu0 0.0
      %522 = vmatpush.msra.mxu0 0.0
      %523 = vmatpush.msra.mxu0 0.0
      %524 = vmatpush.msra.mxu0 %v310
      %525 = vmatpush.msra.mxu0 %v292
      %526 = vmatmul.f32.gmra.mxu0 %v348
      %v527 = vpop.f32.mrf.mxu0
      %v528 = vadd.f32 0.0, %v527
      %529 = vdwg.mxu0
      %v531 = vsel %vm346, %v236, 0
      %533 = vmatpush.msra.mxu0 0.0
      %534 = vmatpush.msra.mxu0 0.0
      %535 = vmatpush.msra.mxu0 0.0
      %536 = vmatpush.msra.mxu0 0.0
      %537 = vmatpush.msra.mxu0 0.0
      %538 = vmatpush.msra.mxu0 0.0
      %539 = vmatpush.msra.mxu0 0.0
      %540 = vmatpush.msra.mxu0 0.0
      %541 = vmatpush.msra.mxu0 0.0
      %542 = vmatpush.msra.mxu0 0.0
      %543 = vmatpush.msra.mxu0 0.0
      %544 = vmatpush.msra.mxu0 0.0
      %545 = vmatpush.msra.mxu0 0.0
      %546 = vmatpush.msra.mxu0 0.0
      %547 = vmatpush.msra.mxu0 %v246
      %548 = vmatpush.msra.mxu0 %v237
      %549 = vmatmul.f32.gmra.mxu0 %v531
      %v550 = vpop.f32.mrf.mxu0
      %v551 = vadd.f32 %v368, %v550
      %552 = vdwg.mxu0
      %553 = vmatpush.msra.mxu0 0.0
      %554 = vmatpush.msra.mxu0 0.0
      %555 = vmatpush.msra.mxu0 0.0
      %556 = vmatpush.msra.mxu0 0.0
      %557 = vmatpush.msra.mxu0 0.0
      %558 = vmatpush.msra.mxu0 0.0
      %559 = vmatpush.msra.mxu0 0.0
      %560 = vmatpush.msra.mxu0 0.0
      %561 = vmatpush.msra.mxu0 0.0
      %562 = vmatpush.msra.mxu0 0.0
      %563 = vmatpush.msra.mxu0 0.0
      %564 = vmatpush.msra.mxu0 0.0
      %565 = vmatpush.msra.mxu0 0.0
      %566 = vmatpush.msra.mxu0 0.0
      %567 = vmatpush.msra.mxu0 %v247
      %568 = vmatpush.msra.mxu0 %v238
      %569 = vmatmul.f32.gmra.mxu0 %v531
      %v570 = vpop.f32.mrf.mxu0
      %v571 = vadd.f32 %v388, %v570
      %572 = vdwg.mxu0
      %573 = vmatpush.msra.mxu0 0.0
      %574 = vmatpush.msra.mxu0 0.0
      %575 = vmatpush.msra.mxu0 0.0
      %576 = vmatpush.msra.mxu0 0.0
      %577 = vmatpush.msra.mxu0 0.0
      %578 = vmatpush.msra.mxu0 0.0
      %579 = vmatpush.msra.mxu0 0.0
      %580 = vmatpush.msra.mxu0 0.0
      %581 = vmatpush.msra.mxu0 0.0
      %582 = vmatpush.msra.mxu0 0.0
      %583 = vmatpush.msra.mxu0 0.0
      %584 = vmatpush.msra.mxu0 0.0
      %585 = vmatpush.msra.mxu0 0.0
      %586 = vmatpush.msra.mxu0 0.0
      %587 = vmatpush.msra.mxu0 %v248
      %588 = vmatpush.msra.mxu0 %v239
      %589 = vmatmul.f32.gmra.mxu0 %v531
      %v590 = vpop.f32.mrf.mxu0
      %v591 = vadd.f32 %v408, %v590
      %592 = vdwg.mxu0
      %593 = vmatpush.msra.mxu0 0.0
      %594 = vmatpush.msra.mxu0 0.0
      %595 = vmatpush.msra.mxu0 0.0
      %596 = vmatpush.msra.mxu0 0.0
      %597 = vmatpush.msra.mxu0 0.0
      %598 = vmatpush.msra.mxu0 0.0
      %599 = vmatpush.msra.mxu0 0.0
      %600 = vmatpush.msra.mxu0 0.0
      %601 = vmatpush.msra.mxu0 0.0
      %602 = vmatpush.msra.mxu0 0.0
      %603 = vmatpush.msra.mxu0 0.0
      %604 = vmatpush.msra.mxu0 0.0
      %605 = vmatpush.msra.mxu0 0.0
      %606 = vmatpush.msra.mxu0 0.0
      %607 = vmatpush.msra.mxu0 %v249
      %608 = vmatpush.msra.mxu0 %v240
      %609 = vmatmul.f32.gmra.mxu0 %v531
      %v610 = vpop.f32.mrf.mxu0
      %v611 = vadd.f32 %v428, %v610
      %612 = vdwg.mxu0
      %613 = vmatpush.msra.mxu0 0.0
      %614 = vmatpush.msra.mxu0 0.0
      %615 = vmatpush.msra.mxu0 0.0
      %616 = vmatpush.msra.mxu0 0.0
      %617 = vmatpush.msra.mxu0 0.0
      %618 = vmatpush.msra.mxu0 0.0
      %619 = vmatpush.msra.mxu0 0.0
      %620 = vmatpush.msra.mxu0 0.0
      %621 = vmatpush.msra.mxu0 0.0
      %622 = vmatpush.msra.mxu0 0.0
      %623 = vmatpush.msra.mxu0 0.0
      %624 = vmatpush.msra.mxu0 0.0
      %625 = vmatpush.msra.mxu0 0.0
      %626 = vmatpush.msra.mxu0 0.0
      %627 = vmatpush.msra.mxu0 %v250
      %628 = vmatpush.msra.mxu0 %v241
      %629 = vmatmul.f32.gmra.mxu0 %v531
      %v630 = vpop.f32.mrf.mxu0
      %v631 = vadd.f32 %v448, %v630
      %632 = vdwg.mxu0
      %633 = vmatpush.msra.mxu0 0.0
      %634 = vmatpush.msra.mxu0 0.0
      %635 = vmatpush.msra.mxu0 0.0
      %636 = vmatpush.msra.mxu0 0.0
      %637 = vmatpush.msra.mxu0 0.0
      %638 = vmatpush.msra.mxu0 0.0
      %639 = vmatpush.msra.mxu0 0.0
      %640 = vmatpush.msra.mxu0 0.0
      %641 = vmatpush.msra.mxu0 0.0
      %642 = vmatpush.msra.mxu0 0.0
      %643 = vmatpush.msra.mxu0 0.0
      %644 = vmatpush.msra.mxu0 0.0
      %645 = vmatpush.msra.mxu0 0.0
      %646 = vmatpush.msra.mxu0 0.0
      %647 = vmatpush.msra.mxu0 %v251
      %648 = vmatpush.msra.mxu0 %v242
      %649 = vmatmul.f32.gmra.mxu0 %v531
      %v650 = vpop.f32.mrf.mxu0
      %v651 = vadd.f32 %v468, %v650
      %652 = vdwg.mxu0
      %653 = vmatpush.msra.mxu0 0.0
      %654 = vmatpush.msra.mxu0 0.0
      %655 = vmatpush.msra.mxu0 0.0
      %656 = vmatpush.msra.mxu0 0.0
      %657 = vmatpush.msra.mxu0 0.0
      %658 = vmatpush.msra.mxu0 0.0
      %659 = vmatpush.msra.mxu0 0.0
      %660 = vmatpush.msra.mxu0 0.0
      %661 = vmatpush.msra.mxu0 0.0
      %662 = vmatpush.msra.mxu0 0.0
      %663 = vmatpush.msra.mxu0 0.0
      %664 = vmatpush.msra.mxu0 0.0
      %665 = vmatpush.msra.mxu0 0.0
      %666 = vmatpush.msra.mxu0 0.0
      %667 = vmatpush.msra.mxu0 %v252
      %668 = vmatpush.msra.mxu0 %v243
      %669 = vmatmul.f32.gmra.mxu0 %v531
      %v670 = vpop.f32.mrf.mxu0
      %v671 = vadd.f32 %v488, %v670
      %672 = vdwg.mxu0
      %673 = vmatpush.msra.mxu0 0.0
      %674 = vmatpush.msra.mxu0 0.0
      %675 = vmatpush.msra.mxu0 0.0
      %676 = vmatpush.msra.mxu0 0.0
      %677 = vmatpush.msra.mxu0 0.0
      %678 = vmatpush.msra.mxu0 0.0
      %679 = vmatpush.msra.mxu0 0.0
      %680 = vmatpush.msra.mxu0 0.0
      %681 = vmatpush.msra.mxu0 0.0
      %682 = vmatpush.msra.mxu0 0.0
      %683 = vmatpush.msra.mxu0 0.0
      %684 = vmatpush.msra.mxu0 0.0
      %685 = vmatpush.msra.mxu0 0.0
      %686 = vmatpush.msra.mxu0 0.0
      %687 = vmatpush.msra.mxu0 %v253
      %688 = vmatpush.msra.mxu0 %v244
      %689 = vmatmul.f32.gmra.mxu0 %v531
      %v690 = vpop.f32.mrf.mxu0
      %v691 = vadd.f32 %v508, %v690
      %692 = vdwg.mxu0
      %693 = vmatpush.msra.mxu0 0.0
      %694 = vmatpush.msra.mxu0 0.0
      %695 = vmatpush.msra.mxu0 0.0
      %696 = vmatpush.msra.mxu0 0.0
      %697 = vmatpush.msra.mxu0 0.0
      %698 = vmatpush.msra.mxu0 0.0
      %699 = vmatpush.msra.mxu0 0.0
      %700 = vmatpush.msra.mxu0 0.0
      %701 = vmatpush.msra.mxu0 0.0
      %702 = vmatpush.msra.mxu0 0.0
      %703 = vmatpush.msra.mxu0 0.0
      %704 = vmatpush.msra.mxu0 0.0
      %705 = vmatpush.msra.mxu0 0.0
      %706 = vmatpush.msra.mxu0 0.0
      %707 = vmatpush.msra.mxu0 %v254
      %708 = vmatpush.msra.mxu0 %v245
      %709 = vmatmul.f32.gmra.mxu0 %v531
      %v710 = vpop.f32.mrf.mxu0
      %v711 = vadd.f32 %v528, %v710
      %712 = vdwg.mxu0
      %s713 = scalar_lea.vmem %s218, 16
      %v714 = vld [vmem:[%s713] sm:$0xff]
      %715 = vrot.lane.b32.xlu0 %v237, 126
      %v716 = vpop.permute.xlu0 %715
      %717 = vrot.lane.b32.xlu0 %v238, 126
      %v718 = vpop.permute.xlu0 %717
      %719 = vrot.lane.b32.xlu0 %v239, 126
      %v720 = vpop.permute.xlu0 %719
      %721 = vrot.lane.b32.xlu0 %v240, 126
      %v722 = vpop.permute.xlu0 %721
      %723 = vrot.lane.b32.xlu0 %v241, 126
      %v724 = vpop.permute.xlu0 %723
      %725 = vrot.lane.b32.xlu0 %v242, 126
      %v726 = vpop.permute.xlu0 %725
      %727 = vrot.lane.b32.xlu0 %v243, 126
      %v728 = vpop.permute.xlu0 %727
      %729 = vrot.lane.b32.xlu0 %v244, 126
      %v730 = vpop.permute.xlu0 %729
      %731 = vrot.lane.b32.xlu0 %v245, 126
      %v732 = vpop.permute.xlu0 %731
      %733 = vrot.lane.b32.xlu0 %v246, 126
      %v734 = vpop.permute.xlu0 %733
      %735 = vrot.lane.b32.xlu0 %v247, 126
      %v736 = vpop.permute.xlu0 %735
      %737 = vrot.lane.b32.xlu0 %v248, 126
      %v738 = vpop.permute.xlu0 %737
      %739 = vrot.lane.b32.xlu0 %v249, 126
      %v740 = vpop.permute.xlu0 %739
      %741 = vrot.lane.b32.xlu0 %v250, 126
      %v742 = vpop.permute.xlu0 %741
      %743 = vrot.lane.b32.xlu0 %v251, 126
      %v744 = vpop.permute.xlu0 %743
      %745 = vrot.lane.b32.xlu0 %v252, 126
      %v746 = vpop.permute.xlu0 %745
      %747 = vrot.lane.b32.xlu0 %v253, 126
      %v748 = vpop.permute.xlu0 %747
      %749 = vrot.lane.b32.xlu0 %v254, 126
      %v750 = vpop.permute.xlu0 %749
      %vm751 = vcmask 1031168
      %v752 = vsel %vm751, %v716, %v718
      %v753 = vsel %vm751, %v718, %v720
      %v754 = vsel %vm751, %v720, %v722
      %v755 = vsel %vm751, %v722, %v724
      %v756 = vsel %vm751, %v724, %v726
      %v757 = vsel %vm751, %v726, %v728
      %v758 = vsel %vm751, %v728, %v730
      %v759 = vsel %vm751, %v730, %v732
      %v760 = vsel %vm751, %v734, %v736
      %v761 = vsel %vm751, %v736, %v738
      %v762 = vsel %vm751, %v738, %v740
      %v763 = vsel %vm751, %v740, %v742
      %v764 = vsel %vm751, %v742, %v744
      %v765 = vsel %vm751, %v744, %v746
      %v766 = vsel %vm751, %v746, %v748
      %v767 = vsel %vm751, %v748, %v750
      %v787 = vsel %vm346, %v714, 0
      %789 = vmatpush.msra.mxu0 0.0
      %790 = vmatpush.msra.mxu0 0.0
      %791 = vmatpush.msra.mxu0 0.0
      %792 = vmatpush.msra.mxu0 0.0
      %793 = vmatpush.msra.mxu0 0.0
      %794 = vmatpush.msra.mxu0 0.0
      %795 = vmatpush.msra.mxu0 0.0
      %796 = vmatpush.msra.mxu0 0.0
      %797 = vmatpush.msra.mxu0 0.0
      %798 = vmatpush.msra.mxu0 0.0
      %799 = vmatpush.msra.mxu0 0.0
      %800 = vmatpush.msra.mxu0 0.0
      %801 = vmatpush.msra.mxu0 0.0
      %802 = vmatpush.msra.mxu0 0.0
      %803 = vmatpush.msra.mxu0 %v760
      %804 = vmatpush.msra.mxu0 %v752
      %805 = vmatmul.f32.gmra.mxu0 %v787
      %v806 = vpop.f32.mrf.mxu0
      %v807 = vadd.f32 0.0, %v806
      %808 = vdwg.mxu0
      %809 = vmatpush.msra.mxu0 0.0
      %810 = vmatpush.msra.mxu0 0.0
      %811 = vmatpush.msra.mxu0 0.0
      %812 = vmatpush.msra.mxu0 0.0
      %813 = vmatpush.msra.mxu0 0.0
      %814 = vmatpush.msra.mxu0 0.0
      %815 = vmatpush.msra.mxu0 0.0
      %816 = vmatpush.msra.mxu0 0.0
      %817 = vmatpush.msra.mxu0 0.0
      %818 = vmatpush.msra.mxu0 0.0
      %819 = vmatpush.msra.mxu0 0.0
      %820 = vmatpush.msra.mxu0 0.0
      %821 = vmatpush.msra.mxu0 0.0
      %822 = vmatpush.msra.mxu0 0.0
      %823 = vmatpush.msra.mxu0 %v761
      %824 = vmatpush.msra.mxu0 %v753
      %825 = vmatmul.f32.gmra.mxu0 %v787
      %v826 = vpop.f32.mrf.mxu0
      %v827 = vadd.f32 0.0, %v826
      %828 = vdwg.mxu0
      %829 = vmatpush.msra.mxu0 0.0
      %830 = vmatpush.msra.mxu0 0.0
      %831 = vmatpush.msra.mxu0 0.0
      %832 = vmatpush.msra.mxu0 0.0
      %833 = vmatpush.msra.mxu0 0.0
      %834 = vmatpush.msra.mxu0 0.0
      %835 = vmatpush.msra.mxu0 0.0
      %836 = vmatpush.msra.mxu0 0.0
      %837 = vmatpush.msra.mxu0 0.0
      %838 = vmatpush.msra.mxu0 0.0
      %839 = vmatpush.msra.mxu0 0.0
      %840 = vmatpush.msra.mxu0 0.0
      %841 = vmatpush.msra.mxu0 0.0
      %842 = vmatpush.msra.mxu0 0.0
      %843 = vmatpush.msra.mxu0 %v762
      %844 = vmatpush.msra.mxu0 %v754
      %845 = vmatmul.f32.gmra.mxu0 %v787
      %v846 = vpop.f32.mrf.mxu0
      %v847 = vadd.f32 0.0, %v846
      %848 = vdwg.mxu0
      %849 = vmatpush.msra.mxu0 0.0
      %850 = vmatpush.msra.mxu0 0.0
      %851 = vmatpush.msra.mxu0 0.0
      %852 = vmatpush.msra.mxu0 0.0
      %853 = vmatpush.msra.mxu0 0.0
      %854 = vmatpush.msra.mxu0 0.0
      %855 = vmatpush.msra.mxu0 0.0
      %856 = vmatpush.msra.mxu0 0.0
      %857 = vmatpush.msra.mxu0 0.0
      %858 = vmatpush.msra.mxu0 0.0
      %859 = vmatpush.msra.mxu0 0.0
      %860 = vmatpush.msra.mxu0 0.0
      %861 = vmatpush.msra.mxu0 0.0
      %862 = vmatpush.msra.mxu0 0.0
      %863 = vmatpush.msra.mxu0 %v763
      %864 = vmatpush.msra.mxu0 %v755
      %865 = vmatmul.f32.gmra.mxu0 %v787
      %v866 = vpop.f32.mrf.mxu0
      %v867 = vadd.f32 0.0, %v866
      %868 = vdwg.mxu0
      %869 = vmatpush.msra.mxu0 0.0
      %870 = vmatpush.msra.mxu0 0.0
      %871 = vmatpush.msra.mxu0 0.0
      %872 = vmatpush.msra.mxu0 0.0
      %873 = vmatpush.msra.mxu0 0.0
      %874 = vmatpush.msra.mxu0 0.0
      %875 = vmatpush.msra.mxu0 0.0
      %876 = vmatpush.msra.mxu0 0.0
      %877 = vmatpush.msra.mxu0 0.0
      %878 = vmatpush.msra.mxu0 0.0
      %879 = vmatpush.msra.mxu0 0.0
      %880 = vmatpush.msra.mxu0 0.0
      %881 = vmatpush.msra.mxu0 0.0
      %882 = vmatpush.msra.mxu0 0.0
      %883 = vmatpush.msra.mxu0 %v764
      %884 = vmatpush.msra.mxu0 %v756
      %885 = vmatmul.f32.gmra.mxu0 %v787
      %v886 = vpop.f32.mrf.mxu0
      %v887 = vadd.f32 0.0, %v886
      %888 = vdwg.mxu0
      %889 = vmatpush.msra.mxu0 0.0
      %890 = vmatpush.msra.mxu0 0.0
      %891 = vmatpush.msra.mxu0 0.0
      %892 = vmatpush.msra.mxu0 0.0
      %893 = vmatpush.msra.mxu0 0.0
      %894 = vmatpush.msra.mxu0 0.0
      %895 = vmatpush.msra.mxu0 0.0
      %896 = vmatpush.msra.mxu0 0.0
      %897 = vmatpush.msra.mxu0 0.0
      %898 = vmatpush.msra.mxu0 0.0
      %899 = vmatpush.msra.mxu0 0.0
      %900 = vmatpush.msra.mxu0 0.0
      %901 = vmatpush.msra.mxu0 0.0
      %902 = vmatpush.msra.mxu0 0.0
      %903 = vmatpush.msra.mxu0 %v765
      %904 = vmatpush.msra.mxu0 %v757
      %905 = vmatmul.f32.gmra.mxu0 %v787
      %v906 = vpop.f32.mrf.mxu0
      %v907 = vadd.f32 0.0, %v906
      %908 = vdwg.mxu0
      %909 = vmatpush.msra.mxu0 0.0
      %910 = vmatpush.msra.mxu0 0.0
      %911 = vmatpush.msra.mxu0 0.0
      %912 = vmatpush.msra.mxu0 0.0
      %913 = vmatpush.msra.mxu0 0.0
      %914 = vmatpush.msra.mxu0 0.0
      %915 = vmatpush.msra.mxu0 0.0
      %916 = vmatpush.msra.mxu0 0.0
      %917 = vmatpush.msra.mxu0 0.0
      %918 = vmatpush.msra.mxu0 0.0
      %919 = vmatpush.msra.mxu0 0.0
      %920 = vmatpush.msra.mxu0 0.0
      %921 = vmatpush.msra.mxu0 0.0
      %922 = vmatpush.msra.mxu0 0.0
      %923 = vmatpush.msra.mxu0 %v766
      %924 = vmatpush.msra.mxu0 %v758
      %925 = vmatmul.f32.gmra.mxu0 %v787
      %v926 = vpop.f32.mrf.mxu0
      %v927 = vadd.f32 0.0, %v926
      %928 = vdwg.mxu0
      %929 = vmatpush.msra.mxu0 0.0
      %930 = vmatpush.msra.mxu0 0.0
      %931 = vmatpush.msra.mxu0 0.0
      %932 = vmatpush.msra.mxu0 0.0
      %933 = vmatpush.msra.mxu0 0.0
      %934 = vmatpush.msra.mxu0 0.0
      %935 = vmatpush.msra.mxu0 0.0
      %936 = vmatpush.msra.mxu0 0.0
      %937 = vmatpush.msra.mxu0 0.0
      %938 = vmatpush.msra.mxu0 0.0
      %939 = vmatpush.msra.mxu0 0.0
      %940 = vmatpush.msra.mxu0 0.0
      %941 = vmatpush.msra.mxu0 0.0
      %942 = vmatpush.msra.mxu0 0.0
      %943 = vmatpush.msra.mxu0 %v767
      %944 = vmatpush.msra.mxu0 %v759
      %945 = vmatmul.f32.gmra.mxu0 %v787
      %v946 = vpop.f32.mrf.mxu0
      %v947 = vadd.f32 0.0, %v946
      %948 = vdwg.mxu0
      %949 = vmatpush.msra.mxu0 0.0
      %950 = vmatpush.msra.mxu0 0.0
      %951 = vmatpush.msra.mxu0 0.0
      %952 = vmatpush.msra.mxu0 0.0
      %953 = vmatpush.msra.mxu0 0.0
      %954 = vmatpush.msra.mxu0 0.0
      %955 = vmatpush.msra.mxu0 0.0
      %956 = vmatpush.msra.mxu0 0.0
      %957 = vmatpush.msra.mxu0 0.0
      %958 = vmatpush.msra.mxu0 0.0
      %959 = vmatpush.msra.mxu0 0.0
      %960 = vmatpush.msra.mxu0 0.0
      %961 = vmatpush.msra.mxu0 0.0
      %962 = vmatpush.msra.mxu0 0.0
      %963 = vmatpush.msra.mxu0 %v750
      %964 = vmatpush.msra.mxu0 %v732
      %965 = vmatmul.f32.gmra.mxu0 %v787
      %v966 = vpop.f32.mrf.mxu0
      %v967 = vadd.f32 0.0, %v966
      %968 = vdwg.mxu0
      %v969 = vadd.f32 %v551, %v807
      %v970 = vadd.f32 %v571, %v827
      %v971 = vadd.f32 %v591, %v847
      %v972 = vadd.f32 %v611, %v867
      %v973 = vadd.f32 %v631, %v887
      %v974 = vadd.f32 %v651, %v907
      %v975 = vadd.f32 %v671, %v927
      %v976 = vadd.f32 %v691, %v947
      %v977 = vadd.f32 %v711, %v967
      %s978 = scalar_lea.vmem %s218, 24
      %v979 = vld [vmem:[%s978] sm:$0xff]
      %980 = vrot.lane.b32.xlu0 %v237, 94
      %v981 = vpop.permute.xlu0 %980
      %982 = vrot.lane.b32.xlu0 %v238, 94
      %v983 = vpop.permute.xlu0 %982
      %984 = vrot.lane.b32.xlu0 %v239, 94
      %v985 = vpop.permute.xlu0 %984
      %986 = vrot.lane.b32.xlu0 %v240, 94
      %v987 = vpop.permute.xlu0 %986
      %988 = vrot.lane.b32.xlu0 %v241, 94
      %v989 = vpop.permute.xlu0 %988
      %990 = vrot.lane.b32.xlu0 %v242, 94
      %v991 = vpop.permute.xlu0 %990
      %992 = vrot.lane.b32.xlu0 %v243, 94
      %v993 = vpop.permute.xlu0 %992
      %994 = vrot.lane.b32.xlu0 %v244, 94
      %v995 = vpop.permute.xlu0 %994
      %996 = vrot.lane.b32.xlu0 %v245, 94
      %v997 = vpop.permute.xlu0 %996
      %998 = vrot.lane.b32.xlu0 %v246, 94
      %v999 = vpop.permute.xlu0 %998
      %1000 = vrot.lane.b32.xlu0 %v247, 94
      %v1001 = vpop.permute.xlu0 %1000
      %1002 = vrot.lane.b32.xlu0 %v248, 94
      %v1003 = vpop.permute.xlu0 %1002
      %1004 = vrot.lane.b32.xlu0 %v249, 94
      %v1005 = vpop.permute.xlu0 %1004
      %1006 = vrot.lane.b32.xlu0 %v250, 94
      %v1007 = vpop.permute.xlu0 %1006
      %1008 = vrot.lane.b32.xlu0 %v251, 94
      %v1009 = vpop.permute.xlu0 %1008
      %1010 = vrot.lane.b32.xlu0 %v252, 94
      %v1011 = vpop.permute.xlu0 %1010
      %1012 = vrot.lane.b32.xlu0 %v253, 94
      %v1013 = vpop.permute.xlu0 %1012
      %1014 = vrot.lane.b32.xlu0 %v254, 94
      %v1015 = vpop.permute.xlu0 %1014
      %vm1016 = vcmask 769024
      %v1017 = vsel %vm1016, %v981, %v983
      %v1018 = vsel %vm1016, %v983, %v985
      %v1019 = vsel %vm1016, %v985, %v987
      %v1020 = vsel %vm1016, %v987, %v989
      %v1021 = vsel %vm1016, %v989, %v991
      %v1022 = vsel %vm1016, %v991, %v993
      %v1023 = vsel %vm1016, %v993, %v995
      %v1024 = vsel %vm1016, %v995, %v997
      %v1025 = vsel %vm1016, %v999, %v1001
      %v1026 = vsel %vm1016, %v1001, %v1003
      %v1027 = vsel %vm1016, %v1003, %v1005
      %v1028 = vsel %vm1016, %v1005, %v1007
      %v1029 = vsel %vm1016, %v1007, %v1009
      %v1030 = vsel %vm1016, %v1009, %v1011
      %v1031 = vsel %vm1016, %v1011, %v1013
      %v1032 = vsel %vm1016, %v1013, %v1015
      %v1052 = vsel %vm346, %v979, 0
      %1054 = vmatpush.msra.mxu0 0.0
      %1055 = vmatpush.msra.mxu0 0.0
      %1056 = vmatpush.msra.mxu0 0.0
      %1057 = vmatpush.msra.mxu0 0.0
      %1058 = vmatpush.msra.mxu0 0.0
      %1059 = vmatpush.msra.mxu0 0.0
      %1060 = vmatpush.msra.mxu0 0.0
      %1061 = vmatpush.msra.mxu0 0.0
      %1062 = vmatpush.msra.mxu0 0.0
      %1063 = vmatpush.msra.mxu0 0.0
      %1064 = vmatpush.msra.mxu0 0.0
      %1065 = vmatpush.msra.mxu0 0.0
      %1066 = vmatpush.msra.mxu0 0.0
      %1067 = vmatpush.msra.mxu0 0.0
      %1068 = vmatpush.msra.mxu0 %v1025
      %1069 = vmatpush.msra.mxu0 %v1017
      %1070 = vmatmul.f32.gmra.mxu0 %v1052
      %v1071 = vpop.f32.mrf.mxu0
      %v1072 = vadd.f32 0.0, %v1071
      %1073 = vdwg.mxu0
      %1074 = vmatpush.msra.mxu0 0.0
      %1075 = vmatpush.msra.mxu0 0.0
      %1076 = vmatpush.msra.mxu0 0.0
      %1077 = vmatpush.msra.mxu0 0.0
      %1078 = vmatpush.msra.mxu0 0.0
      %1079 = vmatpush.msra.mxu0 0.0
      %1080 = vmatpush.msra.mxu0 0.0
      %1081 = vmatpush.msra.mxu0 0.0
      %1082 = vmatpush.msra.mxu0 0.0
      %1083 = vmatpush.msra.mxu0 0.0
      %1084 = vmatpush.msra.mxu0 0.0
      %1085 = vmatpush.msra.mxu0 0.0
      %1086 = vmatpush.msra.mxu0 0.0
      %1087 = vmatpush.msra.mxu0 0.0
      %1088 = vmatpush.msra.mxu0 %v1026
      %1089 = vmatpush.msra.mxu0 %v1018
      %1090 = vmatmul.f32.gmra.mxu0 %v1052
      %v1091 = vpop.f32.mrf.mxu0
      %v1092 = vadd.f32 0.0, %v1091
      %1093 = vdwg.mxu0
      %1094 = vmatpush.msra.mxu0 0.0
      %1095 = vmatpush.msra.mxu0 0.0
      %1096 = vmatpush.msra.mxu0 0.0
      %1097 = vmatpush.msra.mxu0 0.0
      %1098 = vmatpush.msra.mxu0 0.0
      %1099 = vmatpush.msra.mxu0 0.0
      %1100 = vmatpush.msra.mxu0 0.0
      %1101 = vmatpush.msra.mxu0 0.0
      %1102 = vmatpush.msra.mxu0 0.0
      %1103 = vmatpush.msra.mxu0 0.0
      %1104 = vmatpush.msra.mxu0 0.0
      %1105 = vmatpush.msra.mxu0 0.0
      %1106 = vmatpush.msra.mxu0 0.0
      %1107 = vmatpush.msra.mxu0 0.0
      %1108 = vmatpush.msra.mxu0 %v1027
      %1109 = vmatpush.msra.mxu0 %v1019
      %1110 = vmatmul.f32.gmra.mxu0 %v1052
      %v1111 = vpop.f32.mrf.mxu0
      %v1112 = vadd.f32 0.0, %v1111
      %1113 = vdwg.mxu0
      %1114 = vmatpush.msra.mxu0 0.0
      %1115 = vmatpush.msra.mxu0 0.0
      %1116 = vmatpush.msra.mxu0 0.0
      %1117 = vmatpush.msra.mxu0 0.0
      %1118 = vmatpush.msra.mxu0 0.0
      %1119 = vmatpush.msra.mxu0 0.0
      %1120 = vmatpush.msra.mxu0 0.0
      %1121 = vmatpush.msra.mxu0 0.0
      %1122 = vmatpush.msra.mxu0 0.0
      %1123 = vmatpush.msra.mxu0 0.0
      %1124 = vmatpush.msra.mxu0 0.0
      %1125 = vmatpush.msra.mxu0 0.0
      %1126 = vmatpush.msra.mxu0 0.0
      %1127 = vmatpush.msra.mxu0 0.0
      %1128 = vmatpush.msra.mxu0 %v1028
      %1129 = vmatpush.msra.mxu0 %v1020
      %1130 = vmatmul.f32.gmra.mxu0 %v1052
      %v1131 = vpop.f32.mrf.mxu0
      %v1132 = vadd.f32 0.0, %v1131
      %1133 = vdwg.mxu0
      %1134 = vmatpush.msra.mxu0 0.0
      %1135 = vmatpush.msra.mxu0 0.0
      %1136 = vmatpush.msra.mxu0 0.0
      %1137 = vmatpush.msra.mxu0 0.0
      %1138 = vmatpush.msra.mxu0 0.0
      %1139 = vmatpush.msra.mxu0 0.0
      %1140 = vmatpush.msra.mxu0 0.0
      %1141 = vmatpush.msra.mxu0 0.0
      %1142 = vmatpush.msra.mxu0 0.0
      %1143 = vmatpush.msra.mxu0 0.0
      %1144 = vmatpush.msra.mxu0 0.0
      %1145 = vmatpush.msra.mxu0 0.0
      %1146 = vmatpush.msra.mxu0 0.0
      %1147 = vmatpush.msra.mxu0 0.0
      %1148 = vmatpush.msra.mxu0 %v1029
      %1149 = vmatpush.msra.mxu0 %v1021
      %1150 = vmatmul.f32.gmra.mxu0 %v1052
      %v1151 = vpop.f32.mrf.mxu0
      %v1152 = vadd.f32 0.0, %v1151
      %1153 = vdwg.mxu0
      %1154 = vmatpush.msra.mxu0 0.0
      %1155 = vmatpush.msra.mxu0 0.0
      %1156 = vmatpush.msra.mxu0 0.0
      %1157 = vmatpush.msra.mxu0 0.0
      %1158 = vmatpush.msra.mxu0 0.0
      %1159 = vmatpush.msra.mxu0 0.0
      %1160 = vmatpush.msra.mxu0 0.0
      %1161 = vmatpush.msra.mxu0 0.0
      %1162 = vmatpush.msra.mxu0 0.0
      %1163 = vmatpush.msra.mxu0 0.0
      %1164 = vmatpush.msra.mxu0 0.0
      %1165 = vmatpush.msra.mxu0 0.0
      %1166 = vmatpush.msra.mxu0 0.0
      %1167 = vmatpush.msra.mxu0 0.0
      %1168 = vmatpush.msra.mxu0 %v1030
      %1169 = vmatpush.msra.mxu0 %v1022
      %1170 = vmatmul.f32.gmra.mxu0 %v1052
      %v1171 = vpop.f32.mrf.mxu0
      %v1172 = vadd.f32 0.0, %v1171
      %1173 = vdwg.mxu0
      %1174 = vmatpush.msra.mxu0 0.0
      %1175 = vmatpush.msra.mxu0 0.0
      %1176 = vmatpush.msra.mxu0 0.0
      %1177 = vmatpush.msra.mxu0 0.0
      %1178 = vmatpush.msra.mxu0 0.0
      %1179 = vmatpush.msra.mxu0 0.0
      %1180 = vmatpush.msra.mxu0 0.0
      %1181 = vmatpush.msra.mxu0 0.0
      %1182 = vmatpush.msra.mxu0 0.0
      %1183 = vmatpush.msra.mxu0 0.0
      %1184 = vmatpush.msra.mxu0 0.0
      %1185 = vmatpush.msra.mxu0 0.0
      %1186 = vmatpush.msra.mxu0 0.0
      %1187 = vmatpush.msra.mxu0 0.0
      %1188 = vmatpush.msra.mxu0 %v1031
      %1189 = vmatpush.msra.mxu0 %v1023
      %1190 = vmatmul.f32.gmra.mxu0 %v1052
      %v1191 = vpop.f32.mrf.mxu0
      %v1192 = vadd.f32 0.0, %v1191
      %1193 = vdwg.mxu0
      %1194 = vmatpush.msra.mxu0 0.0
      %1195 = vmatpush.msra.mxu0 0.0
      %1196 = vmatpush.msra.mxu0 0.0
      %1197 = vmatpush.msra.mxu0 0.0
      %1198 = vmatpush.msra.mxu0 0.0
      %1199 = vmatpush.msra.mxu0 0.0
      %1200 = vmatpush.msra.mxu0 0.0
      %1201 = vmatpush.msra.mxu0 0.0
      %1202 = vmatpush.msra.mxu0 0.0
      %1203 = vmatpush.msra.mxu0 0.0
      %1204 = vmatpush.msra.mxu0 0.0
      %1205 = vmatpush.msra.mxu0 0.0
      %1206 = vmatpush.msra.mxu0 0.0
      %1207 = vmatpush.msra.mxu0 0.0
      %1208 = vmatpush.msra.mxu0 %v1032
      %1209 = vmatpush.msra.mxu0 %v1024
      %1210 = vmatmul.f32.gmra.mxu0 %v1052
      %v1211 = vpop.f32.mrf.mxu0
      %v1212 = vadd.f32 0.0, %v1211
      %1213 = vdwg.mxu0
      %1214 = vmatpush.msra.mxu0 0.0
      %1215 = vmatpush.msra.mxu0 0.0
      %1216 = vmatpush.msra.mxu0 0.0
      %1217 = vmatpush.msra.mxu0 0.0
      %1218 = vmatpush.msra.mxu0 0.0
      %1219 = vmatpush.msra.mxu0 0.0
      %1220 = vmatpush.msra.mxu0 0.0
      %1221 = vmatpush.msra.mxu0 0.0
      %1222 = vmatpush.msra.mxu0 0.0
      %1223 = vmatpush.msra.mxu0 0.0
      %1224 = vmatpush.msra.mxu0 0.0
      %1225 = vmatpush.msra.mxu0 0.0
      %1226 = vmatpush.msra.mxu0 0.0
      %1227 = vmatpush.msra.mxu0 0.0
      %1228 = vmatpush.msra.mxu0 %v1015
      %1229 = vmatpush.msra.mxu0 %v997
      %1230 = vmatmul.f32.gmra.mxu0 %v1052
      %v1231 = vpop.f32.mrf.mxu0
      %v1232 = vadd.f32 0.0, %v1231
      %1233 = vdwg.mxu0
      %v1234 = vadd.f32 %v969, %v1072
      %v1235 = vadd.f32 %v970, %v1092
      %v1236 = vadd.f32 %v971, %v1112
      %v1237 = vadd.f32 %v972, %v1132
      %v1238 = vadd.f32 %v973, %v1152
      %v1239 = vadd.f32 %v974, %v1172
      %v1240 = vadd.f32 %v975, %v1192
      %v1241 = vadd.f32 %v976, %v1212
      %v1242 = vadd.f32 %v977, %v1232
      %s1243 = scalar_lea.vmem %s218, 32
      %v1244 = vld [vmem:[%s1243] sm:$0xff]
      %1245 = vrot.lane.b32.xlu0 %v237, 93
      %v1246 = vpop.permute.xlu0 %1245
      %1247 = vrot.lane.b32.xlu0 %v238, 93
      %v1248 = vpop.permute.xlu0 %1247
      %1249 = vrot.lane.b32.xlu0 %v239, 93
      %v1250 = vpop.permute.xlu0 %1249
      %1251 = vrot.lane.b32.xlu0 %v240, 93
      %v1252 = vpop.permute.xlu0 %1251
      %1253 = vrot.lane.b32.xlu0 %v241, 93
      %v1254 = vpop.permute.xlu0 %1253
      %1255 = vrot.lane.b32.xlu0 %v242, 93
      %v1256 = vpop.permute.xlu0 %1255
      %1257 = vrot.lane.b32.xlu0 %v243, 93
      %v1258 = vpop.permute.xlu0 %1257
      %1259 = vrot.lane.b32.xlu0 %v244, 93
      %v1260 = vpop.permute.xlu0 %1259
      %1261 = vrot.lane.b32.xlu0 %v245, 93
      %v1262 = vpop.permute.xlu0 %1261
      %1263 = vrot.lane.b32.xlu0 %v246, 93
      %v1264 = vpop.permute.xlu0 %1263
      %1265 = vrot.lane.b32.xlu0 %v247, 93
      %v1266 = vpop.permute.xlu0 %1265
      %1267 = vrot.lane.b32.xlu0 %v248, 93
      %v1268 = vpop.permute.xlu0 %1267
      %1269 = vrot.lane.b32.xlu0 %v249, 93
      %v1270 = vpop.permute.xlu0 %1269
      %1271 = vrot.lane.b32.xlu0 %v250, 93
      %v1272 = vpop.permute.xlu0 %1271
      %1273 = vrot.lane.b32.xlu0 %v251, 93
      %v1274 = vpop.permute.xlu0 %1273
      %1275 = vrot.lane.b32.xlu0 %v252, 93
      %v1276 = vpop.permute.xlu0 %1275
      %1277 = vrot.lane.b32.xlu0 %v253, 93
      %v1278 = vpop.permute.xlu0 %1277
      %1279 = vrot.lane.b32.xlu0 %v254, 93
      %v1280 = vpop.permute.xlu0 %1279
      %vm1281 = vcmask 760832
      %v1282 = vsel %vm1281, %v1246, %v1248
      %v1283 = vsel %vm1281, %v1248, %v1250
      %v1284 = vsel %vm1281, %v1250, %v1252
      %v1285 = vsel %vm1281, %v1252, %v1254
      %v1286 = vsel %vm1281, %v1254, %v1256
      %v1287 = vsel %vm1281, %v1256, %v1258
      %v1288 = vsel %vm1281, %v1258, %v1260
      %v1289 = vsel %vm1281, %v1260, %v1262
      %v1290 = vsel %vm1281, %v1264, %v1266
      %v1291 = vsel %vm1281, %v1266, %v1268
      %v1292 = vsel %vm1281, %v1268, %v1270
      %v1293 = vsel %vm1281, %v1270, %v1272
      %v1294 = vsel %vm1281, %v1272, %v1274
      %v1295 = vsel %vm1281, %v1274, %v1276
      %v1296 = vsel %vm1281, %v1276, %v1278
      %v1297 = vsel %vm1281, %v1278, %v1280
      %v1317 = vsel %vm346, %v1244, 0
      %1319 = vmatpush.msra.mxu0 0.0
      %1320 = vmatpush.msra.mxu0 0.0
      %1321 = vmatpush.msra.mxu0 0.0
      %1322 = vmatpush.msra.mxu0 0.0
      %1323 = vmatpush.msra.mxu0 0.0
      %1324 = vmatpush.msra.mxu0 0.0
      %1325 = vmatpush.msra.mxu0 0.0
      %1326 = vmatpush.msra.mxu0 0.0
      %1327 = vmatpush.msra.mxu0 0.0
      %1328 = vmatpush.msra.mxu0 0.0
      %1329 = vmatpush.msra.mxu0 0.0
      %1330 = vmatpush.msra.mxu0 0.0
      %1331 = vmatpush.msra.mxu0 0.0
      %1332 = vmatpush.msra.mxu0 0.0
      %1333 = vmatpush.msra.mxu0 %v1290
      %1334 = vmatpush.msra.mxu0 %v1282
      %1335 = vmatmul.f32.gmra.mxu0 %v1317
      %v1336 = vpop.f32.mrf.mxu0
      %v1337 = vadd.f32 0.0, %v1336
      %1338 = vdwg.mxu0
      %1339 = vmatpush.msra.mxu0 0.0
      %1340 = vmatpush.msra.mxu0 0.0
      %1341 = vmatpush.msra.mxu0 0.0
      %1342 = vmatpush.msra.mxu0 0.0
      %1343 = vmatpush.msra.mxu0 0.0
      %1344 = vmatpush.msra.mxu0 0.0
      %1345 = vmatpush.msra.mxu0 0.0
      %1346 = vmatpush.msra.mxu0 0.0
      %1347 = vmatpush.msra.mxu0 0.0
      %1348 = vmatpush.msra.mxu0 0.0
      %1349 = vmatpush.msra.mxu0 0.0
      %1350 = vmatpush.msra.mxu0 0.0
      %1351 = vmatpush.msra.mxu0 0.0
      %1352 = vmatpush.msra.mxu0 0.0
      %1353 = vmatpush.msra.mxu0 %v1291
      %1354 = vmatpush.msra.mxu0 %v1283
      %1355 = vmatmul.f32.gmra.mxu0 %v1317
      %v1356 = vpop.f32.mrf.mxu0
      %v1357 = vadd.f32 0.0, %v1356
      %1358 = vdwg.mxu0
      %1359 = vmatpush.msra.mxu0 0.0
      %1360 = vmatpush.msra.mxu0 0.0
      %1361 = vmatpush.msra.mxu0 0.0
      %1362 = vmatpush.msra.mxu0 0.0
      %1363 = vmatpush.msra.mxu0 0.0
      %1364 = vmatpush.msra.mxu0 0.0
      %1365 = vmatpush.msra.mxu0 0.0
      %1366 = vmatpush.msra.mxu0 0.0
      %1367 = vmatpush.msra.mxu0 0.0
      %1368 = vmatpush.msra.mxu0 0.0
      %1369 = vmatpush.msra.mxu0 0.0
      %1370 = vmatpush.msra.mxu0 0.0
      %1371 = vmatpush.msra.mxu0 0.0
      %1372 = vmatpush.msra.mxu0 0.0
      %1373 = vmatpush.msra.mxu0 %v1292
      %1374 = vmatpush.msra.mxu0 %v1284
      %1375 = vmatmul.f32.gmra.mxu0 %v1317
      %v1376 = vpop.f32.mrf.mxu0
      %v1377 = vadd.f32 0.0, %v1376
      %1378 = vdwg.mxu0
      %1379 = vmatpush.msra.mxu0 0.0
      %1380 = vmatpush.msra.mxu0 0.0
      %1381 = vmatpush.msra.mxu0 0.0
      %1382 = vmatpush.msra.mxu0 0.0
      %1383 = vmatpush.msra.mxu0 0.0
      %1384 = vmatpush.msra.mxu0 0.0
      %1385 = vmatpush.msra.mxu0 0.0
      %1386 = vmatpush.msra.mxu0 0.0
      %1387 = vmatpush.msra.mxu0 0.0
      %1388 = vmatpush.msra.mxu0 0.0
      %1389 = vmatpush.msra.mxu0 0.0
      %1390 = vmatpush.msra.mxu0 0.0
      %1391 = vmatpush.msra.mxu0 0.0
      %1392 = vmatpush.msra.mxu0 0.0
      %1393 = vmatpush.msra.mxu0 %v1293
      %1394 = vmatpush.msra.mxu0 %v1285
      %1395 = vmatmul.f32.gmra.mxu0 %v1317
      %v1396 = vpop.f32.mrf.mxu0
      %v1397 = vadd.f32 0.0, %v1396
      %1398 = vdwg.mxu0
      %1399 = vmatpush.msra.mxu0 0.0
      %1400 = vmatpush.msra.mxu0 0.0
      %1401 = vmatpush.msra.mxu0 0.0
      %1402 = vmatpush.msra.mxu0 0.0
      %1403 = vmatpush.msra.mxu0 0.0
      %1404 = vmatpush.msra.mxu0 0.0
      %1405 = vmatpush.msra.mxu0 0.0
      %1406 = vmatpush.msra.mxu0 0.0
      %1407 = vmatpush.msra.mxu0 0.0
      %1408 = vmatpush.msra.mxu0 0.0
      %1409 = vmatpush.msra.mxu0 0.0
      %1410 = vmatpush.msra.mxu0 0.0
      %1411 = vmatpush.msra.mxu0 0.0
      %1412 = vmatpush.msra.mxu0 0.0
      %1413 = vmatpush.msra.mxu0 %v1294
      %1414 = vmatpush.msra.mxu0 %v1286
      %1415 = vmatmul.f32.gmra.mxu0 %v1317
      %v1416 = vpop.f32.mrf.mxu0
      %v1417 = vadd.f32 0.0, %v1416
      %1418 = vdwg.mxu0
      %1419 = vmatpush.msra.mxu0 0.0
      %1420 = vmatpush.msra.mxu0 0.0
      %1421 = vmatpush.msra.mxu0 0.0
      %1422 = vmatpush.msra.mxu0 0.0
      %1423 = vmatpush.msra.mxu0 0.0
      %1424 = vmatpush.msra.mxu0 0.0
      %1425 = vmatpush.msra.mxu0 0.0
      %1426 = vmatpush.msra.mxu0 0.0
      %1427 = vmatpush.msra.mxu0 0.0
      %1428 = vmatpush.msra.mxu0 0.0
      %1429 = vmatpush.msra.mxu0 0.0
      %1430 = vmatpush.msra.mxu0 0.0
      %1431 = vmatpush.msra.mxu0 0.0
      %1432 = vmatpush.msra.mxu0 0.0
      %1433 = vmatpush.msra.mxu0 %v1295
      %1434 = vmatpush.msra.mxu0 %v1287
      %1435 = vmatmul.f32.gmra.mxu0 %v1317
      %v1436 = vpop.f32.mrf.mxu0
      %v1437 = vadd.f32 0.0, %v1436
      %1438 = vdwg.mxu0
      %1439 = vmatpush.msra.mxu0 0.0
      %1440 = vmatpush.msra.mxu0 0.0
      %1441 = vmatpush.msra.mxu0 0.0
      %1442 = vmatpush.msra.mxu0 0.0
      %1443 = vmatpush.msra.mxu0 0.0
      %1444 = vmatpush.msra.mxu0 0.0
      %1445 = vmatpush.msra.mxu0 0.0
      %1446 = vmatpush.msra.mxu0 0.0
      %1447 = vmatpush.msra.mxu0 0.0
      %1448 = vmatpush.msra.mxu0 0.0
      %1449 = vmatpush.msra.mxu0 0.0
      %1450 = vmatpush.msra.mxu0 0.0
      %1451 = vmatpush.msra.mxu0 0.0
      %1452 = vmatpush.msra.mxu0 0.0
      %1453 = vmatpush.msra.mxu0 %v1296
      %1454 = vmatpush.msra.mxu0 %v1288
      %1455 = vmatmul.f32.gmra.mxu0 %v1317
      %v1456 = vpop.f32.mrf.mxu0
      %v1457 = vadd.f32 0.0, %v1456
      %1458 = vdwg.mxu0
      %1459 = vmatpush.msra.mxu0 0.0
      %1460 = vmatpush.msra.mxu0 0.0
      %1461 = vmatpush.msra.mxu0 0.0
      %1462 = vmatpush.msra.mxu0 0.0
      %1463 = vmatpush.msra.mxu0 0.0
      %1464 = vmatpush.msra.mxu0 0.0
      %1465 = vmatpush.msra.mxu0 0.0
      %1466 = vmatpush.msra.mxu0 0.0
      %1467 = vmatpush.msra.mxu0 0.0
      %1468 = vmatpush.msra.mxu0 0.0
      %1469 = vmatpush.msra.mxu0 0.0
      %1470 = vmatpush.msra.mxu0 0.0
      %1471 = vmatpush.msra.mxu0 0.0
      %1472 = vmatpush.msra.mxu0 0.0
      %1473 = vmatpush.msra.mxu0 %v1297
      %1474 = vmatpush.msra.mxu0 %v1289
      %1475 = vmatmul.f32.gmra.mxu0 %v1317
      %v1476 = vpop.f32.mrf.mxu0
      %v1477 = vadd.f32 0.0, %v1476
      %1478 = vdwg.mxu0
      %1479 = vmatpush.msra.mxu0 0.0
      %1480 = vmatpush.msra.mxu0 0.0
      %1481 = vmatpush.msra.mxu0 0.0
      %1482 = vmatpush.msra.mxu0 0.0
      %1483 = vmatpush.msra.mxu0 0.0
      %1484 = vmatpush.msra.mxu0 0.0
      %1485 = vmatpush.msra.mxu0 0.0
      %1486 = vmatpush.msra.mxu0 0.0
      %1487 = vmatpush.msra.mxu0 0.0
      %1488 = vmatpush.msra.mxu0 0.0
      %1489 = vmatpush.msra.mxu0 0.0
      %1490 = vmatpush.msra.mxu0 0.0
      %1491 = vmatpush.msra.mxu0 0.0
      %1492 = vmatpush.msra.mxu0 0.0
      %1493 = vmatpush.msra.mxu0 %v1280
      %1494 = vmatpush.msra.mxu0 %v1262
      %1495 = vmatmul.f32.gmra.mxu0 %v1317
      %v1496 = vpop.f32.mrf.mxu0
      %v1497 = vadd.f32 0.0, %v1496
      %1498 = vdwg.mxu0
      %v1499 = vadd.f32 %v1234, %v1337
      %v1500 = vadd.f32 %v1235, %v1357
      %v1501 = vadd.f32 %v1236, %v1377
      %v1502 = vadd.f32 %v1237, %v1397
      %v1503 = vadd.f32 %v1238, %v1417
      %v1504 = vadd.f32 %v1239, %v1437
      %v1505 = vadd.f32 %v1240, %v1457
      %v1506 = vadd.f32 %v1241, %v1477
      %v1507 = vadd.f32 %v1242, %v1497
      %s1508 = scalar_lea.vmem %s218, 40
      %v1509 = vld [vmem:[%s1508] sm:$0xff]
      %1510 = vrot.lane.b32.xlu0 %v237, 92
      %v1511 = vpop.permute.xlu0 %1510
      %1512 = vrot.lane.b32.xlu0 %v238, 92
      %v1513 = vpop.permute.xlu0 %1512
      %1514 = vrot.lane.b32.xlu0 %v239, 92
      %v1515 = vpop.permute.xlu0 %1514
      %1516 = vrot.lane.b32.xlu0 %v240, 92
      %v1517 = vpop.permute.xlu0 %1516
      %1518 = vrot.lane.b32.xlu0 %v241, 92
      %v1519 = vpop.permute.xlu0 %1518
      %1520 = vrot.lane.b32.xlu0 %v242, 92
      %v1521 = vpop.permute.xlu0 %1520
      %1522 = vrot.lane.b32.xlu0 %v243, 92
      %v1523 = vpop.permute.xlu0 %1522
      %1524 = vrot.lane.b32.xlu0 %v244, 92
      %v1525 = vpop.permute.xlu0 %1524
      %1526 = vrot.lane.b32.xlu0 %v245, 92
      %v1527 = vpop.permute.xlu0 %1526
      %1528 = vrot.lane.b32.xlu0 %v246, 92
      %v1529 = vpop.permute.xlu0 %1528
      %1530 = vrot.lane.b32.xlu0 %v247, 92
      %v1531 = vpop.permute.xlu0 %1530
      %1532 = vrot.lane.b32.xlu0 %v248, 92
      %v1533 = vpop.permute.xlu0 %1532
      %1534 = vrot.lane.b32.xlu0 %v249, 92
      %v1535 = vpop.permute.xlu0 %1534
      %1536 = vrot.lane.b32.xlu0 %v250, 92
      %v1537 = vpop.permute.xlu0 %1536
      %1538 = vrot.lane.b32.xlu0 %v251, 92
      %v1539 = vpop.permute.xlu0 %1538
      %1540 = vrot.lane.b32.xlu0 %v252, 92
      %v1541 = vpop.permute.xlu0 %1540
      %1542 = vrot.lane.b32.xlu0 %v253, 92
      %v1543 = vpop.permute.xlu0 %1542
      %1544 = vrot.lane.b32.xlu0 %v254, 92
      %v1545 = vpop.permute.xlu0 %1544
      %vm1546 = vcmask 752640
      %v1547 = vsel %vm1546, %v1511, %v1513
      %v1548 = vsel %vm1546, %v1513, %v1515
      %v1549 = vsel %vm1546, %v1515, %v1517
      %v1550 = vsel %vm1546, %v1517, %v1519
      %v1551 = vsel %vm1546, %v1519, %v1521
      %v1552 = vsel %vm1546, %v1521, %v1523
      %v1553 = vsel %vm1546, %v1523, %v1525
      %v1554 = vsel %vm1546, %v1525, %v1527
      %v1555 = vsel %vm1546, %v1529, %v1531
      %v1556 = vsel %vm1546, %v1531, %v1533
      %v1557 = vsel %vm1546, %v1533, %v1535
      %v1558 = vsel %vm1546, %v1535, %v1537
      %v1559 = vsel %vm1546, %v1537, %v1539
      %v1560 = vsel %vm1546, %v1539, %v1541
      %v1561 = vsel %vm1546, %v1541, %v1543
      %v1562 = vsel %vm1546, %v1543, %v1545
      %v1582 = vsel %vm346, %v1509, 0
      %1584 = vmatpush.msra.mxu0 0.0
      %1585 = vmatpush.msra.mxu0 0.0
      %1586 = vmatpush.msra.mxu0 0.0
      %1587 = vmatpush.msra.mxu0 0.0
      %1588 = vmatpush.msra.mxu0 0.0
      %1589 = vmatpush.msra.mxu0 0.0
      %1590 = vmatpush.msra.mxu0 0.0
      %1591 = vmatpush.msra.mxu0 0.0
      %1592 = vmatpush.msra.mxu0 0.0
      %1593 = vmatpush.msra.mxu0 0.0
      %1594 = vmatpush.msra.mxu0 0.0
      %1595 = vmatpush.msra.mxu0 0.0
      %1596 = vmatpush.msra.mxu0 0.0
      %1597 = vmatpush.msra.mxu0 0.0
      %1598 = vmatpush.msra.mxu0 %v1555
      %1599 = vmatpush.msra.mxu0 %v1547
      %1600 = vmatmul.f32.gmra.mxu0 %v1582
      %v1601 = vpop.f32.mrf.mxu0
      %v1602 = vadd.f32 0.0, %v1601
      %1603 = vdwg.mxu0
      %1604 = vmatpush.msra.mxu0 0.0
      %1605 = vmatpush.msra.mxu0 0.0
      %1606 = vmatpush.msra.mxu0 0.0
      %1607 = vmatpush.msra.mxu0 0.0
      %1608 = vmatpush.msra.mxu0 0.0
      %1609 = vmatpush.msra.mxu0 0.0
      %1610 = vmatpush.msra.mxu0 0.0
      %1611 = vmatpush.msra.mxu0 0.0
      %1612 = vmatpush.msra.mxu0 0.0
      %1613 = vmatpush.msra.mxu0 0.0
      %1614 = vmatpush.msra.mxu0 0.0
      %1615 = vmatpush.msra.mxu0 0.0
      %1616 = vmatpush.msra.mxu0 0.0
      %1617 = vmatpush.msra.mxu0 0.0
      %1618 = vmatpush.msra.mxu0 %v1556
      %1619 = vmatpush.msra.mxu0 %v1548
      %1620 = vmatmul.f32.gmra.mxu0 %v1582
      %v1621 = vpop.f32.mrf.mxu0
      %v1622 = vadd.f32 0.0, %v1621
      %1623 = vdwg.mxu0
      %1624 = vmatpush.msra.mxu0 0.0
      %1625 = vmatpush.msra.mxu0 0.0
      %1626 = vmatpush.msra.mxu0 0.0
      %1627 = vmatpush.msra.mxu0 0.0
      %1628 = vmatpush.msra.mxu0 0.0
      %1629 = vmatpush.msra.mxu0 0.0
      %1630 = vmatpush.msra.mxu0 0.0
      %1631 = vmatpush.msra.mxu0 0.0
      %1632 = vmatpush.msra.mxu0 0.0
      %1633 = vmatpush.msra.mxu0 0.0
      %1634 = vmatpush.msra.mxu0 0.0
      %1635 = vmatpush.msra.mxu0 0.0
      %1636 = vmatpush.msra.mxu0 0.0
      %1637 = vmatpush.msra.mxu0 0.0
      %1638 = vmatpush.msra.mxu0 %v1557
      %1639 = vmatpush.msra.mxu0 %v1549
      %1640 = vmatmul.f32.gmra.mxu0 %v1582
      %v1641 = vpop.f32.mrf.mxu0
      %v1642 = vadd.f32 0.0, %v1641
      %1643 = vdwg.mxu0
      %1644 = vmatpush.msra.mxu0 0.0
      %1645 = vmatpush.msra.mxu0 0.0
      %1646 = vmatpush.msra.mxu0 0.0
      %1647 = vmatpush.msra.mxu0 0.0
      %1648 = vmatpush.msra.mxu0 0.0
      %1649 = vmatpush.msra.mxu0 0.0
      %1650 = vmatpush.msra.mxu0 0.0
      %1651 = vmatpush.msra.mxu0 0.0
      %1652 = vmatpush.msra.mxu0 0.0
      %1653 = vmatpush.msra.mxu0 0.0
      %1654 = vmatpush.msra.mxu0 0.0
      %1655 = vmatpush.msra.mxu0 0.0
      %1656 = vmatpush.msra.mxu0 0.0
      %1657 = vmatpush.msra.mxu0 0.0
      %1658 = vmatpush.msra.mxu0 %v1558
      %1659 = vmatpush.msra.mxu0 %v1550
      %1660 = vmatmul.f32.gmra.mxu0 %v1582
      %v1661 = vpop.f32.mrf.mxu0
      %v1662 = vadd.f32 0.0, %v1661
      %1663 = vdwg.mxu0
      %1664 = vmatpush.msra.mxu0 0.0
      %1665 = vmatpush.msra.mxu0 0.0
      %1666 = vmatpush.msra.mxu0 0.0
      %1667 = vmatpush.msra.mxu0 0.0
      %1668 = vmatpush.msra.mxu0 0.0
      %1669 = vmatpush.msra.mxu0 0.0
      %1670 = vmatpush.msra.mxu0 0.0
      %1671 = vmatpush.msra.mxu0 0.0
      %1672 = vmatpush.msra.mxu0 0.0
      %1673 = vmatpush.msra.mxu0 0.0
      %1674 = vmatpush.msra.mxu0 0.0
      %1675 = vmatpush.msra.mxu0 0.0
      %1676 = vmatpush.msra.mxu0 0.0
      %1677 = vmatpush.msra.mxu0 0.0
      %1678 = vmatpush.msra.mxu0 %v1559
      %1679 = vmatpush.msra.mxu0 %v1551
      %1680 = vmatmul.f32.gmra.mxu0 %v1582
      %v1681 = vpop.f32.mrf.mxu0
      %v1682 = vadd.f32 0.0, %v1681
      %1683 = vdwg.mxu0
      %1684 = vmatpush.msra.mxu0 0.0
      %1685 = vmatpush.msra.mxu0 0.0
      %1686 = vmatpush.msra.mxu0 0.0
      %1687 = vmatpush.msra.mxu0 0.0
      %1688 = vmatpush.msra.mxu0 0.0
      %1689 = vmatpush.msra.mxu0 0.0
      %1690 = vmatpush.msra.mxu0 0.0
      %1691 = vmatpush.msra.mxu0 0.0
      %1692 = vmatpush.msra.mxu0 0.0
      %1693 = vmatpush.msra.mxu0 0.0
      %1694 = vmatpush.msra.mxu0 0.0
      %1695 = vmatpush.msra.mxu0 0.0
      %1696 = vmatpush.msra.mxu0 0.0
      %1697 = vmatpush.msra.mxu0 0.0
      %1698 = vmatpush.msra.mxu0 %v1560
      %1699 = vmatpush.msra.mxu0 %v1552
      %1700 = vmatmul.f32.gmra.mxu0 %v1582
      %v1701 = vpop.f32.mrf.mxu0
      %v1702 = vadd.f32 0.0, %v1701
      %1703 = vdwg.mxu0
      %1704 = vmatpush.msra.mxu0 0.0
      %1705 = vmatpush.msra.mxu0 0.0
      %1706 = vmatpush.msra.mxu0 0.0
      %1707 = vmatpush.msra.mxu0 0.0
      %1708 = vmatpush.msra.mxu0 0.0
      %1709 = vmatpush.msra.mxu0 0.0
      %1710 = vmatpush.msra.mxu0 0.0
      %1711 = vmatpush.msra.mxu0 0.0
      %1712 = vmatpush.msra.mxu0 0.0
      %1713 = vmatpush.msra.mxu0 0.0
      %1714 = vmatpush.msra.mxu0 0.0
      %1715 = vmatpush.msra.mxu0 0.0
      %1716 = vmatpush.msra.mxu0 0.0
      %1717 = vmatpush.msra.mxu0 0.0
      %1718 = vmatpush.msra.mxu0 %v1561
      %1719 = vmatpush.msra.mxu0 %v1553
      %1720 = vmatmul.f32.gmra.mxu0 %v1582
      %v1721 = vpop.f32.mrf.mxu0
      %v1722 = vadd.f32 0.0, %v1721
      %1723 = vdwg.mxu0
      %1724 = vmatpush.msra.mxu0 0.0
      %1725 = vmatpush.msra.mxu0 0.0
      %1726 = vmatpush.msra.mxu0 0.0
      %1727 = vmatpush.msra.mxu0 0.0
      %1728 = vmatpush.msra.mxu0 0.0
      %1729 = vmatpush.msra.mxu0 0.0
      %1730 = vmatpush.msra.mxu0 0.0
      %1731 = vmatpush.msra.mxu0 0.0
      %1732 = vmatpush.msra.mxu0 0.0
      %1733 = vmatpush.msra.mxu0 0.0
      %1734 = vmatpush.msra.mxu0 0.0
      %1735 = vmatpush.msra.mxu0 0.0
      %1736 = vmatpush.msra.mxu0 0.0
      %1737 = vmatpush.msra.mxu0 0.0
      %1738 = vmatpush.msra.mxu0 %v1562
      %1739 = vmatpush.msra.mxu0 %v1554
      %1740 = vmatmul.f32.gmra.mxu0 %v1582
      %v1741 = vpop.f32.mrf.mxu0
      %v1742 = vadd.f32 0.0, %v1741
      %1743 = vdwg.mxu0
      %1744 = vmatpush.msra.mxu0 0.0
      %1745 = vmatpush.msra.mxu0 0.0
      %1746 = vmatpush.msra.mxu0 0.0
      %1747 = vmatpush.msra.mxu0 0.0
      %1748 = vmatpush.msra.mxu0 0.0
      %1749 = vmatpush.msra.mxu0 0.0
      %1750 = vmatpush.msra.mxu0 0.0
      %1751 = vmatpush.msra.mxu0 0.0
      %1752 = vmatpush.msra.mxu0 0.0
      %1753 = vmatpush.msra.mxu0 0.0
      %1754 = vmatpush.msra.mxu0 0.0
      %1755 = vmatpush.msra.mxu0 0.0
      %1756 = vmatpush.msra.mxu0 0.0
      %1757 = vmatpush.msra.mxu0 0.0
      %1758 = vmatpush.msra.mxu0 %v1545
      %1759 = vmatpush.msra.mxu0 %v1527
      %1760 = vmatmul.f32.gmra.mxu0 %v1582
      %v1761 = vpop.f32.mrf.mxu0
      %v1762 = vadd.f32 0.0, %v1761
      %1763 = vdwg.mxu0
      %v1764 = vadd.f32 %v1499, %v1602
      %v1765 = vadd.f32 %v1500, %v1622
      %v1766 = vadd.f32 %v1501, %v1642
      %v1767 = vadd.f32 %v1502, %v1662
      %v1768 = vadd.f32 %v1503, %v1682
      %v1769 = vadd.f32 %v1504, %v1702
      %v1770 = vadd.f32 %v1505, %v1722
      %v1771 = vadd.f32 %v1506, %v1742
      %v1772 = vadd.f32 %v1507, %v1762
      %s1773 = scalar_lea.vmem %s218, 48
      %v1774 = vld [vmem:[%s1773] sm:$0xff]
      %v1775 = vld [vmem:[%s214] sm:$0xff]
      %v1776 = vld [vmem:[%s214 + $0x8] sm:$0xff]
      %v1777 = vld [vmem:[%s214 + $0x10] sm:$0xff]
      %v1778 = vld [vmem:[%s214 + $0x18] sm:$0xff]
      %v1779 = vld [vmem:[%s214 + $0x20] sm:$0xff]
      %v1780 = vld [vmem:[%s214 + $0x28] sm:$0xff]
      %v1781 = vld [vmem:[%s214 + $0x30] sm:$0xff]
      %v1782 = vld [vmem:[%s214 + $0x38] sm:$0xff]
      %v1783 = vld [vmem:[%s214 + $0x40] sm:$0xff]
      %v1784 = vld [vmem:[%s214 + $0x48] sm:$0xff]
      %v1785 = vld [vmem:[%s214 + $0x50] sm:$0xff]
      %v1786 = vld [vmem:[%s214 + $0x58] sm:$0xff]
      %v1787 = vld [vmem:[%s214 + $0x60] sm:$0xff]
      %v1788 = vld [vmem:[%s214 + $0x68] sm:$0xff]
      %v1789 = vld [vmem:[%s214 + $0x70] sm:$0xff]
      %v1790 = vld [vmem:[%s214 + $0x78] sm:$0xff]
      %v1791 = vld [vmem:[%s214 + $0x80] sm:$0xff]
      %v1792 = vld [vmem:[%s214 + $0x88] sm:$0xff]
      %v1793 = vld [vmem:[%s214 + $0x90] sm:$0xff]
      %v1794 = vld [vmem:[%s214 + $0x98] sm:$0xff]
      %1815 = vrot.lane.b32.xlu0 %v1775, 60
      %v1816 = vpop.permute.xlu0 %1815
      %1817 = vrot.lane.b32.xlu0 %v1776, 60
      %v1818 = vpop.permute.xlu0 %1817
      %1819 = vrot.lane.b32.xlu0 %v1777, 60
      %v1820 = vpop.permute.xlu0 %1819
      %1821 = vrot.lane.b32.xlu0 %v1778, 60
      %v1822 = vpop.permute.xlu0 %1821
      %1823 = vrot.lane.b32.xlu0 %v1779, 60
      %v1824 = vpop.permute.xlu0 %1823
      %1825 = vrot.lane.b32.xlu0 %v1780, 60
      %v1826 = vpop.permute.xlu0 %1825
      %1827 = vrot.lane.b32.xlu0 %v1781, 60
      %v1828 = vpop.permute.xlu0 %1827
      %1829 = vrot.lane.b32.xlu0 %v1782, 60
      %v1830 = vpop.permute.xlu0 %1829
      %1831 = vrot.lane.b32.xlu0 %v1783, 60
      %v1832 = vpop.permute.xlu0 %1831
      %1833 = vrot.lane.b32.xlu0 %v1784, 60
      %v1834 = vpop.permute.xlu0 %1833
      %1835 = vrot.lane.b32.xlu0 %v1785, 60
      %v1836 = vpop.permute.xlu0 %1835
      %1837 = vrot.lane.b32.xlu0 %v1786, 60
      %v1838 = vpop.permute.xlu0 %1837
      %1839 = vrot.lane.b32.xlu0 %v1787, 60
      %v1840 = vpop.permute.xlu0 %1839
      %1841 = vrot.lane.b32.xlu0 %v1788, 60
      %v1842 = vpop.permute.xlu0 %1841
      %1843 = vrot.lane.b32.xlu0 %v1789, 60
      %v1844 = vpop.permute.xlu0 %1843
      %1845 = vrot.lane.b32.xlu0 %v1790, 60
      %v1846 = vpop.permute.xlu0 %1845
      %1847 = vrot.lane.b32.xlu0 %v1791, 60
      %v1848 = vpop.permute.xlu0 %1847
      %1849 = vrot.lane.b32.xlu0 %v1792, 60
      %v1850 = vpop.permute.xlu0 %1849
      %1851 = vrot.lane.b32.xlu0 %v1793, 60
      %v1852 = vpop.permute.xlu0 %1851
      %1853 = vrot.lane.b32.xlu0 %v1794, 60
      %v1854 = vpop.permute.xlu0 %1853
      %vm1855 = vcmask 490496
      %v1856 = vsel %vm1855, %v1816, %v1818
      %v1857 = vsel %vm1855, %v1818, %v1820
      %v1858 = vsel %vm1855, %v1820, %v1822
      %v1859 = vsel %vm1855, %v1822, %v1824
      %v1860 = vsel %vm1855, %v1824, %v1826
      %v1861 = vsel %vm1855, %v1826, %v1828
      %v1862 = vsel %vm1855, %v1828, %v1830
      %v1863 = vsel %vm1855, %v1830, %v1832
      %v1864 = vsel %vm1855, %v1832, %v1834
      %v1865 = vsel %vm1855, %v1836, %v1838
      %v1866 = vsel %vm1855, %v1838, %v1840
      %v1867 = vsel %vm1855, %v1840, %v1842
      %v1868 = vsel %vm1855, %v1842, %v1844
      %v1869 = vsel %vm1855, %v1844, %v1846
      %v1870 = vsel %vm1855, %v1846, %v1848
      %v1871 = vsel %vm1855, %v1848, %v1850
      %v1872 = vsel %vm1855, %v1850, %v1852
      %v1873 = vsel %vm1855, %v1852, %v1854
      %v1893 = vsel %vm346, %v1774, 0
      %1895 = vmatpush.msra.mxu0 0.0
      %1896 = vmatpush.msra.mxu0 0.0
      %1897 = vmatpush.msra.mxu0 0.0
      %1898 = vmatpush.msra.mxu0 0.0
      %1899 = vmatpush.msra.mxu0 0.0
      %1900 = vmatpush.msra.mxu0 0.0
      %1901 = vmatpush.msra.mxu0 0.0
      %1902 = vmatpush.msra.mxu0 0.0
      %1903 = vmatpush.msra.mxu0 0.0
      %1904 = vmatpush.msra.mxu0 0.0
      %1905 = vmatpush.msra.mxu0 0.0
      %1906 = vmatpush.msra.mxu0 0.0
      %1907 = vmatpush.msra.mxu0 0.0
      %1908 = vmatpush.msra.mxu0 0.0
      %1909 = vmatpush.msra.mxu0 %v1865
      %1910 = vmatpush.msra.mxu0 %v1856
      %1911 = vmatmul.f32.gmra.mxu0 %v1893
      %v1912 = vpop.f32.mrf.mxu0
      %v1913 = vadd.f32 0.0, %v1912
      %1914 = vdwg.mxu0
      %1915 = vmatpush.msra.mxu0 0.0
      %1916 = vmatpush.msra.mxu0 0.0
      %1917 = vmatpush.msra.mxu0 0.0
      %1918 = vmatpush.msra.mxu0 0.0
      %1919 = vmatpush.msra.mxu0 0.0
      %1920 = vmatpush.msra.mxu0 0.0
      %1921 = vmatpush.msra.mxu0 0.0
      %1922 = vmatpush.msra.mxu0 0.0
      %1923 = vmatpush.msra.mxu0 0.0
      %1924 = vmatpush.msra.mxu0 0.0
      %1925 = vmatpush.msra.mxu0 0.0
      %1926 = vmatpush.msra.mxu0 0.0
      %1927 = vmatpush.msra.mxu0 0.0
      %1928 = vmatpush.msra.mxu0 0.0
      %1929 = vmatpush.msra.mxu0 %v1866
      %1930 = vmatpush.msra.mxu0 %v1857
      %1931 = vmatmul.f32.gmra.mxu0 %v1893
      %v1932 = vpop.f32.mrf.mxu0
      %v1933 = vadd.f32 0.0, %v1932
      %1934 = vdwg.mxu0
      %1935 = vmatpush.msra.mxu0 0.0
      %1936 = vmatpush.msra.mxu0 0.0
      %1937 = vmatpush.msra.mxu0 0.0
      %1938 = vmatpush.msra.mxu0 0.0
      %1939 = vmatpush.msra.mxu0 0.0
      %1940 = vmatpush.msra.mxu0 0.0
      %1941 = vmatpush.msra.mxu0 0.0
      %1942 = vmatpush.msra.mxu0 0.0
      %1943 = vmatpush.msra.mxu0 0.0
      %1944 = vmatpush.msra.mxu0 0.0
      %1945 = vmatpush.msra.mxu0 0.0
      %1946 = vmatpush.msra.mxu0 0.0
      %1947 = vmatpush.msra.mxu0 0.0
      %1948 = vmatpush.msra.mxu0 0.0
      %1949 = vmatpush.msra.mxu0 %v1867
      %1950 = vmatpush.msra.mxu0 %v1858
      %1951 = vmatmul.f32.gmra.mxu0 %v1893
      %v1952 = vpop.f32.mrf.mxu0
      %v1953 = vadd.f32 0.0, %v1952
      %1954 = vdwg.mxu0
      %1955 = vmatpush.msra.mxu0 0.0
      %1956 = vmatpush.msra.mxu0 0.0
      %1957 = vmatpush.msra.mxu0 0.0
      %1958 = vmatpush.msra.mxu0 0.0
      %1959 = vmatpush.msra.mxu0 0.0
      %1960 = vmatpush.msra.mxu0 0.0
      %1961 = vmatpush.msra.mxu0 0.0
      %1962 = vmatpush.msra.mxu0 0.0
      %1963 = vmatpush.msra.mxu0 0.0
      %1964 = vmatpush.msra.mxu0 0.0
      %1965 = vmatpush.msra.mxu0 0.0
      %1966 = vmatpush.msra.mxu0 0.0
      %1967 = vmatpush.msra.mxu0 0.0
      %1968 = vmatpush.msra.mxu0 0.0
      %1969 = vmatpush.msra.mxu0 %v1868
      %1970 = vmatpush.msra.mxu0 %v1859
      %1971 = vmatmul.f32.gmra.mxu0 %v1893
      %v1972 = vpop.f32.mrf.mxu0
      %v1973 = vadd.f32 0.0, %v1972
      %1974 = vdwg.mxu0
      %1975 = vmatpush.msra.mxu0 0.0
      %1976 = vmatpush.msra.mxu0 0.0
      %1977 = vmatpush.msra.mxu0 0.0
      %1978 = vmatpush.msra.mxu0 0.0
      %1979 = vmatpush.msra.mxu0 0.0
      %1980 = vmatpush.msra.mxu0 0.0
      %1981 = vmatpush.msra.mxu0 0.0
      %1982 = vmatpush.msra.mxu0 0.0
      %1983 = vmatpush.msra.mxu0 0.0
      %1984 = vmatpush.msra.mxu0 0.0
      %1985 = vmatpush.msra.mxu0 0.0
      %1986 = vmatpush.msra.mxu0 0.0
      %1987 = vmatpush.msra.mxu0 0.0
      %1988 = vmatpush.msra.mxu0 0.0
      %1989 = vmatpush.msra.mxu0 %v1869
      %1990 = vmatpush.msra.mxu0 %v1860
      %1991 = vmatmul.f32.gmra.mxu0 %v1893
      %v1992 = vpop.f32.mrf.mxu0
      %v1993 = vadd.f32 0.0, %v1992
      %1994 = vdwg.mxu0
      %1995 = vmatpush.msra.mxu0 0.0
      %1996 = vmatpush.msra.mxu0 0.0
      %1997 = vmatpush.msra.mxu0 0.0
      %1998 = vmatpush.msra.mxu0 0.0
      %1999 = vmatpush.msra.mxu0 0.0
      %2000 = vmatpush.msra.mxu0 0.0
      %2001 = vmatpush.msra.mxu0 0.0
      %2002 = vmatpush.msra.mxu0 0.0
      %2003 = vmatpush.msra.mxu0 0.0
      %2004 = vmatpush.msra.mxu0 0.0
      %2005 = vmatpush.msra.mxu0 0.0
      %2006 = vmatpush.msra.mxu0 0.0
      %2007 = vmatpush.msra.mxu0 0.0
      %2008 = vmatpush.msra.mxu0 0.0
      %2009 = vmatpush.msra.mxu0 %v1870
      %2010 = vmatpush.msra.mxu0 %v1861
      %2011 = vmatmul.f32.gmra.mxu0 %v1893
      %v2012 = vpop.f32.mrf.mxu0
      %v2013 = vadd.f32 0.0, %v2012
      %2014 = vdwg.mxu0
      %2015 = vmatpush.msra.mxu0 0.0
      %2016 = vmatpush.msra.mxu0 0.0
      %2017 = vmatpush.msra.mxu0 0.0
      %2018 = vmatpush.msra.mxu0 0.0
      %2019 = vmatpush.msra.mxu0 0.0
      %2020 = vmatpush.msra.mxu0 0.0
      %2021 = vmatpush.msra.mxu0 0.0
      %2022 = vmatpush.msra.mxu0 0.0
      %2023 = vmatpush.msra.mxu0 0.0
      %2024 = vmatpush.msra.mxu0 0.0
      %2025 = vmatpush.msra.mxu0 0.0
      %2026 = vmatpush.msra.mxu0 0.0
      %2027 = vmatpush.msra.mxu0 0.0
      %2028 = vmatpush.msra.mxu0 0.0
      %2029 = vmatpush.msra.mxu0 %v1871
      %2030 = vmatpush.msra.mxu0 %v1862
      %2031 = vmatmul.f32.gmra.mxu0 %v1893
      %v2032 = vpop.f32.mrf.mxu0
      %v2033 = vadd.f32 0.0, %v2032
      %2034 = vdwg.mxu0
      %2035 = vmatpush.msra.mxu0 0.0
      %2036 = vmatpush.msra.mxu0 0.0
      %2037 = vmatpush.msra.mxu0 0.0
      %2038 = vmatpush.msra.mxu0 0.0
      %2039 = vmatpush.msra.mxu0 0.0
      %2040 = vmatpush.msra.mxu0 0.0
      %2041 = vmatpush.msra.mxu0 0.0
      %2042 = vmatpush.msra.mxu0 0.0
      %2043 = vmatpush.msra.mxu0 0.0
      %2044 = vmatpush.msra.mxu0 0.0
      %2045 = vmatpush.msra.mxu0 0.0
      %2046 = vmatpush.msra.mxu0 0.0
      %2047 = vmatpush.msra.mxu0 0.0
      %2048 = vmatpush.msra.mxu0 0.0
      %2049 = vmatpush.msra.mxu0 %v1872
      %2050 = vmatpush.msra.mxu0 %v1863
      %2051 = vmatmul.f32.gmra.mxu0 %v1893
      %v2052 = vpop.f32.mrf.mxu0
      %v2053 = vadd.f32 0.0, %v2052
      %2054 = vdwg.mxu0
      %2055 = vmatpush.msra.mxu0 0.0
      %2056 = vmatpush.msra.mxu0 0.0
      %2057 = vmatpush.msra.mxu0 0.0
      %2058 = vmatpush.msra.mxu0 0.0
      %2059 = vmatpush.msra.mxu0 0.0
      %2060 = vmatpush.msra.mxu0 0.0
      %2061 = vmatpush.msra.mxu0 0.0
      %2062 = vmatpush.msra.mxu0 0.0
      %2063 = vmatpush.msra.mxu0 0.0
      %2064 = vmatpush.msra.mxu0 0.0
      %2065 = vmatpush.msra.mxu0 0.0
      %2066 = vmatpush.msra.mxu0 0.0
      %2067 = vmatpush.msra.mxu0 0.0
      %2068 = vmatpush.msra.mxu0 0.0
      %2069 = vmatpush.msra.mxu0 %v1873
      %2070 = vmatpush.msra.mxu0 %v1864
      %2071 = vmatmul.f32.gmra.mxu0 %v1893
      %v2072 = vpop.f32.mrf.mxu0
      %v2073 = vadd.f32 0.0, %v2072
      %2074 = vdwg.mxu0
      %v2075 = vadd.f32 %v1764, %v1913
      %v2076 = vadd.f32 %v1765, %v1933
      %v2077 = vadd.f32 %v1766, %v1953
      %v2078 = vadd.f32 %v1767, %v1973
      %v2079 = vadd.f32 %v1768, %v1993
      %v2080 = vadd.f32 %v1769, %v2013
      %v2081 = vadd.f32 %v1770, %v2033
      %v2082 = vadd.f32 %v1771, %v2053
      %v2083 = vadd.f32 %v1772, %v2073
      %s2084 = scalar_lea.vmem %s218, 56
      %v2085 = vld [vmem:[%s2084] sm:$0xff]
      %2086 = vrot.lane.b32.xlu0 %v1775, 59
      %v2087 = vpop.permute.xlu0 %2086
      %2088 = vrot.lane.b32.xlu0 %v1776, 59
      %v2089 = vpop.permute.xlu0 %2088
      %2090 = vrot.lane.b32.xlu0 %v1777, 59
      %v2091 = vpop.permute.xlu0 %2090
      %2092 = vrot.lane.b32.xlu0 %v1778, 59
      %v2093 = vpop.permute.xlu0 %2092
      %2094 = vrot.lane.b32.xlu0 %v1779, 59
      %v2095 = vpop.permute.xlu0 %2094
      %2096 = vrot.lane.b32.xlu0 %v1780, 59
      %v2097 = vpop.permute.xlu0 %2096
      %2098 = vrot.lane.b32.xlu0 %v1781, 59
      %v2099 = vpop.permute.xlu0 %2098
      %2100 = vrot.lane.b32.xlu0 %v1782, 59
      %v2101 = vpop.permute.xlu0 %2100
      %2102 = vrot.lane.b32.xlu0 %v1783, 59
      %v2103 = vpop.permute.xlu0 %2102
      %2104 = vrot.lane.b32.xlu0 %v1784, 59
      %v2105 = vpop.permute.xlu0 %2104
      %2106 = vrot.lane.b32.xlu0 %v1785, 59
      %v2107 = vpop.permute.xlu0 %2106
      %2108 = vrot.lane.b32.xlu0 %v1786, 59
      %v2109 = vpop.permute.xlu0 %2108
      %2110 = vrot.lane.b32.xlu0 %v1787, 59
      %v2111 = vpop.permute.xlu0 %2110
      %2112 = vrot.lane.b32.xlu0 %v1788, 59
      %v2113 = vpop.permute.xlu0 %2112
      %2114 = vrot.lane.b32.xlu0 %v1789, 59
      %v2115 = vpop.permute.xlu0 %2114
      %2116 = vrot.lane.b32.xlu0 %v1790, 59
      %v2117 = vpop.permute.xlu0 %2116
      %2118 = vrot.lane.b32.xlu0 %v1791, 59
      %v2119 = vpop.permute.xlu0 %2118
      %2120 = vrot.lane.b32.xlu0 %v1792, 59
      %v2121 = vpop.permute.xlu0 %2120
      %2122 = vrot.lane.b32.xlu0 %v1793, 59
      %v2123 = vpop.permute.xlu0 %2122
      %2124 = vrot.lane.b32.xlu0 %v1794, 59
      %v2125 = vpop.permute.xlu0 %2124
      %vm2126 = vcmask 482304
      %v2127 = vsel %vm2126, %v2087, %v2089
      %v2128 = vsel %vm2126, %v2089, %v2091
      %v2129 = vsel %vm2126, %v2091, %v2093
      %v2130 = vsel %vm2126, %v2093, %v2095
      %v2131 = vsel %vm2126, %v2095, %v2097
      %v2132 = vsel %vm2126, %v2097, %v2099
      %v2133 = vsel %vm2126, %v2099, %v2101
      %v2134 = vsel %vm2126, %v2101, %v2103
      %v2135 = vsel %vm2126, %v2103, %v2105
      %v2136 = vsel %vm2126, %v2107, %v2109
      %v2137 = vsel %vm2126, %v2109, %v2111
      %v2138 = vsel %vm2126, %v2111, %v2113
      %v2139 = vsel %vm2126, %v2113, %v2115
      %v2140 = vsel %vm2126, %v2115, %v2117
      %v2141 = vsel %vm2126, %v2117, %v2119
      %v2142 = vsel %vm2126, %v2119, %v2121
      %v2143 = vsel %vm2126, %v2121, %v2123
      %v2144 = vsel %vm2126, %v2123, %v2125
      %v2164 = vsel %vm346, %v2085, 0
      %2166 = vmatpush.msra.mxu0 0.0
      %2167 = vmatpush.msra.mxu0 0.0
      %2168 = vmatpush.msra.mxu0 0.0
      %2169 = vmatpush.msra.mxu0 0.0
      %2170 = vmatpush.msra.mxu0 0.0
      %2171 = vmatpush.msra.mxu0 0.0
      %2172 = vmatpush.msra.mxu0 0.0
      %2173 = vmatpush.msra.mxu0 0.0
      %2174 = vmatpush.msra.mxu0 0.0
      %2175 = vmatpush.msra.mxu0 0.0
      %2176 = vmatpush.msra.mxu0 0.0
      %2177 = vmatpush.msra.mxu0 0.0
      %2178 = vmatpush.msra.mxu0 0.0
      %2179 = vmatpush.msra.mxu0 0.0
      %2180 = vmatpush.msra.mxu0 %v2136
      %2181 = vmatpush.msra.mxu0 %v2127
      %2182 = vmatmul.f32.gmra.mxu0 %v2164
      %v2183 = vpop.f32.mrf.mxu0
      %v2184 = vadd.f32 0.0, %v2183
      %2185 = vdwg.mxu0
      %2186 = vmatpush.msra.mxu0 0.0
      %2187 = vmatpush.msra.mxu0 0.0
      %2188 = vmatpush.msra.mxu0 0.0
      %2189 = vmatpush.msra.mxu0 0.0
      %2190 = vmatpush.msra.mxu0 0.0
      %2191 = vmatpush.msra.mxu0 0.0
      %2192 = vmatpush.msra.mxu0 0.0
      %2193 = vmatpush.msra.mxu0 0.0
      %2194 = vmatpush.msra.mxu0 0.0
      %2195 = vmatpush.msra.mxu0 0.0
      %2196 = vmatpush.msra.mxu0 0.0
      %2197 = vmatpush.msra.mxu0 0.0
      %2198 = vmatpush.msra.mxu0 0.0
      %2199 = vmatpush.msra.mxu0 0.0
      %2200 = vmatpush.msra.mxu0 %v2137
      %2201 = vmatpush.msra.mxu0 %v2128
      %2202 = vmatmul.f32.gmra.mxu0 %v2164
      %v2203 = vpop.f32.mrf.mxu0
      %v2204 = vadd.f32 0.0, %v2203
      %2205 = vdwg.mxu0
      %2206 = vmatpush.msra.mxu0 0.0
      %2207 = vmatpush.msra.mxu0 0.0
      %2208 = vmatpush.msra.mxu0 0.0
      %2209 = vmatpush.msra.mxu0 0.0
      %2210 = vmatpush.msra.mxu0 0.0
      %2211 = vmatpush.msra.mxu0 0.0
      %2212 = vmatpush.msra.mxu0 0.0
      %2213 = vmatpush.msra.mxu0 0.0
      %2214 = vmatpush.msra.mxu0 0.0
      %2215 = vmatpush.msra.mxu0 0.0
      %2216 = vmatpush.msra.mxu0 0.0
      %2217 = vmatpush.msra.mxu0 0.0
      %2218 = vmatpush.msra.mxu0 0.0
      %2219 = vmatpush.msra.mxu0 0.0
      %2220 = vmatpush.msra.mxu0 %v2138
      %2221 = vmatpush.msra.mxu0 %v2129
      %2222 = vmatmul.f32.gmra.mxu0 %v2164
      %v2223 = vpop.f32.mrf.mxu0
      %v2224 = vadd.f32 0.0, %v2223
      %2225 = vdwg.mxu0
      %2226 = vmatpush.msra.mxu0 0.0
      %2227 = vmatpush.msra.mxu0 0.0
      %2228 = vmatpush.msra.mxu0 0.0
      %2229 = vmatpush.msra.mxu0 0.0
      %2230 = vmatpush.msra.mxu0 0.0
      %2231 = vmatpush.msra.mxu0 0.0
      %2232 = vmatpush.msra.mxu0 0.0
      %2233 = vmatpush.msra.mxu0 0.0
      %2234 = vmatpush.msra.mxu0 0.0
      %2235 = vmatpush.msra.mxu0 0.0
      %2236 = vmatpush.msra.mxu0 0.0
      %2237 = vmatpush.msra.mxu0 0.0
      %2238 = vmatpush.msra.mxu0 0.0
      %2239 = vmatpush.msra.mxu0 0.0
      %2240 = vmatpush.msra.mxu0 %v2139
      %2241 = vmatpush.msra.mxu0 %v2130
      %2242 = vmatmul.f32.gmra.mxu0 %v2164
      %v2243 = vpop.f32.mrf.mxu0
      %v2244 = vadd.f32 0.0, %v2243
      %2245 = vdwg.mxu0
      %2246 = vmatpush.msra.mxu0 0.0
      %2247 = vmatpush.msra.mxu0 0.0
      %2248 = vmatpush.msra.mxu0 0.0
      %2249 = vmatpush.msra.mxu0 0.0
      %2250 = vmatpush.msra.mxu0 0.0
      %2251 = vmatpush.msra.mxu0 0.0
      %2252 = vmatpush.msra.mxu0 0.0
      %2253 = vmatpush.msra.mxu0 0.0
      %2254 = vmatpush.msra.mxu0 0.0
      %2255 = vmatpush.msra.mxu0 0.0
      %2256 = vmatpush.msra.mxu0 0.0
      %2257 = vmatpush.msra.mxu0 0.0
      %2258 = vmatpush.msra.mxu0 0.0
      %2259 = vmatpush.msra.mxu0 0.0
      %2260 = vmatpush.msra.mxu0 %v2140
      %2261 = vmatpush.msra.mxu0 %v2131
      %2262 = vmatmul.f32.gmra.mxu0 %v2164
      %v2263 = vpop.f32.mrf.mxu0
      %v2264 = vadd.f32 0.0, %v2263
      %2265 = vdwg.mxu0
      %2266 = vmatpush.msra.mxu0 0.0
      %2267 = vmatpush.msra.mxu0 0.0
      %2268 = vmatpush.msra.mxu0 0.0
      %2269 = vmatpush.msra.mxu0 0.0
      %2270 = vmatpush.msra.mxu0 0.0
      %2271 = vmatpush.msra.mxu0 0.0
      %2272 = vmatpush.msra.mxu0 0.0
      %2273 = vmatpush.msra.mxu0 0.0
      %2274 = vmatpush.msra.mxu0 0.0
      %2275 = vmatpush.msra.mxu0 0.0
      %2276 = vmatpush.msra.mxu0 0.0
      %2277 = vmatpush.msra.mxu0 0.0
      %2278 = vmatpush.msra.mxu0 0.0
      %2279 = vmatpush.msra.mxu0 0.0
      %2280 = vmatpush.msra.mxu0 %v2141
      %2281 = vmatpush.msra.mxu0 %v2132
      %2282 = vmatmul.f32.gmra.mxu0 %v2164
      %v2283 = vpop.f32.mrf.mxu0
      %v2284 = vadd.f32 0.0, %v2283
      %2285 = vdwg.mxu0
      %2286 = vmatpush.msra.mxu0 0.0
      %2287 = vmatpush.msra.mxu0 0.0
      %2288 = vmatpush.msra.mxu0 0.0
      %2289 = vmatpush.msra.mxu0 0.0
      %2290 = vmatpush.msra.mxu0 0.0
      %2291 = vmatpush.msra.mxu0 0.0
      %2292 = vmatpush.msra.mxu0 0.0
      %2293 = vmatpush.msra.mxu0 0.0
      %2294 = vmatpush.msra.mxu0 0.0
      %2295 = vmatpush.msra.mxu0 0.0
      %2296 = vmatpush.msra.mxu0 0.0
      %2297 = vmatpush.msra.mxu0 0.0
      %2298 = vmatpush.msra.mxu0 0.0
      %2299 = vmatpush.msra.mxu0 0.0
      %2300 = vmatpush.msra.mxu0 %v2142
      %2301 = vmatpush.msra.mxu0 %v2133
      %2302 = vmatmul.f32.gmra.mxu0 %v2164
      %v2303 = vpop.f32.mrf.mxu0
      %v2304 = vadd.f32 0.0, %v2303
      %2305 = vdwg.mxu0
      %2306 = vmatpush.msra.mxu0 0.0
      %2307 = vmatpush.msra.mxu0 0.0
      %2308 = vmatpush.msra.mxu0 0.0
      %2309 = vmatpush.msra.mxu0 0.0
      %2310 = vmatpush.msra.mxu0 0.0
      %2311 = vmatpush.msra.mxu0 0.0
      %2312 = vmatpush.msra.mxu0 0.0
      %2313 = vmatpush.msra.mxu0 0.0
      %2314 = vmatpush.msra.mxu0 0.0
      %2315 = vmatpush.msra.mxu0 0.0
      %2316 = vmatpush.msra.mxu0 0.0
      %2317 = vmatpush.msra.mxu0 0.0
      %2318 = vmatpush.msra.mxu0 0.0
      %2319 = vmatpush.msra.mxu0 0.0
      %2320 = vmatpush.msra.mxu0 %v2143
      %2321 = vmatpush.msra.mxu0 %v2134
      %2322 = vmatmul.f32.gmra.mxu0 %v2164
      %v2323 = vpop.f32.mrf.mxu0
      %v2324 = vadd.f32 0.0, %v2323
      %2325 = vdwg.mxu0
      %2326 = vmatpush.msra.mxu0 0.0
      %2327 = vmatpush.msra.mxu0 0.0
      %2328 = vmatpush.msra.mxu0 0.0
      %2329 = vmatpush.msra.mxu0 0.0
      %2330 = vmatpush.msra.mxu0 0.0
      %2331 = vmatpush.msra.mxu0 0.0
      %2332 = vmatpush.msra.mxu0 0.0
      %2333 = vmatpush.msra.mxu0 0.0
      %2334 = vmatpush.msra.mxu0 0.0
      %2335 = vmatpush.msra.mxu0 0.0
      %2336 = vmatpush.msra.mxu0 0.0
      %2337 = vmatpush.msra.mxu0 0.0
      %2338 = vmatpush.msra.mxu0 0.0
      %2339 = vmatpush.msra.mxu0 0.0
      %2340 = vmatpush.msra.mxu0 %v2144
      %2341 = vmatpush.msra.mxu0 %v2135
      %2342 = vmatmul.f32.gmra.mxu0 %v2164
      %v2343 = vpop.f32.mrf.mxu0
      %v2344 = vadd.f32 0.0, %v2343
      %2345 = vdwg.mxu0
      %v2346 = vadd.f32 %v2075, %v2184
      %v2347 = vadd.f32 %v2076, %v2204
      %v2348 = vadd.f32 %v2077, %v2224
      %v2349 = vadd.f32 %v2078, %v2244
      %v2350 = vadd.f32 %v2079, %v2264
      %v2351 = vadd.f32 %v2080, %v2284
      %v2352 = vadd.f32 %v2081, %v2304
      %v2353 = vadd.f32 %v2082, %v2324
      %v2354 = vadd.f32 %v2083, %v2344
      %s2355 = scalar_lea.vmem %s218, 64
      %v2356 = vld [vmem:[%s2355] sm:$0xff]
      %2357 = vrot.lane.b32.xlu0 %v1775, 58
      %v2358 = vpop.permute.xlu0 %2357
      %2359 = vrot.lane.b32.xlu0 %v1776, 58
      %v2360 = vpop.permute.xlu0 %2359
      %2361 = vrot.lane.b32.xlu0 %v1777, 58
      %v2362 = vpop.permute.xlu0 %2361
      %2363 = vrot.lane.b32.xlu0 %v1778, 58
      %v2364 = vpop.permute.xlu0 %2363
      %2365 = vrot.lane.b32.xlu0 %v1779, 58
      %v2366 = vpop.permute.xlu0 %2365
      %2367 = vrot.lane.b32.xlu0 %v1780, 58
      %v2368 = vpop.permute.xlu0 %2367
      %2369 = vrot.lane.b32.xlu0 %v1781, 58
      %v2370 = vpop.permute.xlu0 %2369
      %2371 = vrot.lane.b32.xlu0 %v1782, 58
      %v2372 = vpop.permute.xlu0 %2371
      %2373 = vrot.lane.b32.xlu0 %v1783, 58
      %v2374 = vpop.permute.xlu0 %2373
      %2375 = vrot.lane.b32.xlu0 %v1784, 58
      %v2376 = vpop.permute.xlu0 %2375
      %2377 = vrot.lane.b32.xlu0 %v1785, 58
      %v2378 = vpop.permute.xlu0 %2377
      %2379 = vrot.lane.b32.xlu0 %v1786, 58
      %v2380 = vpop.permute.xlu0 %2379
      %2381 = vrot.lane.b32.xlu0 %v1787, 58
      %v2382 = vpop.permute.xlu0 %2381
      %2383 = vrot.lane.b32.xlu0 %v1788, 58
      %v2384 = vpop.permute.xlu0 %2383
      %2385 = vrot.lane.b32.xlu0 %v1789, 58
      %v2386 = vpop.permute.xlu0 %2385
      %2387 = vrot.lane.b32.xlu0 %v1790, 58
      %v2388 = vpop.permute.xlu0 %2387
      %2389 = vrot.lane.b32.xlu0 %v1791, 58
      %v2390 = vpop.permute.xlu0 %2389
      %2391 = vrot.lane.b32.xlu0 %v1792, 58
      %v2392 = vpop.permute.xlu0 %2391
      %2393 = vrot.lane.b32.xlu0 %v1793, 58
      %v2394 = vpop.permute.xlu0 %2393
      %2395 = vrot.lane.b32.xlu0 %v1794, 58
      %v2396 = vpop.permute.xlu0 %2395
      %vm2397 = vcmask 474112
      %v2398 = vsel %vm2397, %v2358, %v2360
      %v2399 = vsel %vm2397, %v2360, %v2362
      %v2400 = vsel %vm2397, %v2362, %v2364
      %v2401 = vsel %vm2397, %v2364, %v2366
      %v2402 = vsel %vm2397, %v2366, %v2368
      %v2403 = vsel %vm2397, %v2368, %v2370
      %v2404 = vsel %vm2397, %v2370, %v2372
      %v2405 = vsel %vm2397, %v2372, %v2374
      %v2406 = vsel %vm2397, %v2374, %v2376
      %v2407 = vsel %vm2397, %v2378, %v2380
      %v2408 = vsel %vm2397, %v2380, %v2382
      %v2409 = vsel %vm2397, %v2382, %v2384
      %v2410 = vsel %vm2397, %v2384, %v2386
      %v2411 = vsel %vm2397, %v2386, %v2388
      %v2412 = vsel %vm2397, %v2388, %v2390
      %v2413 = vsel %vm2397, %v2390, %v2392
      %v2414 = vsel %vm2397, %v2392, %v2394
      %v2415 = vsel %vm2397, %v2394, %v2396
      %v2435 = vsel %vm346, %v2356, 0
      %2437 = vmatpush.msra.mxu0 0.0
      %2438 = vmatpush.msra.mxu0 0.0
      %2439 = vmatpush.msra.mxu0 0.0
      %2440 = vmatpush.msra.mxu0 0.0
      %2441 = vmatpush.msra.mxu0 0.0
      %2442 = vmatpush.msra.mxu0 0.0
      %2443 = vmatpush.msra.mxu0 0.0
      %2444 = vmatpush.msra.mxu0 0.0
      %2445 = vmatpush.msra.mxu0 0.0
      %2446 = vmatpush.msra.mxu0 0.0
      %2447 = vmatpush.msra.mxu0 0.0
      %2448 = vmatpush.msra.mxu0 0.0
      %2449 = vmatpush.msra.mxu0 0.0
      %2450 = vmatpush.msra.mxu0 0.0
      %2451 = vmatpush.msra.mxu0 %v2407
      %2452 = vmatpush.msra.mxu0 %v2398
      %2453 = vmatmul.f32.gmra.mxu0 %v2435
      %v2454 = vpop.f32.mrf.mxu0
      %v2455 = vadd.f32 0.0, %v2454
      %2456 = vdwg.mxu0
      %2457 = vmatpush.msra.mxu0 0.0
      %2458 = vmatpush.msra.mxu0 0.0
      %2459 = vmatpush.msra.mxu0 0.0
      %2460 = vmatpush.msra.mxu0 0.0
      %2461 = vmatpush.msra.mxu0 0.0
      %2462 = vmatpush.msra.mxu0 0.0
      %2463 = vmatpush.msra.mxu0 0.0
      %2464 = vmatpush.msra.mxu0 0.0
      %2465 = vmatpush.msra.mxu0 0.0
      %2466 = vmatpush.msra.mxu0 0.0
      %2467 = vmatpush.msra.mxu0 0.0
      %2468 = vmatpush.msra.mxu0 0.0
      %2469 = vmatpush.msra.mxu0 0.0
      %2470 = vmatpush.msra.mxu0 0.0
      %2471 = vmatpush.msra.mxu0 %v2408
      %2472 = vmatpush.msra.mxu0 %v2399
      %2473 = vmatmul.f32.gmra.mxu0 %v2435
      %v2474 = vpop.f32.mrf.mxu0
      %v2475 = vadd.f32 0.0, %v2474
      %2476 = vdwg.mxu0
      %2477 = vmatpush.msra.mxu0 0.0
      %2478 = vmatpush.msra.mxu0 0.0
      %2479 = vmatpush.msra.mxu0 0.0
      %2480 = vmatpush.msra.mxu0 0.0
      %2481 = vmatpush.msra.mxu0 0.0
      %2482 = vmatpush.msra.mxu0 0.0
      %2483 = vmatpush.msra.mxu0 0.0
      %2484 = vmatpush.msra.mxu0 0.0
      %2485 = vmatpush.msra.mxu0 0.0
      %2486 = vmatpush.msra.mxu0 0.0
      %2487 = vmatpush.msra.mxu0 0.0
      %2488 = vmatpush.msra.mxu0 0.0
      %2489 = vmatpush.msra.mxu0 0.0
      %2490 = vmatpush.msra.mxu0 0.0
      %2491 = vmatpush.msra.mxu0 %v2409
      %2492 = vmatpush.msra.mxu0 %v2400
      %2493 = vmatmul.f32.gmra.mxu0 %v2435
      %v2494 = vpop.f32.mrf.mxu0
      %v2495 = vadd.f32 0.0, %v2494
      %2496 = vdwg.mxu0
      %2497 = vmatpush.msra.mxu0 0.0
      %2498 = vmatpush.msra.mxu0 0.0
      %2499 = vmatpush.msra.mxu0 0.0
      %2500 = vmatpush.msra.mxu0 0.0
      %2501 = vmatpush.msra.mxu0 0.0
      %2502 = vmatpush.msra.mxu0 0.0
      %2503 = vmatpush.msra.mxu0 0.0
      %2504 = vmatpush.msra.mxu0 0.0
      %2505 = vmatpush.msra.mxu0 0.0
      %2506 = vmatpush.msra.mxu0 0.0
      %2507 = vmatpush.msra.mxu0 0.0
      %2508 = vmatpush.msra.mxu0 0.0
      %2509 = vmatpush.msra.mxu0 0.0
      %2510 = vmatpush.msra.mxu0 0.0
      %2511 = vmatpush.msra.mxu0 %v2410
      %2512 = vmatpush.msra.mxu0 %v2401
      %2513 = vmatmul.f32.gmra.mxu0 %v2435
      %v2514 = vpop.f32.mrf.mxu0
      %v2515 = vadd.f32 0.0, %v2514
      %2516 = vdwg.mxu0
      %2517 = vmatpush.msra.mxu0 0.0
      %2518 = vmatpush.msra.mxu0 0.0
      %2519 = vmatpush.msra.mxu0 0.0
      %2520 = vmatpush.msra.mxu0 0.0
      %2521 = vmatpush.msra.mxu0 0.0
      %2522 = vmatpush.msra.mxu0 0.0
      %2523 = vmatpush.msra.mxu0 0.0
      %2524 = vmatpush.msra.mxu0 0.0
      %2525 = vmatpush.msra.mxu0 0.0
      %2526 = vmatpush.msra.mxu0 0.0
      %2527 = vmatpush.msra.mxu0 0.0
      %2528 = vmatpush.msra.mxu0 0.0
      %2529 = vmatpush.msra.mxu0 0.0
      %2530 = vmatpush.msra.mxu0 0.0
      %2531 = vmatpush.msra.mxu0 %v2411
      %2532 = vmatpush.msra.mxu0 %v2402
      %2533 = vmatmul.f32.gmra.mxu0 %v2435
      %v2534 = vpop.f32.mrf.mxu0
      %v2535 = vadd.f32 0.0, %v2534
      %2536 = vdwg.mxu0
      %2537 = vmatpush.msra.mxu0 0.0
      %2538 = vmatpush.msra.mxu0 0.0
      %2539 = vmatpush.msra.mxu0 0.0
      %2540 = vmatpush.msra.mxu0 0.0
      %2541 = vmatpush.msra.mxu0 0.0
      %2542 = vmatpush.msra.mxu0 0.0
      %2543 = vmatpush.msra.mxu0 0.0
      %2544 = vmatpush.msra.mxu0 0.0
      %2545 = vmatpush.msra.mxu0 0.0
      %2546 = vmatpush.msra.mxu0 0.0
      %2547 = vmatpush.msra.mxu0 0.0
      %2548 = vmatpush.msra.mxu0 0.0
      %2549 = vmatpush.msra.mxu0 0.0
      %2550 = vmatpush.msra.mxu0 0.0
      %2551 = vmatpush.msra.mxu0 %v2412
      %2552 = vmatpush.msra.mxu0 %v2403
      %2553 = vmatmul.f32.gmra.mxu0 %v2435
      %v2554 = vpop.f32.mrf.mxu0
      %v2555 = vadd.f32 0.0, %v2554
      %2556 = vdwg.mxu0
      %2557 = vmatpush.msra.mxu0 0.0
      %2558 = vmatpush.msra.mxu0 0.0
      %2559 = vmatpush.msra.mxu0 0.0
      %2560 = vmatpush.msra.mxu0 0.0
      %2561 = vmatpush.msra.mxu0 0.0
      %2562 = vmatpush.msra.mxu0 0.0
      %2563 = vmatpush.msra.mxu0 0.0
      %2564 = vmatpush.msra.mxu0 0.0
      %2565 = vmatpush.msra.mxu0 0.0
      %2566 = vmatpush.msra.mxu0 0.0
      %2567 = vmatpush.msra.mxu0 0.0
      %2568 = vmatpush.msra.mxu0 0.0
      %2569 = vmatpush.msra.mxu0 0.0
      %2570 = vmatpush.msra.mxu0 0.0
      %2571 = vmatpush.msra.mxu0 %v2413
      %2572 = vmatpush.msra.mxu0 %v2404
      %2573 = vmatmul.f32.gmra.mxu0 %v2435
      %v2574 = vpop.f32.mrf.mxu0
      %v2575 = vadd.f32 0.0, %v2574
      %2576 = vdwg.mxu0
      %2577 = vmatpush.msra.mxu0 0.0
      %2578 = vmatpush.msra.mxu0 0.0
      %2579 = vmatpush.msra.mxu0 0.0
      %2580 = vmatpush.msra.mxu0 0.0
      %2581 = vmatpush.msra.mxu0 0.0
      %2582 = vmatpush.msra.mxu0 0.0
      %2583 = vmatpush.msra.mxu0 0.0
      %2584 = vmatpush.msra.mxu0 0.0
      %2585 = vmatpush.msra.mxu0 0.0
      %2586 = vmatpush.msra.mxu0 0.0
      %2587 = vmatpush.msra.mxu0 0.0
      %2588 = vmatpush.msra.mxu0 0.0
      %2589 = vmatpush.msra.mxu0 0.0
      %2590 = vmatpush.msra.mxu0 0.0
      %2591 = vmatpush.msra.mxu0 %v2414
      %2592 = vmatpush.msra.mxu0 %v2405
      %2593 = vmatmul.f32.gmra.mxu0 %v2435
      %v2594 = vpop.f32.mrf.mxu0
      %v2595 = vadd.f32 0.0, %v2594
      %2596 = vdwg.mxu0
      %2597 = vmatpush.msra.mxu0 0.0
      %2598 = vmatpush.msra.mxu0 0.0
      %2599 = vmatpush.msra.mxu0 0.0
      %2600 = vmatpush.msra.mxu0 0.0
      %2601 = vmatpush.msra.mxu0 0.0
      %2602 = vmatpush.msra.mxu0 0.0
      %2603 = vmatpush.msra.mxu0 0.0
      %2604 = vmatpush.msra.mxu0 0.0
      %2605 = vmatpush.msra.mxu0 0.0
      %2606 = vmatpush.msra.mxu0 0.0
      %2607 = vmatpush.msra.mxu0 0.0
      %2608 = vmatpush.msra.mxu0 0.0
      %2609 = vmatpush.msra.mxu0 0.0
      %2610 = vmatpush.msra.mxu0 0.0
      %2611 = vmatpush.msra.mxu0 %v2415
      %2612 = vmatpush.msra.mxu0 %v2406
      %2613 = vmatmul.f32.gmra.mxu0 %v2435
      %v2614 = vpop.f32.mrf.mxu0
      %v2615 = vadd.f32 0.0, %v2614
      %2616 = vdwg.mxu0
      %v2617 = vadd.f32 %v2346, %v2455
      %v2618 = vadd.f32 %v2347, %v2475
      %v2619 = vadd.f32 %v2348, %v2495
      %v2620 = vadd.f32 %v2349, %v2515
      %v2621 = vadd.f32 %v2350, %v2535
      %v2622 = vadd.f32 %v2351, %v2555
      %v2623 = vadd.f32 %v2352, %v2575
      %v2624 = vadd.f32 %v2353, %v2595
      %v2625 = vadd.f32 %v2354, %v2615
      %v2626 = vld [vmem:[%s222] sm:$0xff]
      %2628 = vset.pattern.permute.xlu0 0
      %2629 = vperm.xlu0 %2628, %v2626
      %v2630 = vpop.permute.xlu0 %2629
      %v2632 = vadd.f32 %v2617, %v2630
      %v2633 = vadd.f32 %v2618, %v2630
      %v2634 = vadd.f32 %v2619, %v2630
      %v2635 = vadd.f32 %v2620, %v2630
      %v2636 = vadd.f32 %v2621, %v2630
      %v2637 = vadd.f32 %v2622, %v2630
      %v2638 = vadd.f32 %v2623, %v2630
      %v2639 = vadd.f32 %v2624, %v2630
      %v2640 = vadd.f32 %v2625, %v2630
      %v2641 = vmax.f32 %v2632, 0.0
      %v2642 = vmax.f32 %v2633, 0.0
      %v2643 = vmax.f32 %v2634, 0.0
      %v2644 = vmax.f32 %v2635, 0.0
      %v2645 = vmax.f32 %v2636, 0.0
      %v2646 = vmax.f32 %v2637, 0.0
      %v2647 = vmax.f32 %v2638, 0.0
      %v2648 = vmax.f32 %v2639, 0.0
      %v2649 = vmax.f32 %v2640, 0.0
      %2651 = vrot.lane.b32.xlu0 %v2641, 94
      %v2652 = vpop.permute.xlu0 %2651
      %2654 = vrot.lane.b32.xlu0 %v2641, 60
      %v2655 = vpop.permute.xlu0 %2654
      %2658 = vrot.lane.b32.xlu0 %v2641, 26
      %v2659 = vpop.permute.xlu0 %2658
      %2660 = vrot.lane.b32.xlu0 %v2642, 26
      %v2661 = vpop.permute.xlu0 %2660
      %vm2662 = vcmask 211968
      %v2663 = vsel %vm2662, %v2659, %v2661
      %2665 = vrot.lane.b32.xlu0 %v2642, 120
      %v2666 = vpop.permute.xlu0 %2665
      %2668 = vrot.lane.b32.xlu0 %v2642, 86
      %v2669 = vpop.permute.xlu0 %2668
      %2671 = vrot.lane.b32.xlu0 %v2642, 52
      %v2672 = vpop.permute.xlu0 %2671
      %2675 = vrot.lane.b32.xlu0 %v2642, 18
      %v2676 = vpop.permute.xlu0 %2675
      %2677 = vrot.lane.b32.xlu0 %v2643, 18
      %v2678 = vpop.permute.xlu0 %2677
      %vm2679 = vcmask 146432
      %v2680 = vsel %vm2679, %v2676, %v2678
      %2682 = vrot.lane.b32.xlu0 %v2643, 112
      %v2683 = vpop.permute.xlu0 %2682
      %2685 = vrot.lane.b32.xlu0 %v2643, 78
      %v2686 = vpop.permute.xlu0 %2685
      %2688 = vrot.lane.b32.xlu0 %v2643, 44
      %v2689 = vpop.permute.xlu0 %2688
      %2692 = vrot.lane.b32.xlu0 %v2643, 10
      %v2693 = vpop.permute.xlu0 %2692
      %2694 = vrot.lane.b32.xlu0 %v2644, 10
      %v2695 = vpop.permute.xlu0 %2694
      %vm2696 = vcmask 80896
      %v2697 = vsel %vm2696, %v2693, %v2695
      %2699 = vrot.lane.b32.xlu0 %v2644, 104
      %v2700 = vpop.permute.xlu0 %2699
      %2702 = vrot.lane.b32.xlu0 %v2644, 70
      %v2703 = vpop.permute.xlu0 %2702
      %2705 = vrot.lane.b32.xlu0 %v2644, 36
      %v2706 = vpop.permute.xlu0 %2705
      %2709 = vrot.lane.b32.xlu0 %v2644, 2
      %v2710 = vpop.permute.xlu0 %2709
      %2711 = vrot.lane.b32.xlu0 %v2645, 2
      %v2712 = vpop.permute.xlu0 %2711
      %vm2713 = vcmask 15360
      %v2714 = vsel %vm2713, %v2710, %v2712
      %2716 = vrot.lane.b32.xlu0 %v2645, 96
      %v2717 = vpop.permute.xlu0 %2716
      %2719 = vrot.lane.b32.xlu0 %v2645, 62
      %v2720 = vpop.permute.xlu0 %2719
      %2723 = vrot.lane.b32.xlu0 %v2645, 28
      %v2724 = vpop.permute.xlu0 %2723
      %2725 = vrot.lane.b32.xlu0 %v2646, 28
      %v2726 = vpop.permute.xlu0 %2725
      %vm2727 = vcmask 228352
      %v2728 = vsel %vm2727, %v2724, %v2726
      %2730 = vrot.lane.b32.xlu0 %v2646, 122
      %v2731 = vpop.permute.xlu0 %2730
      %2733 = vrot.lane.b32.xlu0 %v2646, 88
      %v2734 = vpop.permute.xlu0 %2733
      %2736 = vrot.lane.b32.xlu0 %v2646, 54
      %v2737 = vpop.permute.xlu0 %2736
      %2740 = vrot.lane.b32.xlu0 %v2646, 20
      %v2741 = vpop.permute.xlu0 %2740
      %2742 = vrot.lane.b32.xlu0 %v2647, 20
      %v2743 = vpop.permute.xlu0 %2742
      %vm2744 = vcmask 162816
      %v2745 = vsel %vm2744, %v2741, %v2743
      %2747 = vrot.lane.b32.xlu0 %v2647, 114
      %v2748 = vpop.permute.xlu0 %2747
      %2750 = vrot.lane.b32.xlu0 %v2647, 80
      %v2751 = vpop.permute.xlu0 %2750
      %2753 = vrot.lane.b32.xlu0 %v2647, 46
      %v2754 = vpop.permute.xlu0 %2753
      %2757 = vrot.lane.b32.xlu0 %v2647, 12
      %v2758 = vpop.permute.xlu0 %2757
      %2759 = vrot.lane.b32.xlu0 %v2648, 12
      %v2760 = vpop.permute.xlu0 %2759
      %vm2761 = vcmask 97280
      %v2762 = vsel %vm2761, %v2758, %v2760
      %2764 = vrot.lane.b32.xlu0 %v2648, 106
      %v2765 = vpop.permute.xlu0 %2764
      %2767 = vrot.lane.b32.xlu0 %v2648, 72
      %v2768 = vpop.permute.xlu0 %2767
      %2770 = vrot.lane.b32.xlu0 %v2648, 38
      %v2771 = vpop.permute.xlu0 %2770
      %2774 = vrot.lane.b32.xlu0 %v2648, 4
      %v2775 = vpop.permute.xlu0 %2774
      %2776 = vrot.lane.b32.xlu0 %v2649, 4
      %v2777 = vpop.permute.xlu0 %2776
      %vm2778 = vcmask 31744
      %v2779 = vsel %vm2778, %v2775, %v2777
      %2781 = vrot.lane.b32.xlu0 %v2649, 98
      %v2782 = vpop.permute.xlu0 %2781
      %v2784 = vrot.slane %v2655, 4
      %vm2785 = vcmask 1047556
      %v2786 = vsel %vm2785, %v2784, %v2641
      %v2787 = vrot.slane %v2641, 4
      %v2788 = vsel %vm2785, %v2655, %v2787
      %v2790 = vunpack.c.l.s4 1983009808
      %v2791 = vunpack.c.0.s8 %v2790
      %v2792 = vperm.slane %v2786, %v2791
      %v2794 = vunpack.c.l.s4 1983009808
      %v2795 = vunpack.c.0.s8 %v2794
      %v2796 = vperm.slane %v2788, %v2795
      %v2797 = vrot.slane %v2663, 4
      %v2798 = vsel %vm2785, %v2797, %v2652
      %v2799 = vrot.slane %v2652, 4
      %v2800 = vsel %vm2785, %v2663, %v2799
      %v2802 = vunpack.c.l.s4 1983009808
      %v2803 = vunpack.c.0.s8 %v2802
      %v2804 = vperm.slane %v2798, %v2803
      %v2806 = vunpack.c.l.s4 1983009808
      %v2807 = vunpack.c.0.s8 %v2806
      %v2808 = vperm.slane %v2800, %v2807
      %v2809 = vrot.slane %v2672, 4
      %v2810 = vsel %vm2785, %v2809, %v2666
      %v2811 = vrot.slane %v2666, 4
      %v2812 = vsel %vm2785, %v2672, %v2811
      %v2814 = vunpack.c.l.s4 1983009808
      %v2815 = vunpack.c.0.s8 %v2814
      %v2816 = vperm.slane %v2810, %v2815
      %v2818 = vunpack.c.l.s4 1983009808
      %v2819 = vunpack.c.0.s8 %v2818
      %v2820 = vperm.slane %v2812, %v2819
      %v2821 = vrot.slane %v2680, 4
      %v2822 = vsel %vm2785, %v2821, %v2669
      %v2823 = vrot.slane %v2669, 4
      %v2824 = vsel %vm2785, %v2680, %v2823
      %v2826 = vunpack.c.l.s4 1983009808
      %v2827 = vunpack.c.0.s8 %v2826
      %v2828 = vperm.slane %v2822, %v2827
      %v2830 = vunpack.c.l.s4 1983009808
      %v2831 = vunpack.c.0.s8 %v2830
      %v2832 = vperm.slane %v2824, %v2831
      %v2833 = vrot.slane %v2804, 4
      %v2834 = vsel %vm2785, %v2833, %v2792
      %v2835 = vrot.slane %v2792, 4
      %v2836 = vsel %vm2785, %v2804, %v2835
      %v2838 = vunpack.c.l.s4 1934713408
      %v2839 = vunpack.c.0.s8 %v2838
      %v2840 = vperm.slane %v2834, %v2839
      %v2842 = vunpack.c.l.s4 1934713408
      %v2843 = vunpack.c.0.s8 %v2842
      %v2844 = vperm.slane %v2836, %v2843
      %v2845 = vrot.slane %v2808, 4
      %v2846 = vsel %vm2785, %v2845, %v2796
      %v2847 = vrot.slane %v2796, 4
      %v2848 = vsel %vm2785, %v2808, %v2847
      %v2850 = vunpack.c.l.s4 1934713408
      %v2851 = vunpack.c.0.s8 %v2850
      %v2852 = vperm.slane %v2846, %v2851
      %v2854 = vunpack.c.l.s4 1934713408
      %v2855 = vunpack.c.0.s8 %v2854
      %v2856 = vperm.slane %v2848, %v2855
      %v2857 = vrot.slane %v2828, 4
      %v2858 = vsel %vm2785, %v2857, %v2816
      %v2859 = vrot.slane %v2816, 4
      %v2860 = vsel %vm2785, %v2828, %v2859
      %v2862 = vunpack.c.l.s4 1934713408
      %v2863 = vunpack.c.0.s8 %v2862
      %v2864 = vperm.slane %v2858, %v2863
      %v2866 = vunpack.c.l.s4 1934713408
      %v2867 = vunpack.c.0.s8 %v2866
      %v2868 = vperm.slane %v2860, %v2867
      %v2869 = vrot.slane %v2832, 4
      %v2870 = vsel %vm2785, %v2869, %v2820
      %v2871 = vrot.slane %v2820, 4
      %v2872 = vsel %vm2785, %v2832, %v2871
      %v2874 = vunpack.c.l.s4 1934713408
      %v2875 = vunpack.c.0.s8 %v2874
      %v2876 = vperm.slane %v2870, %v2875
      %v2878 = vunpack.c.l.s4 1934713408
      %v2879 = vunpack.c.0.s8 %v2878
      %v2880 = vperm.slane %v2872, %v2879
      %v2881 = vrot.slane %v2864, 4
      %v2882 = vsel %vm2785, %v2881, %v2840
      %v2883 = vrot.slane %v2840, 4
      %v2884 = vsel %vm2785, %v2864, %v2883
      %v2885 = vrot.slane %v2868, 4
      %v2886 = vsel %vm2785, %v2885, %v2844
      %v2887 = vrot.slane %v2844, 4
      %v2888 = vsel %vm2785, %v2868, %v2887
      %v2889 = vrot.slane %v2876, 4
      %v2890 = vsel %vm2785, %v2889, %v2852
      %v2891 = vrot.slane %v2852, 4
      %v2892 = vsel %vm2785, %v2876, %v2891
      %v2893 = vrot.slane %v2880, 4
      %v2894 = vsel %vm2785, %v2893, %v2856
      %v2895 = vrot.slane %v2856, 4
      %v2896 = vsel %vm2785, %v2880, %v2895
      %v2897 = vrot.slane %v2689, 4
      %v2898 = vsel %vm2785, %v2897, %v2683
      %v2899 = vrot.slane %v2683, 4
      %v2900 = vsel %vm2785, %v2689, %v2899
      %v2902 = vunpack.c.l.s4 1983009808
      %v2903 = vunpack.c.0.s8 %v2902
      %v2904 = vperm.slane %v2898, %v2903
      %v2906 = vunpack.c.l.s4 1983009808
      %v2907 = vunpack.c.0.s8 %v2906
      %v2908 = vperm.slane %v2900, %v2907
      %v2909 = vrot.slane %v2697, 4
      %v2910 = vsel %vm2785, %v2909, %v2686
      %v2911 = vrot.slane %v2686, 4
      %v2912 = vsel %vm2785, %v2697, %v2911
      %v2914 = vunpack.c.l.s4 1983009808
      %v2915 = vunpack.c.0.s8 %v2914
      %v2916 = vperm.slane %v2910, %v2915
      %v2918 = vunpack.c.l.s4 1983009808
      %v2919 = vunpack.c.0.s8 %v2918
      %v2920 = vperm.slane %v2912, %v2919
      %v2921 = vrot.slane %v2706, 4
      %v2922 = vsel %vm2785, %v2921, %v2700
      %v2923 = vrot.slane %v2700, 4
      %v2924 = vsel %vm2785, %v2706, %v2923
      %v2926 = vunpack.c.l.s4 1983009808
      %v2927 = vunpack.c.0.s8 %v2926
      %v2928 = vperm.slane %v2922, %v2927
      %v2930 = vunpack.c.l.s4 1983009808
      %v2931 = vunpack.c.0.s8 %v2930
      %v2932 = vperm.slane %v2924, %v2931
      %v2933 = vrot.slane %v2714, 4
      %v2934 = vsel %vm2785, %v2933, %v2703
      %v2935 = vrot.slane %v2703, 4
      %v2936 = vsel %vm2785, %v2714, %v2935
      %v2938 = vunpack.c.l.s4 1983009808
      %v2939 = vunpack.c.0.s8 %v2938
      %v2940 = vperm.slane %v2934, %v2939
      %v2942 = vunpack.c.l.s4 1983009808
      %v2943 = vunpack.c.0.s8 %v2942
      %v2944 = vperm.slane %v2936, %v2943
      %v2945 = vrot.slane %v2916, 4
      %v2946 = vsel %vm2785, %v2945, %v2904
      %v2947 = vrot.slane %v2904, 4
      %v2948 = vsel %vm2785, %v2916, %v2947
      %v2950 = vunpack.c.l.s4 1934713408
      %v2951 = vunpack.c.0.s8 %v2950
      %v2952 = vperm.slane %v2946, %v2951
      %v2954 = vunpack.c.l.s4 1934713408
      %v2955 = vunpack.c.0.s8 %v2954
      %v2956 = vperm.slane %v2948, %v2955
      %v2957 = vrot.slane %v2920, 4
      %v2958 = vsel %vm2785, %v2957, %v2908
      %v2959 = vrot.slane %v2908, 4
      %v2960 = vsel %vm2785, %v2920, %v2959
      %v2962 = vunpack.c.l.s4 1934713408
      %v2963 = vunpack.c.0.s8 %v2962
      %v2964 = vperm.slane %v2958, %v2963
      %v2966 = vunpack.c.l.s4 1934713408
      %v2967 = vunpack.c.0.s8 %v2966
      %v2968 = vperm.slane %v2960, %v2967
      %v2969 = vrot.slane %v2940, 4
      %v2970 = vsel %vm2785, %v2969, %v2928
      %v2971 = vrot.slane %v2928, 4
      %v2972 = vsel %vm2785, %v2940, %v2971
      %v2974 = vunpack.c.l.s4 1934713408
      %v2975 = vunpack.c.0.s8 %v2974
      %v2976 = vperm.slane %v2970, %v2975
      %v2978 = vunpack.c.l.s4 1934713408
      %v2979 = vunpack.c.0.s8 %v2978
      %v2980 = vperm.slane %v2972, %v2979
      %v2981 = vrot.slane %v2944, 4
      %v2982 = vsel %vm2785, %v2981, %v2932
      %v2983 = vrot.slane %v2932, 4
      %v2984 = vsel %vm2785, %v2944, %v2983
      %v2986 = vunpack.c.l.s4 1934713408
      %v2987 = vunpack.c.0.s8 %v2986
      %v2988 = vperm.slane %v2982, %v2987
      %v2990 = vunpack.c.l.s4 1934713408
      %v2991 = vunpack.c.0.s8 %v2990
      %v2992 = vperm.slane %v2984, %v2991
      %v2993 = vrot.slane %v2976, 4
      %v2994 = vsel %vm2785, %v2993, %v2952
      %v2995 = vrot.slane %v2952, 4
      %v2996 = vsel %vm2785, %v2976, %v2995
      %v2997 = vrot.slane %v2980, 4
      %v2998 = vsel %vm2785, %v2997, %v2956
      %v2999 = vrot.slane %v2956, 4
      %v3000 = vsel %vm2785, %v2980, %v2999
      %v3001 = vrot.slane %v2988, 4
      %v3002 = vsel %vm2785, %v3001, %v2964
      %v3003 = vrot.slane %v2964, 4
      %v3004 = vsel %vm2785, %v2988, %v3003
      %v3005 = vrot.slane %v2992, 4
      %v3006 = vsel %vm2785, %v3005, %v2968
      %v3007 = vrot.slane %v2968, 4
      %v3008 = vsel %vm2785, %v2992, %v3007
      %v3009 = vrot.slane %v2728, 4
      %v3010 = vsel %vm2785, %v3009, %v2717
      %v3011 = vrot.slane %v2717, 4
      %v3012 = vsel %vm2785, %v2728, %v3011
      %v3014 = vunpack.c.l.s4 1983009808
      %v3015 = vunpack.c.0.s8 %v3014
      %v3016 = vperm.slane %v3010, %v3015
      %v3018 = vunpack.c.l.s4 1983009808
      %v3019 = vunpack.c.0.s8 %v3018
      %v3020 = vperm.slane %v3012, %v3019
      %v3021 = vrot.slane %v2731, 4
      %v3022 = vsel %vm2785, %v3021, %v2720
      %v3023 = vrot.slane %v2720, 4
      %v3024 = vsel %vm2785, %v2731, %v3023
      %v3026 = vunpack.c.l.s4 1983009808
      %v3027 = vunpack.c.0.s8 %v3026
      %v3028 = vperm.slane %v3022, %v3027
      %v3030 = vunpack.c.l.s4 1983009808
      %v3031 = vunpack.c.0.s8 %v3030
      %v3032 = vperm.slane %v3024, %v3031
      %v3033 = vrot.slane %v2745, 4
      %v3034 = vsel %vm2785, %v3033, %v2734
      %v3035 = vrot.slane %v2734, 4
      %v3036 = vsel %vm2785, %v2745, %v3035
      %v3038 = vunpack.c.l.s4 1983009808
      %v3039 = vunpack.c.0.s8 %v3038
      %v3040 = vperm.slane %v3034, %v3039
      %v3042 = vunpack.c.l.s4 1983009808
      %v3043 = vunpack.c.0.s8 %v3042
      %v3044 = vperm.slane %v3036, %v3043
      %v3045 = vrot.slane %v2748, 4
      %v3046 = vsel %vm2785, %v3045, %v2737
      %v3047 = vrot.slane %v2737, 4
      %v3048 = vsel %vm2785, %v2748, %v3047
      %v3050 = vunpack.c.l.s4 1983009808
      %v3051 = vunpack.c.0.s8 %v3050
      %v3052 = vperm.slane %v3046, %v3051
      %v3054 = vunpack.c.l.s4 1983009808
      %v3055 = vunpack.c.0.s8 %v3054
      %v3056 = vperm.slane %v3048, %v3055
      %v3057 = vrot.slane %v3028, 4
      %v3058 = vsel %vm2785, %v3057, %v3016
      %v3059 = vrot.slane %v3016, 4
      %v3060 = vsel %vm2785, %v3028, %v3059
      %v3062 = vunpack.c.l.s4 1934713408
      %v3063 = vunpack.c.0.s8 %v3062
      %v3064 = vperm.slane %v3058, %v3063
      %v3066 = vunpack.c.l.s4 1934713408
      %v3067 = vunpack.c.0.s8 %v3066
      %v3068 = vperm.slane %v3060, %v3067
      %v3069 = vrot.slane %v3032, 4
      %v3070 = vsel %vm2785, %v3069, %v3020
      %v3071 = vrot.slane %v3020, 4
      %v3072 = vsel %vm2785, %v3032, %v3071
      %v3074 = vunpack.c.l.s4 1934713408
      %v3075 = vunpack.c.0.s8 %v3074
      %v3076 = vperm.slane %v3070, %v3075
      %v3078 = vunpack.c.l.s4 1934713408
      %v3079 = vunpack.c.0.s8 %v3078
      %v3080 = vperm.slane %v3072, %v3079
      %v3081 = vrot.slane %v3052, 4
      %v3082 = vsel %vm2785, %v3081, %v3040
      %v3083 = vrot.slane %v3040, 4
      %v3084 = vsel %vm2785, %v3052, %v3083
      %v3086 = vunpack.c.l.s4 1934713408
      %v3087 = vunpack.c.0.s8 %v3086
      %v3088 = vperm.slane %v3082, %v3087
      %v3090 = vunpack.c.l.s4 1934713408
      %v3091 = vunpack.c.0.s8 %v3090
      %v3092 = vperm.slane %v3084, %v3091
      %v3093 = vrot.slane %v3056, 4
      %v3094 = vsel %vm2785, %v3093, %v3044
      %v3095 = vrot.slane %v3044, 4
      %v3096 = vsel %vm2785, %v3056, %v3095
      %v3098 = vunpack.c.l.s4 1934713408
      %v3099 = vunpack.c.0.s8 %v3098
      %v3100 = vperm.slane %v3094, %v3099
      %v3102 = vunpack.c.l.s4 1934713408
      %v3103 = vunpack.c.0.s8 %v3102
      %v3104 = vperm.slane %v3096, %v3103
      %v3105 = vrot.slane %v3088, 4
      %v3106 = vsel %vm2785, %v3105, %v3064
      %v3107 = vrot.slane %v3064, 4
      %v3108 = vsel %vm2785, %v3088, %v3107
      %v3109 = vrot.slane %v3092, 4
      %v3110 = vsel %vm2785, %v3109, %v3068
      %v3111 = vrot.slane %v3068, 4
      %v3112 = vsel %vm2785, %v3092, %v3111
      %v3113 = vrot.slane %v3100, 4
      %v3114 = vsel %vm2785, %v3113, %v3076
      %v3115 = vrot.slane %v3076, 4
      %v3116 = vsel %vm2785, %v3100, %v3115
      %v3117 = vrot.slane %v3104, 4
      %v3118 = vsel %vm2785, %v3117, %v3080
      %v3119 = vrot.slane %v3080, 4
      %v3120 = vsel %vm2785, %v3104, %v3119
      %v3121 = vrot.slane %v2762, 4
      %v3122 = vsel %vm2785, %v3121, %v2751
      %v3123 = vrot.slane %v2751, 4
      %v3124 = vsel %vm2785, %v2762, %v3123
      %v3126 = vunpack.c.l.s4 1983009808
      %v3127 = vunpack.c.0.s8 %v3126
      %v3128 = vperm.slane %v3122, %v3127
      %v3130 = vunpack.c.l.s4 1983009808
      %v3131 = vunpack.c.0.s8 %v3130
      %v3132 = vperm.slane %v3124, %v3131
      %v3133 = vrot.slane %v2765, 4
      %v3134 = vsel %vm2785, %v3133, %v2754
      %v3135 = vrot.slane %v2754, 4
      %v3136 = vsel %vm2785, %v2765, %v3135
      %v3138 = vunpack.c.l.s4 1983009808
      %v3139 = vunpack.c.0.s8 %v3138
      %v3140 = vperm.slane %v3134, %v3139
      %v3142 = vunpack.c.l.s4 1983009808
      %v3143 = vunpack.c.0.s8 %v3142
      %v3144 = vperm.slane %v3136, %v3143
      %v3145 = vrot.slane %v2779, 4
      %v3146 = vsel %vm2785, %v3145, %v2768
      %v3147 = vrot.slane %v2768, 4
      %v3148 = vsel %vm2785, %v2779, %v3147
      %v3150 = vunpack.c.l.s4 1983009808
      %v3151 = vunpack.c.0.s8 %v3150
      %v3152 = vperm.slane %v3146, %v3151
      %v3154 = vunpack.c.l.s4 1983009808
      %v3155 = vunpack.c.0.s8 %v3154
      %v3156 = vperm.slane %v3148, %v3155
      %v3157 = vrot.slane %v2782, 4
      %v3158 = vsel %vm2785, %v3157, %v2771
      %v3159 = vrot.slane %v2771, 4
      %v3160 = vsel %vm2785, %v2782, %v3159
      %v3162 = vunpack.c.l.s4 1983009808
      %v3163 = vunpack.c.0.s8 %v3162
      %v3164 = vperm.slane %v3158, %v3163
      %v3166 = vunpack.c.l.s4 1983009808
      %v3167 = vunpack.c.0.s8 %v3166
      %v3168 = vperm.slane %v3160, %v3167
      %v3169 = vrot.slane %v3140, 4
      %v3170 = vsel %vm2785, %v3169, %v3128
      %v3171 = vrot.slane %v3128, 4
      %v3172 = vsel %vm2785, %v3140, %v3171
      %v3174 = vunpack.c.l.s4 1934713408
      %v3175 = vunpack.c.0.s8 %v3174
      %v3176 = vperm.slane %v3170, %v3175
      %v3178 = vunpack.c.l.s4 1934713408
      %v3179 = vunpack.c.0.s8 %v3178
      %v3180 = vperm.slane %v3172, %v3179
      %v3181 = vrot.slane %v3144, 4
      %v3182 = vsel %vm2785, %v3181, %v3132
      %v3183 = vrot.slane %v3132, 4
      %v3184 = vsel %vm2785, %v3144, %v3183
      %v3186 = vunpack.c.l.s4 1934713408
      %v3187 = vunpack.c.0.s8 %v3186
      %v3188 = vperm.slane %v3182, %v3187
      %v3190 = vunpack.c.l.s4 1934713408
      %v3191 = vunpack.c.0.s8 %v3190
      %v3192 = vperm.slane %v3184, %v3191
      %v3193 = vrot.slane %v3164, 4
      %v3194 = vsel %vm2785, %v3193, %v3152
      %v3195 = vrot.slane %v3152, 4
      %v3196 = vsel %vm2785, %v3164, %v3195
      %v3198 = vunpack.c.l.s4 1934713408
      %v3199 = vunpack.c.0.s8 %v3198
      %v3200 = vperm.slane %v3194, %v3199
      %v3202 = vunpack.c.l.s4 1934713408
      %v3203 = vunpack.c.0.s8 %v3202
      %v3204 = vperm.slane %v3196, %v3203
      %v3205 = vrot.slane %v3168, 4
      %v3206 = vsel %vm2785, %v3205, %v3156
      %v3207 = vrot.slane %v3156, 4
      %v3208 = vsel %vm2785, %v3168, %v3207
      %v3210 = vunpack.c.l.s4 1934713408
      %v3211 = vunpack.c.0.s8 %v3210
      %v3212 = vperm.slane %v3206, %v3211
      %v3214 = vunpack.c.l.s4 1934713408
      %v3215 = vunpack.c.0.s8 %v3214
      %v3216 = vperm.slane %v3208, %v3215
      %v3217 = vrot.slane %v3200, 4
      %v3218 = vsel %vm2785, %v3217, %v3176
      %v3219 = vrot.slane %v3176, 4
      %v3220 = vsel %vm2785, %v3200, %v3219
      %v3221 = vrot.slane %v3204, 4
      %v3222 = vsel %vm2785, %v3221, %v3180
      %v3223 = vrot.slane %v3180, 4
      %v3224 = vsel %vm2785, %v3204, %v3223
      %v3225 = vrot.slane %v3212, 4
      %v3226 = vsel %vm2785, %v3225, %v3188
      %v3227 = vrot.slane %v3188, 4
      %v3228 = vsel %vm2785, %v3212, %v3227
      %v3229 = vrot.slane %v3216, 4
      %v3230 = vsel %vm2785, %v3229, %v3192
      %v3231 = vrot.slane %v3192, 4
      %v3232 = vsel %vm2785, %v3216, %v3231
      %vm3233 = vcmask 261120
      %3234 = vst.msk [vmem:[%s233] sm:$0xff] %vm3233, %v2882
      %3235 = vst.msk [vmem:[%s233 + $0x8] sm:$0xff] %vm3233, %v2994
      %3236 = vst.msk [vmem:[%s233 + $0x10] sm:$0xff] %vm3233, %v3106
      %3237 = vst.msk [vmem:[%s233 + $0x18] sm:$0xff] %vm3233, %v3218
      %3238 = vst.msk [vmem:[%s233 + $0x20] sm:$0xff] %vm3233, %v2884
      %3239 = vst.msk [vmem:[%s233 + $0x28] sm:$0xff] %vm3233, %v2996
      %3240 = vst.msk [vmem:[%s233 + $0x30] sm:$0xff] %vm3233, %v3108
      %3241 = vst.msk [vmem:[%s233 + $0x38] sm:$0xff] %vm3233, %v3220
      %3242 = vst.msk [vmem:[%s233 + $0x40] sm:$0xff] %vm3233, %v2886
      %3243 = vst.msk [vmem:[%s233 + $0x48] sm:$0xff] %vm3233, %v2998
      %3244 = vst.msk [vmem:[%s233 + $0x50] sm:$0xff] %vm3233, %v3110
      %3245 = vst.msk [vmem:[%s233 + $0x58] sm:$0xff] %vm3233, %v3222
      %3246 = vst.msk [vmem:[%s233 + $0x60] sm:$0xff] %vm3233, %v2888
      %3247 = vst.msk [vmem:[%s233 + $0x68] sm:$0xff] %vm3233, %v3000
      %3248 = vst.msk [vmem:[%s233 + $0x70] sm:$0xff] %vm3233, %v3112
      %3249 = vst.msk [vmem:[%s233 + $0x78] sm:$0xff] %vm3233, %v3224
      %3250 = vst.msk [vmem:[%s233 + $0x80] sm:$0xff] %vm3233, %v2890
      %3251 = vst.msk [vmem:[%s233 + $0x88] sm:$0xff] %vm3233, %v3002
      %3252 = vst.msk [vmem:[%s233 + $0x90] sm:$0xff] %vm3233, %v3114
      %3253 = vst.msk [vmem:[%s233 + $0x98] sm:$0xff] %vm3233, %v3226
      %3254 = vst.msk [vmem:[%s233 + $0xa0] sm:$0xff] %vm3233, %v2892
      %3255 = vst.msk [vmem:[%s233 + $0xa8] sm:$0xff] %vm3233, %v3004
      %3256 = vst.msk [vmem:[%s233 + $0xb0] sm:$0xff] %vm3233, %v3116
      %3257 = vst.msk [vmem:[%s233 + $0xb8] sm:$0xff] %vm3233, %v3228
      %3258 = vst.msk [vmem:[%s233 + $0xc0] sm:$0xff] %vm3233, %v2894
      %3259 = vst.msk [vmem:[%s233 + $0xc8] sm:$0xff] %vm3233, %v3006
      %3260 = vst.msk [vmem:[%s233 + $0xd0] sm:$0xff] %vm3233, %v3118
      %3261 = vst.msk [vmem:[%s233 + $0xd8] sm:$0xff] %vm3233, %v3230
      %3262 = vst.msk [vmem:[%s233 + $0xe0] sm:$0xff] %vm3233, %v2896
      %3263 = vst.msk [vmem:[%s233 + $0xe8] sm:$0xff] %vm3233, %v3008
      %3264 = vst.msk [vmem:[%s233 + $0xf0] sm:$0xff] %vm3233, %v3120
      %3265 = vst.msk [vmem:[%s233 + $0xf8] sm:$0xff] %vm3233, %v3232
      %s3266 = sadd.s32 %s20, 6
      %s3267 = smul.u32 8, %s3266
      %p3268 = scmp.lt.s32.totalorder %s19, 1
      %s3269 = scalar_select %p3268, %s19, 1
      %p3270 = scmp.lt.s32.totalorder %s3267, 55
      %s3271 = scalar_select %p3270, %s3267, 55
      %s3272 = smul.addr %s3271, 4
      %s3273 = smul.addr %s3269, 224
      %s3274 = sadd.s32 %s3272, %s3273
      %s3275 = smul.addr %s3274, 8
      %s3276 = scalar_lea.vmem %s4, %s3275
      // Predicated region
      $region33: #{ffm_v3_forward.5} parent=31 // pred_check
        %p3277 = pneg %p127
      $region34: #{ffm_v3_forward.5} parent=31 // pred_check_branch
        %3279 = sbr.rel (%p3277) target = $region36
      $region35: #{ffm_v3_forward.5} parent=31 // pred_region
        %s3280 = sadd.s32 %s20, 6
        %s3281 = smul.u32 8, %s3280
      $region36: #{ffm_v3_forward.5} parent=31 // pred_fallthru
        _
    $region32: #{ffm_v3_forward.5} parent=5 // pred_fallthru
      _
    %p3282 = scmp.le.s32.totalorder 2, %s10
    // Predicated region
    $region37: #{ffm_v3_forward.5} parent=5 // pred_check
      %p3283 = pneg %p3282
    $region38: #{ffm_v3_forward.5} parent=5 // pred_check_branch
      %3285 = sbr.rel (%p3283) target = $region40
    $region39: #{ffm_v3_forward.5} parent=5 // pred_region
      %s3286 = ssub.s32 %s10, 2
      // Predicated region
      $region41: #{ffm_v3_forward.5} parent=39 // pred_check
        %p3287 = pneg %p133
      $region42: #{ffm_v3_forward.5} parent=39 // pred_check_branch
        %3289 = sbr.rel (%p3287) target = $region44
      $region43: #{ffm_v3_forward.5} parent=39 // pred_region
        %s3290 = sadd.s32 %s22, 6
        %s3291 = smul.u32 8, %s3290
        %p3292 = scmp.lt.s32.totalorder %s21, 1
        %s3293 = scalar_select %p3292, %s21, 1
        %p3294 = scmp.lt.s32.totalorder %s3291, 55
        %s3295 = scalar_select %p3294, %s3291, 55
        %s3296 = smul.addr %s3295, 4
        %s3297 = smul.addr %s3293, 224
        %s3298 = sadd.s32 %s3296, %s3297
        %s3299 = smul.addr %s3298, 8
        %s3300 = scalar_lea.vmem %s4, %s3299
      $region44: #{ffm_v3_forward.5} parent=39 // pred_fallthru
        _
    $region40: #{ffm_v3_forward.5} parent=5 // pred_fallthru
      _
  $region6: #{ffm_v3_forward.5} parent=0 // loop_footer
    %s14 = sadd.s32 1, %s10
  $region7: #{ffm_v3_forward.5} parent=0 // loop_footer_branch
    %9 = sbr.rel target = $region3
  $region8: #{ffm_v3_forward.5} parent=0 // loop_exit
    _

</llo_original>
